<compile_context>
chip_gen: v7x
topology: tpu7x:2x2x1
jax: 0.10.0
libtpu: 0.0.40
codegen_flags: <defaults>
</compile_context>

<pallas_src>
import functools

import jax
import jax.numpy as jnp
import numpy as np
from jax.experimental import pallas as pl
from jax.experimental.pallas import tpu as pltpu

POSITIONAL_UPPER_BOUND = 500
NUM_JOINTS = 8
IN_DIM = NUM_JOINTS * 2
D_MODEL = 128          # nn.TransformerEncoderLayer default-compatible
NHEAD = 4
NUM_LAYERS = 2
D_FF = 2048            # nn.TransformerEncoderLayer default dim_feedforward
HEAD_DIM = D_MODEL // NHEAD
LN_EPS = 1e-5
HEAD_OUT_PAD = 128     # reconstruction head padded to a lane-dense width


# ----------------------------------------------------------------------------
# Kernel helpers
# ----------------------------------------------------------------------------
def _layernorm(x, g, b, eps):
    # PyTorch-style LayerNorm (biased variance) over the last axis, f32.
    mu = jnp.mean(x, axis=-1, keepdims=True)
    var = jnp.mean((x - mu) ** 2, axis=-1, keepdims=True)
    return (x - mu) * jax.lax.rsqrt(var + eps) * g + b


# ----------------------------------------------------------------------------
# Fused whole-model kernel
# ----------------------------------------------------------------------------
def _base_t1_fused_kernel(x_ref, pos_ref, emb_w_ref, emb_b_ref, *rest,
                          num_layers, nhead, head_dim, eps):
    """Whole BaseT1 forward for one (bt, T) batch tile, fully fused."""
    layer_refs = rest[:12 * num_layers]
    head_w_ref, head_b_ref, o_ref = rest[12 * num_layers:]

    bt, T, _ = x_ref.shape
    D = emb_w_ref.shape[1]
    R = bt * T                                   # rows seen by every matmul

    # --- embedding + positional embedding ------------------------------------
    x = x_ref[...].reshape(R, x_ref.shape[2])
    h = jnp.dot(x.astype(jnp.bfloat16), emb_w_ref[...],
                preferred_element_type=jnp.float32) + emb_b_ref[...]
    h = (h.reshape(bt, T, D) + pos_ref[0]).reshape(R, D)     # f32 residual

    # --- encoder layers (post-norm, relu feed-forward) ------------------------
    for li in range(num_layers):
        (wqkv, bqkv, wo, bo, g1, b1,
         w1, bf1, w2, bf2, g2, b2) = layer_refs[12 * li:12 * (li + 1)]

        qkv = jnp.dot(h.astype(jnp.bfloat16), wqkv[...],
                      preferred_element_type=jnp.float32) + bqkv[...]
        # NOTE: 1/sqrt(head_dim) is folded into the Q columns of wqkv / bqkv.
        q = qkv[:, :D].reshape(bt, T, D)
        k = qkv[:, D:2 * D].reshape(bt, T, D)
        v = qkv[:, 2 * D:].reshape(bt, T, D)

        # Gather the per-head 32-lane slabs into one leading batch axis so the
        # whole attention is two batched dot_generals (no per-head matmul loop,
        # no per-head concat of score/PV results).
        def split_heads(t):
            return jnp.concatenate(
                [t[:, :, hh * head_dim:(hh + 1) * head_dim]
                 for hh in range(nhead)], axis=0)            # (nhead*bt, T, hd)

        qh = split_heads(q).astype(jnp.bfloat16)
        kh = split_heads(k).astype(jnp.bfloat16)
        vh = split_heads(v).astype(jnp.bfloat16)

        s = jnp.einsum("bqd,bkd->bqk", qh, kh,
                       preferred_element_type=jnp.float32)   # (nhead*bt, T, T)
        m = jnp.max(s, axis=-1, keepdims=True)
        e = jnp.exp(s - m)
        p = e * pl.reciprocal(jnp.sum(e, axis=-1, keepdims=True), approx=True)
        o = jnp.einsum("bqk,bkd->bqd", p.astype(jnp.bfloat16), vh,
                       preferred_element_type=jnp.float32)   # (nhead*bt, T, hd)
        # Re-assemble heads into a lane-dense (R, D=128) tile.
        attn = jnp.concatenate(
            [o[hh * bt:(hh + 1) * bt] for hh in range(nhead)],
            axis=-1).reshape(R, D)

        attn = jnp.dot(attn.astype(jnp.bfloat16), wo[...],
                       preferred_element_type=jnp.float32) + bo[...]
        h1 = _layernorm(h + attn, g1[...], b1[...], eps)

        # Feed-forward: the (R, D_FF) intermediate never leaves VMEM.
        f = jnp.dot(h1.astype(jnp.bfloat16), w1[...],
                    preferred_element_type=jnp.float32) + bf1[...]
        f = jnp.maximum(f, 0.0)
        f = jnp.dot(f.astype(jnp.bfloat16), w2[...],
                    preferred_element_type=jnp.float32) + bf2[...]
        h = _layernorm(h1 + f, g2[...], b2[...], eps)

    # --- reconstruction head (zero-padded to 128 lanes; wrapper slices) -------
    y = jnp.dot(h.astype(jnp.bfloat16), head_w_ref[...],
                preferred_element_type=jnp.float32) + head_b_ref[...]
    o_ref[...] = y.reshape(bt, T, y.shape[-1]).astype(o_ref.dtype)


# ----------------------------------------------------------------------------
# pallas_call wrapper
# ----------------------------------------------------------------------------
_LAYER_KEYS = ("in_proj_w", "in_proj_b", "out_proj_w", "out_proj_b",
               "ln1_g", "ln1_b", "ff1_w", "ff1_b", "ff2_w", "ff2_b",
               "ln2_g", "ln2_b")


def _pick_batch_tile(B, T, max_rows=512, min_steps=2):
    """Largest batch tile (divisor of B) with bt*T <= max_rows rows, preferring
    a grid of >= min_steps steps so both v7x TensorCores get work."""
    divisors = [d for d in range(1, B + 1) if B % d == 0]
    cands = [d for d in divisors if d * T <= max_rows] or [1]
    multi = [d for d in cands if B // d >= min_steps]
    return max(multi) if multi else max(cands)


def base_t1_forward(x, params):
    """x: (B, T, num_joints*2) -> reconstruction (B, T, num_joints*2)."""
    B, T, J2 = x.shape
    D = params["emb_w"].shape[1]
    P = params["head_w"].shape[1]                 # padded head width (128)
    bt = _pick_batch_tile(B, T)
    grid = (B // bt,)

    pos_t = jax.lax.slice_in_dim(params["pos"], 0, T, axis=1)   # (1, T, D)

    def pinned2(a):                               # full-array, constant index
        return pl.BlockSpec(a.shape, lambda i: (0, 0))

    args = [x, pos_t, params["emb_w"], params["emb_b"]]
    in_specs = [
        pl.BlockSpec((bt, T, J2), lambda i: (i, 0, 0)),
        pl.BlockSpec((1, T, D), lambda i: (0, 0, 0)),
        pinned2(params["emb_w"]),
        pinned2(params["emb_b"]),
    ]
    for lp in params["layers"]:
        for kname in _LAYER_KEYS:
            args.append(lp[kname])
            in_specs.append(pinned2(lp[kname]))
    for kname in ("head_w", "head_b"):
        args.append(params[kname])
        in_specs.append(pinned2(params[kname]))

    kernel = functools.partial(
        _base_t1_fused_kernel,
        num_layers=len(params["layers"]),
        nhead=NHEAD, head_dim=D // NHEAD, eps=LN_EPS)

    out_pad = pl.pallas_call(
        kernel,
        out_shape=jax.ShapeDtypeStruct((B, T, P), jnp.float32),
        grid=grid,
        in_specs=in_specs,
        out_specs=pl.BlockSpec((bt, T, P), lambda i: (i, 0, 0)),
        compiler_params=pltpu.CompilerParams(
            dimension_semantics=("parallel",),
            # Weights (~2.4 MiB bf16) double-buffered + activations stay well
            # under 32 MiB (v7x-safe); raise on v5e/v6e if batch tiles grow.
            vmem_limit_bytes=32 * 1024 * 1024,
        ),
    )(*args)
    return out_pad[:, :, :J2]      # drop the lane padding of the head output


# ----------------------------------------------------------------------------
# Parameters
# ----------------------------------------------------------------------------
def init_params(key):
    """Deterministic synthetic parameters (shapes match the PyTorch module).

    Matmul weights are stored bf16 (MXU operands) as (in, out) = W^T so kernels
    do x @ W.  The attention 1/sqrt(head_dim) scale is folded into the Q columns
    of in_proj_w / in_proj_b (exact reparametrization of softmax(QK^T/sqrt(d))).
    The reconstruction head weight/bias are zero-padded to 128 output lanes.
    """
    def nrm(k, shape, scale=0.02, dtype=jnp.float32):
        return (scale * jax.random.normal(k, shape, dtype=jnp.float32)).astype(dtype)

    attn_scale = 1.0 / float(HEAD_DIM) ** 0.5
    keys = jax.random.split(key, 4 + NUM_LAYERS)

    head_w = jnp.zeros((D_MODEL, HEAD_OUT_PAD), jnp.float32)
    head_w = head_w.at[:, :IN_DIM].set(nrm(keys[3], (D_MODEL, IN_DIM)))

    params = {
        "emb_w": nrm(keys[0], (IN_DIM, D_MODEL), dtype=jnp.bfloat16),
        "emb_b": nrm(keys[1], (1, D_MODEL)),
        "pos": nrm(keys[2], (1, POSITIONAL_UPPER_BOUND, D_MODEL)),
        "head_w": head_w.astype(jnp.bfloat16),
        "head_b": jnp.zeros((1, HEAD_OUT_PAD), jnp.float32),
        "layers": [],
    }
    for li in range(NUM_LAYERS):
        lk = jax.random.split(keys[4 + li], 8)
        in_w = nrm(lk[0], (D_MODEL, 3 * D_MODEL))
        in_b = nrm(lk[1], (1, 3 * D_MODEL))
        in_w = in_w.at[:, :D_MODEL].multiply(attn_scale)   # fold Q scale
        in_b = in_b.at[:, :D_MODEL].multiply(attn_scale)
        params["layers"].append({
            "in_proj_w": in_w.astype(jnp.bfloat16),
            "in_proj_b": in_b,
            "out_proj_w": nrm(lk[2], (D_MODEL, D_MODEL), dtype=jnp.bfloat16),
            "out_proj_b": jnp.zeros((1, D_MODEL), jnp.float32),
            "ln1_g": jnp.ones((1, D_MODEL), jnp.float32),
            "ln1_b": jnp.zeros((1, D_MODEL), jnp.float32),
            "ff1_w": nrm(lk[3], (D_MODEL, D_FF), dtype=jnp.bfloat16),
            "ff1_b": nrm(lk[4], (1, D_FF)),
            "ff2_w": nrm(lk[5], (D_FF, D_MODEL), dtype=jnp.bfloat16),
            "ff2_b": nrm(lk[6], (1, D_MODEL)),
            "ln2_g": jnp.ones((1, D_MODEL), jnp.float32),
            "ln2_b": jnp.zeros((1, D_MODEL), jnp.float32),
        })
    return params


# ----------------------------------------------------------------------------
# Pure-JAX f32 reference (for correctness check)
# ----------------------------------------------------------------------------
def _layernorm_ref(x, g, b, eps=LN_EPS):
    mu = jnp.mean(x, axis=-1, keepdims=True)
    var = jnp.mean((x - mu) ** 2, axis=-1, keepdims=True)
    return (x - mu) * jax.lax.rsqrt(var + eps) * g + b


def base_t1_reference(x, params):
    B, T, _ = x.shape
    f32 = lambda a: a.astype(jnp.float32)
    h = x @ f32(params["emb_w"]) + params["emb_b"] + params["pos"][:, :T, :]
    for lp in params["layers"]:
        qkv = h @ f32(lp["in_proj_w"]) + lp["in_proj_b"]
        q, k, v = jnp.split(qkv, 3, axis=-1)

        def heads(t):
            return jnp.transpose(t.reshape(B, T, NHEAD, HEAD_DIM), (0, 2, 1, 3))

        qh, kh, vh = heads(q), heads(k), heads(v)
        # NOTE: 1/sqrt(head_dim) already folded into the Q weights/bias.
        s = jnp.einsum("bhtd,bhsd->bhts", qh, kh)
        p = jax.nn.softmax(s, axis=-1)
        a = jnp.einsum("bhts,bhsd->bhtd", p, vh)
        a = jnp.transpose(a, (0, 2, 1, 3)).reshape(B, T, D_MODEL)
        a = a @ f32(lp["out_proj_w"]) + lp["out_proj_b"]
        h = _layernorm_ref(h + a, lp["ln1_g"], lp["ln1_b"])
        f = jnp.maximum(h @ f32(lp["ff1_w"]) + lp["ff1_b"], 0.0)
        f = f @ f32(lp["ff2_w"]) + lp["ff2_b"]
        h = _layernorm_ref(h + f, lp["ln2_g"], lp["ln2_b"])
    y = h @ f32(params["head_w"]) + params["head_b"]
    return y[:, :, :IN_DIM]


if __name__ == "__main__":
    key = jax.random.PRNGKey(0)
    pkey, xkey = jax.random.split(key)
    params = init_params(pkey)

    B, T = 2, 8
    x = jax.random.normal(xkey, (B, T, IN_DIM), dtype=jnp.float32)

    fwd = jax.jit(base_t1_forward)
    out = fwd(x, params)
    jax.block_until_ready(out)

    assert out.shape == (B, T, IN_DIM)
    assert bool(jnp.all(jnp.isfinite(out)))

    # Correctness vs. pure-JAX f32 reference (loose tol: bf16 MXU operands,
    # approximate softmax reciprocal).
    ref = base_t1_reference(x, params)
    np.testing.assert_allclose(np.asarray(out), np.asarray(ref),
                               atol=5e-2, rtol=5e-2)

    print("KERNEL_OK")
</pallas_src>

<mosaic_0001>
module attributes {stable_mosaic.version = 11 : i64} {
  func.func @_base_t1_fused_kernel(%arg0: i32, %arg1: memref<1x8x16xf32, #tpu.memory_space<vmem>>, %arg2: memref<1x8x128xf32, #tpu.memory_space<vmem>>, %arg3: memref<16x128xbf16, #tpu.memory_space<vmem>>, %arg4: memref<1x128xf32, #tpu.memory_space<vmem>>, %arg5: memref<128x384xbf16, #tpu.memory_space<vmem>>, %arg6: memref<1x384xf32, #tpu.memory_space<vmem>>, %arg7: memref<128x128xbf16, #tpu.memory_space<vmem>>, %arg8: memref<1x128xf32, #tpu.memory_space<vmem>>, %arg9: memref<1x128xf32, #tpu.memory_space<vmem>>, %arg10: memref<1x128xf32, #tpu.memory_space<vmem>>, %arg11: memref<128x2048xbf16, #tpu.memory_space<vmem>>, %arg12: memref<1x2048xf32, #tpu.memory_space<vmem>>, %arg13: memref<2048x128xbf16, #tpu.memory_space<vmem>>, %arg14: memref<1x128xf32, #tpu.memory_space<vmem>>, %arg15: memref<1x128xf32, #tpu.memory_space<vmem>>, %arg16: memref<1x128xf32, #tpu.memory_space<vmem>>, %arg17: memref<128x384xbf16, #tpu.memory_space<vmem>>, %arg18: memref<1x384xf32, #tpu.memory_space<vmem>>, %arg19: memref<128x128xbf16, #tpu.memory_space<vmem>>, %arg20: memref<1x128xf32, #tpu.memory_space<vmem>>, %arg21: memref<1x128xf32, #tpu.memory_space<vmem>>, %arg22: memref<1x128xf32, #tpu.memory_space<vmem>>, %arg23: memref<128x2048xbf16, #tpu.memory_space<vmem>>, %arg24: memref<1x2048xf32, #tpu.memory_space<vmem>>, %arg25: memref<2048x128xbf16, #tpu.memory_space<vmem>>, %arg26: memref<1x128xf32, #tpu.memory_space<vmem>>, %arg27: memref<1x128xf32, #tpu.memory_space<vmem>>, %arg28: memref<1x128xf32, #tpu.memory_space<vmem>>, %arg29: memref<128x128xbf16, #tpu.memory_space<vmem>>, %arg30: memref<1x128xf32, #tpu.memory_space<vmem>>, %arg31: memref<1x8x128xf32, #tpu.memory_space<vmem>>) attributes {dimension_semantics = [#tpu.dimension_semantics<parallel>], iteration_bounds = array<i64: 2>, scalar_prefetch = 0 : i64, scratch_operands = 0 : i64, tpu.core_type = #tpu.core_type<tc>, window_params = [{transform_indices = @transform_0, window_bounds = array<i64: 1, 8, 16>}, {pipeline_mode = #tpu.pipeline_mode<synchronous>, transform_indices = @transform_1, window_bounds = array<i64: 1, 8, 128>}, {pipeline_mode = #tpu.pipeline_mode<synchronous>, transform_indices = @transform_2, window_bounds = array<i64: 16, 128>}, {pipeline_mode = #tpu.pipeline_mode<synchronous>, transform_indices = @transform_3, window_bounds = array<i64: 1, 128>}, {pipeline_mode = #tpu.pipeline_mode<synchronous>, transform_indices = @transform_4, window_bounds = array<i64: 128, 384>}, {pipeline_mode = #tpu.pipeline_mode<synchronous>, transform_indices = @transform_5, window_bounds = array<i64: 1, 384>}, {pipeline_mode = #tpu.pipeline_mode<synchronous>, transform_indices = @transform_6, window_bounds = array<i64: 128, 128>}, {pipeline_mode = #tpu.pipeline_mode<synchronous>, transform_indices = @transform_7, window_bounds = array<i64: 1, 128>}, {pipeline_mode = #tpu.pipeline_mode<synchronous>, transform_indices = @transform_8, window_bounds = array<i64: 1, 128>}, {pipeline_mode = #tpu.pipeline_mode<synchronous>, transform_indices = @transform_9, window_bounds = array<i64: 1, 128>}, {pipeline_mode = #tpu.pipeline_mode<synchronous>, transform_indices = @transform_10, window_bounds = array<i64: 128, 2048>}, {pipeline_mode = #tpu.pipeline_mode<synchronous>, transform_indices = @transform_11, window_bounds = array<i64: 1, 2048>}, {pipeline_mode = #tpu.pipeline_mode<synchronous>, transform_indices = @transform_12, window_bounds = array<i64: 2048, 128>}, {pipeline_mode = #tpu.pipeline_mode<synchronous>, transform_indices = @transform_13, window_bounds = array<i64: 1, 128>}, {pipeline_mode = #tpu.pipeline_mode<synchronous>, transform_indices = @transform_14, window_bounds = array<i64: 1, 128>}, {pipeline_mode = #tpu.pipeline_mode<synchronous>, transform_indices = @transform_15, window_bounds = array<i64: 1, 128>}, {pipeline_mode = #tpu.pipeline_mode<synchronous>, transform_indices = @transform_16, window_bounds = array<i64: 128, 384>}, {pipeline_mode = #tpu.pipeline_mode<synchronous>, transform_indices = @transform_17, window_bounds = array<i64: 1, 384>}, {pipeline_mode = #tpu.pipeline_mode<synchronous>, transform_indices = @transform_18, window_bounds = array<i64: 128, 128>}, {pipeline_mode = #tpu.pipeline_mode<synchronous>, transform_indices = @transform_19, window_bounds = array<i64: 1, 128>}, {pipeline_mode = #tpu.pipeline_mode<synchronous>, transform_indices = @transform_20, window_bounds = array<i64: 1, 128>}, {pipeline_mode = #tpu.pipeline_mode<synchronous>, transform_indices = @transform_21, window_bounds = array<i64: 1, 128>}, {pipeline_mode = #tpu.pipeline_mode<synchronous>, transform_indices = @transform_22, window_bounds = array<i64: 128, 2048>}, {pipeline_mode = #tpu.pipeline_mode<synchronous>, transform_indices = @transform_23, window_bounds = array<i64: 1, 2048>}, {pipeline_mode = #tpu.pipeline_mode<synchronous>, transform_indices = @transform_24, window_bounds = array<i64: 2048, 128>}, {pipeline_mode = #tpu.pipeline_mode<synchronous>, transform_indices = @transform_25, window_bounds = array<i64: 1, 128>}, {pipeline_mode = #tpu.pipeline_mode<synchronous>, transform_indices = @transform_26, window_bounds = array<i64: 1, 128>}, {pipeline_mode = #tpu.pipeline_mode<synchronous>, transform_indices = @transform_27, window_bounds = array<i64: 1, 128>}, {pipeline_mode = #tpu.pipeline_mode<synchronous>, transform_indices = @transform_28, window_bounds = array<i64: 128, 128>}, {pipeline_mode = #tpu.pipeline_mode<synchronous>, transform_indices = @transform_29, window_bounds = array<i64: 1, 128>}, {transform_indices = @transform_30, window_bounds = array<i64: 1, 8, 128>}]} {
    %c0 = arith.constant 0 : index
    %c0_0 = arith.constant 0 : index
    %c0_1 = arith.constant 0 : index
    %0 = vector.load %arg1[%c0, %c0_0, %c0_1] : memref<1x8x16xf32, #tpu.memory_space<vmem>>, vector<1x8x16xf32>
    %1 = vector.shape_cast %0 : vector<1x8x16xf32> to vector<8x16xf32>
    %2 = arith.truncf %1 : vector<8x16xf32> to vector<8x16xbf16>
    %c0_2 = arith.constant 0 : index
    %c0_3 = arith.constant 0 : index
    %3 = vector.load %arg3[%c0_2, %c0_3] : memref<16x128xbf16, #tpu.memory_space<vmem>>, vector<16x128xbf16>
    %cst = arith.constant dense<0.000000e+00> : vector<8x128xf32>
    %4 = tpu.matmul %2, %3, %cst {dimension_numbers = #tpu.dot_dimension_numbers<[1], [0], [0], [1], [0, 0, 1, 1], [], []>} : vector<8x16xbf16>, vector<16x128xbf16>, vector<8x128xf32> -> vector<8x128xf32>
    %c0_4 = arith.constant 0 : index
    %c0_5 = arith.constant 0 : index
    %5 = vector.load %arg4[%c0_4, %c0_5] : memref<1x128xf32, #tpu.memory_space<vmem>>, vector<1x128xf32>
    %6 = vector.broadcast %5 : vector<1x128xf32> to vector<8x128xf32>
    %7 = arith.addf %4, %6 : vector<8x128xf32>
    %8 = vector.shape_cast %7 : vector<8x128xf32> to vector<1x8x128xf32>
    %c0_6 = arith.constant 0 : index
    %c0_7 = arith.constant 0 : index
    %c0_8 = arith.constant 0 : index
    %9 = vector.load %arg2[%c0_6, %c0_7, %c0_8] : memref<1x8x128xf32, #tpu.memory_space<vmem>>, vector<1x8x128xf32>
    %10 = vector.shape_cast %9 : vector<1x8x128xf32> to vector<8x128xf32>
    %11 = vector.shape_cast %10 : vector<8x128xf32> to vector<1x8x128xf32>
    %12 = arith.addf %8, %11 : vector<1x8x128xf32>
    %13 = vector.shape_cast %12 : vector<1x8x128xf32> to vector<8x128xf32>
    %14 = arith.truncf %13 : vector<8x128xf32> to vector<8x128xbf16>
    %c0_9 = arith.constant 0 : index
    %c0_10 = arith.constant 0 : index
    %15 = vector.load %arg5[%c0_9, %c0_10] : memref<128x384xbf16, #tpu.memory_space<vmem>>, vector<128x384xbf16>
    %cst_11 = arith.constant dense<0.000000e+00> : vector<8x384xf32>
    %16 = tpu.matmul %14, %15, %cst_11 {dimension_numbers = #tpu.dot_dimension_numbers<[1], [0], [0], [1], [0, 0, 1, 1], [], []>} : vector<8x128xbf16>, vector<128x384xbf16>, vector<8x384xf32> -> vector<8x384xf32>
    %c0_12 = arith.constant 0 : index
    %c0_13 = arith.constant 0 : index
    %17 = vector.load %arg6[%c0_12, %c0_13] : memref<1x384xf32, #tpu.memory_space<vmem>>, vector<1x384xf32>
    %18 = vector.broadcast %17 : vector<1x384xf32> to vector<8x384xf32>
    %19 = arith.addf %16, %18 : vector<8x384xf32>
    %20 = vector.extract_strided_slice %19 {offsets = [0, 0], sizes = [8, 128], strides = [1, 1]} : vector<8x384xf32> to vector<8x128xf32>
    %21 = vector.shape_cast %20 : vector<8x128xf32> to vector<1x8x128xf32>
    %22 = vector.extract_strided_slice %19 {offsets = [0, 128], sizes = [8, 128], strides = [1, 1]} : vector<8x384xf32> to vector<8x128xf32>
    %23 = vector.shape_cast %22 : vector<8x128xf32> to vector<1x8x128xf32>
    %24 = vector.extract_strided_slice %19 {offsets = [0, 256], sizes = [8, 128], strides = [1, 1]} : vector<8x384xf32> to vector<8x128xf32>
    %25 = vector.shape_cast %24 : vector<8x128xf32> to vector<1x8x128xf32>
    %26 = vector.extract_strided_slice %21 {offsets = [0, 0, 0], sizes = [1, 8, 32], strides = [1, 1, 1]} : vector<1x8x128xf32> to vector<1x8x32xf32>
    %27 = vector.extract_strided_slice %21 {offsets = [0, 0, 32], sizes = [1, 8, 32], strides = [1, 1, 1]} : vector<1x8x128xf32> to vector<1x8x32xf32>
    %28 = vector.extract_strided_slice %21 {offsets = [0, 0, 64], sizes = [1, 8, 32], strides = [1, 1, 1]} : vector<1x8x128xf32> to vector<1x8x32xf32>
    %29 = vector.extract_strided_slice %21 {offsets = [0, 0, 96], sizes = [1, 8, 32], strides = [1, 1, 1]} : vector<1x8x128xf32> to vector<1x8x32xf32>
    %30 = tpu.concatenate %26, %27, %28, %29 in 0 : vector<1x8x32xf32>, vector<1x8x32xf32>, vector<1x8x32xf32>, vector<1x8x32xf32> -> vector<4x8x32xf32>
    %31 = arith.truncf %30 : vector<4x8x32xf32> to vector<4x8x32xbf16>
    %32 = vector.extract_strided_slice %23 {offsets = [0, 0, 0], sizes = [1, 8, 32], strides = [1, 1, 1]} : vector<1x8x128xf32> to vector<1x8x32xf32>
    %33 = vector.extract_strided_slice %23 {offsets = [0, 0, 32], sizes = [1, 8, 32], strides = [1, 1, 1]} : vector<1x8x128xf32> to vector<1x8x32xf32>
    %34 = vector.extract_strided_slice %23 {offsets = [0, 0, 64], sizes = [1, 8, 32], strides = [1, 1, 1]} : vector<1x8x128xf32> to vector<1x8x32xf32>
    %35 = vector.extract_strided_slice %23 {offsets = [0, 0, 96], sizes = [1, 8, 32], strides = [1, 1, 1]} : vector<1x8x128xf32> to vector<1x8x32xf32>
    %36 = tpu.concatenate %32, %33, %34, %35 in 0 : vector<1x8x32xf32>, vector<1x8x32xf32>, vector<1x8x32xf32>, vector<1x8x32xf32> -> vector<4x8x32xf32>
    %37 = arith.truncf %36 : vector<4x8x32xf32> to vector<4x8x32xbf16>
    %38 = vector.extract_strided_slice %25 {offsets = [0, 0, 0], sizes = [1, 8, 32], strides = [1, 1, 1]} : vector<1x8x128xf32> to vector<1x8x32xf32>
    %39 = vector.extract_strided_slice %25 {offsets = [0, 0, 32], sizes = [1, 8, 32], strides = [1, 1, 1]} : vector<1x8x128xf32> to vector<1x8x32xf32>
    %40 = vector.extract_strided_slice %25 {offsets = [0, 0, 64], sizes = [1, 8, 32], strides = [1, 1, 1]} : vector<1x8x128xf32> to vector<1x8x32xf32>
    %41 = vector.extract_strided_slice %25 {offsets = [0, 0, 96], sizes = [1, 8, 32], strides = [1, 1, 1]} : vector<1x8x128xf32> to vector<1x8x32xf32>
    %42 = tpu.concatenate %38, %39, %40, %41 in 0 : vector<1x8x32xf32>, vector<1x8x32xf32>, vector<1x8x32xf32>, vector<1x8x32xf32> -> vector<4x8x32xf32>
    %43 = arith.truncf %42 : vector<4x8x32xf32> to vector<4x8x32xbf16>
    "tpu.trace_start"() <{level = 10 : i32, message = "bqd,bkd->bqk"}> : () -> ()
    %cst_14 = arith.constant dense<0.000000e+00> : vector<4x8x8xf32>
    %44 = tpu.matmul %31, %37, %cst_14 {dimension_numbers = #tpu.dot_dimension_numbers<[2], [2], [1], [1], [0, 0, 0, 1, 1, 1], [0], [0]>} : vector<4x8x32xbf16>, vector<4x8x32xbf16>, vector<4x8x8xf32> -> vector<4x8x8xf32>
    "tpu.trace_stop"() : () -> ()
    %cst_15 = arith.constant dense<0xFF800000> : vector<4x8xf32>
    %45 = vector.multi_reduction <maximumf>, %44, %cst_15 [2] : vector<4x8x8xf32> to vector<4x8xf32>
    %46 = vector.shape_cast %45 : vector<4x8xf32> to vector<4x8x1xf32>
    %47 = vector.broadcast %46 : vector<4x8x1xf32> to vector<4x8x8xf32>
    %48 = arith.subf %44, %47 : vector<4x8x8xf32>
    %49 = math.exp %48 : vector<4x8x8xf32>
    %cst_16 = arith.constant dense<0.000000e+00> : vector<4x8xf32>
    %50 = vector.multi_reduction <add>, %49, %cst_16 [2] : vector<4x8x8xf32> to vector<4x8xf32>
    %51 = vector.shape_cast %50 : vector<4x8xf32> to vector<4x8x1xf32>
    %52 = tpu.reciprocal %51 {approx = true} : vector<4x8x1xf32> -> vector<4x8x1xf32>
    %53 = vector.broadcast %52 : vector<4x8x1xf32> to vector<4x8x8xf32>
    %54 = arith.mulf %49, %53 : vector<4x8x8xf32>
    %55 = arith.truncf %54 : vector<4x8x8xf32> to vector<4x8x8xbf16>
    "tpu.trace_start"() <{level = 10 : i32, message = "bqk,bkd->bqd"}> : () -> ()
    %cst_17 = arith.constant dense<0.000000e+00> : vector<4x8x32xf32>
    %56 = tpu.matmul %55, %43, %cst_17 {dimension_numbers = #tpu.dot_dimension_numbers<[2], [1], [1], [2], [0, 0, 0, 1, 1, 2], [0], [0]>} : vector<4x8x8xbf16>, vector<4x8x32xbf16>, vector<4x8x32xf32> -> vector<4x8x32xf32>
    "tpu.trace_stop"() : () -> ()
    %57 = vector.extract_strided_slice %56 {offsets = [0, 0, 0], sizes = [1, 8, 32], strides = [1, 1, 1]} : vector<4x8x32xf32> to vector<1x8x32xf32>
    %58 = vector.extract_strided_slice %56 {offsets = [1, 0, 0], sizes = [1, 8, 32], strides = [1, 1, 1]} : vector<4x8x32xf32> to vector<1x8x32xf32>
    %59 = vector.extract_strided_slice %56 {offsets = [2, 0, 0], sizes = [1, 8, 32], strides = [1, 1, 1]} : vector<4x8x32xf32> to vector<1x8x32xf32>
    %60 = vector.extract_strided_slice %56 {offsets = [3, 0, 0], sizes = [1, 8, 32], strides = [1, 1, 1]} : vector<4x8x32xf32> to vector<1x8x32xf32>
    %61 = tpu.concatenate %57, %58, %59, %60 in 2 : vector<1x8x32xf32>, vector<1x8x32xf32>, vector<1x8x32xf32>, vector<1x8x32xf32> -> vector<1x8x128xf32>
    %62 = vector.shape_cast %61 : vector<1x8x128xf32> to vector<8x128xf32>
    %63 = arith.truncf %62 : vector<8x128xf32> to vector<8x128xbf16>
    %c0_18 = arith.constant 0 : index
    %c0_19 = arith.constant 0 : index
    %64 = vector.load %arg7[%c0_18, %c0_19] : memref<128x128xbf16, #tpu.memory_space<vmem>>, vector<128x128xbf16>
    %cst_20 = arith.constant dense<0.000000e+00> : vector<8x128xf32>
    %65 = tpu.matmul %63, %64, %cst_20 {dimension_numbers = #tpu.dot_dimension_numbers<[1], [0], [0], [1], [0, 0, 1, 1], [], []>} : vector<8x128xbf16>, vector<128x128xbf16>, vector<8x128xf32> -> vector<8x128xf32>
    %c0_21 = arith.constant 0 : index
    %c0_22 = arith.constant 0 : index
    %66 = vector.load %arg8[%c0_21, %c0_22] : memref<1x128xf32, #tpu.memory_space<vmem>>, vector<1x128xf32>
    %67 = vector.broadcast %66 : vector<1x128xf32> to vector<8x128xf32>
    %68 = arith.addf %65, %67 : vector<8x128xf32>
    %69 = arith.addf %13, %68 : vector<8x128xf32>
    %c0_23 = arith.constant 0 : index
    %c0_24 = arith.constant 0 : index
    %70 = vector.load %arg9[%c0_23, %c0_24] : memref<1x128xf32, #tpu.memory_space<vmem>>, vector<1x128xf32>
    %c0_25 = arith.constant 0 : index
    %c0_26 = arith.constant 0 : index
    %71 = vector.load %arg10[%c0_25, %c0_26] : memref<1x128xf32, #tpu.memory_space<vmem>>, vector<1x128xf32>
    %cst_27 = arith.constant dense<0.000000e+00> : vector<8xf32>
    %72 = vector.multi_reduction <add>, %69, %cst_27 [1] : vector<8x128xf32> to vector<8xf32>
    %73 = vector.shape_cast %72 : vector<8xf32> to vector<8x1xf32>
    %cst_28 = arith.constant 1.280000e+02 : f32
    %74 = vector.broadcast %cst_28 : f32 to vector<8x1xf32>
    %75 = arith.divf %73, %74 : vector<8x1xf32>
    %76 = vector.broadcast %75 : vector<8x1xf32> to vector<8x128xf32>
    %77 = arith.subf %69, %76 : vector<8x128xf32>
    %78 = arith.mulf %77, %77 : vector<8x128xf32>
    %cst_29 = arith.constant dense<0.000000e+00> : vector<8xf32>
    %79 = vector.multi_reduction <add>, %78, %cst_29 [1] : vector<8x128xf32> to vector<8xf32>
    %80 = vector.shape_cast %79 : vector<8xf32> to vector<8x1xf32>
    %cst_30 = arith.constant 1.280000e+02 : f32
    %81 = vector.broadcast %cst_30 : f32 to vector<8x1xf32>
    %82 = arith.divf %80, %81 : vector<8x1xf32>
    %83 = vector.broadcast %75 : vector<8x1xf32> to vector<8x128xf32>
    %84 = arith.subf %69, %83 : vector<8x128xf32>
    %cst_31 = arith.constant 9.99999974E-6 : f32
    %85 = vector.broadcast %cst_31 : f32 to vector<8x1xf32>
    %86 = arith.addf %82, %85 : vector<8x1xf32>
    %87 = math.rsqrt %86 : vector<8x1xf32>
    %88 = vector.broadcast %87 : vector<8x1xf32> to vector<8x128xf32>
    %89 = arith.mulf %84, %88 : vector<8x128xf32>
    %90 = vector.broadcast %70 : vector<1x128xf32> to vector<8x128xf32>
    %91 = arith.mulf %89, %90 : vector<8x128xf32>
    %92 = vector.broadcast %71 : vector<1x128xf32> to vector<8x128xf32>
    %93 = arith.addf %91, %92 : vector<8x128xf32>
    %94 = arith.truncf %93 : vector<8x128xf32> to vector<8x128xbf16>
    %c0_32 = arith.constant 0 : index
    %c0_33 = arith.constant 0 : index
    %95 = vector.load %arg11[%c0_32, %c0_33] : memref<128x2048xbf16, #tpu.memory_space<vmem>>, vector<128x2048xbf16>
    %cst_34 = arith.constant dense<0.000000e+00> : vector<8x2048xf32>
    %96 = tpu.matmul %94, %95, %cst_34 {dimension_numbers = #tpu.dot_dimension_numbers<[1], [0], [0], [1], [0, 0, 1, 1], [], []>} : vector<8x128xbf16>, vector<128x2048xbf16>, vector<8x2048xf32> -> vector<8x2048xf32>
    %c0_35 = arith.constant 0 : index
    %c0_36 = arith.constant 0 : index
    %97 = vector.load %arg12[%c0_35, %c0_36] : memref<1x2048xf32, #tpu.memory_space<vmem>>, vector<1x2048xf32>
    %98 = vector.broadcast %97 : vector<1x2048xf32> to vector<8x2048xf32>
    %99 = arith.addf %96, %98 : vector<8x2048xf32>
    %cst_37 = arith.constant 0.000000e+00 : f32
    %100 = vector.broadcast %cst_37 : f32 to vector<8x2048xf32>
    %101 = arith.maximumf %99, %100 : vector<8x2048xf32>
    %102 = arith.truncf %101 : vector<8x2048xf32> to vector<8x2048xbf16>
    %c0_38 = arith.constant 0 : index
    %c0_39 = arith.constant 0 : index
    %103 = vector.load %arg13[%c0_38, %c0_39] : memref<2048x128xbf16, #tpu.memory_space<vmem>>, vector<2048x128xbf16>
    %cst_40 = arith.constant dense<0.000000e+00> : vector<8x128xf32>
    %104 = tpu.matmul %102, %103, %cst_40 {dimension_numbers = #tpu.dot_dimension_numbers<[1], [0], [0], [1], [0, 0, 1, 1], [], []>} : vector<8x2048xbf16>, vector<2048x128xbf16>, vector<8x128xf32> -> vector<8x128xf32>
    %c0_41 = arith.constant 0 : index
    %c0_42 = arith.constant 0 : index
    %105 = vector.load %arg14[%c0_41, %c0_42] : memref<1x128xf32, #tpu.memory_space<vmem>>, vector<1x128xf32>
    %106 = vector.broadcast %105 : vector<1x128xf32> to vector<8x128xf32>
    %107 = arith.addf %104, %106 : vector<8x128xf32>
    %108 = arith.addf %93, %107 : vector<8x128xf32>
    %c0_43 = arith.constant 0 : index
    %c0_44 = arith.constant 0 : index
    %109 = vector.load %arg15[%c0_43, %c0_44] : memref<1x128xf32, #tpu.memory_space<vmem>>, vector<1x128xf32>
    %c0_45 = arith.constant 0 : index
    %c0_46 = arith.constant 0 : index
    %110 = vector.load %arg16[%c0_45, %c0_46] : memref<1x128xf32, #tpu.memory_space<vmem>>, vector<1x128xf32>
    %cst_47 = arith.constant dense<0.000000e+00> : vector<8xf32>
    %111 = vector.multi_reduction <add>, %108, %cst_47 [1] : vector<8x128xf32> to vector<8xf32>
    %112 = vector.shape_cast %111 : vector<8xf32> to vector<8x1xf32>
    %cst_48 = arith.constant 1.280000e+02 : f32
    %113 = vector.broadcast %cst_48 : f32 to vector<8x1xf32>
    %114 = arith.divf %112, %113 : vector<8x1xf32>
    %115 = vector.broadcast %114 : vector<8x1xf32> to vector<8x128xf32>
    %116 = arith.subf %108, %115 : vector<8x128xf32>
    %117 = arith.mulf %116, %116 : vector<8x128xf32>
    %cst_49 = arith.constant dense<0.000000e+00> : vector<8xf32>
    %118 = vector.multi_reduction <add>, %117, %cst_49 [1] : vector<8x128xf32> to vector<8xf32>
    %119 = vector.shape_cast %118 : vector<8xf32> to vector<8x1xf32>
    %cst_50 = arith.constant 1.280000e+02 : f32
    %120 = vector.broadcast %cst_50 : f32 to vector<8x1xf32>
    %121 = arith.divf %119, %120 : vector<8x1xf32>
    %122 = vector.broadcast %114 : vector<8x1xf32> to vector<8x128xf32>
    %123 = arith.subf %108, %122 : vector<8x128xf32>
    %cst_51 = arith.constant 9.99999974E-6 : f32
    %124 = vector.broadcast %cst_51 : f32 to vector<8x1xf32>
    %125 = arith.addf %121, %124 : vector<8x1xf32>
    %126 = math.rsqrt %125 : vector<8x1xf32>
    %127 = vector.broadcast %126 : vector<8x1xf32> to vector<8x128xf32>
    %128 = arith.mulf %123, %127 : vector<8x128xf32>
    %129 = vector.broadcast %109 : vector<1x128xf32> to vector<8x128xf32>
    %130 = arith.mulf %128, %129 : vector<8x128xf32>
    %131 = vector.broadcast %110 : vector<1x128xf32> to vector<8x128xf32>
    %132 = arith.addf %130, %131 : vector<8x128xf32>
    %133 = arith.truncf %132 : vector<8x128xf32> to vector<8x128xbf16>
    %c0_52 = arith.constant 0 : index
    %c0_53 = arith.constant 0 : index
    %134 = vector.load %arg17[%c0_52, %c0_53] : memref<128x384xbf16, #tpu.memory_space<vmem>>, vector<128x384xbf16>
    %cst_54 = arith.constant dense<0.000000e+00> : vector<8x384xf32>
    %135 = tpu.matmul %133, %134, %cst_54 {dimension_numbers = #tpu.dot_dimension_numbers<[1], [0], [0], [1], [0, 0, 1, 1], [], []>} : vector<8x128xbf16>, vector<128x384xbf16>, vector<8x384xf32> -> vector<8x384xf32>
    %c0_55 = arith.constant 0 : index
    %c0_56 = arith.constant 0 : index
    %136 = vector.load %arg18[%c0_55, %c0_56] : memref<1x384xf32, #tpu.memory_space<vmem>>, vector<1x384xf32>
    %137 = vector.broadcast %136 : vector<1x384xf32> to vector<8x384xf32>
    %138 = arith.addf %135, %137 : vector<8x384xf32>
    %139 = vector.extract_strided_slice %138 {offsets = [0, 0], sizes = [8, 128], strides = [1, 1]} : vector<8x384xf32> to vector<8x128xf32>
    %140 = vector.shape_cast %139 : vector<8x128xf32> to vector<1x8x128xf32>
    %141 = vector.extract_strided_slice %138 {offsets = [0, 128], sizes = [8, 128], strides = [1, 1]} : vector<8x384xf32> to vector<8x128xf32>
    %142 = vector.shape_cast %141 : vector<8x128xf32> to vector<1x8x128xf32>
    %143 = vector.extract_strided_slice %138 {offsets = [0, 256], sizes = [8, 128], strides = [1, 1]} : vector<8x384xf32> to vector<8x128xf32>
    %144 = vector.shape_cast %143 : vector<8x128xf32> to vector<1x8x128xf32>
    %145 = vector.extract_strided_slice %140 {offsets = [0, 0, 0], sizes = [1, 8, 32], strides = [1, 1, 1]} : vector<1x8x128xf32> to vector<1x8x32xf32>
    %146 = vector.extract_strided_slice %140 {offsets = [0, 0, 32], sizes = [1, 8, 32], strides = [1, 1, 1]} : vector<1x8x128xf32> to vector<1x8x32xf32>
    %147 = vector.extract_strided_slice %140 {offsets = [0, 0, 64], sizes = [1, 8, 32], strides = [1, 1, 1]} : vector<1x8x128xf32> to vector<1x8x32xf32>
    %148 = vector.extract_strided_slice %140 {offsets = [0, 0, 96], sizes = [1, 8, 32], strides = [1, 1, 1]} : vector<1x8x128xf32> to vector<1x8x32xf32>
    %149 = tpu.concatenate %145, %146, %147, %148 in 0 : vector<1x8x32xf32>, vector<1x8x32xf32>, vector<1x8x32xf32>, vector<1x8x32xf32> -> vector<4x8x32xf32>
    %150 = arith.truncf %149 : vector<4x8x32xf32> to vector<4x8x32xbf16>
    %151 = vector.extract_strided_slice %142 {offsets = [0, 0, 0], sizes = [1, 8, 32], strides = [1, 1, 1]} : vector<1x8x128xf32> to vector<1x8x32xf32>
    %152 = vector.extract_strided_slice %142 {offsets = [0, 0, 32], sizes = [1, 8, 32], strides = [1, 1, 1]} : vector<1x8x128xf32> to vector<1x8x32xf32>
    %153 = vector.extract_strided_slice %142 {offsets = [0, 0, 64], sizes = [1, 8, 32], strides = [1, 1, 1]} : vector<1x8x128xf32> to vector<1x8x32xf32>
    %154 = vector.extract_strided_slice %142 {offsets = [0, 0, 96], sizes = [1, 8, 32], strides = [1, 1, 1]} : vector<1x8x128xf32> to vector<1x8x32xf32>
    %155 = tpu.concatenate %151, %152, %153, %154 in 0 : vector<1x8x32xf32>, vector<1x8x32xf32>, vector<1x8x32xf32>, vector<1x8x32xf32> -> vector<4x8x32xf32>
    %156 = arith.truncf %155 : vector<4x8x32xf32> to vector<4x8x32xbf16>
    %157 = vector.extract_strided_slice %144 {offsets = [0, 0, 0], sizes = [1, 8, 32], strides = [1, 1, 1]} : vector<1x8x128xf32> to vector<1x8x32xf32>
    %158 = vector.extract_strided_slice %144 {offsets = [0, 0, 32], sizes = [1, 8, 32], strides = [1, 1, 1]} : vector<1x8x128xf32> to vector<1x8x32xf32>
    %159 = vector.extract_strided_slice %144 {offsets = [0, 0, 64], sizes = [1, 8, 32], strides = [1, 1, 1]} : vector<1x8x128xf32> to vector<1x8x32xf32>
    %160 = vector.extract_strided_slice %144 {offsets = [0, 0, 96], sizes = [1, 8, 32], strides = [1, 1, 1]} : vector<1x8x128xf32> to vector<1x8x32xf32>
    %161 = tpu.concatenate %157, %158, %159, %160 in 0 : vector<1x8x32xf32>, vector<1x8x32xf32>, vector<1x8x32xf32>, vector<1x8x32xf32> -> vector<4x8x32xf32>
    %162 = arith.truncf %161 : vector<4x8x32xf32> to vector<4x8x32xbf16>
    "tpu.trace_start"() <{level = 10 : i32, message = "bqd,bkd->bqk"}> : () -> ()
    %cst_57 = arith.constant dense<0.000000e+00> : vector<4x8x8xf32>
    %163 = tpu.matmul %150, %156, %cst_57 {dimension_numbers = #tpu.dot_dimension_numbers<[2], [2], [1], [1], [0, 0, 0, 1, 1, 1], [0], [0]>} : vector<4x8x32xbf16>, vector<4x8x32xbf16>, vector<4x8x8xf32> -> vector<4x8x8xf32>
    "tpu.trace_stop"() : () -> ()
    %cst_58 = arith.constant dense<0xFF800000> : vector<4x8xf32>
    %164 = vector.multi_reduction <maximumf>, %163, %cst_58 [2] : vector<4x8x8xf32> to vector<4x8xf32>
    %165 = vector.shape_cast %164 : vector<4x8xf32> to vector<4x8x1xf32>
    %166 = vector.broadcast %165 : vector<4x8x1xf32> to vector<4x8x8xf32>
    %167 = arith.subf %163, %166 : vector<4x8x8xf32>
    %168 = math.exp %167 : vector<4x8x8xf32>
    %cst_59 = arith.constant dense<0.000000e+00> : vector<4x8xf32>
    %169 = vector.multi_reduction <add>, %168, %cst_59 [2] : vector<4x8x8xf32> to vector<4x8xf32>
    %170 = vector.shape_cast %169 : vector<4x8xf32> to vector<4x8x1xf32>
    %171 = tpu.reciprocal %170 {approx = true} : vector<4x8x1xf32> -> vector<4x8x1xf32>
    %172 = vector.broadcast %171 : vector<4x8x1xf32> to vector<4x8x8xf32>
    %173 = arith.mulf %168, %172 : vector<4x8x8xf32>
    %174 = arith.truncf %173 : vector<4x8x8xf32> to vector<4x8x8xbf16>
    "tpu.trace_start"() <{level = 10 : i32, message = "bqk,bkd->bqd"}> : () -> ()
    %cst_60 = arith.constant dense<0.000000e+00> : vector<4x8x32xf32>
    %175 = tpu.matmul %174, %162, %cst_60 {dimension_numbers = #tpu.dot_dimension_numbers<[2], [1], [1], [2], [0, 0, 0, 1, 1, 2], [0], [0]>} : vector<4x8x8xbf16>, vector<4x8x32xbf16>, vector<4x8x32xf32> -> vector<4x8x32xf32>
    "tpu.trace_stop"() : () -> ()
    %176 = vector.extract_strided_slice %175 {offsets = [0, 0, 0], sizes = [1, 8, 32], strides = [1, 1, 1]} : vector<4x8x32xf32> to vector<1x8x32xf32>
    %177 = vector.extract_strided_slice %175 {offsets = [1, 0, 0], sizes = [1, 8, 32], strides = [1, 1, 1]} : vector<4x8x32xf32> to vector<1x8x32xf32>
    %178 = vector.extract_strided_slice %175 {offsets = [2, 0, 0], sizes = [1, 8, 32], strides = [1, 1, 1]} : vector<4x8x32xf32> to vector<1x8x32xf32>
    %179 = vector.extract_strided_slice %175 {offsets = [3, 0, 0], sizes = [1, 8, 32], strides = [1, 1, 1]} : vector<4x8x32xf32> to vector<1x8x32xf32>
    %180 = tpu.concatenate %176, %177, %178, %179 in 2 : vector<1x8x32xf32>, vector<1x8x32xf32>, vector<1x8x32xf32>, vector<1x8x32xf32> -> vector<1x8x128xf32>
    %181 = vector.shape_cast %180 : vector<1x8x128xf32> to vector<8x128xf32>
    %182 = arith.truncf %181 : vector<8x128xf32> to vector<8x128xbf16>
    %c0_61 = arith.constant 0 : index
    %c0_62 = arith.constant 0 : index
    %183 = vector.load %arg19[%c0_61, %c0_62] : memref<128x128xbf16, #tpu.memory_space<vmem>>, vector<128x128xbf16>
    %cst_63 = arith.constant dense<0.000000e+00> : vector<8x128xf32>
    %184 = tpu.matmul %182, %183, %cst_63 {dimension_numbers = #tpu.dot_dimension_numbers<[1], [0], [0], [1], [0, 0, 1, 1], [], []>} : vector<8x128xbf16>, vector<128x128xbf16>, vector<8x128xf32> -> vector<8x128xf32>
    %c0_64 = arith.constant 0 : index
    %c0_65 = arith.constant 0 : index
    %185 = vector.load %arg20[%c0_64, %c0_65] : memref<1x128xf32, #tpu.memory_space<vmem>>, vector<1x128xf32>
    %186 = vector.broadcast %185 : vector<1x128xf32> to vector<8x128xf32>
    %187 = arith.addf %184, %186 : vector<8x128xf32>
    %188 = arith.addf %132, %187 : vector<8x128xf32>
    %c0_66 = arith.constant 0 : index
    %c0_67 = arith.constant 0 : index
    %189 = vector.load %arg21[%c0_66, %c0_67] : memref<1x128xf32, #tpu.memory_space<vmem>>, vector<1x128xf32>
    %c0_68 = arith.constant 0 : index
    %c0_69 = arith.constant 0 : index
    %190 = vector.load %arg22[%c0_68, %c0_69] : memref<1x128xf32, #tpu.memory_space<vmem>>, vector<1x128xf32>
    %cst_70 = arith.constant dense<0.000000e+00> : vector<8xf32>
    %191 = vector.multi_reduction <add>, %188, %cst_70 [1] : vector<8x128xf32> to vector<8xf32>
    %192 = vector.shape_cast %191 : vector<8xf32> to vector<8x1xf32>
    %cst_71 = arith.constant 1.280000e+02 : f32
    %193 = vector.broadcast %cst_71 : f32 to vector<8x1xf32>
    %194 = arith.divf %192, %193 : vector<8x1xf32>
    %195 = vector.broadcast %194 : vector<8x1xf32> to vector<8x128xf32>
    %196 = arith.subf %188, %195 : vector<8x128xf32>
    %197 = arith.mulf %196, %196 : vector<8x128xf32>
    %cst_72 = arith.constant dense<0.000000e+00> : vector<8xf32>
    %198 = vector.multi_reduction <add>, %197, %cst_72 [1] : vector<8x128xf32> to vector<8xf32>
    %199 = vector.shape_cast %198 : vector<8xf32> to vector<8x1xf32>
    %cst_73 = arith.constant 1.280000e+02 : f32
    %200 = vector.broadcast %cst_73 : f32 to vector<8x1xf32>
    %201 = arith.divf %199, %200 : vector<8x1xf32>
    %202 = vector.broadcast %194 : vector<8x1xf32> to vector<8x128xf32>
    %203 = arith.subf %188, %202 : vector<8x128xf32>
    %cst_74 = arith.constant 9.99999974E-6 : f32
    %204 = vector.broadcast %cst_74 : f32 to vector<8x1xf32>
    %205 = arith.addf %201, %204 : vector<8x1xf32>
    %206 = math.rsqrt %205 : vector<8x1xf32>
    %207 = vector.broadcast %206 : vector<8x1xf32> to vector<8x128xf32>
    %208 = arith.mulf %203, %207 : vector<8x128xf32>
    %209 = vector.broadcast %189 : vector<1x128xf32> to vector<8x128xf32>
    %210 = arith.mulf %208, %209 : vector<8x128xf32>
    %211 = vector.broadcast %190 : vector<1x128xf32> to vector<8x128xf32>
    %212 = arith.addf %210, %211 : vector<8x128xf32>
    %213 = arith.truncf %212 : vector<8x128xf32> to vector<8x128xbf16>
    %c0_75 = arith.constant 0 : index
    %c0_76 = arith.constant 0 : index
    %214 = vector.load %arg23[%c0_75, %c0_76] : memref<128x2048xbf16, #tpu.memory_space<vmem>>, vector<128x2048xbf16>
    %cst_77 = arith.constant dense<0.000000e+00> : vector<8x2048xf32>
    %215 = tpu.matmul %213, %214, %cst_77 {dimension_numbers = #tpu.dot_dimension_numbers<[1], [0], [0], [1], [0, 0, 1, 1], [], []>} : vector<8x128xbf16>, vector<128x2048xbf16>, vector<8x2048xf32> -> vector<8x2048xf32>
    %c0_78 = arith.constant 0 : index
    %c0_79 = arith.constant 0 : index
    %216 = vector.load %arg24[%c0_78, %c0_79] : memref<1x2048xf32, #tpu.memory_space<vmem>>, vector<1x2048xf32>
    %217 = vector.broadcast %216 : vector<1x2048xf32> to vector<8x2048xf32>
    %218 = arith.addf %215, %217 : vector<8x2048xf32>
    %cst_80 = arith.constant 0.000000e+00 : f32
    %219 = vector.broadcast %cst_80 : f32 to vector<8x2048xf32>
    %220 = arith.maximumf %218, %219 : vector<8x2048xf32>
    %221 = arith.truncf %220 : vector<8x2048xf32> to vector<8x2048xbf16>
    %c0_81 = arith.constant 0 : index
    %c0_82 = arith.constant 0 : index
    %222 = vector.load %arg25[%c0_81, %c0_82] : memref<2048x128xbf16, #tpu.memory_space<vmem>>, vector<2048x128xbf16>
    %cst_83 = arith.constant dense<0.000000e+00> : vector<8x128xf32>
    %223 = tpu.matmul %221, %222, %cst_83 {dimension_numbers = #tpu.dot_dimension_numbers<[1], [0], [0], [1], [0, 0, 1, 1], [], []>} : vector<8x2048xbf16>, vector<2048x128xbf16>, vector<8x128xf32> -> vector<8x128xf32>
    %c0_84 = arith.constant 0 : index
    %c0_85 = arith.constant 0 : index
    %224 = vector.load %arg26[%c0_84, %c0_85] : memref<1x128xf32, #tpu.memory_space<vmem>>, vector<1x128xf32>
    %225 = vector.broadcast %224 : vector<1x128xf32> to vector<8x128xf32>
    %226 = arith.addf %223, %225 : vector<8x128xf32>
    %227 = arith.addf %212, %226 : vector<8x128xf32>
    %c0_86 = arith.constant 0 : index
    %c0_87 = arith.constant 0 : index
    %228 = vector.load %arg27[%c0_86, %c0_87] : memref<1x128xf32, #tpu.memory_space<vmem>>, vector<1x128xf32>
    %c0_88 = arith.constant 0 : index
    %c0_89 = arith.constant 0 : index
    %229 = vector.load %arg28[%c0_88, %c0_89] : memref<1x128xf32, #tpu.memory_space<vmem>>, vector<1x128xf32>
    %cst_90 = arith.constant dense<0.000000e+00> : vector<8xf32>
    %230 = vector.multi_reduction <add>, %227, %cst_90 [1] : vector<8x128xf32> to vector<8xf32>
    %231 = vector.shape_cast %230 : vector<8xf32> to vector<8x1xf32>
    %cst_91 = arith.constant 1.280000e+02 : f32
    %232 = vector.broadcast %cst_91 : f32 to vector<8x1xf32>
    %233 = arith.divf %231, %232 : vector<8x1xf32>
    %234 = vector.broadcast %233 : vector<8x1xf32> to vector<8x128xf32>
    %235 = arith.subf %227, %234 : vector<8x128xf32>
    %236 = arith.mulf %235, %235 : vector<8x128xf32>
    %cst_92 = arith.constant dense<0.000000e+00> : vector<8xf32>
    %237 = vector.multi_reduction <add>, %236, %cst_92 [1] : vector<8x128xf32> to vector<8xf32>
    %238 = vector.shape_cast %237 : vector<8xf32> to vector<8x1xf32>
    %cst_93 = arith.constant 1.280000e+02 : f32
    %239 = vector.broadcast %cst_93 : f32 to vector<8x1xf32>
    %240 = arith.divf %238, %239 : vector<8x1xf32>
    %241 = vector.broadcast %233 : vector<8x1xf32> to vector<8x128xf32>
    %242 = arith.subf %227, %241 : vector<8x128xf32>
    %cst_94 = arith.constant 9.99999974E-6 : f32
    %243 = vector.broadcast %cst_94 : f32 to vector<8x1xf32>
    %244 = arith.addf %240, %243 : vector<8x1xf32>
    %245 = math.rsqrt %244 : vector<8x1xf32>
    %246 = vector.broadcast %245 : vector<8x1xf32> to vector<8x128xf32>
    %247 = arith.mulf %242, %246 : vector<8x128xf32>
    %248 = vector.broadcast %228 : vector<1x128xf32> to vector<8x128xf32>
    %249 = arith.mulf %247, %248 : vector<8x128xf32>
    %250 = vector.broadcast %229 : vector<1x128xf32> to vector<8x128xf32>
    %251 = arith.addf %249, %250 : vector<8x128xf32>
    %252 = arith.truncf %251 : vector<8x128xf32> to vector<8x128xbf16>
    %c0_95 = arith.constant 0 : index
    %c0_96 = arith.constant 0 : index
    %253 = vector.load %arg29[%c0_95, %c0_96] : memref<128x128xbf16, #tpu.memory_space<vmem>>, vector<128x128xbf16>
    %cst_97 = arith.constant dense<0.000000e+00> : vector<8x128xf32>
    %254 = tpu.matmul %252, %253, %cst_97 {dimension_numbers = #tpu.dot_dimension_numbers<[1], [0], [0], [1], [0, 0, 1, 1], [], []>} : vector<8x128xbf16>, vector<128x128xbf16>, vector<8x128xf32> -> vector<8x128xf32>
    %c0_98 = arith.constant 0 : index
    %c0_99 = arith.constant 0 : index
    %255 = vector.load %arg30[%c0_98, %c0_99] : memref<1x128xf32, #tpu.memory_space<vmem>>, vector<1x128xf32>
    %256 = vector.broadcast %255 : vector<1x128xf32> to vector<8x128xf32>
    %257 = arith.addf %254, %256 : vector<8x128xf32>
    %258 = vector.shape_cast %257 : vector<8x128xf32> to vector<1x8x128xf32>
    %c0_100 = arith.constant 0 : index
    %c0_101 = arith.constant 0 : index
    %c0_102 = arith.constant 0 : index
    %259 = vector.load %arg31[%c0_100, %c0_101, %c0_102] : memref<1x8x128xf32, #tpu.memory_space<vmem>>, vector<1x8x128xf32>
    tpu.vector_store %arg31[%c0_100, %c0_101, %c0_102], %258 {strides = array<i32>} : memref<1x8x128xf32, #tpu.memory_space<vmem>>, vector<1x8x128xf32>,
    return
  }
  func.func @transform_0(%arg0: i32) -> (i32, i32, i32) {
    %c0_i32 = arith.constant 0 : i32
    %c0_i32_0 = arith.constant 0 : i32
    %c0_i32_1 = arith.constant 0 : i32
    return %arg0, %c0_i32, %c0_i32_0 : i32, i32, i32
  }
  func.func @transform_1(%arg0: i32) -> (i32, i32, i32) {
    %c0_i32 = arith.constant 0 : i32
    %c0_i32_0 = arith.constant 0 : i32
    %c0_i32_1 = arith.constant 0 : i32
    %c0_i32_2 = arith.constant 0 : i32
    return %c0_i32, %c0_i32_0, %c0_i32_1 : i32, i32, i32
  }
  func.func @transform_2(%arg0: i32) -> (i32, i32) {
    %c0_i32 = arith.constant 0 : i32
    %c0_i32_0 = arith.constant 0 : i32
    %c0_i32_1 = arith.constant 0 : i32
    return %c0_i32, %c0_i32_0 : i32, i32
  }
  func.func @transform_3(%arg0: i32) -> (i32, i32) {
    %c0_i32 = arith.constant 0 : i32
    %c0_i32_0 = arith.constant 0 : i32
    %c0_i32_1 = arith.constant 0 : i32
    return %c0_i32, %c0_i32_0 : i32, i32
  }
  func.func @transform_4(%arg0: i32) -> (i32, i32) {
    %c0_i32 = arith.constant 0 : i32
    %c0_i32_0 = arith.constant 0 : i32
    %c0_i32_1 = arith.constant 0 : i32
    return %c0_i32, %c0_i32_0 : i32, i32
  }
  func.func @transform_5(%arg0: i32) -> (i32, i32) {
    %c0_i32 = arith.constant 0 : i32
    %c0_i32_0 = arith.constant 0 : i32
    %c0_i32_1 = arith.constant 0 : i32
    return %c0_i32, %c0_i32_0 : i32, i32
  }
  func.func @transform_6(%arg0: i32) -> (i32, i32) {
    %c0_i32 = arith.constant 0 : i32
    %c0_i32_0 = arith.constant 0 : i32
    %c0_i32_1 = arith.constant 0 : i32
    return %c0_i32, %c0_i32_0 : i32, i32
  }
  func.func @transform_7(%arg0: i32) -> (i32, i32) {
    %c0_i32 = arith.constant 0 : i32
    %c0_i32_0 = arith.constant 0 : i32
    %c0_i32_1 = arith.constant 0 : i32
    return %c0_i32, %c0_i32_0 : i32, i32
  }
  func.func @transform_8(%arg0: i32) -> (i32, i32) {
    %c0_i32 = arith.constant 0 : i32
    %c0_i32_0 = arith.constant 0 : i32
    %c0_i32_1 = arith.constant 0 : i32
    return %c0_i32, %c0_i32_0 : i32, i32
  }
  func.func @transform_9(%arg0: i32) -> (i32, i32) {
    %c0_i32 = arith.constant 0 : i32
    %c0_i32_0 = arith.constant 0 : i32
    %c0_i32_1 = arith.constant 0 : i32
    return %c0_i32, %c0_i32_0 : i32, i32
  }
  func.func @transform_10(%arg0: i32) -> (i32, i32) {
    %c0_i32 = arith.constant 0 : i32
    %c0_i32_0 = arith.constant 0 : i32
    %c0_i32_1 = arith.constant 0 : i32
    return %c0_i32, %c0_i32_0 : i32, i32
  }
  func.func @transform_11(%arg0: i32) -> (i32, i32) {
    %c0_i32 = arith.constant 0 : i32
    %c0_i32_0 = arith.constant 0 : i32
    %c0_i32_1 = arith.constant 0 : i32
    return %c0_i32, %c0_i32_0 : i32, i32
  }
  func.func @transform_12(%arg0: i32) -> (i32, i32) {
    %c0_i32 = arith.constant 0 : i32
    %c0_i32_0 = arith.constant 0 : i32
    %c0_i32_1 = arith.constant 0 : i32
    return %c0_i32, %c0_i32_0 : i32, i32
  }
  func.func @transform_13(%arg0: i32) -> (i32, i32) {
    %c0_i32 = arith.constant 0 : i32
    %c0_i32_0 = arith.constant 0 : i32
    %c0_i32_1 = arith.constant 0 : i32
    return %c0_i32, %c0_i32_0 : i32, i32
  }
  func.func @transform_14(%arg0: i32) -> (i32, i32) {
    %c0_i32 = arith.constant 0 : i32
    %c0_i32_0 = arith.constant 0 : i32
    %c0_i32_1 = arith.constant 0 : i32
    return %c0_i32, %c0_i32_0 : i32, i32
  }
  func.func @transform_15(%arg0: i32) -> (i32, i32) {
    %c0_i32 = arith.constant 0 : i32
    %c0_i32_0 = arith.constant 0 : i32
    %c0_i32_1 = arith.constant 0 : i32
    return %c0_i32, %c0_i32_0 : i32, i32
  }
  func.func @transform_16(%arg0: i32) -> (i32, i32) {
    %c0_i32 = arith.constant 0 : i32
    %c0_i32_0 = arith.constant 0 : i32
    %c0_i32_1 = arith.constant 0 : i32
    return %c0_i32, %c0_i32_0 : i32, i32
  }
  func.func @transform_17(%arg0: i32) -> (i32, i32) {
    %c0_i32 = arith.constant 0 : i32
    %c0_i32_0 = arith.constant 0 : i32
    %c0_i32_1 = arith.constant 0 : i32
    return %c0_i32, %c0_i32_0 : i32, i32
  }
  func.func @transform_18(%arg0: i32) -> (i32, i32) {
    %c0_i32 = arith.constant 0 : i32
    %c0_i32_0 = arith.constant 0 : i32
    %c0_i32_1 = arith.constant 0 : i32
    return %c0_i32, %c0_i32_0 : i32, i32
  }
  func.func @transform_19(%arg0: i32) -> (i32, i32) {
    %c0_i32 = arith.constant 0 : i32
    %c0_i32_0 = arith.constant 0 : i32
    %c0_i32_1 = arith.constant 0 : i32
    return %c0_i32, %c0_i32_0 : i32, i32
  }
  func.func @transform_20(%arg0: i32) -> (i32, i32) {
    %c0_i32 = arith.constant 0 : i32
    %c0_i32_0 = arith.constant 0 : i32
    %c0_i32_1 = arith.constant 0 : i32
    return %c0_i32, %c0_i32_0 : i32, i32
  }
  func.func @transform_21(%arg0: i32) -> (i32, i32) {
    %c0_i32 = arith.constant 0 : i32
    %c0_i32_0 = arith.constant 0 : i32
    %c0_i32_1 = arith.constant 0 : i32
    return %c0_i32, %c0_i32_0 : i32, i32
  }
  func.func @transform_22(%arg0: i32) -> (i32, i32) {
    %c0_i32 = arith.constant 0 : i32
    %c0_i32_0 = arith.constant 0 : i32
    %c0_i32_1 = arith.constant 0 : i32
    return %c0_i32, %c0_i32_0 : i32, i32
  }
  func.func @transform_23(%arg0: i32) -> (i32, i32) {
    %c0_i32 = arith.constant 0 : i32
    %c0_i32_0 = arith.constant 0 : i32
    %c0_i32_1 = arith.constant 0 : i32
    return %c0_i32, %c0_i32_0 : i32, i32
  }
  func.func @transform_24(%arg0: i32) -> (i32, i32) {
    %c0_i32 = arith.constant 0 : i32
    %c0_i32_0 = arith.constant 0 : i32
    %c0_i32_1 = arith.constant 0 : i32
    return %c0_i32, %c0_i32_0 : i32, i32
  }
  func.func @transform_25(%arg0: i32) -> (i32, i32) {
    %c0_i32 = arith.constant 0 : i32
    %c0_i32_0 = arith.constant 0 : i32
    %c0_i32_1 = arith.constant 0 : i32
    return %c0_i32, %c0_i32_0 : i32, i32
  }
  func.func @transform_26(%arg0: i32) -> (i32, i32) {
    %c0_i32 = arith.constant 0 : i32
    %c0_i32_0 = arith.constant 0 : i32
    %c0_i32_1 = arith.constant 0 : i32
    return %c0_i32, %c0_i32_0 : i32, i32
  }
  func.func @transform_27(%arg0: i32) -> (i32, i32) {
    %c0_i32 = arith.constant 0 : i32
    %c0_i32_0 = arith.constant 0 : i32
    %c0_i32_1 = arith.constant 0 : i32
    return %c0_i32, %c0_i32_0 : i32, i32
  }
  func.func @transform_28(%arg0: i32) -> (i32, i32) {
    %c0_i32 = arith.constant 0 : i32
    %c0_i32_0 = arith.constant 0 : i32
    %c0_i32_1 = arith.constant 0 : i32
    return %c0_i32, %c0_i32_0 : i32, i32
  }
  func.func @transform_29(%arg0: i32) -> (i32, i32) {
    %c0_i32 = arith.constant 0 : i32
    %c0_i32_0 = arith.constant 0 : i32
    %c0_i32_1 = arith.constant 0 : i32
    return %c0_i32, %c0_i32_0 : i32, i32
  }
  func.func @transform_30(%arg0: i32) -> (i32, i32, i32) {
    %c0_i32 = arith.constant 0 : i32
    %c0_i32_0 = arith.constant 0 : i32
    %c0_i32_1 = arith.constant 0 : i32
    return %arg0, %c0_i32, %c0_i32_0 : i32, i32, i32
  }
}

</mosaic_0001>

<llo_original>
// kernel: base_t1_forward.1
$region0: #{base_t1_forward.1}
  #allocation0 [shape = 'u32[]', space=smem, size = 0x4, offset = 0x4, fixed_abs, tag = 'smem constant byte address 0x4 - core index']
  #allocation1 [shape = 'u32[144,128]{1,0:T(1,128)}', space=vmem, size = 0x12000, scoped, tag = 'internal scratch']
  %s0 = inlined_call_operand.smem [shape: u32[31], index: -1, kind: input, shape index: {}]
  %s1 = sld [smem:[%s0]]
  %s2 = scalar_lea.smem %s0, 1
  %s3 = sld [smem:[%s2]]
  %s4 = scalar_lea.smem %s0, 2
  %s5 = sld [smem:[%s4]]
  %s6 = scalar_lea.smem %s0, 3
  %s7 = sld [smem:[%s6]]
  %s8 = scalar_lea.smem %s0, 4
  %s9 = sld [smem:[%s8]]
  %s10 = scalar_lea.smem %s0, 5
  %s11 = sld [smem:[%s10]]
  %s12 = scalar_lea.smem %s0, 6
  %s13 = sld [smem:[%s12]]
  %s14 = scalar_lea.smem %s0, 7
  %s15 = sld [smem:[%s14]]
  %s16 = scalar_lea.smem %s0, 8
  %s17 = sld [smem:[%s16]]
  %s18 = scalar_lea.smem %s0, 9
  %s19 = sld [smem:[%s18]]
  %s20 = scalar_lea.smem %s0, 10
  %s21 = sld [smem:[%s20]]
  %s22 = scalar_lea.smem %s0, 11
  %s23 = sld [smem:[%s22]]
  %s24 = scalar_lea.smem %s0, 12
  %s25 = sld [smem:[%s24]]
  %s26 = scalar_lea.smem %s0, 13
  %s27 = sld [smem:[%s26]]
  %s28 = scalar_lea.smem %s0, 14
  %s29 = sld [smem:[%s28]]
  %s30 = scalar_lea.smem %s0, 15
  %s31 = sld [smem:[%s30]]
  %s32 = scalar_lea.smem %s0, 16
  %s33 = sld [smem:[%s32]]
  %s34 = scalar_lea.smem %s0, 17
  %s35 = sld [smem:[%s34]]
  %s36 = scalar_lea.smem %s0, 18
  %s37 = sld [smem:[%s36]]
  %s38 = scalar_lea.smem %s0, 19
  %s39 = sld [smem:[%s38]]
  %s40 = scalar_lea.smem %s0, 20
  %s41 = sld [smem:[%s40]]
  %s42 = scalar_lea.smem %s0, 21
  %s43 = sld [smem:[%s42]]
  %s44 = scalar_lea.smem %s0, 22
  %s45 = sld [smem:[%s44]]
  %s46 = scalar_lea.smem %s0, 23
  %s47 = sld [smem:[%s46]]
  %s48 = scalar_lea.smem %s0, 24
  %s49 = sld [smem:[%s48]]
  %s50 = scalar_lea.smem %s0, 25
  %s51 = sld [smem:[%s50]]
  %s52 = scalar_lea.smem %s0, 26
  %s53 = sld [smem:[%s52]]
  %s54 = scalar_lea.smem %s0, 27
  %s55 = sld [smem:[%s54]]
  %s56 = scalar_lea.smem %s0, 28
  %s57 = sld [smem:[%s56]]
  %s58 = scalar_lea.smem %s0, 29
  %s59 = sld [smem:[%s58]]
  %s60 = scalar_lea.smem %s0, 30
  %s61 = sld [smem:[%s60]]
  %s62 = sld [smem:[#allocation0]]
  $region233: #{base_t1_forward.1} parent=0
    _
  %s64 = ssub.s32 1, %s62
  %s65 = scalar_select 0, %s64, %s62
  $region1: #{base_t1_forward.1} parent=0
    #allocation2 [shape = 'u8[8192]{0}', space=vmem, size = 0x2000, scoped, tag = 'input window, operand 0']
    #allocation3 [shape = 's32[2]{0}', space=sflag, size = 0x8, scoped, tag = 'scoped memory for base_t1_forward.1']
    #allocation4 [shape = 's32[2]{0}', space=sflag, size = 0x8, scoped, tag = 'scoped memory for base_t1_forward.1']
    #allocation5 [shape = 'u8[512]{0}', space=vmem, size = 0x400, scoped, tag = 'input window, operand 3, single buffered']
    #allocation6 [shape = 's32[1]{0}', space=sflag, size = 0x4, scoped, tag = 'scoped memory for base_t1_forward.1']
    #allocation7 [shape = 'u8[98304]{0}', space=vmem, size = 0x18000, scoped, tag = 'input window, operand 4, single buffered']
    #allocation8 [shape = 'u8[1536]{0}', space=vmem, size = 0x800, scoped, tag = 'input window, operand 5, single buffered']
    #allocation9 [shape = 's32[1]{0}', space=sflag, size = 0x4, scoped, tag = 'scoped memory for base_t1_forward.1']
    #allocation10 [shape = 'u8[512]{0}', space=vmem, size = 0x400, scoped, tag = 'input window, operand 7, single buffered']
    #allocation11 [shape = 'u8[512]{0}', space=vmem, size = 0x400, scoped, tag = 'input window, operand 8, single buffered']
    #allocation12 [shape = 's32[1]{0}', space=sflag, size = 0x4, scoped, tag = 'scoped memory for base_t1_forward.1']
    #allocation13 [shape = 'u8[512]{0}', space=vmem, size = 0x400, scoped, tag = 'input window, operand 9, single buffered']
    #allocation14 [shape = 'u8[524288]{0}', space=vmem, size = 0x80000, scoped, tag = 'input window, operand 10, single buffered']
    #allocation15 [shape = 's32[1]{0}', space=sflag, size = 0x4, scoped, tag = 'scoped memory for base_t1_forward.1']
    #allocation16 [shape = 'u8[8192]{0}', space=vmem, size = 0x2000, scoped, tag = 'input window, operand 11, single buffered']
    #allocation17 [shape = 'u8[524288]{0}', space=vmem, size = 0x80000, scoped, tag = 'input window, operand 12, single buffered']
    #allocation18 [shape = 's32[1]{0}', space=sflag, size = 0x4, scoped, tag = 'scoped memory for base_t1_forward.1']
    #allocation19 [shape = 'u8[512]{0}', space=vmem, size = 0x400, scoped, tag = 'input window, operand 13, single buffered']
    #allocation20 [shape = 'u8[512]{0}', space=vmem, size = 0x400, scoped, tag = 'input window, operand 14, single buffered']
    #allocation21 [shape = 's32[1]{0}', space=sflag, size = 0x4, scoped, tag = 'scoped memory for base_t1_forward.1']
    #allocation22 [shape = 'u8[512]{0}', space=vmem, size = 0x400, scoped, tag = 'input window, operand 15, single buffered']
    #allocation23 [shape = 'u8[98304]{0}', space=vmem, size = 0x18000, scoped, tag = 'input window, operand 16, single buffered']
    #allocation24 [shape = 's32[1]{0}', space=sflag, size = 0x4, scoped, tag = 'scoped memory for base_t1_forward.1']
    #allocation25 [shape = 'u8[32768]{0}', space=vmem, size = 0x8000, scoped, tag = 'input window, operand 18, single buffered']
    #allocation26 [shape = 'u8[524288]{0}', space=vmem, size = 0x80000, scoped, tag = 'input window, operand 22, single buffered']
    #allocation27 [shape = 's32[1]{0}', space=sflag, size = 0x4, scoped, tag = 'scoped memory for base_t1_forward.1']
    #allocation28 [shape = 'u8[8192]{0}', space=vmem, size = 0x2000, scoped, tag = 'input window, operand 23, single buffered']
    #allocation29 [shape = 'u8[524288]{0}', space=vmem, size = 0x80000, scoped, tag = 'input window, operand 24, single buffered']
    #allocation30 [shape = 's32[1]{0}', space=sflag, size = 0x4, scoped, tag = 'scoped memory for base_t1_forward.1']
    #allocation31 [shape = 'u8[32768]{0}', space=vmem, size = 0x8000, scoped, tag = 'input window, operand 28, single buffered']
    #allocation32 [shape = 'u8[512]{0}', space=vmem, size = 0x400, scoped, tag = 'input window, operand 29, single buffered']
    #allocation33 [shape = 's32[1]{0}', space=sflag, size = 0x4, scoped, tag = 'scoped memory for base_t1_forward.1']
    #allocation34 [shape = 'u8[8192]{0}', space=vmem, size = 0x2000, scoped, tag = 'output window, operand 0']
    %66 = vsyncpa [#allocation3], 0
    %s67 = scalar_lea.sflag [#allocation3], 1
    %68 = vsyncpa %s67, 0
    %69 = vsyncpa [#allocation6], 0
    %70 = vsyncpa [#allocation9], 0
    %71 = vsyncpa [#allocation12], 0
    %72 = vsyncpa [#allocation15], 0
    %73 = vsyncpa [#allocation18], 0
    %74 = vsyncpa [#allocation21], 0
    %75 = vsyncpa [#allocation24], 0
    %76 = vsyncpa [#allocation27], 0
    %77 = vsyncpa [#allocation30], 0
    %78 = vsyncpa [#allocation33], 0
    %79 = vsyncpa [#allocation4], 0
    %s80 = scalar_lea.sflag [#allocation4], 1
    %81 = vsyncpa %s80, 0
    loop: start=0, step=1, limit=4
    $region2: #{base_t1_forward.1} parent=1 // loop_pre_header
      _
    $region3: #{base_t1_forward.1} parent=1 // loop_header
      %s83 = sphi 0, %s87
      %p84 = scmp.ge.s32.totalorder %s83, 4
      %s93 = sphi 0, %s95
      %s96 = sphi 0, %s93
      %s97 = sphi 0, %s96
      %s113 = sphi 0, %s97
      %s117 = sphi 0, %s117
      %s119 = sphi 0, %s117
      %s120 = sphi 0, %s119
      %s134 = sphi 0, %s120
      %s138 = sphi 0, %s138
      %s140 = sphi 0, %s138
      %s141 = sphi 0, %s140
      %s155 = sphi 0, %s141
      %s159 = sphi 0, %s159
      %s161 = sphi 0, %s159
      %s162 = sphi 0, %s161
      %s176 = sphi 0, %s162
      %s180 = sphi 0, %s180
      %s182 = sphi 0, %s180
      %s183 = sphi 0, %s182
      %s197 = sphi 0, %s183
      %s201 = sphi 0, %s201
      %s203 = sphi 0, %s201
      %s204 = sphi 0, %s203
      %s218 = sphi 0, %s204
      %s222 = sphi 0, %s222
      %s224 = sphi 0, %s222
      %s225 = sphi 0, %s224
      %s239 = sphi 0, %s225
      %s243 = sphi 0, %s243
      %s245 = sphi 0, %s243
      %s246 = sphi 0, %s245
      %s260 = sphi 0, %s246
      %s264 = sphi 0, %s264
      %s266 = sphi 0, %s264
      %s267 = sphi 0, %s266
      %s281 = sphi 0, %s267
      %s285 = sphi 0, %s285
      %s287 = sphi 0, %s285
      %s288 = sphi 0, %s287
      %s302 = sphi 0, %s288
      %s306 = sphi 0, %s306
      %s308 = sphi 0, %s306
      %s309 = sphi 0, %s308
      %s323 = sphi 0, %s309
      %s327 = sphi 0, %s327
      %s329 = sphi 0, %s327
      %s330 = sphi 0, %s329
      %s344 = sphi 0, %s330
      %s348 = sphi 0, %s348
      %s350 = sphi 0, %s348
      %s351 = sphi 0, %s350
      %s365 = sphi 0, %s351
      %s369 = sphi 0, %s369
      %s371 = sphi 0, %s369
      %s372 = sphi 0, %s371
      %s386 = sphi 0, %s372
      %s390 = sphi 0, %s390
      %s392 = sphi 0, %s390
      %s393 = sphi 0, %s392
      %s407 = sphi 0, %s393
      %s411 = sphi 0, %s411
      %s413 = sphi 0, %s411
      %s414 = sphi 0, %s413
      %s428 = sphi 0, %s414
      %s432 = sphi 0, %s432
      %s434 = sphi 0, %s432
      %s435 = sphi 0, %s434
      %s449 = sphi 0, %s435
      %s453 = sphi 0, %s453
      %s455 = sphi 0, %s453
      %s456 = sphi 0, %s455
      %s470 = sphi 0, %s456
      %s474 = sphi 0, %s474
      %s476 = sphi 0, %s474
      %s477 = sphi 0, %s476
      %s491 = sphi 0, %s477
      %s495 = sphi 0, %s495
      %s497 = sphi 0, %s495
      %s498 = sphi 0, %s497
      %s512 = sphi 0, %s498
      %s516 = sphi 0, %s516
      %s518 = sphi 0, %s516
      %s519 = sphi 0, %s518
      %s533 = sphi 0, %s519
      %s537 = sphi 0, %s537
      %s539 = sphi 0, %s537
      %s540 = sphi 0, %s539
      %s554 = sphi 0, %s540
      %s558 = sphi 0, %s558
      %s560 = sphi 0, %s558
      %s561 = sphi 0, %s560
      %s575 = sphi 0, %s561
      %s579 = sphi 0, %s579
      %s581 = sphi 0, %s579
      %s582 = sphi 0, %s581
      %s596 = sphi 0, %s582
      %s600 = sphi 0, %s600
      %s602 = sphi 0, %s600
      %s603 = sphi 0, %s602
      %s617 = sphi 0, %s603
      %s621 = sphi 0, %s621
      %s623 = sphi 0, %s621
      %s624 = sphi 0, %s623
      %s638 = sphi 0, %s624
      %s642 = sphi 0, %s642
      %s644 = sphi 0, %s642
      %s645 = sphi 0, %s644
      %s659 = sphi 0, %s645
      %s663 = sphi 0, %s663
      %s665 = sphi 0, %s663
      %s666 = sphi 0, %s665
      %s680 = sphi 0, %s666
      %s684 = sphi 0, %s684
      %s686 = sphi 0, %s684
      %s687 = sphi 0, %s686
      %s701 = sphi 0, %s687
      %s705 = sphi 0, %s705
      %s707 = sphi 0, %s705
      %s708 = sphi 0, %s707
      %s722 = sphi 0, %s708
      %s728 = sphi 0, %s730
      %s731 = sphi 0, %s728
      %s732 = sphi 0, %s731
      %s748 = sphi 0, %s732
    $region4: #{base_t1_forward.1} parent=1 // loop_header_branch
      %86 = sbr.rel (%p84) target = $region8
    $region5: #{base_t1_forward.1} parent=1 // loop_body
      %s88 = ssub.s32 %s83, 1
      %s89 = ssub.s32 %s83, 2
      %s90 = sadd.s32 %s83, 1
      %s91 = ssub.s32 %s83, %s90
      %p92 = scmp.eq.s32.totalorder %s91, 0
      %s94 = sadd.s32 %s93, 1
      %s95 = scalar_select %p92, %s93, %s94
      %p98 = pneg %p92
      %p99 = scmp.eq.s32.totalorder %s83, 1
      %p100 = por %p98, %p99
      %p101 = scmp.ne.s32.totalorder %s93, %s96
      %p102 = scmp.eq.s32.totalorder %s83, 0
      %p103 = por %p101, %p102
      %p104 = scmp.ne.s32.totalorder %s93, %s96
      %p105 = scmp.eq.s32.totalorder %s88, 1
      %p106 = por %p104, %p105
      %p107 = scmp.ne.s32.totalorder %s96, %s97
      %p108 = scmp.eq.s32.totalorder %s88, 0
      %p109 = por %p107, %p108
      %p110 = scmp.ne.s32.totalorder %s96, %s97
      %p111 = scmp.eq.s32.totalorder %s89, 1
      %p112 = por %p110, %p111
      %p114 = scmp.ne.s32.totalorder %s97, %s113
      %p115 = scmp.eq.s32.totalorder %s89, 0
      %p116 = por %p114, %p115
      %s118 = sadd.s32 %s117, 1
      %p121 = scmp.eq.s32.totalorder %s83, 1
      %p122 = scmp.ne.s32.totalorder %s117, %s119
      %p123 = scmp.eq.s32.totalorder %s83, 0
      %p124 = por %p122, %p123
      %p125 = scmp.ne.s32.totalorder %s117, %s119
      %p126 = scmp.eq.s32.totalorder %s88, 1
      %p127 = por %p125, %p126
      %p128 = scmp.ne.s32.totalorder %s119, %s120
      %p129 = scmp.eq.s32.totalorder %s88, 0
      %p130 = por %p128, %p129
      %p131 = scmp.ne.s32.totalorder %s119, %s120
      %p132 = scmp.eq.s32.totalorder %s89, 1
      %p133 = por %p131, %p132
      %p135 = scmp.ne.s32.totalorder %s120, %s134
      %p136 = scmp.eq.s32.totalorder %s89, 0
      %p137 = por %p135, %p136
      %s139 = sadd.s32 %s138, 1
      %p142 = scmp.eq.s32.totalorder %s83, 1
      %p143 = scmp.ne.s32.totalorder %s138, %s140
      %p144 = scmp.eq.s32.totalorder %s83, 0
      %p145 = por %p143, %p144
      %p146 = scmp.ne.s32.totalorder %s138, %s140
      %p147 = scmp.eq.s32.totalorder %s88, 1
      %p148 = por %p146, %p147
      %p149 = scmp.ne.s32.totalorder %s140, %s141
      %p150 = scmp.eq.s32.totalorder %s88, 0
      %p151 = por %p149, %p150
      %p152 = scmp.ne.s32.totalorder %s140, %s141
      %p153 = scmp.eq.s32.totalorder %s89, 1
      %p154 = por %p152, %p153
      %p156 = scmp.ne.s32.totalorder %s141, %s155
      %p157 = scmp.eq.s32.totalorder %s89, 0
      %p158 = por %p156, %p157
      %s160 = sadd.s32 %s159, 1
      %p163 = scmp.eq.s32.totalorder %s83, 1
      %p164 = scmp.ne.s32.totalorder %s159, %s161
      %p165 = scmp.eq.s32.totalorder %s83, 0
      %p166 = por %p164, %p165
      %p167 = scmp.ne.s32.totalorder %s159, %s161
      %p168 = scmp.eq.s32.totalorder %s88, 1
      %p169 = por %p167, %p168
      %p170 = scmp.ne.s32.totalorder %s161, %s162
      %p171 = scmp.eq.s32.totalorder %s88, 0
      %p172 = por %p170, %p171
      %p173 = scmp.ne.s32.totalorder %s161, %s162
      %p174 = scmp.eq.s32.totalorder %s89, 1
      %p175 = por %p173, %p174
      %p177 = scmp.ne.s32.totalorder %s162, %s176
      %p178 = scmp.eq.s32.totalorder %s89, 0
      %p179 = por %p177, %p178
      %s181 = sadd.s32 %s180, 1
      %p184 = scmp.eq.s32.totalorder %s83, 1
      %p185 = scmp.ne.s32.totalorder %s180, %s182
      %p186 = scmp.eq.s32.totalorder %s83, 0
      %p187 = por %p185, %p186
      %p188 = scmp.ne.s32.totalorder %s180, %s182
      %p189 = scmp.eq.s32.totalorder %s88, 1
      %p190 = por %p188, %p189
      %p191 = scmp.ne.s32.totalorder %s182, %s183
      %p192 = scmp.eq.s32.totalorder %s88, 0
      %p193 = por %p191, %p192
      %p194 = scmp.ne.s32.totalorder %s182, %s183
      %p195 = scmp.eq.s32.totalorder %s89, 1
      %p196 = por %p194, %p195
      %p198 = scmp.ne.s32.totalorder %s183, %s197
      %p199 = scmp.eq.s32.totalorder %s89, 0
      %p200 = por %p198, %p199
      %s202 = sadd.s32 %s201, 1
      %p205 = scmp.eq.s32.totalorder %s83, 1
      %p206 = scmp.ne.s32.totalorder %s201, %s203
      %p207 = scmp.eq.s32.totalorder %s83, 0
      %p208 = por %p206, %p207
      %p209 = scmp.ne.s32.totalorder %s201, %s203
      %p210 = scmp.eq.s32.totalorder %s88, 1
      %p211 = por %p209, %p210
      %p212 = scmp.ne.s32.totalorder %s203, %s204
      %p213 = scmp.eq.s32.totalorder %s88, 0
      %p214 = por %p212, %p213
      %p215 = scmp.ne.s32.totalorder %s203, %s204
      %p216 = scmp.eq.s32.totalorder %s89, 1
      %p217 = por %p215, %p216
      %p219 = scmp.ne.s32.totalorder %s204, %s218
      %p220 = scmp.eq.s32.totalorder %s89, 0
      %p221 = por %p219, %p220
      %s223 = sadd.s32 %s222, 1
      %p226 = scmp.eq.s32.totalorder %s83, 1
      %p227 = scmp.ne.s32.totalorder %s222, %s224
      %p228 = scmp.eq.s32.totalorder %s83, 0
      %p229 = por %p227, %p228
      %p230 = scmp.ne.s32.totalorder %s222, %s224
      %p231 = scmp.eq.s32.totalorder %s88, 1
      %p232 = por %p230, %p231
      %p233 = scmp.ne.s32.totalorder %s224, %s225
      %p234 = scmp.eq.s32.totalorder %s88, 0
      %p235 = por %p233, %p234
      %p236 = scmp.ne.s32.totalorder %s224, %s225
      %p237 = scmp.eq.s32.totalorder %s89, 1
      %p238 = por %p236, %p237
      %p240 = scmp.ne.s32.totalorder %s225, %s239
      %p241 = scmp.eq.s32.totalorder %s89, 0
      %p242 = por %p240, %p241
      %s244 = sadd.s32 %s243, 1
      %p247 = scmp.eq.s32.totalorder %s83, 1
      %p248 = scmp.ne.s32.totalorder %s243, %s245
      %p249 = scmp.eq.s32.totalorder %s83, 0
      %p250 = por %p248, %p249
      %p251 = scmp.ne.s32.totalorder %s243, %s245
      %p252 = scmp.eq.s32.totalorder %s88, 1
      %p253 = por %p251, %p252
      %p254 = scmp.ne.s32.totalorder %s245, %s246
      %p255 = scmp.eq.s32.totalorder %s88, 0
      %p256 = por %p254, %p255
      %p257 = scmp.ne.s32.totalorder %s245, %s246
      %p258 = scmp.eq.s32.totalorder %s89, 1
      %p259 = por %p257, %p258
      %p261 = scmp.ne.s32.totalorder %s246, %s260
      %p262 = scmp.eq.s32.totalorder %s89, 0
      %p263 = por %p261, %p262
      %s265 = sadd.s32 %s264, 1
      %p268 = scmp.eq.s32.totalorder %s83, 1
      %p269 = scmp.ne.s32.totalorder %s264, %s266
      %p270 = scmp.eq.s32.totalorder %s83, 0
      %p271 = por %p269, %p270
      %p272 = scmp.ne.s32.totalorder %s264, %s266
      %p273 = scmp.eq.s32.totalorder %s88, 1
      %p274 = por %p272, %p273
      %p275 = scmp.ne.s32.totalorder %s266, %s267
      %p276 = scmp.eq.s32.totalorder %s88, 0
      %p277 = por %p275, %p276
      %p278 = scmp.ne.s32.totalorder %s266, %s267
      %p279 = scmp.eq.s32.totalorder %s89, 1
      %p280 = por %p278, %p279
      %p282 = scmp.ne.s32.totalorder %s267, %s281
      %p283 = scmp.eq.s32.totalorder %s89, 0
      %p284 = por %p282, %p283
      %s286 = sadd.s32 %s285, 1
      %p289 = scmp.eq.s32.totalorder %s83, 1
      %p290 = scmp.ne.s32.totalorder %s285, %s287
      %p291 = scmp.eq.s32.totalorder %s83, 0
      %p292 = por %p290, %p291
      %p293 = scmp.ne.s32.totalorder %s285, %s287
      %p294 = scmp.eq.s32.totalorder %s88, 1
      %p295 = por %p293, %p294
      %p296 = scmp.ne.s32.totalorder %s287, %s288
      %p297 = scmp.eq.s32.totalorder %s88, 0
      %p298 = por %p296, %p297
      %p299 = scmp.ne.s32.totalorder %s287, %s288
      %p300 = scmp.eq.s32.totalorder %s89, 1
      %p301 = por %p299, %p300
      %p303 = scmp.ne.s32.totalorder %s288, %s302
      %p304 = scmp.eq.s32.totalorder %s89, 0
      %p305 = por %p303, %p304
      %s307 = sadd.s32 %s306, 1
      %p310 = scmp.eq.s32.totalorder %s83, 1
      %p311 = scmp.ne.s32.totalorder %s306, %s308
      %p312 = scmp.eq.s32.totalorder %s83, 0
      %p313 = por %p311, %p312
      %p314 = scmp.ne.s32.totalorder %s306, %s308
      %p315 = scmp.eq.s32.totalorder %s88, 1
      %p316 = por %p314, %p315
      %p317 = scmp.ne.s32.totalorder %s308, %s309
      %p318 = scmp.eq.s32.totalorder %s88, 0
      %p319 = por %p317, %p318
      %p320 = scmp.ne.s32.totalorder %s308, %s309
      %p321 = scmp.eq.s32.totalorder %s89, 1
      %p322 = por %p320, %p321
      %p324 = scmp.ne.s32.totalorder %s309, %s323
      %p325 = scmp.eq.s32.totalorder %s89, 0
      %p326 = por %p324, %p325
      %s328 = sadd.s32 %s327, 1
      %p331 = scmp.eq.s32.totalorder %s83, 1
      %p332 = scmp.ne.s32.totalorder %s327, %s329
      %p333 = scmp.eq.s32.totalorder %s83, 0
      %p334 = por %p332, %p333
      %p335 = scmp.ne.s32.totalorder %s327, %s329
      %p336 = scmp.eq.s32.totalorder %s88, 1
      %p337 = por %p335, %p336
      %p338 = scmp.ne.s32.totalorder %s329, %s330
      %p339 = scmp.eq.s32.totalorder %s88, 0
      %p340 = por %p338, %p339
      %p341 = scmp.ne.s32.totalorder %s329, %s330
      %p342 = scmp.eq.s32.totalorder %s89, 1
      %p343 = por %p341, %p342
      %p345 = scmp.ne.s32.totalorder %s330, %s344
      %p346 = scmp.eq.s32.totalorder %s89, 0
      %p347 = por %p345, %p346
      %s349 = sadd.s32 %s348, 1
      %p352 = scmp.eq.s32.totalorder %s83, 1
      %p353 = scmp.ne.s32.totalorder %s348, %s350
      %p354 = scmp.eq.s32.totalorder %s83, 0
      %p355 = por %p353, %p354
      %p356 = scmp.ne.s32.totalorder %s348, %s350
      %p357 = scmp.eq.s32.totalorder %s88, 1
      %p358 = por %p356, %p357
      %p359 = scmp.ne.s32.totalorder %s350, %s351
      %p360 = scmp.eq.s32.totalorder %s88, 0
      %p361 = por %p359, %p360
      %p362 = scmp.ne.s32.totalorder %s350, %s351
      %p363 = scmp.eq.s32.totalorder %s89, 1
      %p364 = por %p362, %p363
      %p366 = scmp.ne.s32.totalorder %s351, %s365
      %p367 = scmp.eq.s32.totalorder %s89, 0
      %p368 = por %p366, %p367
      %s370 = sadd.s32 %s369, 1
      %p373 = scmp.eq.s32.totalorder %s83, 1
      %p374 = scmp.ne.s32.totalorder %s369, %s371
      %p375 = scmp.eq.s32.totalorder %s83, 0
      %p376 = por %p374, %p375
      %p377 = scmp.ne.s32.totalorder %s369, %s371
      %p378 = scmp.eq.s32.totalorder %s88, 1
      %p379 = por %p377, %p378
      %p380 = scmp.ne.s32.totalorder %s371, %s372
      %p381 = scmp.eq.s32.totalorder %s88, 0
      %p382 = por %p380, %p381
      %p383 = scmp.ne.s32.totalorder %s371, %s372
      %p384 = scmp.eq.s32.totalorder %s89, 1
      %p385 = por %p383, %p384
      %p387 = scmp.ne.s32.totalorder %s372, %s386
      %p388 = scmp.eq.s32.totalorder %s89, 0
      %p389 = por %p387, %p388
      %s391 = sadd.s32 %s390, 1
      %p394 = scmp.eq.s32.totalorder %s83, 1
      %p395 = scmp.ne.s32.totalorder %s390, %s392
      %p396 = scmp.eq.s32.totalorder %s83, 0
      %p397 = por %p395, %p396
      %p398 = scmp.ne.s32.totalorder %s390, %s392
      %p399 = scmp.eq.s32.totalorder %s88, 1
      %p400 = por %p398, %p399
      %p401 = scmp.ne.s32.totalorder %s392, %s393
      %p402 = scmp.eq.s32.totalorder %s88, 0
      %p403 = por %p401, %p402
      %p404 = scmp.ne.s32.totalorder %s392, %s393
      %p405 = scmp.eq.s32.totalorder %s89, 1
      %p406 = por %p404, %p405
      %p408 = scmp.ne.s32.totalorder %s393, %s407
      %p409 = scmp.eq.s32.totalorder %s89, 0
      %p410 = por %p408, %p409
      %s412 = sadd.s32 %s411, 1
      %p415 = scmp.eq.s32.totalorder %s83, 1
      %p416 = scmp.ne.s32.totalorder %s411, %s413
      %p417 = scmp.eq.s32.totalorder %s83, 0
      %p418 = por %p416, %p417
      %p419 = scmp.ne.s32.totalorder %s411, %s413
      %p420 = scmp.eq.s32.totalorder %s88, 1
      %p421 = por %p419, %p420
      %p422 = scmp.ne.s32.totalorder %s413, %s414
      %p423 = scmp.eq.s32.totalorder %s88, 0
      %p424 = por %p422, %p423
      %p425 = scmp.ne.s32.totalorder %s413, %s414
      %p426 = scmp.eq.s32.totalorder %s89, 1
      %p427 = por %p425, %p426
      %p429 = scmp.ne.s32.totalorder %s414, %s428
      %p430 = scmp.eq.s32.totalorder %s89, 0
      %p431 = por %p429, %p430
      %s433 = sadd.s32 %s432, 1
      %p436 = scmp.eq.s32.totalorder %s83, 1
      %p437 = scmp.ne.s32.totalorder %s432, %s434
      %p438 = scmp.eq.s32.totalorder %s83, 0
      %p439 = por %p437, %p438
      %p440 = scmp.ne.s32.totalorder %s432, %s434
      %p441 = scmp.eq.s32.totalorder %s88, 1
      %p442 = por %p440, %p441
      %p443 = scmp.ne.s32.totalorder %s434, %s435
      %p444 = scmp.eq.s32.totalorder %s88, 0
      %p445 = por %p443, %p444
      %p446 = scmp.ne.s32.totalorder %s434, %s435
      %p447 = scmp.eq.s32.totalorder %s89, 1
      %p448 = por %p446, %p447
      %p450 = scmp.ne.s32.totalorder %s435, %s449
      %p451 = scmp.eq.s32.totalorder %s89, 0
      %p452 = por %p450, %p451
      %s454 = sadd.s32 %s453, 1
      %p457 = scmp.eq.s32.totalorder %s83, 1
      %p458 = scmp.ne.s32.totalorder %s453, %s455
      %p459 = scmp.eq.s32.totalorder %s83, 0
      %p460 = por %p458, %p459
      %p461 = scmp.ne.s32.totalorder %s453, %s455
      %p462 = scmp.eq.s32.totalorder %s88, 1
      %p463 = por %p461, %p462
      %p464 = scmp.ne.s32.totalorder %s455, %s456
      %p465 = scmp.eq.s32.totalorder %s88, 0
      %p466 = por %p464, %p465
      %p467 = scmp.ne.s32.totalorder %s455, %s456
      %p468 = scmp.eq.s32.totalorder %s89, 1
      %p469 = por %p467, %p468
      %p471 = scmp.ne.s32.totalorder %s456, %s470
      %p472 = scmp.eq.s32.totalorder %s89, 0
      %p473 = por %p471, %p472
      %s475 = sadd.s32 %s474, 1
      %p478 = scmp.eq.s32.totalorder %s83, 1
      %p479 = scmp.ne.s32.totalorder %s474, %s476
      %p480 = scmp.eq.s32.totalorder %s83, 0
      %p481 = por %p479, %p480
      %p482 = scmp.ne.s32.totalorder %s474, %s476
      %p483 = scmp.eq.s32.totalorder %s88, 1
      %p484 = por %p482, %p483
      %p485 = scmp.ne.s32.totalorder %s476, %s477
      %p486 = scmp.eq.s32.totalorder %s88, 0
      %p487 = por %p485, %p486
      %p488 = scmp.ne.s32.totalorder %s476, %s477
      %p489 = scmp.eq.s32.totalorder %s89, 1
      %p490 = por %p488, %p489
      %p492 = scmp.ne.s32.totalorder %s477, %s491
      %p493 = scmp.eq.s32.totalorder %s89, 0
      %p494 = por %p492, %p493
      %s496 = sadd.s32 %s495, 1
      %p499 = scmp.eq.s32.totalorder %s83, 1
      %p500 = scmp.ne.s32.totalorder %s495, %s497
      %p501 = scmp.eq.s32.totalorder %s83, 0
      %p502 = por %p500, %p501
      %p503 = scmp.ne.s32.totalorder %s495, %s497
      %p504 = scmp.eq.s32.totalorder %s88, 1
      %p505 = por %p503, %p504
      %p506 = scmp.ne.s32.totalorder %s497, %s498
      %p507 = scmp.eq.s32.totalorder %s88, 0
      %p508 = por %p506, %p507
      %p509 = scmp.ne.s32.totalorder %s497, %s498
      %p510 = scmp.eq.s32.totalorder %s89, 1
      %p511 = por %p509, %p510
      %p513 = scmp.ne.s32.totalorder %s498, %s512
      %p514 = scmp.eq.s32.totalorder %s89, 0
      %p515 = por %p513, %p514
      %s517 = sadd.s32 %s516, 1
      %p520 = scmp.eq.s32.totalorder %s83, 1
      %p521 = scmp.ne.s32.totalorder %s516, %s518
      %p522 = scmp.eq.s32.totalorder %s83, 0
      %p523 = por %p521, %p522
      %p524 = scmp.ne.s32.totalorder %s516, %s518
      %p525 = scmp.eq.s32.totalorder %s88, 1
      %p526 = por %p524, %p525
      %p527 = scmp.ne.s32.totalorder %s518, %s519
      %p528 = scmp.eq.s32.totalorder %s88, 0
      %p529 = por %p527, %p528
      %p530 = scmp.ne.s32.totalorder %s518, %s519
      %p531 = scmp.eq.s32.totalorder %s89, 1
      %p532 = por %p530, %p531
      %p534 = scmp.ne.s32.totalorder %s519, %s533
      %p535 = scmp.eq.s32.totalorder %s89, 0
      %p536 = por %p534, %p535
      %s538 = sadd.s32 %s537, 1
      %p541 = scmp.eq.s32.totalorder %s83, 1
      %p542 = scmp.ne.s32.totalorder %s537, %s539
      %p543 = scmp.eq.s32.totalorder %s83, 0
      %p544 = por %p542, %p543
      %p545 = scmp.ne.s32.totalorder %s537, %s539
      %p546 = scmp.eq.s32.totalorder %s88, 1
      %p547 = por %p545, %p546
      %p548 = scmp.ne.s32.totalorder %s539, %s540
      %p549 = scmp.eq.s32.totalorder %s88, 0
      %p550 = por %p548, %p549
      %p551 = scmp.ne.s32.totalorder %s539, %s540
      %p552 = scmp.eq.s32.totalorder %s89, 1
      %p553 = por %p551, %p552
      %p555 = scmp.ne.s32.totalorder %s540, %s554
      %p556 = scmp.eq.s32.totalorder %s89, 0
      %p557 = por %p555, %p556
      %s559 = sadd.s32 %s558, 1
      %p562 = scmp.eq.s32.totalorder %s83, 1
      %p563 = scmp.ne.s32.totalorder %s558, %s560
      %p564 = scmp.eq.s32.totalorder %s83, 0
      %p565 = por %p563, %p564
      %p566 = scmp.ne.s32.totalorder %s558, %s560
      %p567 = scmp.eq.s32.totalorder %s88, 1
      %p568 = por %p566, %p567
      %p569 = scmp.ne.s32.totalorder %s560, %s561
      %p570 = scmp.eq.s32.totalorder %s88, 0
      %p571 = por %p569, %p570
      %p572 = scmp.ne.s32.totalorder %s560, %s561
      %p573 = scmp.eq.s32.totalorder %s89, 1
      %p574 = por %p572, %p573
      %p576 = scmp.ne.s32.totalorder %s561, %s575
      %p577 = scmp.eq.s32.totalorder %s89, 0
      %p578 = por %p576, %p577
      %s580 = sadd.s32 %s579, 1
      %p583 = scmp.eq.s32.totalorder %s83, 1
      %p584 = scmp.ne.s32.totalorder %s579, %s581
      %p585 = scmp.eq.s32.totalorder %s83, 0
      %p586 = por %p584, %p585
      %p587 = scmp.ne.s32.totalorder %s579, %s581
      %p588 = scmp.eq.s32.totalorder %s88, 1
      %p589 = por %p587, %p588
      %p590 = scmp.ne.s32.totalorder %s581, %s582
      %p591 = scmp.eq.s32.totalorder %s88, 0
      %p592 = por %p590, %p591
      %p593 = scmp.ne.s32.totalorder %s581, %s582
      %p594 = scmp.eq.s32.totalorder %s89, 1
      %p595 = por %p593, %p594
      %p597 = scmp.ne.s32.totalorder %s582, %s596
      %p598 = scmp.eq.s32.totalorder %s89, 0
      %p599 = por %p597, %p598
      %s601 = sadd.s32 %s600, 1
      %p604 = scmp.eq.s32.totalorder %s83, 1
      %p605 = scmp.ne.s32.totalorder %s600, %s602
      %p606 = scmp.eq.s32.totalorder %s83, 0
      %p607 = por %p605, %p606
      %p608 = scmp.ne.s32.totalorder %s600, %s602
      %p609 = scmp.eq.s32.totalorder %s88, 1
      %p610 = por %p608, %p609
      %p611 = scmp.ne.s32.totalorder %s602, %s603
      %p612 = scmp.eq.s32.totalorder %s88, 0
      %p613 = por %p611, %p612
      %p614 = scmp.ne.s32.totalorder %s602, %s603
      %p615 = scmp.eq.s32.totalorder %s89, 1
      %p616 = por %p614, %p615
      %p618 = scmp.ne.s32.totalorder %s603, %s617
      %p619 = scmp.eq.s32.totalorder %s89, 0
      %p620 = por %p618, %p619
      %s622 = sadd.s32 %s621, 1
      %p625 = scmp.eq.s32.totalorder %s83, 1
      %p626 = scmp.ne.s32.totalorder %s621, %s623
      %p627 = scmp.eq.s32.totalorder %s83, 0
      %p628 = por %p626, %p627
      %p629 = scmp.ne.s32.totalorder %s621, %s623
      %p630 = scmp.eq.s32.totalorder %s88, 1
      %p631 = por %p629, %p630
      %p632 = scmp.ne.s32.totalorder %s623, %s624
      %p633 = scmp.eq.s32.totalorder %s88, 0
      %p634 = por %p632, %p633
      %p635 = scmp.ne.s32.totalorder %s623, %s624
      %p636 = scmp.eq.s32.totalorder %s89, 1
      %p637 = por %p635, %p636
      %p639 = scmp.ne.s32.totalorder %s624, %s638
      %p640 = scmp.eq.s32.totalorder %s89, 0
      %p641 = por %p639, %p640
      %s643 = sadd.s32 %s642, 1
      %p646 = scmp.eq.s32.totalorder %s83, 1
      %p647 = scmp.ne.s32.totalorder %s642, %s644
      %p648 = scmp.eq.s32.totalorder %s83, 0
      %p649 = por %p647, %p648
      %p650 = scmp.ne.s32.totalorder %s642, %s644
      %p651 = scmp.eq.s32.totalorder %s88, 1
      %p652 = por %p650, %p651
      %p653 = scmp.ne.s32.totalorder %s644, %s645
      %p654 = scmp.eq.s32.totalorder %s88, 0
      %p655 = por %p653, %p654
      %p656 = scmp.ne.s32.totalorder %s644, %s645
      %p657 = scmp.eq.s32.totalorder %s89, 1
      %p658 = por %p656, %p657
      %p660 = scmp.ne.s32.totalorder %s645, %s659
      %p661 = scmp.eq.s32.totalorder %s89, 0
      %p662 = por %p660, %p661
      %s664 = sadd.s32 %s663, 1
      %p667 = scmp.eq.s32.totalorder %s83, 1
      %p668 = scmp.ne.s32.totalorder %s663, %s665
      %p669 = scmp.eq.s32.totalorder %s83, 0
      %p670 = por %p668, %p669
      %p671 = scmp.ne.s32.totalorder %s663, %s665
      %p672 = scmp.eq.s32.totalorder %s88, 1
      %p673 = por %p671, %p672
      %p674 = scmp.ne.s32.totalorder %s665, %s666
      %p675 = scmp.eq.s32.totalorder %s88, 0
      %p676 = por %p674, %p675
      %p677 = scmp.ne.s32.totalorder %s665, %s666
      %p678 = scmp.eq.s32.totalorder %s89, 1
      %p679 = por %p677, %p678
      %p681 = scmp.ne.s32.totalorder %s666, %s680
      %p682 = scmp.eq.s32.totalorder %s89, 0
      %p683 = por %p681, %p682
      %s685 = sadd.s32 %s684, 1
      %p688 = scmp.eq.s32.totalorder %s83, 1
      %p689 = scmp.ne.s32.totalorder %s684, %s686
      %p690 = scmp.eq.s32.totalorder %s83, 0
      %p691 = por %p689, %p690
      %p692 = scmp.ne.s32.totalorder %s684, %s686
      %p693 = scmp.eq.s32.totalorder %s88, 1
      %p694 = por %p692, %p693
      %p695 = scmp.ne.s32.totalorder %s686, %s687
      %p696 = scmp.eq.s32.totalorder %s88, 0
      %p697 = por %p695, %p696
      %p698 = scmp.ne.s32.totalorder %s686, %s687
      %p699 = scmp.eq.s32.totalorder %s89, 1
      %p700 = por %p698, %p699
      %p702 = scmp.ne.s32.totalorder %s687, %s701
      %p703 = scmp.eq.s32.totalorder %s89, 0
      %p704 = por %p702, %p703
      %s706 = sadd.s32 %s705, 1
      %p709 = scmp.eq.s32.totalorder %s83, 1
      %p710 = scmp.ne.s32.totalorder %s705, %s707
      %p711 = scmp.eq.s32.totalorder %s83, 0
      %p712 = por %p710, %p711
      %p713 = scmp.ne.s32.totalorder %s705, %s707
      %p714 = scmp.eq.s32.totalorder %s88, 1
      %p715 = por %p713, %p714
      %p716 = scmp.ne.s32.totalorder %s707, %s708
      %p717 = scmp.eq.s32.totalorder %s88, 0
      %p718 = por %p716, %p717
      %p719 = scmp.ne.s32.totalorder %s707, %s708
      %p720 = scmp.eq.s32.totalorder %s89, 1
      %p721 = por %p719, %p720
      %p723 = scmp.ne.s32.totalorder %s708, %s722
      %p724 = scmp.eq.s32.totalorder %s89, 0
      %p725 = por %p723, %p724
      %s726 = ssub.s32 %s83, %s90
      %p727 = scmp.eq.s32.totalorder %s726, 0
      %s729 = sadd.s32 %s728, 1
      %s730 = scalar_select %p727, %s728, %s729
      %p733 = pneg %p727
      %p734 = scmp.eq.s32.totalorder %s83, 1
      %p735 = por %p733, %p734
      %p736 = scmp.ne.s32.totalorder %s728, %s731
      %p737 = scmp.eq.s32.totalorder %s83, 0
      %p738 = por %p736, %p737
      %p739 = scmp.ne.s32.totalorder %s728, %s731
      %p740 = scmp.eq.s32.totalorder %s88, 1
      %p741 = por %p739, %p740
      %p742 = scmp.ne.s32.totalorder %s731, %s732
      %p743 = scmp.eq.s32.totalorder %s88, 0
      %p744 = por %p742, %p743
      %p745 = scmp.ne.s32.totalorder %s731, %s732
      %p746 = scmp.eq.s32.totalorder %s89, 1
      %p747 = por %p745, %p746
      %p749 = scmp.ne.s32.totalorder %s732, %s748
      %p750 = scmp.eq.s32.totalorder %s89, 0
      %p751 = por %p749, %p750
      %p752 = scmp.le.s32.totalorder 1, %s83
      %p753 = scmp.lt.s32.totalorder %s83, 3
      %p754 = pnand %p752, %p753
      %p755 = pneg %p754
      // Predicated region
      $region9: #{base_t1_forward.1} parent=5 // pred_check
        _
      $region10: #{base_t1_forward.1} parent=5 // pred_check_branch
        %757 = sbr.rel (%p754) target = $region12
      $region11: #{base_t1_forward.1} parent=5 // pred_region
        %s758 = ssub.s32 %s83, 1
        // Predicated region
        $region13: #{base_t1_forward.1} parent=11 // pred_check
          %p759 = pneg %p130
        $region14: #{base_t1_forward.1} parent=11 // pred_check_branch
          %761 = sbr.rel (%p759) target = $region16
        $region15: #{base_t1_forward.1} parent=11 // pred_region
          _
        $region16: #{base_t1_forward.1} parent=11 // pred_fallthru
          _
        // Predicated region
        $region17: #{base_t1_forward.1} parent=11 // pred_check
          %p762 = pneg %p151
        $region18: #{base_t1_forward.1} parent=11 // pred_check_branch
          %764 = sbr.rel (%p762) target = $region20
        $region19: #{base_t1_forward.1} parent=11 // pred_region
          _
        $region20: #{base_t1_forward.1} parent=11 // pred_fallthru
          _
        // Predicated region
        $region21: #{base_t1_forward.1} parent=11 // pred_check
          %p765 = pneg %p172
        $region22: #{base_t1_forward.1} parent=11 // pred_check_branch
          %767 = sbr.rel (%p765) target = $region24
        $region23: #{base_t1_forward.1} parent=11 // pred_region
          %s769 = ssub.s32 16, 16
          %770 = vsyncadd [#allocation6], %s769
          %s772 = sshll.u32 [#allocation5], 4
          %s773 = int_to_ptr.vmem [resolvable:$true] %s772
          %775 = dma.hbm_to_vmem [thread:$0]  %s7, 16, %s773, [#allocation6]
        $region24: #{base_t1_forward.1} parent=11 // pred_fallthru
          _
        // Predicated region
        $region25: #{base_t1_forward.1} parent=11 // pred_check
          %p776 = pneg %p193
        $region26: #{base_t1_forward.1} parent=11 // pred_check_branch
          %778 = sbr.rel (%p776) target = $region28
        $region27: #{base_t1_forward.1} parent=11 // pred_region
          %s780 = ssub.s32 3072, 3072
          %781 = vsyncadd [#allocation6], %s780
          %s782 = sshll.u32 [#allocation7], 4
          %s783 = int_to_ptr.vmem [resolvable:$true] %s782
          %788 = dma.hbm_to_vmem [thread:$0]  %s9, 3072, %s783, [#allocation6], 192, 192, 12
        $region28: #{base_t1_forward.1} parent=11 // pred_fallthru
          _
        // Predicated region
        $region29: #{base_t1_forward.1} parent=11 // pred_check
          %p789 = pneg %p214
        $region30: #{base_t1_forward.1} parent=11 // pred_check_branch
          %791 = sbr.rel (%p789) target = $region32
        $region31: #{base_t1_forward.1} parent=11 // pred_region
          %s793 = ssub.s32 48, 48
          %794 = vsyncadd [#allocation9], %s793
          %s796 = sshll.u32 [#allocation8], 4
          %s797 = int_to_ptr.vmem [resolvable:$true] %s796
          %799 = dma.hbm_to_vmem [thread:$0]  %s11, 48, %s797, [#allocation9]
        $region32: #{base_t1_forward.1} parent=11 // pred_fallthru
          _
        // Predicated region
        $region33: #{base_t1_forward.1} parent=11 // pred_check
          %p800 = pneg %p235
        $region34: #{base_t1_forward.1} parent=11 // pred_check_branch
          %802 = sbr.rel (%p800) target = $region36
        $region35: #{base_t1_forward.1} parent=11 // pred_region
          _
        $region36: #{base_t1_forward.1} parent=11 // pred_fallthru
          _
        // Predicated region
        $region37: #{base_t1_forward.1} parent=11 // pred_check
          %p803 = pneg %p256
        $region38: #{base_t1_forward.1} parent=11 // pred_check_branch
          %805 = sbr.rel (%p803) target = $region40
        $region39: #{base_t1_forward.1} parent=11 // pred_region
          %s807 = ssub.s32 16, 16
          %808 = vsyncadd [#allocation9], %s807
          %s810 = sshll.u32 [#allocation10], 4
          %s811 = int_to_ptr.vmem [resolvable:$true] %s810
          %813 = dma.hbm_to_vmem [thread:$0]  %s15, 16, %s811, [#allocation9]
        $region40: #{base_t1_forward.1} parent=11 // pred_fallthru
          _
        // Predicated region
        $region41: #{base_t1_forward.1} parent=11 // pred_check
          %p814 = pneg %p277
        $region42: #{base_t1_forward.1} parent=11 // pred_check_branch
          %816 = sbr.rel (%p814) target = $region44
        $region43: #{base_t1_forward.1} parent=11 // pred_region
          %s818 = ssub.s32 16, 16
          %819 = vsyncadd [#allocation12], %s818
          %s821 = sshll.u32 [#allocation11], 4
          %s822 = int_to_ptr.vmem [resolvable:$true] %s821
          %824 = dma.hbm_to_vmem [thread:$0]  %s17, 16, %s822, [#allocation12]
        $region44: #{base_t1_forward.1} parent=11 // pred_fallthru
          _
        // Predicated region
        $region45: #{base_t1_forward.1} parent=11 // pred_check
          %p825 = pneg %p298
        $region46: #{base_t1_forward.1} parent=11 // pred_check_branch
          %827 = sbr.rel (%p825) target = $region48
        $region47: #{base_t1_forward.1} parent=11 // pred_region
          %s829 = ssub.s32 16, 16
          %830 = vsyncadd [#allocation12], %s829
          %s832 = sshll.u32 [#allocation13], 4
          %s833 = int_to_ptr.vmem [resolvable:$true] %s832
          %835 = dma.hbm_to_vmem [thread:$0]  %s19, 16, %s833, [#allocation12]
        $region48: #{base_t1_forward.1} parent=11 // pred_fallthru
          _
        // Predicated region
        $region49: #{base_t1_forward.1} parent=11 // pred_check
          %p836 = pneg %p319
        $region50: #{base_t1_forward.1} parent=11 // pred_check_branch
          %838 = sbr.rel (%p836) target = $region52
        $region51: #{base_t1_forward.1} parent=11 // pred_region
          %s840 = ssub.s32 16384, 16384
          %841 = vsyncadd [#allocation15], %s840
          %s842 = sshll.u32 [#allocation14], 4
          %s843 = int_to_ptr.vmem [resolvable:$true] %s842
          %848 = dma.hbm_to_vmem [thread:$0]  %s21, 16384, %s843, [#allocation15], 1024, 1024, 64
        $region52: #{base_t1_forward.1} parent=11 // pred_fallthru
          _
        // Predicated region
        $region53: #{base_t1_forward.1} parent=11 // pred_check
          %p849 = pneg %p340
        $region54: #{base_t1_forward.1} parent=11 // pred_check_branch
          %851 = sbr.rel (%p849) target = $region56
        $region55: #{base_t1_forward.1} parent=11 // pred_region
          %s853 = ssub.s32 256, 256
          %854 = vsyncadd [#allocation15], %s853
          %s856 = sshll.u32 [#allocation16], 4
          %s857 = int_to_ptr.vmem [resolvable:$true] %s856
          %859 = dma.hbm_to_vmem [thread:$0]  %s23, 256, %s857, [#allocation15]
        $region56: #{base_t1_forward.1} parent=11 // pred_fallthru
          _
        // Predicated region
        $region57: #{base_t1_forward.1} parent=11 // pred_check
          %p860 = pneg %p361
        $region58: #{base_t1_forward.1} parent=11 // pred_check_branch
          %862 = sbr.rel (%p860) target = $region60
        $region59: #{base_t1_forward.1} parent=11 // pred_region
          %s864 = ssub.s32 16384, 16384
          %865 = vsyncadd [#allocation18], %s864
          %s866 = sshll.u32 [#allocation17], 4
          %s867 = int_to_ptr.vmem [resolvable:$true] %s866
          %872 = dma.hbm_to_vmem [thread:$0]  %s25, 16384, %s867, [#allocation18], 64, 64, 4
        $region60: #{base_t1_forward.1} parent=11 // pred_fallthru
          _
        // Predicated region
        $region61: #{base_t1_forward.1} parent=11 // pred_check
          %p873 = pneg %p382
        $region62: #{base_t1_forward.1} parent=11 // pred_check_branch
          %875 = sbr.rel (%p873) target = $region64
        $region63: #{base_t1_forward.1} parent=11 // pred_region
          %s877 = ssub.s32 16, 16
          %878 = vsyncadd [#allocation18], %s877
          %s880 = sshll.u32 [#allocation19], 4
          %s881 = int_to_ptr.vmem [resolvable:$true] %s880
          %883 = dma.hbm_to_vmem [thread:$0]  %s27, 16, %s881, [#allocation18]
        $region64: #{base_t1_forward.1} parent=11 // pred_fallthru
          _
        // Predicated region
        $region65: #{base_t1_forward.1} parent=11 // pred_check
          %p884 = pneg %p403
        $region66: #{base_t1_forward.1} parent=11 // pred_check_branch
          %886 = sbr.rel (%p884) target = $region68
        $region67: #{base_t1_forward.1} parent=11 // pred_region
          %s888 = ssub.s32 16, 16
          %889 = vsyncadd [#allocation21], %s888
          %s891 = sshll.u32 [#allocation20], 4
          %s892 = int_to_ptr.vmem [resolvable:$true] %s891
          %894 = dma.hbm_to_vmem [thread:$0]  %s29, 16, %s892, [#allocation21]
        $region68: #{base_t1_forward.1} parent=11 // pred_fallthru
          _
        // Predicated region
        $region69: #{base_t1_forward.1} parent=11 // pred_check
          %p895 = pneg %p424
        $region70: #{base_t1_forward.1} parent=11 // pred_check_branch
          %897 = sbr.rel (%p895) target = $region72
        $region71: #{base_t1_forward.1} parent=11 // pred_region
          %s899 = ssub.s32 16, 16
          %900 = vsyncadd [#allocation21], %s899
          %s902 = sshll.u32 [#allocation22], 4
          %s903 = int_to_ptr.vmem [resolvable:$true] %s902
          %905 = dma.hbm_to_vmem [thread:$0]  %s31, 16, %s903, [#allocation21]
        $region72: #{base_t1_forward.1} parent=11 // pred_fallthru
          _
        // Predicated region
        $region73: #{base_t1_forward.1} parent=11 // pred_check
          %p906 = pneg %p445
        $region74: #{base_t1_forward.1} parent=11 // pred_check_branch
          %908 = sbr.rel (%p906) target = $region76
        $region75: #{base_t1_forward.1} parent=11 // pred_region
          %s910 = ssub.s32 3072, 3072
          %911 = vsyncadd [#allocation24], %s910
          %s912 = sshll.u32 [#allocation23], 4
          %s913 = int_to_ptr.vmem [resolvable:$true] %s912
          %918 = dma.hbm_to_vmem [thread:$0]  %s33, 3072, %s913, [#allocation24], 192, 192, 12
        $region76: #{base_t1_forward.1} parent=11 // pred_fallthru
          _
        // Predicated region
        $region77: #{base_t1_forward.1} parent=11 // pred_check
          %p919 = pneg %p466
        $region78: #{base_t1_forward.1} parent=11 // pred_check_branch
          %921 = sbr.rel (%p919) target = $region80
        $region79: #{base_t1_forward.1} parent=11 // pred_region
          _
        $region80: #{base_t1_forward.1} parent=11 // pred_fallthru
          _
        // Predicated region
        $region81: #{base_t1_forward.1} parent=11 // pred_check
          %p922 = pneg %p487
        $region82: #{base_t1_forward.1} parent=11 // pred_check_branch
          %924 = sbr.rel (%p922) target = $region84
        $region83: #{base_t1_forward.1} parent=11 // pred_region
          %s926 = ssub.s32 1024, 1024
          %927 = vsyncadd [#allocation24], %s926
          %s928 = sshll.u32 [#allocation25], 4
          %s929 = int_to_ptr.vmem [resolvable:$true] %s928
          %934 = dma.hbm_to_vmem [thread:$0]  %s37, 1024, %s929, [#allocation24], 64, 64, 4
        $region84: #{base_t1_forward.1} parent=11 // pred_fallthru
          _
        // Predicated region
        $region85: #{base_t1_forward.1} parent=11 // pred_check
          %p935 = pneg %p508
        $region86: #{base_t1_forward.1} parent=11 // pred_check_branch
          %937 = sbr.rel (%p935) target = $region88
        $region87: #{base_t1_forward.1} parent=11 // pred_region
          _
        $region88: #{base_t1_forward.1} parent=11 // pred_fallthru
          _
        // Predicated region
        $region89: #{base_t1_forward.1} parent=11 // pred_check
          %p938 = pneg %p529
        $region90: #{base_t1_forward.1} parent=11 // pred_check_branch
          %940 = sbr.rel (%p938) target = $region92
        $region91: #{base_t1_forward.1} parent=11 // pred_region
          _
        $region92: #{base_t1_forward.1} parent=11 // pred_fallthru
          _
        // Predicated region
        $region93: #{base_t1_forward.1} parent=11 // pred_check
          %p941 = pneg %p550
        $region94: #{base_t1_forward.1} parent=11 // pred_check_branch
          %943 = sbr.rel (%p941) target = $region96
        $region95: #{base_t1_forward.1} parent=11 // pred_region
          _
        $region96: #{base_t1_forward.1} parent=11 // pred_fallthru
          _
        // Predicated region
        $region97: #{base_t1_forward.1} parent=11 // pred_check
          %p944 = pneg %p571
        $region98: #{base_t1_forward.1} parent=11 // pred_check_branch
          %946 = sbr.rel (%p944) target = $region100
        $region99: #{base_t1_forward.1} parent=11 // pred_region
          %s948 = ssub.s32 16384, 16384
          %949 = vsyncadd [#allocation27], %s948
          %s950 = sshll.u32 [#allocation26], 4
          %s951 = int_to_ptr.vmem [resolvable:$true] %s950
          %956 = dma.hbm_to_vmem [thread:$0]  %s45, 16384, %s951, [#allocation27], 1024, 1024, 64
        $region100: #{base_t1_forward.1} parent=11 // pred_fallthru
          _
        // Predicated region
        $region101: #{base_t1_forward.1} parent=11 // pred_check
          %p957 = pneg %p592
        $region102: #{base_t1_forward.1} parent=11 // pred_check_branch
          %959 = sbr.rel (%p957) target = $region104
        $region103: #{base_t1_forward.1} parent=11 // pred_region
          %s961 = ssub.s32 256, 256
          %962 = vsyncadd [#allocation27], %s961
          %s964 = sshll.u32 [#allocation28], 4
          %s965 = int_to_ptr.vmem [resolvable:$true] %s964
          %967 = dma.hbm_to_vmem [thread:$0]  %s47, 256, %s965, [#allocation27]
        $region104: #{base_t1_forward.1} parent=11 // pred_fallthru
          _
        // Predicated region
        $region105: #{base_t1_forward.1} parent=11 // pred_check
          %p968 = pneg %p613
        $region106: #{base_t1_forward.1} parent=11 // pred_check_branch
          %970 = sbr.rel (%p968) target = $region108
        $region107: #{base_t1_forward.1} parent=11 // pred_region
          %s972 = ssub.s32 16384, 16384
          %973 = vsyncadd [#allocation30], %s972
          %s974 = sshll.u32 [#allocation29], 4
          %s975 = int_to_ptr.vmem [resolvable:$true] %s974
          %980 = dma.hbm_to_vmem [thread:$0]  %s49, 16384, %s975, [#allocation30], 64, 64, 4
        $region108: #{base_t1_forward.1} parent=11 // pred_fallthru
          _
        // Predicated region
        $region109: #{base_t1_forward.1} parent=11 // pred_check
          %p981 = pneg %p634
        $region110: #{base_t1_forward.1} parent=11 // pred_check_branch
          %983 = sbr.rel (%p981) target = $region112
        $region111: #{base_t1_forward.1} parent=11 // pred_region
          _
        $region112: #{base_t1_forward.1} parent=11 // pred_fallthru
          _
        // Predicated region
        $region113: #{base_t1_forward.1} parent=11 // pred_check
          %p984 = pneg %p655
        $region114: #{base_t1_forward.1} parent=11 // pred_check_branch
          %986 = sbr.rel (%p984) target = $region116
        $region115: #{base_t1_forward.1} parent=11 // pred_region
          _
        $region116: #{base_t1_forward.1} parent=11 // pred_fallthru
          _
        // Predicated region
        $region117: #{base_t1_forward.1} parent=11 // pred_check
          %p987 = pneg %p676
        $region118: #{base_t1_forward.1} parent=11 // pred_check_branch
          %989 = sbr.rel (%p987) target = $region120
        $region119: #{base_t1_forward.1} parent=11 // pred_region
          _
        $region120: #{base_t1_forward.1} parent=11 // pred_fallthru
          _
        // Predicated region
        $region121: #{base_t1_forward.1} parent=11 // pred_check
          %p990 = pneg %p697
        $region122: #{base_t1_forward.1} parent=11 // pred_check_branch
          %992 = sbr.rel (%p990) target = $region124
        $region123: #{base_t1_forward.1} parent=11 // pred_region
          %s994 = ssub.s32 1024, 1024
          %995 = vsyncadd [#allocation30], %s994
          %s996 = sshll.u32 [#allocation31], 4
          %s997 = int_to_ptr.vmem [resolvable:$true] %s996
          %1002 = dma.hbm_to_vmem [thread:$0]  %s57, 1024, %s997, [#allocation30], 64, 64, 4
        $region124: #{base_t1_forward.1} parent=11 // pred_fallthru
          _
        // Predicated region
        $region125: #{base_t1_forward.1} parent=11 // pred_check
          %p1003 = pneg %p718
        $region126: #{base_t1_forward.1} parent=11 // pred_check_branch
          %1005 = sbr.rel (%p1003) target = $region128
        $region127: #{base_t1_forward.1} parent=11 // pred_region
          %s1007 = ssub.s32 16, 16
          %1008 = vsyncadd [#allocation33], %s1007
          %s1010 = sshll.u32 [#allocation32], 4
          %s1011 = int_to_ptr.vmem [resolvable:$true] %s1010
          %1013 = dma.hbm_to_vmem [thread:$0]  %s59, 16, %s1011, [#allocation33]
        $region128: #{base_t1_forward.1} parent=11 // pred_fallthru
          _
      $region12: #{base_t1_forward.1} parent=5 // pred_fallthru
        _
      %p1014 = scmp.lt.s32.totalorder %s83, 2
      // Predicated region
      $region129: #{base_t1_forward.1} parent=5 // pred_check
        %p1015 = pneg %p1014
      $region130: #{base_t1_forward.1} parent=5 // pred_check_branch
        %1017 = sbr.rel (%p1015) target = $region132
      $region131: #{base_t1_forward.1} parent=5 // pred_region
        // Predicated region
        $region133: #{base_t1_forward.1} parent=131 // pred_check
          %p1018 = pneg %p103
        $region134: #{base_t1_forward.1} parent=131 // pred_check_branch
          %1020 = sbr.rel (%p1018) target = $region136
        $region135: #{base_t1_forward.1} parent=131 // pred_region
          %s1021 = sand.u32 %s93, 1
          %s1022 = scalar_lea.sflag [#allocation3], %s1021
          %s1023 = sand.u32 %s93, 1
          %s1024 = smul.addr %s1023, 8
          %s1025 = scalar_lea.vmem [#allocation2], %s1024
          %s1027 = ssub.s32 128, 128
          %1028 = vsyncadd %s1022, %s1027
          %s1029 = smul.addr %s83, 128
          %s1030 = scalar_lea.hbm %s1, %s1029
          %s1032 = sshll.u32 %s1025, 4
          %s1033 = int_to_ptr.vmem [resolvable:$true] %s1032
          %1035 = dma.hbm_to_vmem [thread:$0]  %s1030, 128, %s1033, %s1022
        $region136: #{base_t1_forward.1} parent=131 // pred_fallthru
          _
      $region132: #{base_t1_forward.1} parent=5 // pred_fallthru
        _
      %p1036 = scmp.le.s32.totalorder 1, %s83
      %p1037 = scmp.lt.s32.totalorder %s83, 3
      %p1038 = pnand %p1036, %p1037
      %p1039 = pneg %p1038
      // Predicated region
      $region137: #{base_t1_forward.1} parent=5 // pred_check
        _
      $region138: #{base_t1_forward.1} parent=5 // pred_check_branch
        %1041 = sbr.rel (%p1038) target = $region140
      $region139: #{base_t1_forward.1} parent=5 // pred_region
        %s1042 = ssub.s32 %s83, 1
        %s1043 = sand.u32 %s96, 1
        %s1044 = scalar_lea.sflag [#allocation3], %s1043
        %s1045 = sand.u32 %s96, 1
        %s1046 = smul.addr %s1045, 8
        %s1047 = scalar_lea.vmem [#allocation2], %s1046
        // Predicated region
        $region141: #{base_t1_forward.1} parent=139 // pred_check
          %p1048 = pneg %p109
        $region142: #{base_t1_forward.1} parent=139 // pred_check_branch
          %1050 = sbr.rel (%p1048) target = $region144
        $region143: #{base_t1_forward.1} parent=139 // pred_region
          %1051 = dma.done %s1044, 128
        $region144: #{base_t1_forward.1} parent=139 // pred_fallthru
          _
        // Predicated region
        $region145: #{base_t1_forward.1} parent=139 // pred_check
          %p1052 = pneg %p172
        $region146: #{base_t1_forward.1} parent=139 // pred_check_branch
          %1054 = sbr.rel (%p1052) target = $region148
        $region147: #{base_t1_forward.1} parent=139 // pred_region
          %1055 = dma.done [#allocation6], 16
        $region148: #{base_t1_forward.1} parent=139 // pred_fallthru
          _
        // Predicated region
        $region149: #{base_t1_forward.1} parent=139 // pred_check
          %p1056 = pneg %p193
        $region150: #{base_t1_forward.1} parent=139 // pred_check_branch
          %1058 = sbr.rel (%p1056) target = $region152
        $region151: #{base_t1_forward.1} parent=139 // pred_region
          %1059 = dma.done [#allocation6], 3072
        $region152: #{base_t1_forward.1} parent=139 // pred_fallthru
          _
        // Predicated region
        $region153: #{base_t1_forward.1} parent=139 // pred_check
          %p1060 = pneg %p214
        $region154: #{base_t1_forward.1} parent=139 // pred_check_branch
          %1062 = sbr.rel (%p1060) target = $region156
        $region155: #{base_t1_forward.1} parent=139 // pred_region
          %1063 = dma.done [#allocation9], 48
        $region156: #{base_t1_forward.1} parent=139 // pred_fallthru
          _
        // Predicated region
        $region157: #{base_t1_forward.1} parent=139 // pred_check
          %p1064 = pneg %p256
        $region158: #{base_t1_forward.1} parent=139 // pred_check_branch
          %1066 = sbr.rel (%p1064) target = $region160
        $region159: #{base_t1_forward.1} parent=139 // pred_region
          %1067 = dma.done [#allocation9], 16
        $region160: #{base_t1_forward.1} parent=139 // pred_fallthru
          _
        // Predicated region
        $region161: #{base_t1_forward.1} parent=139 // pred_check
          %p1068 = pneg %p277
        $region162: #{base_t1_forward.1} parent=139 // pred_check_branch
          %1070 = sbr.rel (%p1068) target = $region164
        $region163: #{base_t1_forward.1} parent=139 // pred_region
          %1071 = dma.done [#allocation12], 16
        $region164: #{base_t1_forward.1} parent=139 // pred_fallthru
          _
        // Predicated region
        $region165: #{base_t1_forward.1} parent=139 // pred_check
          %p1072 = pneg %p298
        $region166: #{base_t1_forward.1} parent=139 // pred_check_branch
          %1074 = sbr.rel (%p1072) target = $region168
        $region167: #{base_t1_forward.1} parent=139 // pred_region
          %1075 = dma.done [#allocation12], 16
        $region168: #{base_t1_forward.1} parent=139 // pred_fallthru
          _
        // Predicated region
        $region169: #{base_t1_forward.1} parent=139 // pred_check
          %p1076 = pneg %p319
        $region170: #{base_t1_forward.1} parent=139 // pred_check_branch
          %1078 = sbr.rel (%p1076) target = $region172
        $region171: #{base_t1_forward.1} parent=139 // pred_region
          %1079 = dma.done [#allocation15], 16384
        $region172: #{base_t1_forward.1} parent=139 // pred_fallthru
          _
        // Predicated region
        $region173: #{base_t1_forward.1} parent=139 // pred_check
          %p1080 = pneg %p340
        $region174: #{base_t1_forward.1} parent=139 // pred_check_branch
          %1082 = sbr.rel (%p1080) target = $region176
        $region175: #{base_t1_forward.1} parent=139 // pred_region
          %1083 = dma.done [#allocation15], 256
        $region176: #{base_t1_forward.1} parent=139 // pred_fallthru
          _
        // Predicated region
        $region177: #{base_t1_forward.1} parent=139 // pred_check
          %p1084 = pneg %p361
        $region178: #{base_t1_forward.1} parent=139 // pred_check_branch
          %1086 = sbr.rel (%p1084) target = $region180
        $region179: #{base_t1_forward.1} parent=139 // pred_region
          %1087 = dma.done [#allocation18], 16384
        $region180: #{base_t1_forward.1} parent=139 // pred_fallthru
          _
        // Predicated region
        $region181: #{base_t1_forward.1} parent=139 // pred_check
          %p1088 = pneg %p382
        $region182: #{base_t1_forward.1} parent=139 // pred_check_branch
          %1090 = sbr.rel (%p1088) target = $region184
        $region183: #{base_t1_forward.1} parent=139 // pred_region
          %1091 = dma.done [#allocation18], 16
        $region184: #{base_t1_forward.1} parent=139 // pred_fallthru
          _
        // Predicated region
        $region185: #{base_t1_forward.1} parent=139 // pred_check
          %p1092 = pneg %p403
        $region186: #{base_t1_forward.1} parent=139 // pred_check_branch
          %1094 = sbr.rel (%p1092) target = $region188
        $region187: #{base_t1_forward.1} parent=139 // pred_region
          %1095 = dma.done [#allocation21], 16
        $region188: #{base_t1_forward.1} parent=139 // pred_fallthru
          _
        // Predicated region
        $region189: #{base_t1_forward.1} parent=139 // pred_check
          %p1096 = pneg %p424
        $region190: #{base_t1_forward.1} parent=139 // pred_check_branch
          %1098 = sbr.rel (%p1096) target = $region192
        $region191: #{base_t1_forward.1} parent=139 // pred_region
          %1099 = dma.done [#allocation21], 16
        $region192: #{base_t1_forward.1} parent=139 // pred_fallthru
          _
        // Predicated region
        $region193: #{base_t1_forward.1} parent=139 // pred_check
          %p1100 = pneg %p445
        $region194: #{base_t1_forward.1} parent=139 // pred_check_branch
          %1102 = sbr.rel (%p1100) target = $region196
        $region195: #{base_t1_forward.1} parent=139 // pred_region
          %1103 = dma.done [#allocation24], 3072
        $region196: #{base_t1_forward.1} parent=139 // pred_fallthru
          _
        // Predicated region
        $region197: #{base_t1_forward.1} parent=139 // pred_check
          %p1104 = pneg %p487
        $region198: #{base_t1_forward.1} parent=139 // pred_check_branch
          %1106 = sbr.rel (%p1104) target = $region200
        $region199: #{base_t1_forward.1} parent=139 // pred_region
          %1107 = dma.done [#allocation24], 1024
        $region200: #{base_t1_forward.1} parent=139 // pred_fallthru
          _
        // Predicated region
        $region201: #{base_t1_forward.1} parent=139 // pred_check
          %p1108 = pneg %p571
        $region202: #{base_t1_forward.1} parent=139 // pred_check_branch
          %1110 = sbr.rel (%p1108) target = $region204
        $region203: #{base_t1_forward.1} parent=139 // pred_region
          %1111 = dma.done [#allocation27], 16384
        $region204: #{base_t1_forward.1} parent=139 // pred_fallthru
          _
        // Predicated region
        $region205: #{base_t1_forward.1} parent=139 // pred_check
          %p1112 = pneg %p592
        $region206: #{base_t1_forward.1} parent=139 // pred_check_branch
          %1114 = sbr.rel (%p1112) target = $region208
        $region207: #{base_t1_forward.1} parent=139 // pred_region
          %1115 = dma.done [#allocation27], 256
        $region208: #{base_t1_forward.1} parent=139 // pred_fallthru
          _
        // Predicated region
        $region209: #{base_t1_forward.1} parent=139 // pred_check
          %p1116 = pneg %p613
        $region210: #{base_t1_forward.1} parent=139 // pred_check_branch
          %1118 = sbr.rel (%p1116) target = $region212
        $region211: #{base_t1_forward.1} parent=139 // pred_region
          %1119 = dma.done [#allocation30], 16384
        $region212: #{base_t1_forward.1} parent=139 // pred_fallthru
          _
        // Predicated region
        $region213: #{base_t1_forward.1} parent=139 // pred_check
          %p1120 = pneg %p697
        $region214: #{base_t1_forward.1} parent=139 // pred_check_branch
          %1122 = sbr.rel (%p1120) target = $region216
        $region215: #{base_t1_forward.1} parent=139 // pred_region
          %1123 = dma.done [#allocation30], 1024
        $region216: #{base_t1_forward.1} parent=139 // pred_fallthru
          _
        // Predicated region
        $region217: #{base_t1_forward.1} parent=139 // pred_check
          %p1124 = pneg %p718
        $region218: #{base_t1_forward.1} parent=139 // pred_check_branch
          %1126 = sbr.rel (%p1124) target = $region220
        $region219: #{base_t1_forward.1} parent=139 // pred_region
          %1127 = dma.done [#allocation33], 16
        $region220: #{base_t1_forward.1} parent=139 // pred_fallthru
          _
        %s1128 = sand.u32 %s96, 1
        %s1129 = scalar_lea.sflag [#allocation3], %s1128
        %s1130 = sand.u32 %s96, 1
        %s1131 = smul.addr %s1130, 8
        %s1132 = scalar_lea.vmem [#allocation2], %s1131
        %p1133 = pneg %p109
        %p1134 = pneg %p106
        %p1135 = pneg %p130
        %p1136 = pneg %p127
        %p1137 = pneg %p151
        %p1138 = pneg %p148
        %p1139 = pneg %p172
        %p1140 = pneg %p169
        %p1141 = pneg %p193
        %p1142 = pneg %p190
        %p1143 = pneg %p214
        %p1144 = pneg %p211
        %p1145 = pneg %p235
        %p1146 = pneg %p232
        %p1147 = pneg %p256
        %p1148 = pneg %p253
        %p1149 = pneg %p277
        %p1150 = pneg %p274
        %p1151 = pneg %p298
        %p1152 = pneg %p295
        %p1153 = pneg %p319
        %p1154 = pneg %p316
        %p1155 = pneg %p340
        %p1156 = pneg %p337
        %p1157 = pneg %p361
        %p1158 = pneg %p358
        %p1159 = pneg %p382
        %p1160 = pneg %p379
        %p1161 = pneg %p403
        %p1162 = pneg %p400
        %p1163 = pneg %p424
        %p1164 = pneg %p421
        %p1165 = pneg %p445
        %p1166 = pneg %p442
        %p1167 = pneg %p466
        %p1168 = pneg %p463
        %p1169 = pneg %p487
        %p1170 = pneg %p484
        %p1171 = pneg %p508
        %p1172 = pneg %p505
        %p1173 = pneg %p529
        %p1174 = pneg %p526
        %p1175 = pneg %p550
        %p1176 = pneg %p547
        %p1177 = pneg %p571
        %p1178 = pneg %p568
        %p1179 = pneg %p592
        %p1180 = pneg %p589
        %p1181 = pneg %p613
        %p1182 = pneg %p610
        %p1183 = pneg %p634
        %p1184 = pneg %p631
        %p1185 = pneg %p655
        %p1186 = pneg %p652
        %p1187 = pneg %p676
        %p1188 = pneg %p673
        %p1189 = pneg %p697
        %p1190 = pneg %p694
        %p1191 = pneg %p718
        %p1192 = pneg %p715
        %p1193 = pneg %p744
        %p1194 = pneg %p741
        %s1195 = sand.u32 %s731, 1
        %s1196 = scalar_lea.sflag [#allocation4], %s1195
        %s1197 = sand.u32 %s731, 1
        %s1198 = smul.addr %s1197, 8
        %s1199 = scalar_lea.vmem [#allocation34], %s1198
        %v1201 = vld [vmem:[%s1047] sm:$0xff]
        %v1202 = vpack.c.bf16 %v1201, %v1201
        %v1203 = vld [vmem:[%s5] sm:$0xf]
        %v1204 = vld [vmem:[%s5 + $0x4] sm:$0xf]
        %v1205 = vld [vmem:[#allocation5] sm:$0x1]
        %v1207 = vlaneseq
        %v1208 = vshrl.u32 %v1207, 7
        %v1209 = vsub.s32 0, %v1208
        %v1210 = vrot.slane %v1205, %v1209
        %v1214 = vunpack.c.l.b16 %v1203
        %v1215 = vunpack.c.l.b16 %v1204
        %v1216 = vpack.c.b16 %v1215, %v1214
        %vm1218 = vcmask 130048
        %v1220 = vsel %vm1218, %v1202, 0
        %1222 = vmatprep.subr.bf16.mxu0 0
        %1223 = vmatpush1.bf16.msra.mxu0 %v1216
        %1224 = vmatprep.subr.bf16.mxu0 0
        %1225 = vmatpush1.bf16.msra.mxu0 0
        %1226 = vmatprep.subr.bf16.mxu0 0
        %1227 = vmatpush1.bf16.msra.mxu0 0
        %1228 = vmatprep.subr.bf16.mxu0 0
        %1229 = vmatpush1.bf16.msra.mxu0 0
        %1230 = vmatprep.subr.bf16.mxu0 0
        %1231 = vmatpush1.bf16.msra.mxu0 0
        %1232 = vmatprep.subr.bf16.mxu0 0
        %1233 = vmatpush1.bf16.msra.mxu0 0
        %1234 = vmatprep.subr.bf16.mxu0 0
        %1235 = vmatpush1.bf16.msra.mxu0 0
        %1236 = vmatprep.subr.bf16.mxu0 0
        %1237 = vmatpush1.bf16.msra.mxu0 0
        %1238 = vmatprep.subr.bf16.mxu0 0
        %1239 = vmatpush1.bf16.msra.mxu0 0
        %1240 = vmatprep.subr.bf16.mxu0 0
        %1241 = vmatpush1.bf16.msra.mxu0 0
        %1242 = vmatprep.subr.bf16.mxu0 0
        %1243 = vmatpush1.bf16.msra.mxu0 0
        %1244 = vmatprep.subr.bf16.mxu0 0
        %1245 = vmatpush1.bf16.msra.mxu0 0
        %1246 = vmatprep.subr.bf16.mxu0 0
        %1247 = vmatpush1.bf16.msra.mxu0 0
        %1248 = vmatprep.subr.bf16.mxu0 0
        %1249 = vmatpush1.bf16.msra.mxu0 0
        %1250 = vmatprep.subr.bf16.mxu0 0
        %1251 = vmatpush1.bf16.msra.mxu0 0
        %1252 = vmatprep.subr.bf16.mxu0 0
        %1253 = vmatpush1.bf16.msra.mxu0 0
        %1254 = vmatprep.mubr.bf16.mxu0 0
        %1255 = vmatmul.mubr.bf16.gmra.mrb[0].mxu0 %v1220
        %v1256 = vpop.f32.mrb[0].mxu0
        %v1257 = vadd.f32 %v1210, %v1256
        %v1258 = vpop.f32.mrb[0].mxu0
        %v1259 = vpop.f32.mrb[0].mxu0
        %v1260 = vpop.f32.mrb[0].mxu0
        %1261 = vdwg.mxu0
        %v1262 = vld [vmem:[%s3] sm:$0xff]
        %v1263 = vadd.f32 %v1257, %v1262
        %v1264 = vpack.c.bf16 %v1263, %v1263
        %v1265 = vld [vmem:[#allocation7] sm:$0xff]
        %v1266 = vld [vmem:[#allocation7 + $0x8] sm:$0xf]
        %v1267 = vld [vmem:[#allocation7 + $0xc] sm:$0xff]
        %v1268 = vld [vmem:[#allocation7 + $0x14] sm:$0xf]
        %v1269 = vld [vmem:[#allocation7 + $0x18] sm:$0xff]
        %v1270 = vld [vmem:[#allocation7 + $0x20] sm:$0xf]
        %v1271 = vld [vmem:[#allocation7 + $0x24] sm:$0xff]
        %v1272 = vld [vmem:[#allocation7 + $0x2c] sm:$0xf]
        %v1273 = vld [vmem:[#allocation7 + $0x30] sm:$0xff]
        %v1274 = vld [vmem:[#allocation7 + $0x38] sm:$0xf]
        %v1275 = vld [vmem:[#allocation7 + $0x3c] sm:$0xff]
        %v1276 = vld [vmem:[#allocation7 + $0x44] sm:$0xf]
        %v1277 = vld [vmem:[#allocation7 + $0x48] sm:$0xff]
        %v1278 = vld [vmem:[#allocation7 + $0x50] sm:$0xf]
        %v1279 = vld [vmem:[#allocation7 + $0x54] sm:$0xff]
        %v1280 = vld [vmem:[#allocation7 + $0x5c] sm:$0xf]
        %v1281 = vld [vmem:[#allocation7 + $0x60] sm:$0xff]
        %v1282 = vld [vmem:[#allocation7 + $0x68] sm:$0xf]
        %v1283 = vld [vmem:[#allocation7 + $0x6c] sm:$0xff]
        %v1284 = vld [vmem:[#allocation7 + $0x74] sm:$0xf]
        %v1285 = vld [vmem:[#allocation7 + $0x78] sm:$0xff]
        %v1286 = vld [vmem:[#allocation7 + $0x80] sm:$0xf]
        %v1287 = vld [vmem:[#allocation7 + $0x84] sm:$0xff]
        %v1288 = vld [vmem:[#allocation7 + $0x8c] sm:$0xf]
        %v1289 = vld [vmem:[#allocation7 + $0x90] sm:$0xff]
        %v1290 = vld [vmem:[#allocation7 + $0x98] sm:$0xf]
        %v1291 = vld [vmem:[#allocation7 + $0x9c] sm:$0xff]
        %v1292 = vld [vmem:[#allocation7 + $0xa4] sm:$0xf]
        %v1293 = vld [vmem:[#allocation7 + $0xa8] sm:$0xff]
        %v1294 = vld [vmem:[#allocation7 + $0xb0] sm:$0xf]
        %v1295 = vld [vmem:[#allocation7 + $0xb4] sm:$0xff]
        %v1296 = vld [vmem:[#allocation7 + $0xbc] sm:$0xf]
        %v1297 = vld [vmem:[#allocation8] sm:$0x7]
        %v1299 = vlaneseq
        %v1300 = vshrl.u32 %v1299, 7
        %v1301 = vsub.s32 0, %v1300
        %v1302 = vrot.slane %v1297, %v1301
        %v1303 = vlaneseq
        %v1304 = vshrl.u32 %v1303, 7
        %v1305 = vsub.s32 1, %v1304
        %v1306 = vrot.slane %v1297, %v1305
        %v1307 = vlaneseq
        %v1308 = vshrl.u32 %v1307, 7
        %v1309 = vsub.s32 2, %v1308
        %v1310 = vrot.slane %v1297, %v1309
        %v1346 = vunpack.c.l.b16 %v1265
        %v1347 = vunpack.c.h.b16 %v1265
        %v1348 = vunpack.c.l.b16 %v1266
        %v1349 = vunpack.c.l.b16 %v1267
        %v1350 = vunpack.c.h.b16 %v1267
        %v1351 = vunpack.c.l.b16 %v1268
        %v1352 = vunpack.c.l.b16 %v1269
        %v1353 = vunpack.c.h.b16 %v1269
        %v1354 = vunpack.c.l.b16 %v1270
        %v1355 = vunpack.c.l.b16 %v1271
        %v1356 = vunpack.c.h.b16 %v1271
        %v1357 = vunpack.c.l.b16 %v1272
        %v1358 = vunpack.c.l.b16 %v1273
        %v1359 = vunpack.c.h.b16 %v1273
        %v1360 = vunpack.c.l.b16 %v1274
        %v1361 = vunpack.c.l.b16 %v1275
        %v1362 = vunpack.c.h.b16 %v1275
        %v1363 = vunpack.c.l.b16 %v1276
        %v1364 = vunpack.c.l.b16 %v1277
        %v1365 = vunpack.c.h.b16 %v1277
        %v1366 = vunpack.c.l.b16 %v1278
        %v1367 = vunpack.c.l.b16 %v1279
        %v1368 = vunpack.c.h.b16 %v1279
        %v1369 = vunpack.c.l.b16 %v1280
        %v1370 = vunpack.c.l.b16 %v1281
        %v1371 = vunpack.c.h.b16 %v1281
        %v1372 = vunpack.c.l.b16 %v1282
        %v1373 = vunpack.c.l.b16 %v1283
        %v1374 = vunpack.c.h.b16 %v1283
        %v1375 = vunpack.c.l.b16 %v1284
        %v1376 = vunpack.c.l.b16 %v1285
        %v1377 = vunpack.c.h.b16 %v1285
        %v1378 = vunpack.c.l.b16 %v1286
        %v1379 = vunpack.c.l.b16 %v1287
        %v1380 = vunpack.c.h.b16 %v1287
        %v1381 = vunpack.c.l.b16 %v1288
        %v1382 = vunpack.c.l.b16 %v1289
        %v1383 = vunpack.c.h.b16 %v1289
        %v1384 = vunpack.c.l.b16 %v1290
        %v1385 = vunpack.c.l.b16 %v1291
        %v1386 = vunpack.c.h.b16 %v1291
        %v1387 = vunpack.c.l.b16 %v1292
        %v1388 = vunpack.c.l.b16 %v1293
        %v1389 = vunpack.c.h.b16 %v1293
        %v1390 = vunpack.c.l.b16 %v1294
        %v1391 = vunpack.c.l.b16 %v1295
        %v1392 = vunpack.c.h.b16 %v1295
        %v1393 = vunpack.c.l.b16 %v1296
        %v1394 = vpack.c.b16 %v1349, %v1346
        %v1395 = vpack.c.b16 %v1350, %v1347
        %v1396 = vpack.c.b16 %v1351, %v1348
        %v1397 = vpack.c.b16 %v1355, %v1352
        %v1398 = vpack.c.b16 %v1356, %v1353
        %v1399 = vpack.c.b16 %v1357, %v1354
        %v1400 = vpack.c.b16 %v1361, %v1358
        %v1401 = vpack.c.b16 %v1362, %v1359
        %v1402 = vpack.c.b16 %v1363, %v1360
        %v1403 = vpack.c.b16 %v1367, %v1364
        %v1404 = vpack.c.b16 %v1368, %v1365
        %v1405 = vpack.c.b16 %v1369, %v1366
        %v1406 = vpack.c.b16 %v1373, %v1370
        %v1407 = vpack.c.b16 %v1374, %v1371
        %v1408 = vpack.c.b16 %v1375, %v1372
        %v1409 = vpack.c.b16 %v1379, %v1376
        %v1410 = vpack.c.b16 %v1380, %v1377
        %v1411 = vpack.c.b16 %v1381, %v1378
        %v1412 = vpack.c.b16 %v1385, %v1382
        %v1413 = vpack.c.b16 %v1386, %v1383
        %v1414 = vpack.c.b16 %v1387, %v1384
        %v1415 = vpack.c.b16 %v1391, %v1388
        %v1416 = vpack.c.b16 %v1392, %v1389
        %v1417 = vpack.c.b16 %v1393, %v1390
        %1442 = vmatprep.subr.bf16.mxu0 %v1395
        %1443 = vmatpush1.bf16.msra.mxu0 %v1394
        %1444 = vmatprep.subr.bf16.mxu0 %v1398
        %1445 = vmatpush1.bf16.msra.mxu0 %v1397
        %1446 = vmatprep.subr.bf16.mxu0 %v1401
        %1447 = vmatpush1.bf16.msra.mxu0 %v1400
        %1448 = vmatprep.subr.bf16.mxu0 %v1404
        %1449 = vmatpush1.bf16.msra.mxu0 %v1403
        %1450 = vmatprep.subr.bf16.mxu0 %v1407
        %1451 = vmatpush1.bf16.msra.mxu0 %v1406
        %1452 = vmatprep.subr.bf16.mxu0 %v1410
        %1453 = vmatpush1.bf16.msra.mxu0 %v1409
        %1454 = vmatprep.subr.bf16.mxu0 %v1413
        %1455 = vmatpush1.bf16.msra.mxu0 %v1412
        %1456 = vmatprep.subr.bf16.mxu0 %v1416
        %1457 = vmatpush1.bf16.msra.mxu0 %v1415
        %1458 = vmatprep.subr.bf16.mxu0 0
        %1459 = vmatpush1.bf16.msra.mxu0 0
        %1460 = vmatprep.subr.bf16.mxu0 0
        %1461 = vmatpush1.bf16.msra.mxu0 0
        %1462 = vmatprep.subr.bf16.mxu0 0
        %1463 = vmatpush1.bf16.msra.mxu0 0
        %1464 = vmatprep.subr.bf16.mxu0 0
        %1465 = vmatpush1.bf16.msra.mxu0 0
        %1466 = vmatprep.subr.bf16.mxu0 0
        %1467 = vmatpush1.bf16.msra.mxu0 0
        %1468 = vmatprep.subr.bf16.mxu0 0
        %1469 = vmatpush1.bf16.msra.mxu0 0
        %1470 = vmatprep.subr.bf16.mxu0 0
        %1471 = vmatpush1.bf16.msra.mxu0 0
        %1472 = vmatprep.subr.bf16.mxu0 0
        %1473 = vmatpush1.bf16.msra.mxu0 0
        %1474 = vmatprep.mubr.bf16.mxu0 0
        %1475 = vmatmul.mubr.bf16.gmra.mrb[0].mxu0 %v1264
        %v1476 = vpop.f32.mrb[0].mxu0
        %v1477 = vadd.f32 %v1302, %v1476
        %v1478 = vpop.f32.mrb[0].mxu0
        %v1479 = vadd.f32 %v1306, %v1478
        %v1480 = vpop.f32.mrb[0].mxu0
        %v1481 = vpop.f32.mrb[0].mxu0
        %1482 = vdwg.mxu0
        %1483 = vmatprep.subr.bf16.mxu0 0
        %1484 = vmatpush1.bf16.msra.mxu0 %v1396
        %1485 = vmatprep.subr.bf16.mxu0 0
        %1486 = vmatpush1.bf16.msra.mxu0 %v1399
        %1487 = vmatprep.subr.bf16.mxu0 0
        %1488 = vmatpush1.bf16.msra.mxu0 %v1402
        %1489 = vmatprep.subr.bf16.mxu0 0
        %1490 = vmatpush1.bf16.msra.mxu0 %v1405
        %1491 = vmatprep.subr.bf16.mxu0 0
        %1492 = vmatpush1.bf16.msra.mxu0 %v1408
        %1493 = vmatprep.subr.bf16.mxu0 0
        %1494 = vmatpush1.bf16.msra.mxu0 %v1411
        %1495 = vmatprep.subr.bf16.mxu0 0
        %1496 = vmatpush1.bf16.msra.mxu0 %v1414
        %1497 = vmatprep.subr.bf16.mxu0 0
        %1498 = vmatpush1.bf16.msra.mxu0 %v1417
        %1499 = vmatprep.subr.bf16.mxu0 0
        %1500 = vmatpush1.bf16.msra.mxu0 0
        %1501 = vmatprep.subr.bf16.mxu0 0
        %1502 = vmatpush1.bf16.msra.mxu0 0
        %1503 = vmatprep.subr.bf16.mxu0 0
        %1504 = vmatpush1.bf16.msra.mxu0 0
        %1505 = vmatprep.subr.bf16.mxu0 0
        %1506 = vmatpush1.bf16.msra.mxu0 0
        %1507 = vmatprep.subr.bf16.mxu0 0
        %1508 = vmatpush1.bf16.msra.mxu0 0
        %1509 = vmatprep.subr.bf16.mxu0 0
        %1510 = vmatpush1.bf16.msra.mxu0 0
        %1511 = vmatprep.subr.bf16.mxu0 0
        %1512 = vmatpush1.bf16.msra.mxu0 0
        %1513 = vmatprep.subr.bf16.mxu0 0
        %1514 = vmatpush1.bf16.msra.mxu0 0
        %1515 = vmatprep.mubr.bf16.mxu0 0
        %1516 = vmatmul.mubr.bf16.gmra.mrb[0].mxu0 %v1264
        %v1517 = vpop.f32.mrb[0].mxu0
        %v1518 = vadd.f32 %v1310, %v1517
        %v1519 = vpop.f32.mrb[0].mxu0
        %v1520 = vpop.f32.mrb[0].mxu0
        %v1521 = vpop.f32.mrb[0].mxu0
        %1522 = vdwg.mxu0
        %1524 = vrot.lane.b32.xlu0 %v1477, 96
        %v1525 = vpop.permute.xlu0 %1524
        %1527 = vrot.lane.b32.xlu0 %v1477, 64
        %v1528 = vpop.permute.xlu0 %1527
        %1530 = vrot.lane.b32.xlu0 %v1477, 32
        %v1531 = vpop.permute.xlu0 %1530
        %v1533 = vpack.c.bf16 %v1477, %v1477
        %v1534 = vpack.c.bf16 %v1525, %v1525
        %v1535 = vpack.c.bf16 %v1528, %v1528
        %v1536 = vpack.c.bf16 %v1531, %v1531
        %1538 = vrot.lane.b32.xlu0 %v1479, 96
        %v1539 = vpop.permute.xlu0 %1538
        %1541 = vrot.lane.b32.xlu0 %v1479, 64
        %v1542 = vpop.permute.xlu0 %1541
        %1544 = vrot.lane.b32.xlu0 %v1479, 32
        %v1545 = vpop.permute.xlu0 %1544
        %v1547 = vpack.c.bf16 %v1479, %v1479
        %v1548 = vpack.c.bf16 %v1539, %v1539
        %v1549 = vpack.c.bf16 %v1542, %v1542
        %v1550 = vpack.c.bf16 %v1545, %v1545
        %1552 = vrot.lane.b32.xlu0 %v1518, 96
        %v1553 = vpop.permute.xlu0 %1552
        %1555 = vrot.lane.b32.xlu0 %v1518, 64
        %v1556 = vpop.permute.xlu0 %1555
        %1558 = vrot.lane.b32.xlu0 %v1518, 32
        %v1559 = vpop.permute.xlu0 %1558
        %v1561 = vpack.c.bf16 %v1518, %v1518
        %v1562 = vpack.c.bf16 %v1553, %v1553
        %v1563 = vpack.c.bf16 %v1556, %v1556
        %v1564 = vpack.c.bf16 %v1559, %v1559
        %vm1565 = vcmask 261120
        %v1567 = vsel %vm1565, %v1533, 0
        %v1570 = vsel %vm1565, %v1547, 0
        %1572 = vmatprep.subr.bf16.mxu0 0
        %1573 = vmatpush1.bf16.xpose.msra.mxu0 %v1570
        %1574 = vmatprep.subr.bf16.mxu0 0
        %1575 = vmatpush1.bf16.xpose.msra.mxu0 0
        %1576 = vmatprep.subr.bf16.mxu0 0
        %1577 = vmatpush1.bf16.xpose.msra.mxu0 0
        %1578 = vmatprep.subr.bf16.mxu0 0
        %1579 = vmatpush1.bf16.xpose.msra.mxu0 0
        %1580 = vmatprep.subr.bf16.mxu0 0
        %1581 = vmatpush1.bf16.xpose.msra.mxu0 0
        %1582 = vmatprep.subr.bf16.mxu0 0
        %1583 = vmatpush1.bf16.xpose.msra.mxu0 0
        %1584 = vmatprep.subr.bf16.mxu0 0
        %1585 = vmatpush1.bf16.xpose.msra.mxu0 0
        %1586 = vmatprep.subr.bf16.mxu0 0
        %1587 = vmatpush1.bf16.xpose.msra.mxu0 0
        %1588 = vmatprep.subr.bf16.mxu0 0
        %1589 = vmatpush1.bf16.xpose.msra.mxu0 0
        %1590 = vmatprep.subr.bf16.mxu0 0
        %1591 = vmatpush1.bf16.xpose.msra.mxu0 0
        %1592 = vmatprep.subr.bf16.mxu0 0
        %1593 = vmatpush1.bf16.xpose.msra.mxu0 0
        %1594 = vmatprep.subr.bf16.mxu0 0
        %1595 = vmatpush1.bf16.xpose.msra.mxu0 0
        %1596 = vmatprep.subr.bf16.mxu0 0
        %1597 = vmatpush1.bf16.xpose.msra.mxu0 0
        %1598 = vmatprep.subr.bf16.mxu0 0
        %1599 = vmatpush1.bf16.xpose.msra.mxu0 0
        %1600 = vmatprep.subr.bf16.mxu0 0
        %1601 = vmatpush1.bf16.xpose.msra.mxu0 0
        %1602 = vmatprep.subr.bf16.mxu0 0
        %1603 = vmatpush1.bf16.xpose.msra.mxu0 0
        %1604 = vmatprep.mubr.bf16.mxu0 0
        %1605 = vmatmul.mubr.bf16.gmra.mrb[0].mxu0 %v1567
        %v1606 = vpop.f32.mrb[0].mxu0
        %v1607 = vadd.f32 0.0, %v1606
        %v1608 = vpop.f32.mrb[0].mxu0
        %v1609 = vpop.f32.mrb[0].mxu0
        %v1610 = vpop.f32.mrb[0].mxu0
        %1611 = vdwg.mxu0
        %v1613 = vsel %vm1565, %v1534, 0
        %v1616 = vsel %vm1565, %v1548, 0
        %1618 = vmatprep.subr.bf16.mxu0 0
        %1619 = vmatpush1.bf16.xpose.msra.mxu0 %v1616
        %1620 = vmatprep.subr.bf16.mxu0 0
        %1621 = vmatpush1.bf16.xpose.msra.mxu0 0
        %1622 = vmatprep.subr.bf16.mxu0 0
        %1623 = vmatpush1.bf16.xpose.msra.mxu0 0
        %1624 = vmatprep.subr.bf16.mxu0 0
        %1625 = vmatpush1.bf16.xpose.msra.mxu0 0
        %1626 = vmatprep.subr.bf16.mxu0 0
        %1627 = vmatpush1.bf16.xpose.msra.mxu0 0
        %1628 = vmatprep.subr.bf16.mxu0 0
        %1629 = vmatpush1.bf16.xpose.msra.mxu0 0
        %1630 = vmatprep.subr.bf16.mxu0 0
        %1631 = vmatpush1.bf16.xpose.msra.mxu0 0
        %1632 = vmatprep.subr.bf16.mxu0 0
        %1633 = vmatpush1.bf16.xpose.msra.mxu0 0
        %1634 = vmatprep.subr.bf16.mxu0 0
        %1635 = vmatpush1.bf16.xpose.msra.mxu0 0
        %1636 = vmatprep.subr.bf16.mxu0 0
        %1637 = vmatpush1.bf16.xpose.msra.mxu0 0
        %1638 = vmatprep.subr.bf16.mxu0 0
        %1639 = vmatpush1.bf16.xpose.msra.mxu0 0
        %1640 = vmatprep.subr.bf16.mxu0 0
        %1641 = vmatpush1.bf16.xpose.msra.mxu0 0
        %1642 = vmatprep.subr.bf16.mxu0 0
        %1643 = vmatpush1.bf16.xpose.msra.mxu0 0
        %1644 = vmatprep.subr.bf16.mxu0 0
        %1645 = vmatpush1.bf16.xpose.msra.mxu0 0
        %1646 = vmatprep.subr.bf16.mxu0 0
        %1647 = vmatpush1.bf16.xpose.msra.mxu0 0
        %1648 = vmatprep.subr.bf16.mxu0 0
        %1649 = vmatpush1.bf16.xpose.msra.mxu0 0
        %1650 = vmatprep.mubr.bf16.mxu0 0
        %1651 = vmatmul.mubr.bf16.gmra.mrb[0].mxu0 %v1613
        %v1652 = vpop.f32.mrb[0].mxu0
        %v1653 = vadd.f32 0.0, %v1652
        %v1654 = vpop.f32.mrb[0].mxu0
        %v1655 = vpop.f32.mrb[0].mxu0
        %v1656 = vpop.f32.mrb[0].mxu0
        %1657 = vdwg.mxu0
        %v1659 = vsel %vm1565, %v1535, 0
        %v1662 = vsel %vm1565, %v1549, 0
        %1664 = vmatprep.subr.bf16.mxu0 0
        %1665 = vmatpush1.bf16.xpose.msra.mxu0 %v1662
        %1666 = vmatprep.subr.bf16.mxu0 0
        %1667 = vmatpush1.bf16.xpose.msra.mxu0 0
        %1668 = vmatprep.subr.bf16.mxu0 0
        %1669 = vmatpush1.bf16.xpose.msra.mxu0 0
        %1670 = vmatprep.subr.bf16.mxu0 0
        %1671 = vmatpush1.bf16.xpose.msra.mxu0 0
        %1672 = vmatprep.subr.bf16.mxu0 0
        %1673 = vmatpush1.bf16.xpose.msra.mxu0 0
        %1674 = vmatprep.subr.bf16.mxu0 0
        %1675 = vmatpush1.bf16.xpose.msra.mxu0 0
        %1676 = vmatprep.subr.bf16.mxu0 0
        %1677 = vmatpush1.bf16.xpose.msra.mxu0 0
        %1678 = vmatprep.subr.bf16.mxu0 0
        %1679 = vmatpush1.bf16.xpose.msra.mxu0 0
        %1680 = vmatprep.subr.bf16.mxu0 0
        %1681 = vmatpush1.bf16.xpose.msra.mxu0 0
        %1682 = vmatprep.subr.bf16.mxu0 0
        %1683 = vmatpush1.bf16.xpose.msra.mxu0 0
        %1684 = vmatprep.subr.bf16.mxu0 0
        %1685 = vmatpush1.bf16.xpose.msra.mxu0 0
        %1686 = vmatprep.subr.bf16.mxu0 0
        %1687 = vmatpush1.bf16.xpose.msra.mxu0 0
        %1688 = vmatprep.subr.bf16.mxu0 0
        %1689 = vmatpush1.bf16.xpose.msra.mxu0 0
        %1690 = vmatprep.subr.bf16.mxu0 0
        %1691 = vmatpush1.bf16.xpose.msra.mxu0 0
        %1692 = vmatprep.subr.bf16.mxu0 0
        %1693 = vmatpush1.bf16.xpose.msra.mxu0 0
        %1694 = vmatprep.subr.bf16.mxu0 0
        %1695 = vmatpush1.bf16.xpose.msra.mxu0 0
        %1696 = vmatprep.mubr.bf16.mxu0 0
        %1697 = vmatmul.mubr.bf16.gmra.mrb[0].mxu0 %v1659
        %v1698 = vpop.f32.mrb[0].mxu0
        %v1699 = vadd.f32 0.0, %v1698
        %v1700 = vpop.f32.mrb[0].mxu0
        %v1701 = vpop.f32.mrb[0].mxu0
        %v1702 = vpop.f32.mrb[0].mxu0
        %1703 = vdwg.mxu0
        %v1705 = vsel %vm1565, %v1536, 0
        %v1708 = vsel %vm1565, %v1550, 0
        %1710 = vmatprep.subr.bf16.mxu0 0
        %1711 = vmatpush1.bf16.xpose.msra.mxu0 %v1708
        %1712 = vmatprep.subr.bf16.mxu0 0
        %1713 = vmatpush1.bf16.xpose.msra.mxu0 0
        %1714 = vmatprep.subr.bf16.mxu0 0
        %1715 = vmatpush1.bf16.xpose.msra.mxu0 0
        %1716 = vmatprep.subr.bf16.mxu0 0
        %1717 = vmatpush1.bf16.xpose.msra.mxu0 0
        %1718 = vmatprep.subr.bf16.mxu0 0
        %1719 = vmatpush1.bf16.xpose.msra.mxu0 0
        %1720 = vmatprep.subr.bf16.mxu0 0
        %1721 = vmatpush1.bf16.xpose.msra.mxu0 0
        %1722 = vmatprep.subr.bf16.mxu0 0
        %1723 = vmatpush1.bf16.xpose.msra.mxu0 0
        %1724 = vmatprep.subr.bf16.mxu0 0
        %1725 = vmatpush1.bf16.xpose.msra.mxu0 0
        %1726 = vmatprep.subr.bf16.mxu0 0
        %1727 = vmatpush1.bf16.xpose.msra.mxu0 0
        %1728 = vmatprep.subr.bf16.mxu0 0
        %1729 = vmatpush1.bf16.xpose.msra.mxu0 0
        %1730 = vmatprep.subr.bf16.mxu0 0
        %1731 = vmatpush1.bf16.xpose.msra.mxu0 0
        %1732 = vmatprep.subr.bf16.mxu0 0
        %1733 = vmatpush1.bf16.xpose.msra.mxu0 0
        %1734 = vmatprep.subr.bf16.mxu0 0
        %1735 = vmatpush1.bf16.xpose.msra.mxu0 0
        %1736 = vmatprep.subr.bf16.mxu0 0
        %1737 = vmatpush1.bf16.xpose.msra.mxu0 0
        %1738 = vmatprep.subr.bf16.mxu0 0
        %1739 = vmatpush1.bf16.xpose.msra.mxu0 0
        %1740 = vmatprep.subr.bf16.mxu0 0
        %1741 = vmatpush1.bf16.xpose.msra.mxu0 0
        %1742 = vmatprep.mubr.bf16.mxu0 0
        %1743 = vmatmul.mubr.bf16.gmra.mrb[0].mxu0 %v1705
        %v1744 = vpop.f32.mrb[0].mxu0
        %v1745 = vadd.f32 0.0, %v1744
        %v1746 = vpop.f32.mrb[0].mxu0
        %v1747 = vpop.f32.mrb[0].mxu0
        %v1748 = vpop.f32.mrb[0].mxu0
        %1749 = vdwg.mxu0
        %vm1750 = vcmask 64512
        %v1751 = vsel %vm1750, %v1607, -inf
        %1752 = vmax.xlane.f32.xlu0 %v1751
        %v1753 = vpop.xlane.xlu0 %1752
        %v1754 = vsel %vm1750, %v1653, -inf
        %1755 = vmax.xlane.f32.xlu0 %v1754
        %v1756 = vpop.xlane.xlu0 %1755
        %v1757 = vsel %vm1750, %v1699, -inf
        %1758 = vmax.xlane.f32.xlu0 %v1757
        %v1759 = vpop.xlane.xlu0 %1758
        %v1760 = vsel %vm1750, %v1745, -inf
        %1761 = vmax.xlane.f32.xlu0 %v1760
        %v1762 = vpop.xlane.xlu0 %1761
        %v1763 = vsub.f32 %v1607, %v1753
        %v1764 = vsub.f32 %v1653, %v1756
        %v1765 = vsub.f32 %v1699, %v1759
        %v1766 = vsub.f32 %v1745, %v1762
        %v1767 = vmul.f32 %v1763, 1.442695
        %v1768 = vpow.pop %v1767
        %v1769 = vmul.f32 %v1764, 1.442695
        %v1770 = vpow.pop %v1769
        %v1771 = vmul.f32 %v1765, 1.442695
        %v1772 = vpow.pop %v1771
        %v1773 = vmul.f32 %v1766, 1.442695
        %v1774 = vpow.pop %v1773
        %v1775 = vsel %vm1750, %v1768, 0.0
        %1776 = vadd.xlane.f32.xlu0 %v1775
        %v1777 = vpop.xlane.xlu0 %1776
        %v1778 = vsel %vm1750, %v1770, 0.0
        %1779 = vadd.xlane.f32.xlu0 %v1778
        %v1780 = vpop.xlane.xlu0 %1779
        %v1781 = vsel %vm1750, %v1772, 0.0
        %1782 = vadd.xlane.f32.xlu0 %v1781
        %v1783 = vpop.xlane.xlu0 %1782
        %v1784 = vsel %vm1750, %v1774, 0.0
        %1785 = vadd.xlane.f32.xlu0 %v1784
        %v1786 = vpop.xlane.xlu0 %1785
        %v1787 = vrcp.pop %v1777
        %v1788 = vrcp.pop %v1780
        %v1789 = vrcp.pop %v1783
        %v1790 = vrcp.pop %v1786
        %v1791 = vmul.f32 %v1768, %v1787
        %v1792 = vmul.f32 %v1770, %v1788
        %v1793 = vmul.f32 %v1772, %v1789
        %v1794 = vmul.f32 %v1774, %v1790
        %v1795 = vpack.c.bf16 %v1791, %v1791
        %v1796 = vpack.c.bf16 %v1792, %v1792
        %v1797 = vpack.c.bf16 %v1793, %v1793
        %v1798 = vpack.c.bf16 %v1794, %v1794
        %v1800 = vsel %vm1750, %v1795, 0
        %vm1802 = vcmask 1043456
        %v1804 = vsel %vm1802, %v1561, 0
        %1806 = vmatprep.subr.bf16.mxu0 0
        %1807 = vmatpush1.bf16.msra.mxu0 %v1804
        %1808 = vmatprep.subr.bf16.mxu0 0
        %1809 = vmatpush1.bf16.msra.mxu0 0
        %1810 = vmatprep.subr.bf16.mxu0 0
        %1811 = vmatpush1.bf16.msra.mxu0 0
        %1812 = vmatprep.subr.bf16.mxu0 0
        %1813 = vmatpush1.bf16.msra.mxu0 0
        %1814 = vmatprep.subr.bf16.mxu0 0
        %1815 = vmatpush1.bf16.msra.mxu0 0
        %1816 = vmatprep.subr.bf16.mxu0 0
        %1817 = vmatpush1.bf16.msra.mxu0 0
        %1818 = vmatprep.subr.bf16.mxu0 0
        %1819 = vmatpush1.bf16.msra.mxu0 0
        %1820 = vmatprep.subr.bf16.mxu0 0
        %1821 = vmatpush1.bf16.msra.mxu0 0
        %1822 = vmatprep.subr.bf16.mxu0 0
        %1823 = vmatpush1.bf16.msra.mxu0 0
        %1824 = vmatprep.subr.bf16.mxu0 0
        %1825 = vmatpush1.bf16.msra.mxu0 0
        %1826 = vmatprep.subr.bf16.mxu0 0
        %1827 = vmatpush1.bf16.msra.mxu0 0
        %1828 = vmatprep.subr.bf16.mxu0 0
        %1829 = vmatpush1.bf16.msra.mxu0 0
        %1830 = vmatprep.subr.bf16.mxu0 0
        %1831 = vmatpush1.bf16.msra.mxu0 0
        %1832 = vmatprep.subr.bf16.mxu0 0
        %1833 = vmatpush1.bf16.msra.mxu0 0
        %1834 = vmatprep.subr.bf16.mxu0 0
        %1835 = vmatpush1.bf16.msra.mxu0 0
        %1836 = vmatprep.subr.bf16.mxu0 0
        %1837 = vmatpush1.bf16.msra.mxu0 0
        %1838 = vmatprep.mubr.bf16.mxu0 0
        %1839 = vmatmul.mubr.bf16.gmra.mrb[0].mxu0 %v1800
        %v1840 = vpop.f32.mrb[0].mxu0
        %v1841 = vadd.f32 0.0, %v1840
        %v1842 = vpop.f32.mrb[0].mxu0
        %v1843 = vpop.f32.mrb[0].mxu0
        %v1844 = vpop.f32.mrb[0].mxu0
        %1845 = vdwg.mxu0
        %v1847 = vsel %vm1750, %v1796, 0
        %v1850 = vsel %vm1802, %v1562, 0
        %1852 = vmatprep.subr.bf16.mxu0 0
        %1853 = vmatpush1.bf16.msra.mxu0 %v1850
        %1854 = vmatprep.subr.bf16.mxu0 0
        %1855 = vmatpush1.bf16.msra.mxu0 0
        %1856 = vmatprep.subr.bf16.mxu0 0
        %1857 = vmatpush1.bf16.msra.mxu0 0
        %1858 = vmatprep.subr.bf16.mxu0 0
        %1859 = vmatpush1.bf16.msra.mxu0 0
        %1860 = vmatprep.subr.bf16.mxu0 0
        %1861 = vmatpush1.bf16.msra.mxu0 0
        %1862 = vmatprep.subr.bf16.mxu0 0
        %1863 = vmatpush1.bf16.msra.mxu0 0
        %1864 = vmatprep.subr.bf16.mxu0 0
        %1865 = vmatpush1.bf16.msra.mxu0 0
        %1866 = vmatprep.subr.bf16.mxu0 0
        %1867 = vmatpush1.bf16.msra.mxu0 0
        %1868 = vmatprep.subr.bf16.mxu0 0
        %1869 = vmatpush1.bf16.msra.mxu0 0
        %1870 = vmatprep.subr.bf16.mxu0 0
        %1871 = vmatpush1.bf16.msra.mxu0 0
        %1872 = vmatprep.subr.bf16.mxu0 0
        %1873 = vmatpush1.bf16.msra.mxu0 0
        %1874 = vmatprep.subr.bf16.mxu0 0
        %1875 = vmatpush1.bf16.msra.mxu0 0
        %1876 = vmatprep.subr.bf16.mxu0 0
        %1877 = vmatpush1.bf16.msra.mxu0 0
        %1878 = vmatprep.subr.bf16.mxu0 0
        %1879 = vmatpush1.bf16.msra.mxu0 0
        %1880 = vmatprep.subr.bf16.mxu0 0
        %1881 = vmatpush1.bf16.msra.mxu0 0
        %1882 = vmatprep.subr.bf16.mxu0 0
        %1883 = vmatpush1.bf16.msra.mxu0 0
        %1884 = vmatprep.mubr.bf16.mxu0 0
        %1885 = vmatmul.mubr.bf16.gmra.mrb[0].mxu0 %v1847
        %v1886 = vpop.f32.mrb[0].mxu0
        %v1887 = vadd.f32 0.0, %v1886
        %v1888 = vpop.f32.mrb[0].mxu0
        %v1889 = vpop.f32.mrb[0].mxu0
        %v1890 = vpop.f32.mrb[0].mxu0
        %1891 = vdwg.mxu0
        %v1893 = vsel %vm1750, %v1797, 0
        %v1896 = vsel %vm1802, %v1563, 0
        %1898 = vmatprep.subr.bf16.mxu0 0
        %1899 = vmatpush1.bf16.msra.mxu0 %v1896
        %1900 = vmatprep.subr.bf16.mxu0 0
        %1901 = vmatpush1.bf16.msra.mxu0 0
        %1902 = vmatprep.subr.bf16.mxu0 0
        %1903 = vmatpush1.bf16.msra.mxu0 0
        %1904 = vmatprep.subr.bf16.mxu0 0
        %1905 = vmatpush1.bf16.msra.mxu0 0
        %1906 = vmatprep.subr.bf16.mxu0 0
        %1907 = vmatpush1.bf16.msra.mxu0 0
        %1908 = vmatprep.subr.bf16.mxu0 0
        %1909 = vmatpush1.bf16.msra.mxu0 0
        %1910 = vmatprep.subr.bf16.mxu0 0
        %1911 = vmatpush1.bf16.msra.mxu0 0
        %1912 = vmatprep.subr.bf16.mxu0 0
        %1913 = vmatpush1.bf16.msra.mxu0 0
        %1914 = vmatprep.subr.bf16.mxu0 0
        %1915 = vmatpush1.bf16.msra.mxu0 0
        %1916 = vmatprep.subr.bf16.mxu0 0
        %1917 = vmatpush1.bf16.msra.mxu0 0
        %1918 = vmatprep.subr.bf16.mxu0 0
        %1919 = vmatpush1.bf16.msra.mxu0 0
        %1920 = vmatprep.subr.bf16.mxu0 0
        %1921 = vmatpush1.bf16.msra.mxu0 0
        %1922 = vmatprep.subr.bf16.mxu0 0
        %1923 = vmatpush1.bf16.msra.mxu0 0
        %1924 = vmatprep.subr.bf16.mxu0 0
        %1925 = vmatpush1.bf16.msra.mxu0 0
        %1926 = vmatprep.subr.bf16.mxu0 0
        %1927 = vmatpush1.bf16.msra.mxu0 0
        %1928 = vmatprep.subr.bf16.mxu0 0
        %1929 = vmatpush1.bf16.msra.mxu0 0
        %1930 = vmatprep.mubr.bf16.mxu0 0
        %1931 = vmatmul.mubr.bf16.gmra.mrb[0].mxu0 %v1893
        %v1932 = vpop.f32.mrb[0].mxu0
        %v1933 = vadd.f32 0.0, %v1932
        %v1934 = vpop.f32.mrb[0].mxu0
        %v1935 = vpop.f32.mrb[0].mxu0
        %v1936 = vpop.f32.mrb[0].mxu0
        %1937 = vdwg.mxu0
        %v1939 = vsel %vm1750, %v1798, 0
        %v1942 = vsel %vm1802, %v1564, 0
        %1944 = vmatprep.subr.bf16.mxu0 0
        %1945 = vmatpush1.bf16.msra.mxu0 %v1942
        %1946 = vmatprep.subr.bf16.mxu0 0
        %1947 = vmatpush1.bf16.msra.mxu0 0
        %1948 = vmatprep.subr.bf16.mxu0 0
        %1949 = vmatpush1.bf16.msra.mxu0 0
        %1950 = vmatprep.subr.bf16.mxu0 0
        %1951 = vmatpush1.bf16.msra.mxu0 0
        %1952 = vmatprep.subr.bf16.mxu0 0
        %1953 = vmatpush1.bf16.msra.mxu0 0
        %1954 = vmatprep.subr.bf16.mxu0 0
        %1955 = vmatpush1.bf16.msra.mxu0 0
        %1956 = vmatprep.subr.bf16.mxu0 0
        %1957 = vmatpush1.bf16.msra.mxu0 0
        %1958 = vmatprep.subr.bf16.mxu0 0
        %1959 = vmatpush1.bf16.msra.mxu0 0
        %1960 = vmatprep.subr.bf16.mxu0 0
        %1961 = vmatpush1.bf16.msra.mxu0 0
        %1962 = vmatprep.subr.bf16.mxu0 0
        %1963 = vmatpush1.bf16.msra.mxu0 0
        %1964 = vmatprep.subr.bf16.mxu0 0
        %1965 = vmatpush1.bf16.msra.mxu0 0
        %1966 = vmatprep.subr.bf16.mxu0 0
        %1967 = vmatpush1.bf16.msra.mxu0 0
        %1968 = vmatprep.subr.bf16.mxu0 0
        %1969 = vmatpush1.bf16.msra.mxu0 0
        %1970 = vmatprep.subr.bf16.mxu0 0
        %1971 = vmatpush1.bf16.msra.mxu0 0
        %1972 = vmatprep.subr.bf16.mxu0 0
        %1973 = vmatpush1.bf16.msra.mxu0 0
        %1974 = vmatprep.subr.bf16.mxu0 0
        %1975 = vmatpush1.bf16.msra.mxu0 0
        %1976 = vmatprep.mubr.bf16.mxu0 0
        %1977 = vmatmul.mubr.bf16.gmra.mrb[0].mxu0 %v1939
        %v1978 = vpop.f32.mrb[0].mxu0
        %v1979 = vadd.f32 0.0, %v1978
        %v1980 = vpop.f32.mrb[0].mxu0
        %v1981 = vpop.f32.mrb[0].mxu0
        %v1982 = vpop.f32.mrb[0].mxu0
        %1983 = vdwg.mxu0
        %1985 = vrot.lane.b32.xlu0 %v1887, 32
        %v1986 = vpop.permute.xlu0 %1985
        %1989 = vrot.lane.b32.xlu0 %v1933, 64
        %v1990 = vpop.permute.xlu0 %1989
        %1993 = vrot.lane.b32.xlu0 %v1979, 96
        %v1994 = vpop.permute.xlu0 %1993
        %v1996 = vsel %vm1565, %v1841, %v1986
        %vm1997 = vcmask 523264
        %v1998 = vsel %vm1997, %v1996, %v1990
        %vm1999 = vcmask 785408
        %v2000 = vsel %vm1999, %v1998, %v1994
        %v2001 = vpack.c.bf16 %v2000, %v2000
        %v2002 = vld [vmem:[%s13] sm:$0xf]
        %v2003 = vld [vmem:[%s13 + $0x4] sm:$0xf]
        %v2004 = vld [vmem:[%s13 + $0x8] sm:$0xf]
        %v2005 = vld [vmem:[%s13 + $0xc] sm:$0xf]
        %v2006 = vld [vmem:[%s13 + $0x10] sm:$0xf]
        %v2007 = vld [vmem:[%s13 + $0x14] sm:$0xf]
        %v2008 = vld [vmem:[%s13 + $0x18] sm:$0xf]
        %v2009 = vld [vmem:[%s13 + $0x1c] sm:$0xf]
        %v2010 = vld [vmem:[%s13 + $0x20] sm:$0xf]
        %v2011 = vld [vmem:[%s13 + $0x24] sm:$0xf]
        %v2012 = vld [vmem:[%s13 + $0x28] sm:$0xf]
        %v2013 = vld [vmem:[%s13 + $0x2c] sm:$0xf]
        %v2014 = vld [vmem:[%s13 + $0x30] sm:$0xf]
        %v2015 = vld [vmem:[%s13 + $0x34] sm:$0xf]
        %v2016 = vld [vmem:[%s13 + $0x38] sm:$0xf]
        %v2017 = vld [vmem:[%s13 + $0x3c] sm:$0xf]
        %v2018 = vld [vmem:[#allocation10] sm:$0x1]
        %v2020 = vlaneseq
        %v2021 = vshrl.u32 %v2020, 7
        %v2022 = vsub.s32 0, %v2021
        %v2023 = vrot.slane %v2018, %v2022
        %v2041 = vunpack.c.l.b16 %v2002
        %v2042 = vunpack.c.l.b16 %v2003
        %v2043 = vunpack.c.l.b16 %v2004
        %v2044 = vunpack.c.l.b16 %v2005
        %v2045 = vunpack.c.l.b16 %v2006
        %v2046 = vunpack.c.l.b16 %v2007
        %v2047 = vunpack.c.l.b16 %v2008
        %v2048 = vunpack.c.l.b16 %v2009
        %v2049 = vunpack.c.l.b16 %v2010
        %v2050 = vunpack.c.l.b16 %v2011
        %v2051 = vunpack.c.l.b16 %v2012
        %v2052 = vunpack.c.l.b16 %v2013
        %v2053 = vunpack.c.l.b16 %v2014
        %v2054 = vunpack.c.l.b16 %v2015
        %v2055 = vunpack.c.l.b16 %v2016
        %v2056 = vunpack.c.l.b16 %v2017
        %v2057 = vpack.c.b16 %v2042, %v2041
        %v2058 = vpack.c.b16 %v2044, %v2043
        %v2059 = vpack.c.b16 %v2046, %v2045
        %v2060 = vpack.c.b16 %v2048, %v2047
        %v2061 = vpack.c.b16 %v2050, %v2049
        %v2062 = vpack.c.b16 %v2052, %v2051
        %v2063 = vpack.c.b16 %v2054, %v2053
        %v2064 = vpack.c.b16 %v2056, %v2055
        %2073 = vmatprep.subr.bf16.mxu0 0
        %2074 = vmatpush1.bf16.msra.mxu0 %v2057
        %2075 = vmatprep.subr.bf16.mxu0 0
        %2076 = vmatpush1.bf16.msra.mxu0 %v2058
        %2077 = vmatprep.subr.bf16.mxu0 0
        %2078 = vmatpush1.bf16.msra.mxu0 %v2059
        %2079 = vmatprep.subr.bf16.mxu0 0
        %2080 = vmatpush1.bf16.msra.mxu0 %v2060
        %2081 = vmatprep.subr.bf16.mxu0 0
        %2082 = vmatpush1.bf16.msra.mxu0 %v2061
        %2083 = vmatprep.subr.bf16.mxu0 0
        %2084 = vmatpush1.bf16.msra.mxu0 %v2062
        %2085 = vmatprep.subr.bf16.mxu0 0
        %2086 = vmatpush1.bf16.msra.mxu0 %v2063
        %2087 = vmatprep.subr.bf16.mxu0 0
        %2088 = vmatpush1.bf16.msra.mxu0 %v2064
        %2089 = vmatprep.subr.bf16.mxu0 0
        %2090 = vmatpush1.bf16.msra.mxu0 0
        %2091 = vmatprep.subr.bf16.mxu0 0
        %2092 = vmatpush1.bf16.msra.mxu0 0
        %2093 = vmatprep.subr.bf16.mxu0 0
        %2094 = vmatpush1.bf16.msra.mxu0 0
        %2095 = vmatprep.subr.bf16.mxu0 0
        %2096 = vmatpush1.bf16.msra.mxu0 0
        %2097 = vmatprep.subr.bf16.mxu0 0
        %2098 = vmatpush1.bf16.msra.mxu0 0
        %2099 = vmatprep.subr.bf16.mxu0 0
        %2100 = vmatpush1.bf16.msra.mxu0 0
        %2101 = vmatprep.subr.bf16.mxu0 0
        %2102 = vmatpush1.bf16.msra.mxu0 0
        %2103 = vmatprep.subr.bf16.mxu0 0
        %2104 = vmatpush1.bf16.msra.mxu0 0
        %2105 = vmatprep.mubr.bf16.mxu0 0
        %2106 = vmatmul.mubr.bf16.gmra.mrb[0].mxu0 %v2001
        %v2107 = vpop.f32.mrb[0].mxu0
        %v2108 = vadd.f32 %v2023, %v2107
        %v2109 = vpop.f32.mrb[0].mxu0
        %v2110 = vpop.f32.mrb[0].mxu0
        %v2111 = vpop.f32.mrb[0].mxu0
        %2112 = vdwg.mxu0
        %v2113 = vadd.f32 %v1263, %v2108
        %v2114 = vld [vmem:[#allocation11] sm:$0x1]
        %v2115 = vld [vmem:[#allocation13] sm:$0x1]
        %2116 = vadd.xlane.f32.xlu0 %v2113
        %v2117 = vpop.xlane.xlu0 %2116
        %v2118 = vrcp.pop 128.0
        %v2119 = vmul.f32 %v2117, %v2118
        %v2120 = vsub.f32 %v2113, %v2119
        %v2121 = vmul.f32 %v2120, %v2120
        %2122 = vadd.xlane.f32.xlu0 %v2121
        %v2123 = vpop.xlane.xlu0 %2122
        %v2124 = vmul.f32 %v2123, %v2118
        %v2125 = vadd.f32 %v2124, 1e-05
        %v2126 = vrsqrt.pop %v2125
        %v2127 = vmul.f32 %v2120, %v2126
        %v2129 = vlaneseq
        %v2130 = vshrl.u32 %v2129, 7
        %v2131 = vsub.s32 0, %v2130
        %v2132 = vrot.slane %v2114, %v2131
        %v2134 = vmul.f32 %v2127, %v2132
        %v2136 = vlaneseq
        %v2137 = vshrl.u32 %v2136, 7
        %v2138 = vsub.s32 0, %v2137
        %v2139 = vrot.slane %v2115, %v2138
        %v2141 = vadd.f32 %v2134, %v2139
        %v2142 = vpack.c.bf16 %v2141, %v2141
        %v2143 = vld [vmem:[#allocation14] sm:$0xff]
        %v2144 = vld [vmem:[#allocation14 + $0x8] sm:$0xff]
        %v2145 = vld [vmem:[#allocation14 + $0x10] sm:$0xff]
        %v2146 = vld [vmem:[#allocation14 + $0x18] sm:$0xff]
        %v2147 = vld [vmem:[#allocation14 + $0x20] sm:$0xff]
        %v2148 = vld [vmem:[#allocation14 + $0x28] sm:$0xff]
        %v2149 = vld [vmem:[#allocation14 + $0x30] sm:$0xff]
        %v2150 = vld [vmem:[#allocation14 + $0x38] sm:$0xff]
        %v2151 = vld [vmem:[#allocation14 + $0x40] sm:$0xff]
        %v2152 = vld [vmem:[#allocation14 + $0x48] sm:$0xff]
        %v2153 = vld [vmem:[#allocation14 + $0x50] sm:$0xff]
        %v2154 = vld [vmem:[#allocation14 + $0x58] sm:$0xff]
        %v2155 = vld [vmem:[#allocation14 + $0x60] sm:$0xff]
        %v2156 = vld [vmem:[#allocation14 + $0x68] sm:$0xff]
        %v2157 = vld [vmem:[#allocation14 + $0x70] sm:$0xff]
        %v2158 = vld [vmem:[#allocation14 + $0x78] sm:$0xff]
        %v2159 = vld [vmem:[#allocation14 + $0x80] sm:$0xff]
        %v2160 = vld [vmem:[#allocation14 + $0x88] sm:$0xff]
        %v2161 = vld [vmem:[#allocation14 + $0x90] sm:$0xff]
        %v2162 = vld [vmem:[#allocation14 + $0x98] sm:$0xff]
        %v2163 = vld [vmem:[#allocation14 + $0xa0] sm:$0xff]
        %v2164 = vld [vmem:[#allocation14 + $0xa8] sm:$0xff]
        %v2165 = vld [vmem:[#allocation14 + $0xb0] sm:$0xff]
        %v2166 = vld [vmem:[#allocation14 + $0xb8] sm:$0xff]
        %v2167 = vld [vmem:[#allocation14 + $0xc0] sm:$0xff]
        %v2168 = vld [vmem:[#allocation14 + $0xc8] sm:$0xff]
        %v2169 = vld [vmem:[#allocation14 + $0xd0] sm:$0xff]
        %v2170 = vld [vmem:[#allocation14 + $0xd8] sm:$0xff]
        %v2171 = vld [vmem:[#allocation14 + $0xe0] sm:$0xff]
        %v2172 = vld [vmem:[#allocation14 + $0xe8] sm:$0xff]
        %v2173 = vld [vmem:[#allocation14 + $0xf0] sm:$0xff]
        %v2174 = vld [vmem:[#allocation14 + $0xf8] sm:$0xff]
        %v2175 = vld [vmem:[#allocation14 + $0x100] sm:$0xff]
        %v2176 = vld [vmem:[#allocation14 + $0x108] sm:$0xff]
        %v2177 = vld [vmem:[#allocation14 + $0x110] sm:$0xff]
        %v2178 = vld [vmem:[#allocation14 + $0x118] sm:$0xff]
        %v2179 = vld [vmem:[#allocation14 + $0x120] sm:$0xff]
        %v2180 = vld [vmem:[#allocation14 + $0x128] sm:$0xff]
        %v2181 = vld [vmem:[#allocation14 + $0x130] sm:$0xff]
        %v2182 = vld [vmem:[#allocation14 + $0x138] sm:$0xff]
        %v2183 = vld [vmem:[#allocation14 + $0x140] sm:$0xff]
        %v2184 = vld [vmem:[#allocation14 + $0x148] sm:$0xff]
        %v2185 = vld [vmem:[#allocation14 + $0x150] sm:$0xff]
        %v2186 = vld [vmem:[#allocation14 + $0x158] sm:$0xff]
        %v2187 = vld [vmem:[#allocation14 + $0x160] sm:$0xff]
        %v2188 = vld [vmem:[#allocation14 + $0x168] sm:$0xff]
        %v2189 = vld [vmem:[#allocation14 + $0x170] sm:$0xff]
        %v2190 = vld [vmem:[#allocation14 + $0x178] sm:$0xff]
        %v2191 = vld [vmem:[#allocation14 + $0x180] sm:$0xff]
        %v2192 = vld [vmem:[#allocation14 + $0x188] sm:$0xff]
        %v2193 = vld [vmem:[#allocation14 + $0x190] sm:$0xff]
        %v2194 = vld [vmem:[#allocation14 + $0x198] sm:$0xff]
        %v2195 = vld [vmem:[#allocation14 + $0x1a0] sm:$0xff]
        %v2196 = vld [vmem:[#allocation14 + $0x1a8] sm:$0xff]
        %v2197 = vld [vmem:[#allocation14 + $0x1b0] sm:$0xff]
        %v2198 = vld [vmem:[#allocation14 + $0x1b8] sm:$0xff]
        %v2199 = vld [vmem:[#allocation14 + $0x1c0] sm:$0xff]
        %v2200 = vld [vmem:[#allocation14 + $0x1c8] sm:$0xff]
        %v2201 = vld [vmem:[#allocation14 + $0x1d0] sm:$0xff]
        %v2202 = vld [vmem:[#allocation14 + $0x1d8] sm:$0xff]
        %v2203 = vld [vmem:[#allocation14 + $0x1e0] sm:$0xff]
        %v2204 = vld [vmem:[#allocation14 + $0x1e8] sm:$0xff]
        %v2205 = vld [vmem:[#allocation14 + $0x1f0] sm:$0xff]
        %v2206 = vld [vmem:[#allocation14 + $0x1f8] sm:$0xff]
        %v2207 = vld [vmem:[#allocation14 + $0x200] sm:$0xff]
        %v2208 = vld [vmem:[#allocation14 + $0x208] sm:$0xff]
        %v2209 = vld [vmem:[#allocation14 + $0x210] sm:$0xff]
        %v2210 = vld [vmem:[#allocation14 + $0x218] sm:$0xff]
        %v2211 = vld [vmem:[#allocation14 + $0x220] sm:$0xff]
        %v2212 = vld [vmem:[#allocation14 + $0x228] sm:$0xff]
        %v2213 = vld [vmem:[#allocation14 + $0x230] sm:$0xff]
        %v2214 = vld [vmem:[#allocation14 + $0x238] sm:$0xff]
        %v2215 = vld [vmem:[#allocation14 + $0x240] sm:$0xff]
        %v2216 = vld [vmem:[#allocation14 + $0x248] sm:$0xff]
        %v2217 = vld [vmem:[#allocation14 + $0x250] sm:$0xff]
        %v2218 = vld [vmem:[#allocation14 + $0x258] sm:$0xff]
        %v2219 = vld [vmem:[#allocation14 + $0x260] sm:$0xff]
        %v2220 = vld [vmem:[#allocation14 + $0x268] sm:$0xff]
        %v2221 = vld [vmem:[#allocation14 + $0x270] sm:$0xff]
        %v2222 = vld [vmem:[#allocation14 + $0x278] sm:$0xff]
        %v2223 = vld [vmem:[#allocation14 + $0x280] sm:$0xff]
        %v2224 = vld [vmem:[#allocation14 + $0x288] sm:$0xff]
        %v2225 = vld [vmem:[#allocation14 + $0x290] sm:$0xff]
        %v2226 = vld [vmem:[#allocation14 + $0x298] sm:$0xff]
        %v2227 = vld [vmem:[#allocation14 + $0x2a0] sm:$0xff]
        %v2228 = vld [vmem:[#allocation14 + $0x2a8] sm:$0xff]
        %v2229 = vld [vmem:[#allocation14 + $0x2b0] sm:$0xff]
        %v2230 = vld [vmem:[#allocation14 + $0x2b8] sm:$0xff]
        %v2231 = vld [vmem:[#allocation14 + $0x2c0] sm:$0xff]
        %v2232 = vld [vmem:[#allocation14 + $0x2c8] sm:$0xff]
        %v2233 = vld [vmem:[#allocation14 + $0x2d0] sm:$0xff]
        %v2234 = vld [vmem:[#allocation14 + $0x2d8] sm:$0xff]
        %v2235 = vld [vmem:[#allocation14 + $0x2e0] sm:$0xff]
        %v2236 = vld [vmem:[#allocation14 + $0x2e8] sm:$0xff]
        %v2237 = vld [vmem:[#allocation14 + $0x2f0] sm:$0xff]
        %v2238 = vld [vmem:[#allocation14 + $0x2f8] sm:$0xff]
        %v2239 = vld [vmem:[#allocation14 + $0x300] sm:$0xff]
        %v2240 = vld [vmem:[#allocation14 + $0x308] sm:$0xff]
        %v2241 = vld [vmem:[#allocation14 + $0x310] sm:$0xff]
        %v2242 = vld [vmem:[#allocation14 + $0x318] sm:$0xff]
        %v2243 = vld [vmem:[#allocation14 + $0x320] sm:$0xff]
        %v2244 = vld [vmem:[#allocation14 + $0x328] sm:$0xff]
        %v2245 = vld [vmem:[#allocation14 + $0x330] sm:$0xff]
        %v2246 = vld [vmem:[#allocation14 + $0x338] sm:$0xff]
        %v2247 = vld [vmem:[#allocation14 + $0x340] sm:$0xff]
        %v2248 = vld [vmem:[#allocation14 + $0x348] sm:$0xff]
        %v2249 = vld [vmem:[#allocation14 + $0x350] sm:$0xff]
        %v2250 = vld [vmem:[#allocation14 + $0x358] sm:$0xff]
        %v2251 = vld [vmem:[#allocation14 + $0x360] sm:$0xff]
        %v2252 = vld [vmem:[#allocation14 + $0x368] sm:$0xff]
        %v2253 = vld [vmem:[#allocation14 + $0x370] sm:$0xff]
        %v2254 = vld [vmem:[#allocation14 + $0x378] sm:$0xff]
        %v2255 = vld [vmem:[#allocation14 + $0x380] sm:$0xff]
        %v2256 = vld [vmem:[#allocation14 + $0x388] sm:$0xff]
        %v2257 = vld [vmem:[#allocation14 + $0x390] sm:$0xff]
        %v2258 = vld [vmem:[#allocation14 + $0x398] sm:$0xff]
        %v2259 = vld [vmem:[#allocation14 + $0x3a0] sm:$0xff]
        %v2260 = vld [vmem:[#allocation14 + $0x3a8] sm:$0xff]
        %v2261 = vld [vmem:[#allocation14 + $0x3b0] sm:$0xff]
        %v2262 = vld [vmem:[#allocation14 + $0x3b8] sm:$0xff]
        %v2263 = vld [vmem:[#allocation14 + $0x3c0] sm:$0xff]
        %v2264 = vld [vmem:[#allocation14 + $0x3c8] sm:$0xff]
        %v2265 = vld [vmem:[#allocation14 + $0x3d0] sm:$0xff]
        %v2266 = vld [vmem:[#allocation14 + $0x3d8] sm:$0xff]
        %v2267 = vld [vmem:[#allocation14 + $0x3e0] sm:$0xff]
        %v2268 = vld [vmem:[#allocation14 + $0x3e8] sm:$0xff]
        %v2269 = vld [vmem:[#allocation14 + $0x3f0] sm:$0xff]
        %v2270 = vld [vmem:[#allocation14 + $0x3f8] sm:$0xff]
        %v2271 = vld [vmem:[#allocation16] sm:$0xff]
        %v2272 = vld [vmem:[#allocation16 + $0x8] sm:$0xff]
        %v2275 = vlaneseq
        %v2276 = vshrl.u32 %v2275, 7
        %v2277 = vsub.s32 0, %v2276
        %v2278 = vrot.slane %v2271, %v2277
        %v2279 = vlaneseq
        %v2280 = vshrl.u32 %v2279, 7
        %v2281 = vsub.s32 1, %v2280
        %v2282 = vrot.slane %v2271, %v2281
        %v2283 = vlaneseq
        %v2284 = vshrl.u32 %v2283, 7
        %v2285 = vsub.s32 2, %v2284
        %v2286 = vrot.slane %v2271, %v2285
        %v2287 = vlaneseq
        %v2288 = vshrl.u32 %v2287, 7
        %v2289 = vsub.s32 3, %v2288
        %v2290 = vrot.slane %v2271, %v2289
        %v2291 = vlaneseq
        %v2292 = vshrl.u32 %v2291, 7
        %v2293 = vsub.s32 4, %v2292
        %v2294 = vrot.slane %v2271, %v2293
        %v2295 = vlaneseq
        %v2296 = vshrl.u32 %v2295, 7
        %v2297 = vsub.s32 5, %v2296
        %v2298 = vrot.slane %v2271, %v2297
        %v2299 = vlaneseq
        %v2300 = vshrl.u32 %v2299, 7
        %v2301 = vsub.s32 6, %v2300
        %v2302 = vrot.slane %v2271, %v2301
        %v2303 = vlaneseq
        %v2304 = vshrl.u32 %v2303, 7
        %v2305 = vsub.s32 7, %v2304
        %v2306 = vrot.slane %v2271, %v2305
        %v2307 = vlaneseq
        %v2308 = vshrl.u32 %v2307, 7
        %v2309 = vsub.s32 0, %v2308
        %v2310 = vrot.slane %v2272, %v2309
        %v2311 = vlaneseq
        %v2312 = vshrl.u32 %v2311, 7
        %v2313 = vsub.s32 1, %v2312
        %v2314 = vrot.slane %v2272, %v2313
        %v2315 = vlaneseq
        %v2316 = vshrl.u32 %v2315, 7
        %v2317 = vsub.s32 2, %v2316
        %v2318 = vrot.slane %v2272, %v2317
        %v2319 = vlaneseq
        %v2320 = vshrl.u32 %v2319, 7
        %v2321 = vsub.s32 3, %v2320
        %v2322 = vrot.slane %v2272, %v2321
        %v2323 = vlaneseq
        %v2324 = vshrl.u32 %v2323, 7
        %v2325 = vsub.s32 4, %v2324
        %v2326 = vrot.slane %v2272, %v2325
        %v2327 = vlaneseq
        %v2328 = vshrl.u32 %v2327, 7
        %v2329 = vsub.s32 5, %v2328
        %v2330 = vrot.slane %v2272, %v2329
        %v2331 = vlaneseq
        %v2332 = vshrl.u32 %v2331, 7
        %v2333 = vsub.s32 6, %v2332
        %v2334 = vrot.slane %v2272, %v2333
        %v2335 = vlaneseq
        %v2336 = vshrl.u32 %v2335, 7
        %v2337 = vsub.s32 7, %v2336
        %v2338 = vrot.slane %v2272, %v2337
        %v2483 = vunpack.c.l.b16 %v2143
        %v2484 = vunpack.c.h.b16 %v2143
        %v2485 = vunpack.c.l.b16 %v2144
        %v2486 = vunpack.c.h.b16 %v2144
        %v2487 = vunpack.c.l.b16 %v2145
        %v2488 = vunpack.c.h.b16 %v2145
        %v2489 = vunpack.c.l.b16 %v2146
        %v2490 = vunpack.c.h.b16 %v2146
        %v2491 = vunpack.c.l.b16 %v2147
        %v2492 = vunpack.c.h.b16 %v2147
        %v2493 = vunpack.c.l.b16 %v2148
        %v2494 = vunpack.c.h.b16 %v2148
        %v2495 = vunpack.c.l.b16 %v2149
        %v2496 = vunpack.c.h.b16 %v2149
        %v2497 = vunpack.c.l.b16 %v2150
        %v2498 = vunpack.c.h.b16 %v2150
        %v2499 = vunpack.c.l.b16 %v2151
        %v2500 = vunpack.c.h.b16 %v2151
        %v2501 = vunpack.c.l.b16 %v2152
        %v2502 = vunpack.c.h.b16 %v2152
        %v2503 = vunpack.c.l.b16 %v2153
        %v2504 = vunpack.c.h.b16 %v2153
        %v2505 = vunpack.c.l.b16 %v2154
        %v2506 = vunpack.c.h.b16 %v2154
        %v2507 = vunpack.c.l.b16 %v2155
        %v2508 = vunpack.c.h.b16 %v2155
        %v2509 = vunpack.c.l.b16 %v2156
        %v2510 = vunpack.c.h.b16 %v2156
        %v2511 = vunpack.c.l.b16 %v2157
        %v2512 = vunpack.c.h.b16 %v2157
        %v2513 = vunpack.c.l.b16 %v2158
        %v2514 = vunpack.c.h.b16 %v2158
        %v2515 = vunpack.c.l.b16 %v2159
        %v2516 = vunpack.c.h.b16 %v2159
        %v2517 = vunpack.c.l.b16 %v2160
        %v2518 = vunpack.c.h.b16 %v2160
        %v2519 = vunpack.c.l.b16 %v2161
        %v2520 = vunpack.c.h.b16 %v2161
        %v2521 = vunpack.c.l.b16 %v2162
        %v2522 = vunpack.c.h.b16 %v2162
        %v2523 = vunpack.c.l.b16 %v2163
        %v2524 = vunpack.c.h.b16 %v2163
        %v2525 = vunpack.c.l.b16 %v2164
        %v2526 = vunpack.c.h.b16 %v2164
        %v2527 = vunpack.c.l.b16 %v2165
        %v2528 = vunpack.c.h.b16 %v2165
        %v2529 = vunpack.c.l.b16 %v2166
        %v2530 = vunpack.c.h.b16 %v2166
        %v2531 = vunpack.c.l.b16 %v2167
        %v2532 = vunpack.c.h.b16 %v2167
        %v2533 = vunpack.c.l.b16 %v2168
        %v2534 = vunpack.c.h.b16 %v2168
        %v2535 = vunpack.c.l.b16 %v2169
        %v2536 = vunpack.c.h.b16 %v2169
        %v2537 = vunpack.c.l.b16 %v2170
        %v2538 = vunpack.c.h.b16 %v2170
        %v2539 = vunpack.c.l.b16 %v2171
        %v2540 = vunpack.c.h.b16 %v2171
        %v2541 = vunpack.c.l.b16 %v2172
        %v2542 = vunpack.c.h.b16 %v2172
        %v2543 = vunpack.c.l.b16 %v2173
        %v2544 = vunpack.c.h.b16 %v2173
        %v2545 = vunpack.c.l.b16 %v2174
        %v2546 = vunpack.c.h.b16 %v2174
        %v2547 = vunpack.c.l.b16 %v2175
        %v2548 = vunpack.c.h.b16 %v2175
        %v2549 = vunpack.c.l.b16 %v2176
        %v2550 = vunpack.c.h.b16 %v2176
        %v2551 = vunpack.c.l.b16 %v2177
        %v2552 = vunpack.c.h.b16 %v2177
        %v2553 = vunpack.c.l.b16 %v2178
        %v2554 = vunpack.c.h.b16 %v2178
        %v2555 = vunpack.c.l.b16 %v2179
        %v2556 = vunpack.c.h.b16 %v2179
        %v2557 = vunpack.c.l.b16 %v2180
        %v2558 = vunpack.c.h.b16 %v2180
        %v2559 = vunpack.c.l.b16 %v2181
        %v2560 = vunpack.c.h.b16 %v2181
        %v2561 = vunpack.c.l.b16 %v2182
        %v2562 = vunpack.c.h.b16 %v2182
        %v2563 = vunpack.c.l.b16 %v2183
        %v2564 = vunpack.c.h.b16 %v2183
        %v2565 = vunpack.c.l.b16 %v2184
        %v2566 = vunpack.c.h.b16 %v2184
        %v2567 = vunpack.c.l.b16 %v2185
        %v2568 = vunpack.c.h.b16 %v2185
        %v2569 = vunpack.c.l.b16 %v2186
        %v2570 = vunpack.c.h.b16 %v2186
        %v2571 = vunpack.c.l.b16 %v2187
        %v2572 = vunpack.c.h.b16 %v2187
        %v2573 = vunpack.c.l.b16 %v2188
        %v2574 = vunpack.c.h.b16 %v2188
        %v2575 = vunpack.c.l.b16 %v2189
        %v2576 = vunpack.c.h.b16 %v2189
        %v2577 = vunpack.c.l.b16 %v2190
        %v2578 = vunpack.c.h.b16 %v2190
        %v2579 = vunpack.c.l.b16 %v2191
        %v2580 = vunpack.c.h.b16 %v2191
        %v2581 = vunpack.c.l.b16 %v2192
        %v2582 = vunpack.c.h.b16 %v2192
        %v2583 = vunpack.c.l.b16 %v2193
        %v2584 = vunpack.c.h.b16 %v2193
        %v2585 = vunpack.c.l.b16 %v2194
        %v2586 = vunpack.c.h.b16 %v2194
        %v2587 = vunpack.c.l.b16 %v2195
        %v2588 = vunpack.c.h.b16 %v2195
        %v2589 = vunpack.c.l.b16 %v2196
        %v2590 = vunpack.c.h.b16 %v2196
        %v2591 = vunpack.c.l.b16 %v2197
        %v2592 = vunpack.c.h.b16 %v2197
        %v2593 = vunpack.c.l.b16 %v2198
        %v2594 = vunpack.c.h.b16 %v2198
        %v2595 = vunpack.c.l.b16 %v2199
        %v2596 = vunpack.c.h.b16 %v2199
        %v2597 = vunpack.c.l.b16 %v2200
        %v2598 = vunpack.c.h.b16 %v2200
        %v2599 = vunpack.c.l.b16 %v2201
        %v2600 = vunpack.c.h.b16 %v2201
        %v2601 = vunpack.c.l.b16 %v2202
        %v2602 = vunpack.c.h.b16 %v2202
        %v2603 = vunpack.c.l.b16 %v2203
        %v2604 = vunpack.c.h.b16 %v2203
        %v2605 = vunpack.c.l.b16 %v2204
        %v2606 = vunpack.c.h.b16 %v2204
        %v2607 = vunpack.c.l.b16 %v2205
        %v2608 = vunpack.c.h.b16 %v2205
        %v2609 = vunpack.c.l.b16 %v2206
        %v2610 = vunpack.c.h.b16 %v2206
        %v2611 = vunpack.c.l.b16 %v2207
        %v2612 = vunpack.c.h.b16 %v2207
        %v2613 = vunpack.c.l.b16 %v2208
        %v2614 = vunpack.c.h.b16 %v2208
        %v2615 = vunpack.c.l.b16 %v2209
        %v2616 = vunpack.c.h.b16 %v2209
        %v2617 = vunpack.c.l.b16 %v2210
        %v2618 = vunpack.c.h.b16 %v2210
        %v2619 = vunpack.c.l.b16 %v2211
        %v2620 = vunpack.c.h.b16 %v2211
        %v2621 = vunpack.c.l.b16 %v2212
        %v2622 = vunpack.c.h.b16 %v2212
        %v2623 = vunpack.c.l.b16 %v2213
        %v2624 = vunpack.c.h.b16 %v2213
        %v2625 = vunpack.c.l.b16 %v2214
        %v2626 = vunpack.c.h.b16 %v2214
        %v2627 = vunpack.c.l.b16 %v2215
        %v2628 = vunpack.c.h.b16 %v2215
        %v2629 = vunpack.c.l.b16 %v2216
        %v2630 = vunpack.c.h.b16 %v2216
        %v2631 = vunpack.c.l.b16 %v2217
        %v2632 = vunpack.c.h.b16 %v2217
        %v2633 = vunpack.c.l.b16 %v2218
        %v2634 = vunpack.c.h.b16 %v2218
        %v2635 = vunpack.c.l.b16 %v2219
        %v2636 = vunpack.c.h.b16 %v2219
        %v2637 = vunpack.c.l.b16 %v2220
        %v2638 = vunpack.c.h.b16 %v2220
        %v2639 = vunpack.c.l.b16 %v2221
        %v2640 = vunpack.c.h.b16 %v2221
        %v2641 = vunpack.c.l.b16 %v2222
        %v2642 = vunpack.c.h.b16 %v2222
        %v2643 = vunpack.c.l.b16 %v2223
        %v2644 = vunpack.c.h.b16 %v2223
        %v2645 = vunpack.c.l.b16 %v2224
        %v2646 = vunpack.c.h.b16 %v2224
        %v2647 = vunpack.c.l.b16 %v2225
        %v2648 = vunpack.c.h.b16 %v2225
        %v2649 = vunpack.c.l.b16 %v2226
        %v2650 = vunpack.c.h.b16 %v2226
        %v2651 = vunpack.c.l.b16 %v2227
        %v2652 = vunpack.c.h.b16 %v2227
        %v2653 = vunpack.c.l.b16 %v2228
        %v2654 = vunpack.c.h.b16 %v2228
        %v2655 = vunpack.c.l.b16 %v2229
        %v2656 = vunpack.c.h.b16 %v2229
        %v2657 = vunpack.c.l.b16 %v2230
        %v2658 = vunpack.c.h.b16 %v2230
        %v2659 = vunpack.c.l.b16 %v2231
        %v2660 = vunpack.c.h.b16 %v2231
        %v2661 = vunpack.c.l.b16 %v2232
        %v2662 = vunpack.c.h.b16 %v2232
        %v2663 = vunpack.c.l.b16 %v2233
        %v2664 = vunpack.c.h.b16 %v2233
        %v2665 = vunpack.c.l.b16 %v2234
        %v2666 = vunpack.c.h.b16 %v2234
        %v2667 = vunpack.c.l.b16 %v2235
        %v2668 = vunpack.c.h.b16 %v2235
        %v2669 = vunpack.c.l.b16 %v2236
        %v2670 = vunpack.c.h.b16 %v2236
        %v2671 = vunpack.c.l.b16 %v2237
        %v2672 = vunpack.c.h.b16 %v2237
        %v2673 = vunpack.c.l.b16 %v2238
        %v2674 = vunpack.c.h.b16 %v2238
        %v2675 = vunpack.c.l.b16 %v2239
        %v2676 = vunpack.c.h.b16 %v2239
        %v2677 = vunpack.c.l.b16 %v2240
        %v2678 = vunpack.c.h.b16 %v2240
        %v2679 = vunpack.c.l.b16 %v2241
        %v2680 = vunpack.c.h.b16 %v2241
        %v2681 = vunpack.c.l.b16 %v2242
        %v2682 = vunpack.c.h.b16 %v2242
        %v2683 = vunpack.c.l.b16 %v2243
        %v2684 = vunpack.c.h.b16 %v2243
        %v2685 = vunpack.c.l.b16 %v2244
        %v2686 = vunpack.c.h.b16 %v2244
        %v2687 = vunpack.c.l.b16 %v2245
        %v2688 = vunpack.c.h.b16 %v2245
        %v2689 = vunpack.c.l.b16 %v2246
        %v2690 = vunpack.c.h.b16 %v2246
        %v2691 = vunpack.c.l.b16 %v2247
        %v2692 = vunpack.c.h.b16 %v2247
        %v2693 = vunpack.c.l.b16 %v2248
        %v2694 = vunpack.c.h.b16 %v2248
        %v2695 = vunpack.c.l.b16 %v2249
        %v2696 = vunpack.c.h.b16 %v2249
        %v2697 = vunpack.c.l.b16 %v2250
        %v2698 = vunpack.c.h.b16 %v2250
        %v2699 = vunpack.c.l.b16 %v2251
        %v2700 = vunpack.c.h.b16 %v2251
        %v2701 = vunpack.c.l.b16 %v2252
        %v2702 = vunpack.c.h.b16 %v2252
        %v2703 = vunpack.c.l.b16 %v2253
        %v2704 = vunpack.c.h.b16 %v2253
        %v2705 = vunpack.c.l.b16 %v2254
        %v2706 = vunpack.c.h.b16 %v2254
        %v2707 = vunpack.c.l.b16 %v2255
        %v2708 = vunpack.c.h.b16 %v2255
        %v2709 = vunpack.c.l.b16 %v2256
        %v2710 = vunpack.c.h.b16 %v2256
        %v2711 = vunpack.c.l.b16 %v2257
        %v2712 = vunpack.c.h.b16 %v2257
        %v2713 = vunpack.c.l.b16 %v2258
        %v2714 = vunpack.c.h.b16 %v2258
        %v2715 = vunpack.c.l.b16 %v2259
        %v2716 = vunpack.c.h.b16 %v2259
        %v2717 = vunpack.c.l.b16 %v2260
        %v2718 = vunpack.c.h.b16 %v2260
        %v2719 = vunpack.c.l.b16 %v2261
        %v2720 = vunpack.c.h.b16 %v2261
        %v2721 = vunpack.c.l.b16 %v2262
        %v2722 = vunpack.c.h.b16 %v2262
        %v2723 = vunpack.c.l.b16 %v2263
        %v2724 = vunpack.c.h.b16 %v2263
        %v2725 = vunpack.c.l.b16 %v2264
        %v2726 = vunpack.c.h.b16 %v2264
        %v2727 = vunpack.c.l.b16 %v2265
        %v2728 = vunpack.c.h.b16 %v2265
        %v2729 = vunpack.c.l.b16 %v2266
        %v2730 = vunpack.c.h.b16 %v2266
        %v2731 = vunpack.c.l.b16 %v2267
        %v2732 = vunpack.c.h.b16 %v2267
        %v2733 = vunpack.c.l.b16 %v2268
        %v2734 = vunpack.c.h.b16 %v2268
        %v2735 = vunpack.c.l.b16 %v2269
        %v2736 = vunpack.c.h.b16 %v2269
        %v2737 = vunpack.c.l.b16 %v2270
        %v2738 = vunpack.c.h.b16 %v2270
        %v2739 = vpack.c.b16 %v2499, %v2483
        %v2740 = vpack.c.b16 %v2500, %v2484
        %v2741 = vpack.c.b16 %v2501, %v2485
        %v2742 = vpack.c.b16 %v2502, %v2486
        %v2743 = vpack.c.b16 %v2503, %v2487
        %v2744 = vpack.c.b16 %v2504, %v2488
        %v2745 = vpack.c.b16 %v2505, %v2489
        %v2746 = vpack.c.b16 %v2506, %v2490
        %v2747 = vpack.c.b16 %v2507, %v2491
        %v2748 = vpack.c.b16 %v2508, %v2492
        %v2749 = vpack.c.b16 %v2509, %v2493
        %v2750 = vpack.c.b16 %v2510, %v2494
        %v2751 = vpack.c.b16 %v2511, %v2495
        %v2752 = vpack.c.b16 %v2512, %v2496
        %v2753 = vpack.c.b16 %v2513, %v2497
        %v2754 = vpack.c.b16 %v2514, %v2498
        %v2755 = vpack.c.b16 %v2531, %v2515
        %v2756 = vpack.c.b16 %v2532, %v2516
        %v2757 = vpack.c.b16 %v2533, %v2517
        %v2758 = vpack.c.b16 %v2534, %v2518
        %v2759 = vpack.c.b16 %v2535, %v2519
        %v2760 = vpack.c.b16 %v2536, %v2520
        %v2761 = vpack.c.b16 %v2537, %v2521
        %v2762 = vpack.c.b16 %v2538, %v2522
        %v2763 = vpack.c.b16 %v2539, %v2523
        %v2764 = vpack.c.b16 %v2540, %v2524
        %v2765 = vpack.c.b16 %v2541, %v2525
        %v2766 = vpack.c.b16 %v2542, %v2526
        %v2767 = vpack.c.b16 %v2543, %v2527
        %v2768 = vpack.c.b16 %v2544, %v2528
        %v2769 = vpack.c.b16 %v2545, %v2529
        %v2770 = vpack.c.b16 %v2546, %v2530
        %v2771 = vpack.c.b16 %v2563, %v2547
        %v2772 = vpack.c.b16 %v2564, %v2548
        %v2773 = vpack.c.b16 %v2565, %v2549
        %v2774 = vpack.c.b16 %v2566, %v2550
        %v2775 = vpack.c.b16 %v2567, %v2551
        %v2776 = vpack.c.b16 %v2568, %v2552
        %v2777 = vpack.c.b16 %v2569, %v2553
        %v2778 = vpack.c.b16 %v2570, %v2554
        %v2779 = vpack.c.b16 %v2571, %v2555
        %v2780 = vpack.c.b16 %v2572, %v2556
        %v2781 = vpack.c.b16 %v2573, %v2557
        %v2782 = vpack.c.b16 %v2574, %v2558
        %v2783 = vpack.c.b16 %v2575, %v2559
        %v2784 = vpack.c.b16 %v2576, %v2560
        %v2785 = vpack.c.b16 %v2577, %v2561
        %v2786 = vpack.c.b16 %v2578, %v2562
        %v2787 = vpack.c.b16 %v2595, %v2579
        %v2788 = vpack.c.b16 %v2596, %v2580
        %v2789 = vpack.c.b16 %v2597, %v2581
        %v2790 = vpack.c.b16 %v2598, %v2582
        %v2791 = vpack.c.b16 %v2599, %v2583
        %v2792 = vpack.c.b16 %v2600, %v2584
        %v2793 = vpack.c.b16 %v2601, %v2585
        %v2794 = vpack.c.b16 %v2602, %v2586
        %v2795 = vpack.c.b16 %v2603, %v2587
        %v2796 = vpack.c.b16 %v2604, %v2588
        %v2797 = vpack.c.b16 %v2605, %v2589
        %v2798 = vpack.c.b16 %v2606, %v2590
        %v2799 = vpack.c.b16 %v2607, %v2591
        %v2800 = vpack.c.b16 %v2608, %v2592
        %v2801 = vpack.c.b16 %v2609, %v2593
        %v2802 = vpack.c.b16 %v2610, %v2594
        %v2803 = vpack.c.b16 %v2627, %v2611
        %v2804 = vpack.c.b16 %v2628, %v2612
        %v2805 = vpack.c.b16 %v2629, %v2613
        %v2806 = vpack.c.b16 %v2630, %v2614
        %v2807 = vpack.c.b16 %v2631, %v2615
        %v2808 = vpack.c.b16 %v2632, %v2616
        %v2809 = vpack.c.b16 %v2633, %v2617
        %v2810 = vpack.c.b16 %v2634, %v2618
        %v2811 = vpack.c.b16 %v2635, %v2619
        %v2812 = vpack.c.b16 %v2636, %v2620
        %v2813 = vpack.c.b16 %v2637, %v2621
        %v2814 = vpack.c.b16 %v2638, %v2622
        %v2815 = vpack.c.b16 %v2639, %v2623
        %v2816 = vpack.c.b16 %v2640, %v2624
        %v2817 = vpack.c.b16 %v2641, %v2625
        %v2818 = vpack.c.b16 %v2642, %v2626
        %v2819 = vpack.c.b16 %v2659, %v2643
        %v2820 = vpack.c.b16 %v2660, %v2644
        %v2821 = vpack.c.b16 %v2661, %v2645
        %v2822 = vpack.c.b16 %v2662, %v2646
        %v2823 = vpack.c.b16 %v2663, %v2647
        %v2824 = vpack.c.b16 %v2664, %v2648
        %v2825 = vpack.c.b16 %v2665, %v2649
        %v2826 = vpack.c.b16 %v2666, %v2650
        %v2827 = vpack.c.b16 %v2667, %v2651
        %v2828 = vpack.c.b16 %v2668, %v2652
        %v2829 = vpack.c.b16 %v2669, %v2653
        %v2830 = vpack.c.b16 %v2670, %v2654
        %v2831 = vpack.c.b16 %v2671, %v2655
        %v2832 = vpack.c.b16 %v2672, %v2656
        %v2833 = vpack.c.b16 %v2673, %v2657
        %v2834 = vpack.c.b16 %v2674, %v2658
        %v2835 = vpack.c.b16 %v2691, %v2675
        %v2836 = vpack.c.b16 %v2692, %v2676
        %v2837 = vpack.c.b16 %v2693, %v2677
        %v2838 = vpack.c.b16 %v2694, %v2678
        %v2839 = vpack.c.b16 %v2695, %v2679
        %v2840 = vpack.c.b16 %v2696, %v2680
        %v2841 = vpack.c.b16 %v2697, %v2681
        %v2842 = vpack.c.b16 %v2698, %v2682
        %v2843 = vpack.c.b16 %v2699, %v2683
        %v2844 = vpack.c.b16 %v2700, %v2684
        %v2845 = vpack.c.b16 %v2701, %v2685
        %v2846 = vpack.c.b16 %v2702, %v2686
        %v2847 = vpack.c.b16 %v2703, %v2687
        %v2848 = vpack.c.b16 %v2704, %v2688
        %v2849 = vpack.c.b16 %v2705, %v2689
        %v2850 = vpack.c.b16 %v2706, %v2690
        %v2851 = vpack.c.b16 %v2723, %v2707
        %v2852 = vpack.c.b16 %v2724, %v2708
        %v2853 = vpack.c.b16 %v2725, %v2709
        %v2854 = vpack.c.b16 %v2726, %v2710
        %v2855 = vpack.c.b16 %v2727, %v2711
        %v2856 = vpack.c.b16 %v2728, %v2712
        %v2857 = vpack.c.b16 %v2729, %v2713
        %v2858 = vpack.c.b16 %v2730, %v2714
        %v2859 = vpack.c.b16 %v2731, %v2715
        %v2860 = vpack.c.b16 %v2732, %v2716
        %v2861 = vpack.c.b16 %v2733, %v2717
        %v2862 = vpack.c.b16 %v2734, %v2718
        %v2863 = vpack.c.b16 %v2735, %v2719
        %v2864 = vpack.c.b16 %v2736, %v2720
        %v2865 = vpack.c.b16 %v2737, %v2721
        %v2866 = vpack.c.b16 %v2738, %v2722
        %2995 = vmatprep.subr.bf16.mxu0 %v2740
        %2996 = vmatpush1.bf16.msra.mxu0 %v2739
        %2997 = vmatprep.subr.bf16.mxu0 %v2756
        %2998 = vmatpush1.bf16.msra.mxu0 %v2755
        %2999 = vmatprep.subr.bf16.mxu0 %v2772
        %3000 = vmatpush1.bf16.msra.mxu0 %v2771
        %3001 = vmatprep.subr.bf16.mxu0 %v2788
        %3002 = vmatpush1.bf16.msra.mxu0 %v2787
        %3003 = vmatprep.subr.bf16.mxu0 %v2804
        %3004 = vmatpush1.bf16.msra.mxu0 %v2803
        %3005 = vmatprep.subr.bf16.mxu0 %v2820
        %3006 = vmatpush1.bf16.msra.mxu0 %v2819
        %3007 = vmatprep.subr.bf16.mxu0 %v2836
        %3008 = vmatpush1.bf16.msra.mxu0 %v2835
        %3009 = vmatprep.subr.bf16.mxu0 %v2852
        %3010 = vmatpush1.bf16.msra.mxu0 %v2851
        %3011 = vmatprep.subr.bf16.mxu0 0
        %3012 = vmatpush1.bf16.msra.mxu0 0
        %3013 = vmatprep.subr.bf16.mxu0 0
        %3014 = vmatpush1.bf16.msra.mxu0 0
        %3015 = vmatprep.subr.bf16.mxu0 0
        %3016 = vmatpush1.bf16.msra.mxu0 0
        %3017 = vmatprep.subr.bf16.mxu0 0
        %3018 = vmatpush1.bf16.msra.mxu0 0
        %3019 = vmatprep.subr.bf16.mxu0 0
        %3020 = vmatpush1.bf16.msra.mxu0 0
        %3021 = vmatprep.subr.bf16.mxu0 0
        %3022 = vmatpush1.bf16.msra.mxu0 0
        %3023 = vmatprep.subr.bf16.mxu0 0
        %3024 = vmatpush1.bf16.msra.mxu0 0
        %3025 = vmatprep.subr.bf16.mxu0 0
        %3026 = vmatpush1.bf16.msra.mxu0 0
        %3027 = vmatprep.mubr.bf16.mxu0 0
        %3028 = vmatmul.mubr.bf16.gmra.mrb[0].mxu0 %v2142
        %v3029 = vpop.f32.mrb[0].mxu0
        %v3030 = vadd.f32 %v2278, %v3029
        %v3031 = vpop.f32.mrb[0].mxu0
        %v3032 = vadd.f32 %v2282, %v3031
        %v3033 = vpop.f32.mrb[0].mxu0
        %v3034 = vpop.f32.mrb[0].mxu0
        %3035 = vdwg.mxu0
        %3036 = vmatprep.subr.bf16.mxu0 %v2742
        %3037 = vmatpush1.bf16.msra.mxu0 %v2741
        %3038 = vmatprep.subr.bf16.mxu0 %v2758
        %3039 = vmatpush1.bf16.msra.mxu0 %v2757
        %3040 = vmatprep.subr.bf16.mxu0 %v2774
        %3041 = vmatpush1.bf16.msra.mxu0 %v2773
        %3042 = vmatprep.subr.bf16.mxu0 %v2790
        %3043 = vmatpush1.bf16.msra.mxu0 %v2789
        %3044 = vmatprep.subr.bf16.mxu0 %v2806
        %3045 = vmatpush1.bf16.msra.mxu0 %v2805
        %3046 = vmatprep.subr.bf16.mxu0 %v2822
        %3047 = vmatpush1.bf16.msra.mxu0 %v2821
        %3048 = vmatprep.subr.bf16.mxu0 %v2838
        %3049 = vmatpush1.bf16.msra.mxu0 %v2837
        %3050 = vmatprep.subr.bf16.mxu0 %v2854
        %3051 = vmatpush1.bf16.msra.mxu0 %v2853
        %3052 = vmatprep.subr.bf16.mxu0 0
        %3053 = vmatpush1.bf16.msra.mxu0 0
        %3054 = vmatprep.subr.bf16.mxu0 0
        %3055 = vmatpush1.bf16.msra.mxu0 0
        %3056 = vmatprep.subr.bf16.mxu0 0
        %3057 = vmatpush1.bf16.msra.mxu0 0
        %3058 = vmatprep.subr.bf16.mxu0 0
        %3059 = vmatpush1.bf16.msra.mxu0 0
        %3060 = vmatprep.subr.bf16.mxu0 0
        %3061 = vmatpush1.bf16.msra.mxu0 0
        %3062 = vmatprep.subr.bf16.mxu0 0
        %3063 = vmatpush1.bf16.msra.mxu0 0
        %3064 = vmatprep.subr.bf16.mxu0 0
        %3065 = vmatpush1.bf16.msra.mxu0 0
        %3066 = vmatprep.subr.bf16.mxu0 0
        %3067 = vmatpush1.bf16.msra.mxu0 0
        %3068 = vmatprep.mubr.bf16.mxu0 0
        %3069 = vmatmul.mubr.bf16.gmra.mrb[0].mxu0 %v2142
        %v3070 = vpop.f32.mrb[0].mxu0
        %v3071 = vadd.f32 %v2286, %v3070
        %v3072 = vpop.f32.mrb[0].mxu0
        %v3073 = vadd.f32 %v2290, %v3072
        %v3074 = vpop.f32.mrb[0].mxu0
        %v3075 = vpop.f32.mrb[0].mxu0
        %3076 = vdwg.mxu0
        %3077 = vmatprep.subr.bf16.mxu0 %v2744
        %3078 = vmatpush1.bf16.msra.mxu0 %v2743
        %3079 = vmatprep.subr.bf16.mxu0 %v2760
        %3080 = vmatpush1.bf16.msra.mxu0 %v2759
        %3081 = vmatprep.subr.bf16.mxu0 %v2776
        %3082 = vmatpush1.bf16.msra.mxu0 %v2775
        %3083 = vmatprep.subr.bf16.mxu0 %v2792
        %3084 = vmatpush1.bf16.msra.mxu0 %v2791
        %3085 = vmatprep.subr.bf16.mxu0 %v2808
        %3086 = vmatpush1.bf16.msra.mxu0 %v2807
        %3087 = vmatprep.subr.bf16.mxu0 %v2824
        %3088 = vmatpush1.bf16.msra.mxu0 %v2823
        %3089 = vmatprep.subr.bf16.mxu0 %v2840
        %3090 = vmatpush1.bf16.msra.mxu0 %v2839
        %3091 = vmatprep.subr.bf16.mxu0 %v2856
        %3092 = vmatpush1.bf16.msra.mxu0 %v2855
        %3093 = vmatprep.subr.bf16.mxu0 0
        %3094 = vmatpush1.bf16.msra.mxu0 0
        %3095 = vmatprep.subr.bf16.mxu0 0
        %3096 = vmatpush1.bf16.msra.mxu0 0
        %3097 = vmatprep.subr.bf16.mxu0 0
        %3098 = vmatpush1.bf16.msra.mxu0 0
        %3099 = vmatprep.subr.bf16.mxu0 0
        %3100 = vmatpush1.bf16.msra.mxu0 0
        %3101 = vmatprep.subr.bf16.mxu0 0
        %3102 = vmatpush1.bf16.msra.mxu0 0
        %3103 = vmatprep.subr.bf16.mxu0 0
        %3104 = vmatpush1.bf16.msra.mxu0 0
        %3105 = vmatprep.subr.bf16.mxu0 0
        %3106 = vmatpush1.bf16.msra.mxu0 0
        %3107 = vmatprep.subr.bf16.mxu0 0
        %3108 = vmatpush1.bf16.msra.mxu0 0
        %3109 = vmatprep.mubr.bf16.mxu0 0
        %3110 = vmatmul.mubr.bf16.gmra.mrb[0].mxu0 %v2142
        %v3111 = vpop.f32.mrb[0].mxu0
        %v3112 = vadd.f32 %v2294, %v3111
        %v3113 = vpop.f32.mrb[0].mxu0
        %v3114 = vadd.f32 %v2298, %v3113
        %v3115 = vpop.f32.mrb[0].mxu0
        %v3116 = vpop.f32.mrb[0].mxu0
        %3117 = vdwg.mxu0
        %3118 = vmatprep.subr.bf16.mxu0 %v2746
        %3119 = vmatpush1.bf16.msra.mxu0 %v2745
        %3120 = vmatprep.subr.bf16.mxu0 %v2762
        %3121 = vmatpush1.bf16.msra.mxu0 %v2761
        %3122 = vmatprep.subr.bf16.mxu0 %v2778
        %3123 = vmatpush1.bf16.msra.mxu0 %v2777
        %3124 = vmatprep.subr.bf16.mxu0 %v2794
        %3125 = vmatpush1.bf16.msra.mxu0 %v2793
        %3126 = vmatprep.subr.bf16.mxu0 %v2810
        %3127 = vmatpush1.bf16.msra.mxu0 %v2809
        %3128 = vmatprep.subr.bf16.mxu0 %v2826
        %3129 = vmatpush1.bf16.msra.mxu0 %v2825
        %3130 = vmatprep.subr.bf16.mxu0 %v2842
        %3131 = vmatpush1.bf16.msra.mxu0 %v2841
        %3132 = vmatprep.subr.bf16.mxu0 %v2858
        %3133 = vmatpush1.bf16.msra.mxu0 %v2857
        %3134 = vmatprep.subr.bf16.mxu0 0
        %3135 = vmatpush1.bf16.msra.mxu0 0
        %3136 = vmatprep.subr.bf16.mxu0 0
        %3137 = vmatpush1.bf16.msra.mxu0 0
        %3138 = vmatprep.subr.bf16.mxu0 0
        %3139 = vmatpush1.bf16.msra.mxu0 0
        %3140 = vmatprep.subr.bf16.mxu0 0
        %3141 = vmatpush1.bf16.msra.mxu0 0
        %3142 = vmatprep.subr.bf16.mxu0 0
        %3143 = vmatpush1.bf16.msra.mxu0 0
        %3144 = vmatprep.subr.bf16.mxu0 0
        %3145 = vmatpush1.bf16.msra.mxu0 0
        %3146 = vmatprep.subr.bf16.mxu0 0
        %3147 = vmatpush1.bf16.msra.mxu0 0
        %3148 = vmatprep.subr.bf16.mxu0 0
        %3149 = vmatpush1.bf16.msra.mxu0 0
        %3150 = vmatprep.mubr.bf16.mxu0 0
        %3151 = vmatmul.mubr.bf16.gmra.mrb[0].mxu0 %v2142
        %v3152 = vpop.f32.mrb[0].mxu0
        %v3153 = vadd.f32 %v2302, %v3152
        %v3154 = vpop.f32.mrb[0].mxu0
        %v3155 = vadd.f32 %v2306, %v3154
        %v3156 = vpop.f32.mrb[0].mxu0
        %v3157 = vpop.f32.mrb[0].mxu0
        %3158 = vdwg.mxu0
        %3159 = vmatprep.subr.bf16.mxu0 %v2748
        %3160 = vmatpush1.bf16.msra.mxu0 %v2747
        %3161 = vmatprep.subr.bf16.mxu0 %v2764
        %3162 = vmatpush1.bf16.msra.mxu0 %v2763
        %3163 = vmatprep.subr.bf16.mxu0 %v2780
        %3164 = vmatpush1.bf16.msra.mxu0 %v2779
        %3165 = vmatprep.subr.bf16.mxu0 %v2796
        %3166 = vmatpush1.bf16.msra.mxu0 %v2795
        %3167 = vmatprep.subr.bf16.mxu0 %v2812
        %3168 = vmatpush1.bf16.msra.mxu0 %v2811
        %3169 = vmatprep.subr.bf16.mxu0 %v2828
        %3170 = vmatpush1.bf16.msra.mxu0 %v2827
        %3171 = vmatprep.subr.bf16.mxu0 %v2844
        %3172 = vmatpush1.bf16.msra.mxu0 %v2843
        %3173 = vmatprep.subr.bf16.mxu0 %v2860
        %3174 = vmatpush1.bf16.msra.mxu0 %v2859
        %3175 = vmatprep.subr.bf16.mxu0 0
        %3176 = vmatpush1.bf16.msra.mxu0 0
        %3177 = vmatprep.subr.bf16.mxu0 0
        %3178 = vmatpush1.bf16.msra.mxu0 0
        %3179 = vmatprep.subr.bf16.mxu0 0
        %3180 = vmatpush1.bf16.msra.mxu0 0
        %3181 = vmatprep.subr.bf16.mxu0 0
        %3182 = vmatpush1.bf16.msra.mxu0 0
        %3183 = vmatprep.subr.bf16.mxu0 0
        %3184 = vmatpush1.bf16.msra.mxu0 0
        %3185 = vmatprep.subr.bf16.mxu0 0
        %3186 = vmatpush1.bf16.msra.mxu0 0
        %3187 = vmatprep.subr.bf16.mxu0 0
        %3188 = vmatpush1.bf16.msra.mxu0 0
        %3189 = vmatprep.subr.bf16.mxu0 0
        %3190 = vmatpush1.bf16.msra.mxu0 0
        %3191 = vmatprep.mubr.bf16.mxu0 0
        %3192 = vmatmul.mubr.bf16.gmra.mrb[0].mxu0 %v2142
        %v3193 = vpop.f32.mrb[0].mxu0
        %v3194 = vadd.f32 %v2310, %v3193
        %v3195 = vpop.f32.mrb[0].mxu0
        %v3196 = vadd.f32 %v2314, %v3195
        %v3197 = vpop.f32.mrb[0].mxu0
        %v3198 = vpop.f32.mrb[0].mxu0
        %3199 = vdwg.mxu0
        %3200 = vmatprep.subr.bf16.mxu0 %v2750
        %3201 = vmatpush1.bf16.msra.mxu0 %v2749
        %3202 = vmatprep.subr.bf16.mxu0 %v2766
        %3203 = vmatpush1.bf16.msra.mxu0 %v2765
        %3204 = vmatprep.subr.bf16.mxu0 %v2782
        %3205 = vmatpush1.bf16.msra.mxu0 %v2781
        %3206 = vmatprep.subr.bf16.mxu0 %v2798
        %3207 = vmatpush1.bf16.msra.mxu0 %v2797
        %3208 = vmatprep.subr.bf16.mxu0 %v2814
        %3209 = vmatpush1.bf16.msra.mxu0 %v2813
        %3210 = vmatprep.subr.bf16.mxu0 %v2830
        %3211 = vmatpush1.bf16.msra.mxu0 %v2829
        %3212 = vmatprep.subr.bf16.mxu0 %v2846
        %3213 = vmatpush1.bf16.msra.mxu0 %v2845
        %3214 = vmatprep.subr.bf16.mxu0 %v2862
        %3215 = vmatpush1.bf16.msra.mxu0 %v2861
        %3216 = vmatprep.subr.bf16.mxu0 0
        %3217 = vmatpush1.bf16.msra.mxu0 0
        %3218 = vmatprep.subr.bf16.mxu0 0
        %3219 = vmatpush1.bf16.msra.mxu0 0
        %3220 = vmatprep.subr.bf16.mxu0 0
        %3221 = vmatpush1.bf16.msra.mxu0 0
        %3222 = vmatprep.subr.bf16.mxu0 0
        %3223 = vmatpush1.bf16.msra.mxu0 0
        %3224 = vmatprep.subr.bf16.mxu0 0
        %3225 = vmatpush1.bf16.msra.mxu0 0
        %3226 = vmatprep.subr.bf16.mxu0 0
        %3227 = vmatpush1.bf16.msra.mxu0 0
        %3228 = vmatprep.subr.bf16.mxu0 0
        %3229 = vmatpush1.bf16.msra.mxu0 0
        %3230 = vmatprep.subr.bf16.mxu0 0
        %3231 = vmatpush1.bf16.msra.mxu0 0
        %3232 = vmatprep.mubr.bf16.mxu0 0
        %3233 = vmatmul.mubr.bf16.gmra.mrb[0].mxu0 %v2142
        %v3234 = vpop.f32.mrb[0].mxu0
        %v3235 = vadd.f32 %v2318, %v3234
        %v3236 = vpop.f32.mrb[0].mxu0
        %v3237 = vadd.f32 %v2322, %v3236
        %v3238 = vpop.f32.mrb[0].mxu0
        %v3239 = vpop.f32.mrb[0].mxu0
        %3240 = vdwg.mxu0
        %3241 = vmatprep.subr.bf16.mxu0 %v2752
        %3242 = vmatpush1.bf16.msra.mxu0 %v2751
        %3243 = vmatprep.subr.bf16.mxu0 %v2768
        %3244 = vmatpush1.bf16.msra.mxu0 %v2767
        %3245 = vmatprep.subr.bf16.mxu0 %v2784
        %3246 = vmatpush1.bf16.msra.mxu0 %v2783
        %3247 = vmatprep.subr.bf16.mxu0 %v2800
        %3248 = vmatpush1.bf16.msra.mxu0 %v2799
        %3249 = vmatprep.subr.bf16.mxu0 %v2816
        %3250 = vmatpush1.bf16.msra.mxu0 %v2815
        %3251 = vmatprep.subr.bf16.mxu0 %v2832
        %3252 = vmatpush1.bf16.msra.mxu0 %v2831
        %3253 = vmatprep.subr.bf16.mxu0 %v2848
        %3254 = vmatpush1.bf16.msra.mxu0 %v2847
        %3255 = vmatprep.subr.bf16.mxu0 %v2864
        %3256 = vmatpush1.bf16.msra.mxu0 %v2863
        %3257 = vmatprep.subr.bf16.mxu0 0
        %3258 = vmatpush1.bf16.msra.mxu0 0
        %3259 = vmatprep.subr.bf16.mxu0 0
        %3260 = vmatpush1.bf16.msra.mxu0 0
        %3261 = vmatprep.subr.bf16.mxu0 0
        %3262 = vmatpush1.bf16.msra.mxu0 0
        %3263 = vmatprep.subr.bf16.mxu0 0
        %3264 = vmatpush1.bf16.msra.mxu0 0
        %3265 = vmatprep.subr.bf16.mxu0 0
        %3266 = vmatpush1.bf16.msra.mxu0 0
        %3267 = vmatprep.subr.bf16.mxu0 0
        %3268 = vmatpush1.bf16.msra.mxu0 0
        %3269 = vmatprep.subr.bf16.mxu0 0
        %3270 = vmatpush1.bf16.msra.mxu0 0
        %3271 = vmatprep.subr.bf16.mxu0 0
        %3272 = vmatpush1.bf16.msra.mxu0 0
        %3273 = vmatprep.mubr.bf16.mxu0 0
        %3274 = vmatmul.mubr.bf16.gmra.mrb[0].mxu0 %v2142
        %v3275 = vpop.f32.mrb[0].mxu0
        %v3276 = vadd.f32 %v2326, %v3275
        %v3277 = vpop.f32.mrb[0].mxu0
        %v3278 = vadd.f32 %v2330, %v3277
        %v3279 = vpop.f32.mrb[0].mxu0
        %v3280 = vpop.f32.mrb[0].mxu0
        %3281 = vdwg.mxu0
        %3282 = vmatprep.subr.bf16.mxu0 %v2754
        %3283 = vmatpush1.bf16.msra.mxu0 %v2753
        %3284 = vmatprep.subr.bf16.mxu0 %v2770
        %3285 = vmatpush1.bf16.msra.mxu0 %v2769
        %3286 = vmatprep.subr.bf16.mxu0 %v2786
        %3287 = vmatpush1.bf16.msra.mxu0 %v2785
        %3288 = vmatprep.subr.bf16.mxu0 %v2802
        %3289 = vmatpush1.bf16.msra.mxu0 %v2801
        %3290 = vmatprep.subr.bf16.mxu0 %v2818
        %3291 = vmatpush1.bf16.msra.mxu0 %v2817
        %3292 = vmatprep.subr.bf16.mxu0 %v2834
        %3293 = vmatpush1.bf16.msra.mxu0 %v2833
        %3294 = vmatprep.subr.bf16.mxu0 %v2850
        %3295 = vmatpush1.bf16.msra.mxu0 %v2849
        %3296 = vmatprep.subr.bf16.mxu0 %v2866
        %3297 = vmatpush1.bf16.msra.mxu0 %v2865
        %3298 = vmatprep.subr.bf16.mxu0 0
        %3299 = vmatpush1.bf16.msra.mxu0 0
        %3300 = vmatprep.subr.bf16.mxu0 0
        %3301 = vmatpush1.bf16.msra.mxu0 0
        %3302 = vmatprep.subr.bf16.mxu0 0
        %3303 = vmatpush1.bf16.msra.mxu0 0
        %3304 = vmatprep.subr.bf16.mxu0 0
        %3305 = vmatpush1.bf16.msra.mxu0 0
        %3306 = vmatprep.subr.bf16.mxu0 0
        %3307 = vmatpush1.bf16.msra.mxu0 0
        %3308 = vmatprep.subr.bf16.mxu0 0
        %3309 = vmatpush1.bf16.msra.mxu0 0
        %3310 = vmatprep.subr.bf16.mxu0 0
        %3311 = vmatpush1.bf16.msra.mxu0 0
        %3312 = vmatprep.subr.bf16.mxu0 0
        %3313 = vmatpush1.bf16.msra.mxu0 0
        %3314 = vmatprep.mubr.bf16.mxu0 0
        %3315 = vmatmul.mubr.bf16.gmra.mrb[0].mxu0 %v2142
        %v3316 = vpop.f32.mrb[0].mxu0
        %v3317 = vadd.f32 %v2334, %v3316
        %v3318 = vpop.f32.mrb[0].mxu0
        %v3319 = vadd.f32 %v2338, %v3318
        %v3320 = vpop.f32.mrb[0].mxu0
        %v3321 = vpop.f32.mrb[0].mxu0
        %3322 = vdwg.mxu0
        %v3323 = vmax.f32 %v3030, 0.0
        %v3324 = vmax.f32 %v3032, 0.0
        %v3325 = vmax.f32 %v3071, 0.0
        %v3326 = vmax.f32 %v3073, 0.0
        %v3327 = vmax.f32 %v3112, 0.0
        %v3328 = vmax.f32 %v3114, 0.0
        %v3329 = vmax.f32 %v3153, 0.0
        %v3330 = vmax.f32 %v3155, 0.0
        %v3331 = vmax.f32 %v3194, 0.0
        %v3332 = vmax.f32 %v3196, 0.0
        %v3333 = vmax.f32 %v3235, 0.0
        %v3334 = vmax.f32 %v3237, 0.0
        %v3335 = vmax.f32 %v3276, 0.0
        %v3336 = vmax.f32 %v3278, 0.0
        %v3337 = vmax.f32 %v3317, 0.0
        %v3338 = vmax.f32 %v3319, 0.0
        %v3339 = vpack.c.bf16 %v3323, %v3323
        %v3340 = vpack.c.bf16 %v3324, %v3324
        %v3341 = vpack.c.bf16 %v3325, %v3325
        %v3342 = vpack.c.bf16 %v3326, %v3326
        %v3343 = vpack.c.bf16 %v3327, %v3327
        %v3344 = vpack.c.bf16 %v3328, %v3328
        %v3345 = vpack.c.bf16 %v3329, %v3329
        %v3346 = vpack.c.bf16 %v3330, %v3330
        %v3347 = vpack.c.bf16 %v3331, %v3331
        %v3348 = vpack.c.bf16 %v3332, %v3332
        %v3349 = vpack.c.bf16 %v3333, %v3333
        %v3350 = vpack.c.bf16 %v3334, %v3334
        %v3351 = vpack.c.bf16 %v3335, %v3335
        %v3352 = vpack.c.bf16 %v3336, %v3336
        %v3353 = vpack.c.bf16 %v3337, %v3337
        %v3354 = vpack.c.bf16 %v3338, %v3338
        %v3355 = vld [vmem:[#allocation17] sm:$0xf]
        %v3356 = vld [vmem:[#allocation17 + $0x4] sm:$0xf]
        %v3357 = vld [vmem:[#allocation17 + $0x8] sm:$0xf]
        %v3358 = vld [vmem:[#allocation17 + $0xc] sm:$0xf]
        %v3359 = vld [vmem:[#allocation17 + $0x10] sm:$0xf]
        %v3360 = vld [vmem:[#allocation17 + $0x14] sm:$0xf]
        %v3361 = vld [vmem:[#allocation17 + $0x18] sm:$0xf]
        %v3362 = vld [vmem:[#allocation17 + $0x1c] sm:$0xf]
        %v3363 = vld [vmem:[#allocation17 + $0x20] sm:$0xf]
        %v3364 = vld [vmem:[#allocation17 + $0x24] sm:$0xf]
        %v3365 = vld [vmem:[#allocation17 + $0x28] sm:$0xf]
        %v3366 = vld [vmem:[#allocation17 + $0x2c] sm:$0xf]
        %v3367 = vld [vmem:[#allocation17 + $0x30] sm:$0xf]
        %v3368 = vld [vmem:[#allocation17 + $0x34] sm:$0xf]
        %v3369 = vld [vmem:[#allocation17 + $0x38] sm:$0xf]
        %v3370 = vld [vmem:[#allocation17 + $0x3c] sm:$0xf]
        %v3371 = vld [vmem:[#allocation17 + $0x40] sm:$0xf]
        %v3372 = vld [vmem:[#allocation17 + $0x44] sm:$0xf]
        %v3373 = vld [vmem:[#allocation17 + $0x48] sm:$0xf]
        %v3374 = vld [vmem:[#allocation17 + $0x4c] sm:$0xf]
        %v3375 = vld [vmem:[#allocation17 + $0x50] sm:$0xf]
        %v3376 = vld [vmem:[#allocation17 + $0x54] sm:$0xf]
        %v3377 = vld [vmem:[#allocation17 + $0x58] sm:$0xf]
        %v3378 = vld [vmem:[#allocation17 + $0x5c] sm:$0xf]
        %v3379 = vld [vmem:[#allocation17 + $0x60] sm:$0xf]
        %v3380 = vld [vmem:[#allocation17 + $0x64] sm:$0xf]
        %v3381 = vld [vmem:[#allocation17 + $0x68] sm:$0xf]
        %v3382 = vld [vmem:[#allocation17 + $0x6c] sm:$0xf]
        %v3383 = vld [vmem:[#allocation17 + $0x70] sm:$0xf]
        %v3384 = vld [vmem:[#allocation17 + $0x74] sm:$0xf]
        %v3385 = vld [vmem:[#allocation17 + $0x78] sm:$0xf]
        %v3386 = vld [vmem:[#allocation17 + $0x7c] sm:$0xf]
        %v3387 = vld [vmem:[#allocation17 + $0x80] sm:$0xf]
        %v3388 = vld [vmem:[#allocation17 + $0x84] sm:$0xf]
        %v3389 = vld [vmem:[#allocation17 + $0x88] sm:$0xf]
        %v3390 = vld [vmem:[#allocation17 + $0x8c] sm:$0xf]
        %v3391 = vld [vmem:[#allocation17 + $0x90] sm:$0xf]
        %v3392 = vld [vmem:[#allocation17 + $0x94] sm:$0xf]
        %v3393 = vld [vmem:[#allocation17 + $0x98] sm:$0xf]
        %v3394 = vld [vmem:[#allocation17 + $0x9c] sm:$0xf]
        %v3395 = vld [vmem:[#allocation17 + $0xa0] sm:$0xf]
        %v3396 = vld [vmem:[#allocation17 + $0xa4] sm:$0xf]
        %v3397 = vld [vmem:[#allocation17 + $0xa8] sm:$0xf]
        %v3398 = vld [vmem:[#allocation17 + $0xac] sm:$0xf]
        %v3399 = vld [vmem:[#allocation17 + $0xb0] sm:$0xf]
        %v3400 = vld [vmem:[#allocation17 + $0xb4] sm:$0xf]
        %v3401 = vld [vmem:[#allocation17 + $0xb8] sm:$0xf]
        %v3402 = vld [vmem:[#allocation17 + $0xbc] sm:$0xf]
        %v3403 = vld [vmem:[#allocation17 + $0xc0] sm:$0xf]
        %v3404 = vld [vmem:[#allocation17 + $0xc4] sm:$0xf]
        %v3405 = vld [vmem:[#allocation17 + $0xc8] sm:$0xf]
        %v3406 = vld [vmem:[#allocation17 + $0xcc] sm:$0xf]
        %v3407 = vld [vmem:[#allocation17 + $0xd0] sm:$0xf]
        %v3408 = vld [vmem:[#allocation17 + $0xd4] sm:$0xf]
        %v3409 = vld [vmem:[#allocation17 + $0xd8] sm:$0xf]
        %v3410 = vld [vmem:[#allocation17 + $0xdc] sm:$0xf]
        %v3411 = vld [vmem:[#allocation17 + $0xe0] sm:$0xf]
        %v3412 = vld [vmem:[#allocation17 + $0xe4] sm:$0xf]
        %v3413 = vld [vmem:[#allocation17 + $0xe8] sm:$0xf]
        %v3414 = vld [vmem:[#allocation17 + $0xec] sm:$0xf]
        %v3415 = vld [vmem:[#allocation17 + $0xf0] sm:$0xf]
        %v3416 = vld [vmem:[#allocation17 + $0xf4] sm:$0xf]
        %v3417 = vld [vmem:[#allocation17 + $0xf8] sm:$0xf]
        %v3418 = vld [vmem:[#allocation17 + $0xfc] sm:$0xf]
        %v3419 = vld [vmem:[#allocation17 + $0x100] sm:$0xf]
        %v3420 = vld [vmem:[#allocation17 + $0x104] sm:$0xf]
        %v3421 = vld [vmem:[#allocation17 + $0x108] sm:$0xf]
        %v3422 = vld [vmem:[#allocation17 + $0x10c] sm:$0xf]
        %v3423 = vld [vmem:[#allocation17 + $0x110] sm:$0xf]
        %v3424 = vld [vmem:[#allocation17 + $0x114] sm:$0xf]
        %v3425 = vld [vmem:[#allocation17 + $0x118] sm:$0xf]
        %v3426 = vld [vmem:[#allocation17 + $0x11c] sm:$0xf]
        %v3427 = vld [vmem:[#allocation17 + $0x120] sm:$0xf]
        %v3428 = vld [vmem:[#allocation17 + $0x124] sm:$0xf]
        %v3429 = vld [vmem:[#allocation17 + $0x128] sm:$0xf]
        %v3430 = vld [vmem:[#allocation17 + $0x12c] sm:$0xf]
        %v3431 = vld [vmem:[#allocation17 + $0x130] sm:$0xf]
        %v3432 = vld [vmem:[#allocation17 + $0x134] sm:$0xf]
        %v3433 = vld [vmem:[#allocation17 + $0x138] sm:$0xf]
        %v3434 = vld [vmem:[#allocation17 + $0x13c] sm:$0xf]
        %v3435 = vld [vmem:[#allocation17 + $0x140] sm:$0xf]
        %v3436 = vld [vmem:[#allocation17 + $0x144] sm:$0xf]
        %v3437 = vld [vmem:[#allocation17 + $0x148] sm:$0xf]
        %v3438 = vld [vmem:[#allocation17 + $0x14c] sm:$0xf]
        %v3439 = vld [vmem:[#allocation17 + $0x150] sm:$0xf]
        %v3440 = vld [vmem:[#allocation17 + $0x154] sm:$0xf]
        %v3441 = vld [vmem:[#allocation17 + $0x158] sm:$0xf]
        %v3442 = vld [vmem:[#allocation17 + $0x15c] sm:$0xf]
        %v3443 = vld [vmem:[#allocation17 + $0x160] sm:$0xf]
        %v3444 = vld [vmem:[#allocation17 + $0x164] sm:$0xf]
        %v3445 = vld [vmem:[#allocation17 + $0x168] sm:$0xf]
        %v3446 = vld [vmem:[#allocation17 + $0x16c] sm:$0xf]
        %v3447 = vld [vmem:[#allocation17 + $0x170] sm:$0xf]
        %v3448 = vld [vmem:[#allocation17 + $0x174] sm:$0xf]
        %v3449 = vld [vmem:[#allocation17 + $0x178] sm:$0xf]
        %v3450 = vld [vmem:[#allocation17 + $0x17c] sm:$0xf]
        %v3451 = vld [vmem:[#allocation17 + $0x180] sm:$0xf]
        %v3452 = vld [vmem:[#allocation17 + $0x184] sm:$0xf]
        %v3453 = vld [vmem:[#allocation17 + $0x188] sm:$0xf]
        %v3454 = vld [vmem:[#allocation17 + $0x18c] sm:$0xf]
        %v3455 = vld [vmem:[#allocation17 + $0x190] sm:$0xf]
        %v3456 = vld [vmem:[#allocation17 + $0x194] sm:$0xf]
        %v3457 = vld [vmem:[#allocation17 + $0x198] sm:$0xf]
        %v3458 = vld [vmem:[#allocation17 + $0x19c] sm:$0xf]
        %v3459 = vld [vmem:[#allocation17 + $0x1a0] sm:$0xf]
        %v3460 = vld [vmem:[#allocation17 + $0x1a4] sm:$0xf]
        %v3461 = vld [vmem:[#allocation17 + $0x1a8] sm:$0xf]
        %v3462 = vld [vmem:[#allocation17 + $0x1ac] sm:$0xf]
        %v3463 = vld [vmem:[#allocation17 + $0x1b0] sm:$0xf]
        %v3464 = vld [vmem:[#allocation17 + $0x1b4] sm:$0xf]
        %v3465 = vld [vmem:[#allocation17 + $0x1b8] sm:$0xf]
        %v3466 = vld [vmem:[#allocation17 + $0x1bc] sm:$0xf]
        %v3467 = vld [vmem:[#allocation17 + $0x1c0] sm:$0xf]
        %v3468 = vld [vmem:[#allocation17 + $0x1c4] sm:$0xf]
        %v3469 = vld [vmem:[#allocation17 + $0x1c8] sm:$0xf]
        %v3470 = vld [vmem:[#allocation17 + $0x1cc] sm:$0xf]
        %v3471 = vld [vmem:[#allocation17 + $0x1d0] sm:$0xf]
        %v3472 = vld [vmem:[#allocation17 + $0x1d4] sm:$0xf]
        %v3473 = vld [vmem:[#allocation17 + $0x1d8] sm:$0xf]
        %v3474 = vld [vmem:[#allocation17 + $0x1dc] sm:$0xf]
        %v3475 = vld [vmem:[#allocation17 + $0x1e0] sm:$0xf]
        %v3476 = vld [vmem:[#allocation17 + $0x1e4] sm:$0xf]
        %v3477 = vld [vmem:[#allocation17 + $0x1e8] sm:$0xf]
        %v3478 = vld [vmem:[#allocation17 + $0x1ec] sm:$0xf]
        %v3479 = vld [vmem:[#allocation17 + $0x1f0] sm:$0xf]
        %v3480 = vld [vmem:[#allocation17 + $0x1f4] sm:$0xf]
        %v3481 = vld [vmem:[#allocation17 + $0x1f8] sm:$0xf]
        %v3482 = vld [vmem:[#allocation17 + $0x1fc] sm:$0xf]
        %v3483 = vld [vmem:[#allocation17 + $0x200] sm:$0xf]
        %v3484 = vld [vmem:[#allocation17 + $0x204] sm:$0xf]
        %v3485 = vld [vmem:[#allocation17 + $0x208] sm:$0xf]
        %v3486 = vld [vmem:[#allocation17 + $0x20c] sm:$0xf]
        %v3487 = vld [vmem:[#allocation17 + $0x210] sm:$0xf]
        %v3488 = vld [vmem:[#allocation17 + $0x214] sm:$0xf]
        %v3489 = vld [vmem:[#allocation17 + $0x218] sm:$0xf]
        %v3490 = vld [vmem:[#allocation17 + $0x21c] sm:$0xf]
        %v3491 = vld [vmem:[#allocation17 + $0x220] sm:$0xf]
        %v3492 = vld [vmem:[#allocation17 + $0x224] sm:$0xf]
        %v3493 = vld [vmem:[#allocation17 + $0x228] sm:$0xf]
        %v3494 = vld [vmem:[#allocation17 + $0x22c] sm:$0xf]
        %v3495 = vld [vmem:[#allocation17 + $0x230] sm:$0xf]
        %v3496 = vld [vmem:[#allocation17 + $0x234] sm:$0xf]
        %v3497 = vld [vmem:[#allocation17 + $0x238] sm:$0xf]
        %v3498 = vld [vmem:[#allocation17 + $0x23c] sm:$0xf]
        %v3499 = vld [vmem:[#allocation17 + $0x240] sm:$0xf]
        %v3500 = vld [vmem:[#allocation17 + $0x244] sm:$0xf]
        %v3501 = vld [vmem:[#allocation17 + $0x248] sm:$0xf]
        %v3502 = vld [vmem:[#allocation17 + $0x24c] sm:$0xf]
        %v3503 = vld [vmem:[#allocation17 + $0x250] sm:$0xf]
        %v3504 = vld [vmem:[#allocation17 + $0x254] sm:$0xf]
        %v3505 = vld [vmem:[#allocation17 + $0x258] sm:$0xf]
        %v3506 = vld [vmem:[#allocation17 + $0x25c] sm:$0xf]
        %v3507 = vld [vmem:[#allocation17 + $0x260] sm:$0xf]
        %v3508 = vld [vmem:[#allocation17 + $0x264] sm:$0xf]
        %v3509 = vld [vmem:[#allocation17 + $0x268] sm:$0xf]
        %v3510 = vld [vmem:[#allocation17 + $0x26c] sm:$0xf]
        %v3511 = vld [vmem:[#allocation17 + $0x270] sm:$0xf]
        %v3512 = vld [vmem:[#allocation17 + $0x274] sm:$0xf]
        %v3513 = vld [vmem:[#allocation17 + $0x278] sm:$0xf]
        %v3514 = vld [vmem:[#allocation17 + $0x27c] sm:$0xf]
        %v3515 = vld [vmem:[#allocation17 + $0x280] sm:$0xf]
        %v3516 = vld [vmem:[#allocation17 + $0x284] sm:$0xf]
        %v3517 = vld [vmem:[#allocation17 + $0x288] sm:$0xf]
        %v3518 = vld [vmem:[#allocation17 + $0x28c] sm:$0xf]
        %v3519 = vld [vmem:[#allocation17 + $0x290] sm:$0xf]
        %v3520 = vld [vmem:[#allocation17 + $0x294] sm:$0xf]
        %v3521 = vld [vmem:[#allocation17 + $0x298] sm:$0xf]
        %v3522 = vld [vmem:[#allocation17 + $0x29c] sm:$0xf]
        %v3523 = vld [vmem:[#allocation17 + $0x2a0] sm:$0xf]
        %v3524 = vld [vmem:[#allocation17 + $0x2a4] sm:$0xf]
        %v3525 = vld [vmem:[#allocation17 + $0x2a8] sm:$0xf]
        %v3526 = vld [vmem:[#allocation17 + $0x2ac] sm:$0xf]
        %v3527 = vld [vmem:[#allocation17 + $0x2b0] sm:$0xf]
        %v3528 = vld [vmem:[#allocation17 + $0x2b4] sm:$0xf]
        %v3529 = vld [vmem:[#allocation17 + $0x2b8] sm:$0xf]
        %v3530 = vld [vmem:[#allocation17 + $0x2bc] sm:$0xf]
        %v3531 = vld [vmem:[#allocation17 + $0x2c0] sm:$0xf]
        %v3532 = vld [vmem:[#allocation17 + $0x2c4] sm:$0xf]
        %v3533 = vld [vmem:[#allocation17 + $0x2c8] sm:$0xf]
        %v3534 = vld [vmem:[#allocation17 + $0x2cc] sm:$0xf]
        %v3535 = vld [vmem:[#allocation17 + $0x2d0] sm:$0xf]
        %v3536 = vld [vmem:[#allocation17 + $0x2d4] sm:$0xf]
        %v3537 = vld [vmem:[#allocation17 + $0x2d8] sm:$0xf]
        %v3538 = vld [vmem:[#allocation17 + $0x2dc] sm:$0xf]
        %v3539 = vld [vmem:[#allocation17 + $0x2e0] sm:$0xf]
        %v3540 = vld [vmem:[#allocation17 + $0x2e4] sm:$0xf]
        %v3541 = vld [vmem:[#allocation17 + $0x2e8] sm:$0xf]
        %v3542 = vld [vmem:[#allocation17 + $0x2ec] sm:$0xf]
        %v3543 = vld [vmem:[#allocation17 + $0x2f0] sm:$0xf]
        %v3544 = vld [vmem:[#allocation17 + $0x2f4] sm:$0xf]
        %v3545 = vld [vmem:[#allocation17 + $0x2f8] sm:$0xf]
        %v3546 = vld [vmem:[#allocation17 + $0x2fc] sm:$0xf]
        %v3547 = vld [vmem:[#allocation17 + $0x300] sm:$0xf]
        %v3548 = vld [vmem:[#allocation17 + $0x304] sm:$0xf]
        %v3549 = vld [vmem:[#allocation17 + $0x308] sm:$0xf]
        %v3550 = vld [vmem:[#allocation17 + $0x30c] sm:$0xf]
        %v3551 = vld [vmem:[#allocation17 + $0x310] sm:$0xf]
        %v3552 = vld [vmem:[#allocation17 + $0x314] sm:$0xf]
        %v3553 = vld [vmem:[#allocation17 + $0x318] sm:$0xf]
        %v3554 = vld [vmem:[#allocation17 + $0x31c] sm:$0xf]
        %v3555 = vld [vmem:[#allocation17 + $0x320] sm:$0xf]
        %v3556 = vld [vmem:[#allocation17 + $0x324] sm:$0xf]
        %v3557 = vld [vmem:[#allocation17 + $0x328] sm:$0xf]
        %v3558 = vld [vmem:[#allocation17 + $0x32c] sm:$0xf]
        %v3559 = vld [vmem:[#allocation17 + $0x330] sm:$0xf]
        %v3560 = vld [vmem:[#allocation17 + $0x334] sm:$0xf]
        %v3561 = vld [vmem:[#allocation17 + $0x338] sm:$0xf]
        %v3562 = vld [vmem:[#allocation17 + $0x33c] sm:$0xf]
        %v3563 = vld [vmem:[#allocation17 + $0x340] sm:$0xf]
        %v3564 = vld [vmem:[#allocation17 + $0x344] sm:$0xf]
        %v3565 = vld [vmem:[#allocation17 + $0x348] sm:$0xf]
        %v3566 = vld [vmem:[#allocation17 + $0x34c] sm:$0xf]
        %v3567 = vld [vmem:[#allocation17 + $0x350] sm:$0xf]
        %v3568 = vld [vmem:[#allocation17 + $0x354] sm:$0xf]
        %v3569 = vld [vmem:[#allocation17 + $0x358] sm:$0xf]
        %v3570 = vld [vmem:[#allocation17 + $0x35c] sm:$0xf]
        %v3571 = vld [vmem:[#allocation17 + $0x360] sm:$0xf]
        %v3572 = vld [vmem:[#allocation17 + $0x364] sm:$0xf]
        %v3573 = vld [vmem:[#allocation17 + $0x368] sm:$0xf]
        %v3574 = vld [vmem:[#allocation17 + $0x36c] sm:$0xf]
        %v3575 = vld [vmem:[#allocation17 + $0x370] sm:$0xf]
        %v3576 = vld [vmem:[#allocation17 + $0x374] sm:$0xf]
        %v3577 = vld [vmem:[#allocation17 + $0x378] sm:$0xf]
        %v3578 = vld [vmem:[#allocation17 + $0x37c] sm:$0xf]
        %v3579 = vld [vmem:[#allocation17 + $0x380] sm:$0xf]
        %v3580 = vld [vmem:[#allocation17 + $0x384] sm:$0xf]
        %v3581 = vld [vmem:[#allocation17 + $0x388] sm:$0xf]
        %v3582 = vld [vmem:[#allocation17 + $0x38c] sm:$0xf]
        %v3583 = vld [vmem:[#allocation17 + $0x390] sm:$0xf]
        %v3584 = vld [vmem:[#allocation17 + $0x394] sm:$0xf]
        %v3585 = vld [vmem:[#allocation17 + $0x398] sm:$0xf]
        %v3586 = vld [vmem:[#allocation17 + $0x39c] sm:$0xf]
        %v3587 = vld [vmem:[#allocation17 + $0x3a0] sm:$0xf]
        %v3588 = vld [vmem:[#allocation17 + $0x3a4] sm:$0xf]
        %v3589 = vld [vmem:[#allocation17 + $0x3a8] sm:$0xf]
        %v3590 = vld [vmem:[#allocation17 + $0x3ac] sm:$0xf]
        %v3591 = vld [vmem:[#allocation17 + $0x3b0] sm:$0xf]
        %v3592 = vld [vmem:[#allocation17 + $0x3b4] sm:$0xf]
        %v3593 = vld [vmem:[#allocation17 + $0x3b8] sm:$0xf]
        %v3594 = vld [vmem:[#allocation17 + $0x3bc] sm:$0xf]
        %v3595 = vld [vmem:[#allocation17 + $0x3c0] sm:$0xf]
        %v3596 = vld [vmem:[#allocation17 + $0x3c4] sm:$0xf]
        %v3597 = vld [vmem:[#allocation17 + $0x3c8] sm:$0xf]
        %v3598 = vld [vmem:[#allocation17 + $0x3cc] sm:$0xf]
        %v3599 = vld [vmem:[#allocation17 + $0x3d0] sm:$0xf]
        %v3600 = vld [vmem:[#allocation17 + $0x3d4] sm:$0xf]
        %v3601 = vld [vmem:[#allocation17 + $0x3d8] sm:$0xf]
        %v3602 = vld [vmem:[#allocation17 + $0x3dc] sm:$0xf]
        %v3603 = vld [vmem:[#allocation17 + $0x3e0] sm:$0xf]
        %v3604 = vld [vmem:[#allocation17 + $0x3e4] sm:$0xf]
        %v3605 = vld [vmem:[#allocation17 + $0x3e8] sm:$0xf]
        %v3606 = vld [vmem:[#allocation17 + $0x3ec] sm:$0xf]
        %v3607 = vld [vmem:[#allocation17 + $0x3f0] sm:$0xf]
        %v3608 = vld [vmem:[#allocation17 + $0x3f4] sm:$0xf]
        %v3609 = vld [vmem:[#allocation17 + $0x3f8] sm:$0xf]
        %v3610 = vld [vmem:[#allocation17 + $0x3fc] sm:$0xf]
        %v3611 = vld [vmem:[#allocation19] sm:$0x1]
        %v3613 = vlaneseq
        %v3614 = vshrl.u32 %v3613, 7
        %v3615 = vsub.s32 0, %v3614
        %v3616 = vrot.slane %v3611, %v3615
        %v3874 = vunpack.c.l.b16 %v3355
        %v3875 = vunpack.c.l.b16 %v3356
        %v3876 = vunpack.c.l.b16 %v3357
        %v3877 = vunpack.c.l.b16 %v3358
        %v3878 = vunpack.c.l.b16 %v3359
        %v3879 = vunpack.c.l.b16 %v3360
        %v3880 = vunpack.c.l.b16 %v3361
        %v3881 = vunpack.c.l.b16 %v3362
        %v3882 = vunpack.c.l.b16 %v3363
        %v3883 = vunpack.c.l.b16 %v3364
        %v3884 = vunpack.c.l.b16 %v3365
        %v3885 = vunpack.c.l.b16 %v3366
        %v3886 = vunpack.c.l.b16 %v3367
        %v3887 = vunpack.c.l.b16 %v3368
        %v3888 = vunpack.c.l.b16 %v3369
        %v3889 = vunpack.c.l.b16 %v3370
        %v3890 = vunpack.c.l.b16 %v3371
        %v3891 = vunpack.c.l.b16 %v3372
        %v3892 = vunpack.c.l.b16 %v3373
        %v3893 = vunpack.c.l.b16 %v3374
        %v3894 = vunpack.c.l.b16 %v3375
        %v3895 = vunpack.c.l.b16 %v3376
        %v3896 = vunpack.c.l.b16 %v3377
        %v3897 = vunpack.c.l.b16 %v3378
        %v3898 = vunpack.c.l.b16 %v3379
        %v3899 = vunpack.c.l.b16 %v3380
        %v3900 = vunpack.c.l.b16 %v3381
        %v3901 = vunpack.c.l.b16 %v3382
        %v3902 = vunpack.c.l.b16 %v3383
        %v3903 = vunpack.c.l.b16 %v3384
        %v3904 = vunpack.c.l.b16 %v3385
        %v3905 = vunpack.c.l.b16 %v3386
        %v3906 = vunpack.c.l.b16 %v3387
        %v3907 = vunpack.c.l.b16 %v3388
        %v3908 = vunpack.c.l.b16 %v3389
        %v3909 = vunpack.c.l.b16 %v3390
        %v3910 = vunpack.c.l.b16 %v3391
        %v3911 = vunpack.c.l.b16 %v3392
        %v3912 = vunpack.c.l.b16 %v3393
        %v3913 = vunpack.c.l.b16 %v3394
        %v3914 = vunpack.c.l.b16 %v3395
        %v3915 = vunpack.c.l.b16 %v3396
        %v3916 = vunpack.c.l.b16 %v3397
        %v3917 = vunpack.c.l.b16 %v3398
        %v3918 = vunpack.c.l.b16 %v3399
        %v3919 = vunpack.c.l.b16 %v3400
        %v3920 = vunpack.c.l.b16 %v3401
        %v3921 = vunpack.c.l.b16 %v3402
        %v3922 = vunpack.c.l.b16 %v3403
        %v3923 = vunpack.c.l.b16 %v3404
        %v3924 = vunpack.c.l.b16 %v3405
        %v3925 = vunpack.c.l.b16 %v3406
        %v3926 = vunpack.c.l.b16 %v3407
        %v3927 = vunpack.c.l.b16 %v3408
        %v3928 = vunpack.c.l.b16 %v3409
        %v3929 = vunpack.c.l.b16 %v3410
        %v3930 = vunpack.c.l.b16 %v3411
        %v3931 = vunpack.c.l.b16 %v3412
        %v3932 = vunpack.c.l.b16 %v3413
        %v3933 = vunpack.c.l.b16 %v3414
        %v3934 = vunpack.c.l.b16 %v3415
        %v3935 = vunpack.c.l.b16 %v3416
        %v3936 = vunpack.c.l.b16 %v3417
        %v3937 = vunpack.c.l.b16 %v3418
        %v3938 = vunpack.c.l.b16 %v3419
        %v3939 = vunpack.c.l.b16 %v3420
        %v3940 = vunpack.c.l.b16 %v3421
        %v3941 = vunpack.c.l.b16 %v3422
        %v3942 = vunpack.c.l.b16 %v3423
        %v3943 = vunpack.c.l.b16 %v3424
        %v3944 = vunpack.c.l.b16 %v3425
        %v3945 = vunpack.c.l.b16 %v3426
        %v3946 = vunpack.c.l.b16 %v3427
        %v3947 = vunpack.c.l.b16 %v3428
        %v3948 = vunpack.c.l.b16 %v3429
        %v3949 = vunpack.c.l.b16 %v3430
        %v3950 = vunpack.c.l.b16 %v3431
        %v3951 = vunpack.c.l.b16 %v3432
        %v3952 = vunpack.c.l.b16 %v3433
        %v3953 = vunpack.c.l.b16 %v3434
        %v3954 = vunpack.c.l.b16 %v3435
        %v3955 = vunpack.c.l.b16 %v3436
        %v3956 = vunpack.c.l.b16 %v3437
        %v3957 = vunpack.c.l.b16 %v3438
        %v3958 = vunpack.c.l.b16 %v3439
        %v3959 = vunpack.c.l.b16 %v3440
        %v3960 = vunpack.c.l.b16 %v3441
        %v3961 = vunpack.c.l.b16 %v3442
        %v3962 = vunpack.c.l.b16 %v3443
        %v3963 = vunpack.c.l.b16 %v3444
        %v3964 = vunpack.c.l.b16 %v3445
        %v3965 = vunpack.c.l.b16 %v3446
        %v3966 = vunpack.c.l.b16 %v3447
        %v3967 = vunpack.c.l.b16 %v3448
        %v3968 = vunpack.c.l.b16 %v3449
        %v3969 = vunpack.c.l.b16 %v3450
        %v3970 = vunpack.c.l.b16 %v3451
        %v3971 = vunpack.c.l.b16 %v3452
        %v3972 = vunpack.c.l.b16 %v3453
        %v3973 = vunpack.c.l.b16 %v3454
        %v3974 = vunpack.c.l.b16 %v3455
        %v3975 = vunpack.c.l.b16 %v3456
        %v3976 = vunpack.c.l.b16 %v3457
        %v3977 = vunpack.c.l.b16 %v3458
        %v3978 = vunpack.c.l.b16 %v3459
        %v3979 = vunpack.c.l.b16 %v3460
        %v3980 = vunpack.c.l.b16 %v3461
        %v3981 = vunpack.c.l.b16 %v3462
        %v3982 = vunpack.c.l.b16 %v3463
        %v3983 = vunpack.c.l.b16 %v3464
        %v3984 = vunpack.c.l.b16 %v3465
        %v3985 = vunpack.c.l.b16 %v3466
        %v3986 = vunpack.c.l.b16 %v3467
        %v3987 = vunpack.c.l.b16 %v3468
        %v3988 = vunpack.c.l.b16 %v3469
        %v3989 = vunpack.c.l.b16 %v3470
        %v3990 = vunpack.c.l.b16 %v3471
        %v3991 = vunpack.c.l.b16 %v3472
        %v3992 = vunpack.c.l.b16 %v3473
        %v3993 = vunpack.c.l.b16 %v3474
        %v3994 = vunpack.c.l.b16 %v3475
        %v3995 = vunpack.c.l.b16 %v3476
        %v3996 = vunpack.c.l.b16 %v3477
        %v3997 = vunpack.c.l.b16 %v3478
        %v3998 = vunpack.c.l.b16 %v3479
        %v3999 = vunpack.c.l.b16 %v3480
        %v4000 = vunpack.c.l.b16 %v3481
        %v4001 = vunpack.c.l.b16 %v3482
        %v4002 = vunpack.c.l.b16 %v3483
        %v4003 = vunpack.c.l.b16 %v3484
        %v4004 = vunpack.c.l.b16 %v3485
        %v4005 = vunpack.c.l.b16 %v3486
        %v4006 = vunpack.c.l.b16 %v3487
        %v4007 = vunpack.c.l.b16 %v3488
        %v4008 = vunpack.c.l.b16 %v3489
        %v4009 = vunpack.c.l.b16 %v3490
        %v4010 = vunpack.c.l.b16 %v3491
        %v4011 = vunpack.c.l.b16 %v3492
        %v4012 = vunpack.c.l.b16 %v3493
        %v4013 = vunpack.c.l.b16 %v3494
        %v4014 = vunpack.c.l.b16 %v3495
        %v4015 = vunpack.c.l.b16 %v3496
        %v4016 = vunpack.c.l.b16 %v3497
        %v4017 = vunpack.c.l.b16 %v3498
        %v4018 = vunpack.c.l.b16 %v3499
        %v4019 = vunpack.c.l.b16 %v3500
        %v4020 = vunpack.c.l.b16 %v3501
        %v4021 = vunpack.c.l.b16 %v3502
        %v4022 = vunpack.c.l.b16 %v3503
        %v4023 = vunpack.c.l.b16 %v3504
        %v4024 = vunpack.c.l.b16 %v3505
        %v4025 = vunpack.c.l.b16 %v3506
        %v4026 = vunpack.c.l.b16 %v3507
        %v4027 = vunpack.c.l.b16 %v3508
        %v4028 = vunpack.c.l.b16 %v3509
        %v4029 = vunpack.c.l.b16 %v3510
        %v4030 = vunpack.c.l.b16 %v3511
        %v4031 = vunpack.c.l.b16 %v3512
        %v4032 = vunpack.c.l.b16 %v3513
        %v4033 = vunpack.c.l.b16 %v3514
        %v4034 = vunpack.c.l.b16 %v3515
        %v4035 = vunpack.c.l.b16 %v3516
        %v4036 = vunpack.c.l.b16 %v3517
        %v4037 = vunpack.c.l.b16 %v3518
        %v4038 = vunpack.c.l.b16 %v3519
        %v4039 = vunpack.c.l.b16 %v3520
        %v4040 = vunpack.c.l.b16 %v3521
        %v4041 = vunpack.c.l.b16 %v3522
        %v4042 = vunpack.c.l.b16 %v3523
        %v4043 = vunpack.c.l.b16 %v3524
        %v4044 = vunpack.c.l.b16 %v3525
        %v4045 = vunpack.c.l.b16 %v3526
        %v4046 = vunpack.c.l.b16 %v3527
        %v4047 = vunpack.c.l.b16 %v3528
        %v4048 = vunpack.c.l.b16 %v3529
        %v4049 = vunpack.c.l.b16 %v3530
        %v4050 = vunpack.c.l.b16 %v3531
        %v4051 = vunpack.c.l.b16 %v3532
        %v4052 = vunpack.c.l.b16 %v3533
        %v4053 = vunpack.c.l.b16 %v3534
        %v4054 = vunpack.c.l.b16 %v3535
        %v4055 = vunpack.c.l.b16 %v3536
        %v4056 = vunpack.c.l.b16 %v3537
        %v4057 = vunpack.c.l.b16 %v3538
        %v4058 = vunpack.c.l.b16 %v3539
        %v4059 = vunpack.c.l.b16 %v3540
        %v4060 = vunpack.c.l.b16 %v3541
        %v4061 = vunpack.c.l.b16 %v3542
        %v4062 = vunpack.c.l.b16 %v3543
        %v4063 = vunpack.c.l.b16 %v3544
        %v4064 = vunpack.c.l.b16 %v3545
        %v4065 = vunpack.c.l.b16 %v3546
        %v4066 = vunpack.c.l.b16 %v3547
        %v4067 = vunpack.c.l.b16 %v3548
        %v4068 = vunpack.c.l.b16 %v3549
        %v4069 = vunpack.c.l.b16 %v3550
        %v4070 = vunpack.c.l.b16 %v3551
        %v4071 = vunpack.c.l.b16 %v3552
        %v4072 = vunpack.c.l.b16 %v3553
        %v4073 = vunpack.c.l.b16 %v3554
        %v4074 = vunpack.c.l.b16 %v3555
        %v4075 = vunpack.c.l.b16 %v3556
        %v4076 = vunpack.c.l.b16 %v3557
        %v4077 = vunpack.c.l.b16 %v3558
        %v4078 = vunpack.c.l.b16 %v3559
        %v4079 = vunpack.c.l.b16 %v3560
        %v4080 = vunpack.c.l.b16 %v3561
        %v4081 = vunpack.c.l.b16 %v3562
        %v4082 = vunpack.c.l.b16 %v3563
        %v4083 = vunpack.c.l.b16 %v3564
        %v4084 = vunpack.c.l.b16 %v3565
        %v4085 = vunpack.c.l.b16 %v3566
        %v4086 = vunpack.c.l.b16 %v3567
        %v4087 = vunpack.c.l.b16 %v3568
        %v4088 = vunpack.c.l.b16 %v3569
        %v4089 = vunpack.c.l.b16 %v3570
        %v4090 = vunpack.c.l.b16 %v3571
        %v4091 = vunpack.c.l.b16 %v3572
        %v4092 = vunpack.c.l.b16 %v3573
        %v4093 = vunpack.c.l.b16 %v3574
        %v4094 = vunpack.c.l.b16 %v3575
        %v4095 = vunpack.c.l.b16 %v3576
        %v4096 = vunpack.c.l.b16 %v3577
        %v4097 = vunpack.c.l.b16 %v3578
        %v4098 = vunpack.c.l.b16 %v3579
        %v4099 = vunpack.c.l.b16 %v3580
        %v4100 = vunpack.c.l.b16 %v3581
        %v4101 = vunpack.c.l.b16 %v3582
        %v4102 = vunpack.c.l.b16 %v3583
        %v4103 = vunpack.c.l.b16 %v3584
        %v4104 = vunpack.c.l.b16 %v3585
        %v4105 = vunpack.c.l.b16 %v3586
        %v4106 = vunpack.c.l.b16 %v3587
        %v4107 = vunpack.c.l.b16 %v3588
        %v4108 = vunpack.c.l.b16 %v3589
        %v4109 = vunpack.c.l.b16 %v3590
        %v4110 = vunpack.c.l.b16 %v3591
        %v4111 = vunpack.c.l.b16 %v3592
        %v4112 = vunpack.c.l.b16 %v3593
        %v4113 = vunpack.c.l.b16 %v3594
        %v4114 = vunpack.c.l.b16 %v3595
        %v4115 = vunpack.c.l.b16 %v3596
        %v4116 = vunpack.c.l.b16 %v3597
        %v4117 = vunpack.c.l.b16 %v3598
        %v4118 = vunpack.c.l.b16 %v3599
        %v4119 = vunpack.c.l.b16 %v3600
        %v4120 = vunpack.c.l.b16 %v3601
        %v4121 = vunpack.c.l.b16 %v3602
        %v4122 = vunpack.c.l.b16 %v3603
        %v4123 = vunpack.c.l.b16 %v3604
        %v4124 = vunpack.c.l.b16 %v3605
        %v4125 = vunpack.c.l.b16 %v3606
        %v4126 = vunpack.c.l.b16 %v3607
        %v4127 = vunpack.c.l.b16 %v3608
        %v4128 = vunpack.c.l.b16 %v3609
        %v4129 = vunpack.c.l.b16 %v3610
        %v4130 = vpack.c.b16 %v3875, %v3874
        %v4131 = vpack.c.b16 %v3877, %v3876
        %v4132 = vpack.c.b16 %v3879, %v3878
        %v4133 = vpack.c.b16 %v3881, %v3880
        %v4134 = vpack.c.b16 %v3883, %v3882
        %v4135 = vpack.c.b16 %v3885, %v3884
        %v4136 = vpack.c.b16 %v3887, %v3886
        %v4137 = vpack.c.b16 %v3889, %v3888
        %v4138 = vpack.c.b16 %v3891, %v3890
        %v4139 = vpack.c.b16 %v3893, %v3892
        %v4140 = vpack.c.b16 %v3895, %v3894
        %v4141 = vpack.c.b16 %v3897, %v3896
        %v4142 = vpack.c.b16 %v3899, %v3898
        %v4143 = vpack.c.b16 %v3901, %v3900
        %v4144 = vpack.c.b16 %v3903, %v3902
        %v4145 = vpack.c.b16 %v3905, %v3904
        %v4146 = vpack.c.b16 %v3907, %v3906
        %v4147 = vpack.c.b16 %v3909, %v3908
        %v4148 = vpack.c.b16 %v3911, %v3910
        %v4149 = vpack.c.b16 %v3913, %v3912
        %v4150 = vpack.c.b16 %v3915, %v3914
        %v4151 = vpack.c.b16 %v3917, %v3916
        %v4152 = vpack.c.b16 %v3919, %v3918
        %v4153 = vpack.c.b16 %v3921, %v3920
        %v4154 = vpack.c.b16 %v3923, %v3922
        %v4155 = vpack.c.b16 %v3925, %v3924
        %v4156 = vpack.c.b16 %v3927, %v3926
        %v4157 = vpack.c.b16 %v3929, %v3928
        %v4158 = vpack.c.b16 %v3931, %v3930
        %v4159 = vpack.c.b16 %v3933, %v3932
        %v4160 = vpack.c.b16 %v3935, %v3934
        %v4161 = vpack.c.b16 %v3937, %v3936
        %v4162 = vpack.c.b16 %v3939, %v3938
        %v4163 = vpack.c.b16 %v3941, %v3940
        %v4164 = vpack.c.b16 %v3943, %v3942
        %v4165 = vpack.c.b16 %v3945, %v3944
        %v4166 = vpack.c.b16 %v3947, %v3946
        %v4167 = vpack.c.b16 %v3949, %v3948
        %v4168 = vpack.c.b16 %v3951, %v3950
        %v4169 = vpack.c.b16 %v3953, %v3952
        %v4170 = vpack.c.b16 %v3955, %v3954
        %v4171 = vpack.c.b16 %v3957, %v3956
        %v4172 = vpack.c.b16 %v3959, %v3958
        %v4173 = vpack.c.b16 %v3961, %v3960
        %v4174 = vpack.c.b16 %v3963, %v3962
        %v4175 = vpack.c.b16 %v3965, %v3964
        %v4176 = vpack.c.b16 %v3967, %v3966
        %v4177 = vpack.c.b16 %v3969, %v3968
        %v4178 = vpack.c.b16 %v3971, %v3970
        %v4179 = vpack.c.b16 %v3973, %v3972
        %v4180 = vpack.c.b16 %v3975, %v3974
        %v4181 = vpack.c.b16 %v3977, %v3976
        %v4182 = vpack.c.b16 %v3979, %v3978
        %v4183 = vpack.c.b16 %v3981, %v3980
        %v4184 = vpack.c.b16 %v3983, %v3982
        %v4185 = vpack.c.b16 %v3985, %v3984
        %v4186 = vpack.c.b16 %v3987, %v3986
        %v4187 = vpack.c.b16 %v3989, %v3988
        %v4188 = vpack.c.b16 %v3991, %v3990
        %v4189 = vpack.c.b16 %v3993, %v3992
        %v4190 = vpack.c.b16 %v3995, %v3994
        %v4191 = vpack.c.b16 %v3997, %v3996
        %v4192 = vpack.c.b16 %v3999, %v3998
        %v4193 = vpack.c.b16 %v4001, %v4000
        %v4194 = vpack.c.b16 %v4003, %v4002
        %v4195 = vpack.c.b16 %v4005, %v4004
        %v4196 = vpack.c.b16 %v4007, %v4006
        %v4197 = vpack.c.b16 %v4009, %v4008
        %v4198 = vpack.c.b16 %v4011, %v4010
        %v4199 = vpack.c.b16 %v4013, %v4012
        %v4200 = vpack.c.b16 %v4015, %v4014
        %v4201 = vpack.c.b16 %v4017, %v4016
        %v4202 = vpack.c.b16 %v4019, %v4018
        %v4203 = vpack.c.b16 %v4021, %v4020
        %v4204 = vpack.c.b16 %v4023, %v4022
        %v4205 = vpack.c.b16 %v4025, %v4024
        %v4206 = vpack.c.b16 %v4027, %v4026
        %v4207 = vpack.c.b16 %v4029, %v4028
        %v4208 = vpack.c.b16 %v4031, %v4030
        %v4209 = vpack.c.b16 %v4033, %v4032
        %v4210 = vpack.c.b16 %v4035, %v4034
        %v4211 = vpack.c.b16 %v4037, %v4036
        %v4212 = vpack.c.b16 %v4039, %v4038
        %v4213 = vpack.c.b16 %v4041, %v4040
        %v4214 = vpack.c.b16 %v4043, %v4042
        %v4215 = vpack.c.b16 %v4045, %v4044
        %v4216 = vpack.c.b16 %v4047, %v4046
        %v4217 = vpack.c.b16 %v4049, %v4048
        %v4218 = vpack.c.b16 %v4051, %v4050
        %v4219 = vpack.c.b16 %v4053, %v4052
        %v4220 = vpack.c.b16 %v4055, %v4054
        %v4221 = vpack.c.b16 %v4057, %v4056
        %v4222 = vpack.c.b16 %v4059, %v4058
        %v4223 = vpack.c.b16 %v4061, %v4060
        %v4224 = vpack.c.b16 %v4063, %v4062
        %v4225 = vpack.c.b16 %v4065, %v4064
        %v4226 = vpack.c.b16 %v4067, %v4066
        %v4227 = vpack.c.b16 %v4069, %v4068
        %v4228 = vpack.c.b16 %v4071, %v4070
        %v4229 = vpack.c.b16 %v4073, %v4072
        %v4230 = vpack.c.b16 %v4075, %v4074
        %v4231 = vpack.c.b16 %v4077, %v4076
        %v4232 = vpack.c.b16 %v4079, %v4078
        %v4233 = vpack.c.b16 %v4081, %v4080
        %v4234 = vpack.c.b16 %v4083, %v4082
        %v4235 = vpack.c.b16 %v4085, %v4084
        %v4236 = vpack.c.b16 %v4087, %v4086
        %v4237 = vpack.c.b16 %v4089, %v4088
        %v4238 = vpack.c.b16 %v4091, %v4090
        %v4239 = vpack.c.b16 %v4093, %v4092
        %v4240 = vpack.c.b16 %v4095, %v4094
        %v4241 = vpack.c.b16 %v4097, %v4096
        %v4242 = vpack.c.b16 %v4099, %v4098
        %v4243 = vpack.c.b16 %v4101, %v4100
        %v4244 = vpack.c.b16 %v4103, %v4102
        %v4245 = vpack.c.b16 %v4105, %v4104
        %v4246 = vpack.c.b16 %v4107, %v4106
        %v4247 = vpack.c.b16 %v4109, %v4108
        %v4248 = vpack.c.b16 %v4111, %v4110
        %v4249 = vpack.c.b16 %v4113, %v4112
        %v4250 = vpack.c.b16 %v4115, %v4114
        %v4251 = vpack.c.b16 %v4117, %v4116
        %v4252 = vpack.c.b16 %v4119, %v4118
        %v4253 = vpack.c.b16 %v4121, %v4120
        %v4254 = vpack.c.b16 %v4123, %v4122
        %v4255 = vpack.c.b16 %v4125, %v4124
        %v4256 = vpack.c.b16 %v4127, %v4126
        %v4257 = vpack.c.b16 %v4129, %v4128
        %4386 = vmatprep.subr.bf16.mxu0 0
        %4387 = vmatpush1.bf16.msra.mxu0 %v4130
        %4388 = vmatprep.subr.bf16.mxu0 0
        %4389 = vmatpush1.bf16.msra.mxu0 %v4131
        %4390 = vmatprep.subr.bf16.mxu0 0
        %4391 = vmatpush1.bf16.msra.mxu0 %v4132
        %4392 = vmatprep.subr.bf16.mxu0 0
        %4393 = vmatpush1.bf16.msra.mxu0 %v4133
        %4394 = vmatprep.subr.bf16.mxu0 0
        %4395 = vmatpush1.bf16.msra.mxu0 %v4134
        %4396 = vmatprep.subr.bf16.mxu0 0
        %4397 = vmatpush1.bf16.msra.mxu0 %v4135
        %4398 = vmatprep.subr.bf16.mxu0 0
        %4399 = vmatpush1.bf16.msra.mxu0 %v4136
        %4400 = vmatprep.subr.bf16.mxu0 0
        %4401 = vmatpush1.bf16.msra.mxu0 %v4137
        %4402 = vmatprep.subr.bf16.mxu0 0
        %4403 = vmatpush1.bf16.msra.mxu0 %v4138
        %4404 = vmatprep.subr.bf16.mxu0 0
        %4405 = vmatpush1.bf16.msra.mxu0 %v4139
        %4406 = vmatprep.subr.bf16.mxu0 0
        %4407 = vmatpush1.bf16.msra.mxu0 %v4140
        %4408 = vmatprep.subr.bf16.mxu0 0
        %4409 = vmatpush1.bf16.msra.mxu0 %v4141
        %4410 = vmatprep.subr.bf16.mxu0 0
        %4411 = vmatpush1.bf16.msra.mxu0 %v4142
        %4412 = vmatprep.subr.bf16.mxu0 0
        %4413 = vmatpush1.bf16.msra.mxu0 %v4143
        %4414 = vmatprep.subr.bf16.mxu0 0
        %4415 = vmatpush1.bf16.msra.mxu0 %v4144
        %4416 = vmatprep.subr.bf16.mxu0 0
        %4417 = vmatpush1.bf16.msra.mxu0 %v4145
        %4418 = vmatprep.mubr.bf16.mxu0 %v3340
        %4419 = vmatmul.mubr.bf16.gmra.mrb[0].mxu0 %v3339
        %v4420 = vpop.f32.mrb[0].mxu0
        %v4421 = vadd.f32 %v3616, %v4420
        %v4422 = vpop.f32.mrb[0].mxu0
        %v4423 = vpop.f32.mrb[0].mxu0
        %v4424 = vpop.f32.mrb[0].mxu0
        %4425 = vdwg.mxu0
        %4426 = vmatprep.subr.bf16.mxu0 0
        %4427 = vmatpush1.bf16.msra.mxu0 %v4146
        %4428 = vmatprep.subr.bf16.mxu0 0
        %4429 = vmatpush1.bf16.msra.mxu0 %v4147
        %4430 = vmatprep.subr.bf16.mxu0 0
        %4431 = vmatpush1.bf16.msra.mxu0 %v4148
        %4432 = vmatprep.subr.bf16.mxu0 0
        %4433 = vmatpush1.bf16.msra.mxu0 %v4149
        %4434 = vmatprep.subr.bf16.mxu0 0
        %4435 = vmatpush1.bf16.msra.mxu0 %v4150
        %4436 = vmatprep.subr.bf16.mxu0 0
        %4437 = vmatpush1.bf16.msra.mxu0 %v4151
        %4438 = vmatprep.subr.bf16.mxu0 0
        %4439 = vmatpush1.bf16.msra.mxu0 %v4152
        %4440 = vmatprep.subr.bf16.mxu0 0
        %4441 = vmatpush1.bf16.msra.mxu0 %v4153
        %4442 = vmatprep.subr.bf16.mxu0 0
        %4443 = vmatpush1.bf16.msra.mxu0 %v4154
        %4444 = vmatprep.subr.bf16.mxu0 0
        %4445 = vmatpush1.bf16.msra.mxu0 %v4155
        %4446 = vmatprep.subr.bf16.mxu0 0
        %4447 = vmatpush1.bf16.msra.mxu0 %v4156
        %4448 = vmatprep.subr.bf16.mxu0 0
        %4449 = vmatpush1.bf16.msra.mxu0 %v4157
        %4450 = vmatprep.subr.bf16.mxu0 0
        %4451 = vmatpush1.bf16.msra.mxu0 %v4158
        %4452 = vmatprep.subr.bf16.mxu0 0
        %4453 = vmatpush1.bf16.msra.mxu0 %v4159
        %4454 = vmatprep.subr.bf16.mxu0 0
        %4455 = vmatpush1.bf16.msra.mxu0 %v4160
        %4456 = vmatprep.subr.bf16.mxu0 0
        %4457 = vmatpush1.bf16.msra.mxu0 %v4161
        %4458 = vmatprep.mubr.bf16.mxu0 %v3342
        %4459 = vmatmul.mubr.bf16.gmra.mrb[0].mxu0 %v3341
        %v4460 = vpop.f32.mrb[0].mxu0
        %v4461 = vadd.f32 %v4421, %v4460
        %v4462 = vpop.f32.mrb[0].mxu0
        %v4463 = vpop.f32.mrb[0].mxu0
        %v4464 = vpop.f32.mrb[0].mxu0
        %4465 = vdwg.mxu0
        %4466 = vmatprep.subr.bf16.mxu0 0
        %4467 = vmatpush1.bf16.msra.mxu0 %v4162
        %4468 = vmatprep.subr.bf16.mxu0 0
        %4469 = vmatpush1.bf16.msra.mxu0 %v4163
        %4470 = vmatprep.subr.bf16.mxu0 0
        %4471 = vmatpush1.bf16.msra.mxu0 %v4164
        %4472 = vmatprep.subr.bf16.mxu0 0
        %4473 = vmatpush1.bf16.msra.mxu0 %v4165
        %4474 = vmatprep.subr.bf16.mxu0 0
        %4475 = vmatpush1.bf16.msra.mxu0 %v4166
        %4476 = vmatprep.subr.bf16.mxu0 0
        %4477 = vmatpush1.bf16.msra.mxu0 %v4167
        %4478 = vmatprep.subr.bf16.mxu0 0
        %4479 = vmatpush1.bf16.msra.mxu0 %v4168
        %4480 = vmatprep.subr.bf16.mxu0 0
        %4481 = vmatpush1.bf16.msra.mxu0 %v4169
        %4482 = vmatprep.subr.bf16.mxu0 0
        %4483 = vmatpush1.bf16.msra.mxu0 %v4170
        %4484 = vmatprep.subr.bf16.mxu0 0
        %4485 = vmatpush1.bf16.msra.mxu0 %v4171
        %4486 = vmatprep.subr.bf16.mxu0 0
        %4487 = vmatpush1.bf16.msra.mxu0 %v4172
        %4488 = vmatprep.subr.bf16.mxu0 0
        %4489 = vmatpush1.bf16.msra.mxu0 %v4173
        %4490 = vmatprep.subr.bf16.mxu0 0
        %4491 = vmatpush1.bf16.msra.mxu0 %v4174
        %4492 = vmatprep.subr.bf16.mxu0 0
        %4493 = vmatpush1.bf16.msra.mxu0 %v4175
        %4494 = vmatprep.subr.bf16.mxu0 0
        %4495 = vmatpush1.bf16.msra.mxu0 %v4176
        %4496 = vmatprep.subr.bf16.mxu0 0
        %4497 = vmatpush1.bf16.msra.mxu0 %v4177
        %4498 = vmatprep.mubr.bf16.mxu0 %v3344
        %4499 = vmatmul.mubr.bf16.gmra.mrb[0].mxu0 %v3343
        %v4500 = vpop.f32.mrb[0].mxu0
        %v4501 = vadd.f32 %v4461, %v4500
        %v4502 = vpop.f32.mrb[0].mxu0
        %v4503 = vpop.f32.mrb[0].mxu0
        %v4504 = vpop.f32.mrb[0].mxu0
        %4505 = vdwg.mxu0
        %4506 = vmatprep.subr.bf16.mxu0 0
        %4507 = vmatpush1.bf16.msra.mxu0 %v4178
        %4508 = vmatprep.subr.bf16.mxu0 0
        %4509 = vmatpush1.bf16.msra.mxu0 %v4179
        %4510 = vmatprep.subr.bf16.mxu0 0
        %4511 = vmatpush1.bf16.msra.mxu0 %v4180
        %4512 = vmatprep.subr.bf16.mxu0 0
        %4513 = vmatpush1.bf16.msra.mxu0 %v4181
        %4514 = vmatprep.subr.bf16.mxu0 0
        %4515 = vmatpush1.bf16.msra.mxu0 %v4182
        %4516 = vmatprep.subr.bf16.mxu0 0
        %4517 = vmatpush1.bf16.msra.mxu0 %v4183
        %4518 = vmatprep.subr.bf16.mxu0 0
        %4519 = vmatpush1.bf16.msra.mxu0 %v4184
        %4520 = vmatprep.subr.bf16.mxu0 0
        %4521 = vmatpush1.bf16.msra.mxu0 %v4185
        %4522 = vmatprep.subr.bf16.mxu0 0
        %4523 = vmatpush1.bf16.msra.mxu0 %v4186
        %4524 = vmatprep.subr.bf16.mxu0 0
        %4525 = vmatpush1.bf16.msra.mxu0 %v4187
        %4526 = vmatprep.subr.bf16.mxu0 0
        %4527 = vmatpush1.bf16.msra.mxu0 %v4188
        %4528 = vmatprep.subr.bf16.mxu0 0
        %4529 = vmatpush1.bf16.msra.mxu0 %v4189
        %4530 = vmatprep.subr.bf16.mxu0 0
        %4531 = vmatpush1.bf16.msra.mxu0 %v4190
        %4532 = vmatprep.subr.bf16.mxu0 0
        %4533 = vmatpush1.bf16.msra.mxu0 %v4191
        %4534 = vmatprep.subr.bf16.mxu0 0
        %4535 = vmatpush1.bf16.msra.mxu0 %v4192
        %4536 = vmatprep.subr.bf16.mxu0 0
        %4537 = vmatpush1.bf16.msra.mxu0 %v4193
        %4538 = vmatprep.mubr.bf16.mxu0 %v3346
        %4539 = vmatmul.mubr.bf16.gmra.mrb[0].mxu0 %v3345
        %v4540 = vpop.f32.mrb[0].mxu0
        %v4541 = vadd.f32 %v4501, %v4540
        %v4542 = vpop.f32.mrb[0].mxu0
        %v4543 = vpop.f32.mrb[0].mxu0
        %v4544 = vpop.f32.mrb[0].mxu0
        %4545 = vdwg.mxu0
        %4546 = vmatprep.subr.bf16.mxu0 0
        %4547 = vmatpush1.bf16.msra.mxu0 %v4194
        %4548 = vmatprep.subr.bf16.mxu0 0
        %4549 = vmatpush1.bf16.msra.mxu0 %v4195
        %4550 = vmatprep.subr.bf16.mxu0 0
        %4551 = vmatpush1.bf16.msra.mxu0 %v4196
        %4552 = vmatprep.subr.bf16.mxu0 0
        %4553 = vmatpush1.bf16.msra.mxu0 %v4197
        %4554 = vmatprep.subr.bf16.mxu0 0
        %4555 = vmatpush1.bf16.msra.mxu0 %v4198
        %4556 = vmatprep.subr.bf16.mxu0 0
        %4557 = vmatpush1.bf16.msra.mxu0 %v4199
        %4558 = vmatprep.subr.bf16.mxu0 0
        %4559 = vmatpush1.bf16.msra.mxu0 %v4200
        %4560 = vmatprep.subr.bf16.mxu0 0
        %4561 = vmatpush1.bf16.msra.mxu0 %v4201
        %4562 = vmatprep.subr.bf16.mxu0 0
        %4563 = vmatpush1.bf16.msra.mxu0 %v4202
        %4564 = vmatprep.subr.bf16.mxu0 0
        %4565 = vmatpush1.bf16.msra.mxu0 %v4203
        %4566 = vmatprep.subr.bf16.mxu0 0
        %4567 = vmatpush1.bf16.msra.mxu0 %v4204
        %4568 = vmatprep.subr.bf16.mxu0 0
        %4569 = vmatpush1.bf16.msra.mxu0 %v4205
        %4570 = vmatprep.subr.bf16.mxu0 0
        %4571 = vmatpush1.bf16.msra.mxu0 %v4206
        %4572 = vmatprep.subr.bf16.mxu0 0
        %4573 = vmatpush1.bf16.msra.mxu0 %v4207
        %4574 = vmatprep.subr.bf16.mxu0 0
        %4575 = vmatpush1.bf16.msra.mxu0 %v4208
        %4576 = vmatprep.subr.bf16.mxu0 0
        %4577 = vmatpush1.bf16.msra.mxu0 %v4209
        %4578 = vmatprep.mubr.bf16.mxu0 %v3348
        %4579 = vmatmul.mubr.bf16.gmra.mrb[0].mxu0 %v3347
        %v4580 = vpop.f32.mrb[0].mxu0
        %v4581 = vadd.f32 %v4541, %v4580
        %v4582 = vpop.f32.mrb[0].mxu0
        %v4583 = vpop.f32.mrb[0].mxu0
        %v4584 = vpop.f32.mrb[0].mxu0
        %4585 = vdwg.mxu0
        %4586 = vmatprep.subr.bf16.mxu0 0
        %4587 = vmatpush1.bf16.msra.mxu0 %v4210
        %4588 = vmatprep.subr.bf16.mxu0 0
        %4589 = vmatpush1.bf16.msra.mxu0 %v4211
        %4590 = vmatprep.subr.bf16.mxu0 0
        %4591 = vmatpush1.bf16.msra.mxu0 %v4212
        %4592 = vmatprep.subr.bf16.mxu0 0
        %4593 = vmatpush1.bf16.msra.mxu0 %v4213
        %4594 = vmatprep.subr.bf16.mxu0 0
        %4595 = vmatpush1.bf16.msra.mxu0 %v4214
        %4596 = vmatprep.subr.bf16.mxu0 0
        %4597 = vmatpush1.bf16.msra.mxu0 %v4215
        %4598 = vmatprep.subr.bf16.mxu0 0
        %4599 = vmatpush1.bf16.msra.mxu0 %v4216
        %4600 = vmatprep.subr.bf16.mxu0 0
        %4601 = vmatpush1.bf16.msra.mxu0 %v4217
        %4602 = vmatprep.subr.bf16.mxu0 0
        %4603 = vmatpush1.bf16.msra.mxu0 %v4218
        %4604 = vmatprep.subr.bf16.mxu0 0
        %4605 = vmatpush1.bf16.msra.mxu0 %v4219
        %4606 = vmatprep.subr.bf16.mxu0 0
        %4607 = vmatpush1.bf16.msra.mxu0 %v4220
        %4608 = vmatprep.subr.bf16.mxu0 0
        %4609 = vmatpush1.bf16.msra.mxu0 %v4221
        %4610 = vmatprep.subr.bf16.mxu0 0
        %4611 = vmatpush1.bf16.msra.mxu0 %v4222
        %4612 = vmatprep.subr.bf16.mxu0 0
        %4613 = vmatpush1.bf16.msra.mxu0 %v4223
        %4614 = vmatprep.subr.bf16.mxu0 0
        %4615 = vmatpush1.bf16.msra.mxu0 %v4224
        %4616 = vmatprep.subr.bf16.mxu0 0
        %4617 = vmatpush1.bf16.msra.mxu0 %v4225
        %4618 = vmatprep.mubr.bf16.mxu0 %v3350
        %4619 = vmatmul.mubr.bf16.gmra.mrb[0].mxu0 %v3349
        %v4620 = vpop.f32.mrb[0].mxu0
        %v4621 = vadd.f32 %v4581, %v4620
        %v4622 = vpop.f32.mrb[0].mxu0
        %v4623 = vpop.f32.mrb[0].mxu0
        %v4624 = vpop.f32.mrb[0].mxu0
        %4625 = vdwg.mxu0
        %4626 = vmatprep.subr.bf16.mxu0 0
        %4627 = vmatpush1.bf16.msra.mxu0 %v4226
        %4628 = vmatprep.subr.bf16.mxu0 0
        %4629 = vmatpush1.bf16.msra.mxu0 %v4227
        %4630 = vmatprep.subr.bf16.mxu0 0
        %4631 = vmatpush1.bf16.msra.mxu0 %v4228
        %4632 = vmatprep.subr.bf16.mxu0 0
        %4633 = vmatpush1.bf16.msra.mxu0 %v4229
        %4634 = vmatprep.subr.bf16.mxu0 0
        %4635 = vmatpush1.bf16.msra.mxu0 %v4230
        %4636 = vmatprep.subr.bf16.mxu0 0
        %4637 = vmatpush1.bf16.msra.mxu0 %v4231
        %4638 = vmatprep.subr.bf16.mxu0 0
        %4639 = vmatpush1.bf16.msra.mxu0 %v4232
        %4640 = vmatprep.subr.bf16.mxu0 0
        %4641 = vmatpush1.bf16.msra.mxu0 %v4233
        %4642 = vmatprep.subr.bf16.mxu0 0
        %4643 = vmatpush1.bf16.msra.mxu0 %v4234
        %4644 = vmatprep.subr.bf16.mxu0 0
        %4645 = vmatpush1.bf16.msra.mxu0 %v4235
        %4646 = vmatprep.subr.bf16.mxu0 0
        %4647 = vmatpush1.bf16.msra.mxu0 %v4236
        %4648 = vmatprep.subr.bf16.mxu0 0
        %4649 = vmatpush1.bf16.msra.mxu0 %v4237
        %4650 = vmatprep.subr.bf16.mxu0 0
        %4651 = vmatpush1.bf16.msra.mxu0 %v4238
        %4652 = vmatprep.subr.bf16.mxu0 0
        %4653 = vmatpush1.bf16.msra.mxu0 %v4239
        %4654 = vmatprep.subr.bf16.mxu0 0
        %4655 = vmatpush1.bf16.msra.mxu0 %v4240
        %4656 = vmatprep.subr.bf16.mxu0 0
        %4657 = vmatpush1.bf16.msra.mxu0 %v4241
        %4658 = vmatprep.mubr.bf16.mxu0 %v3352
        %4659 = vmatmul.mubr.bf16.gmra.mrb[0].mxu0 %v3351
        %v4660 = vpop.f32.mrb[0].mxu0
        %v4661 = vadd.f32 %v4621, %v4660
        %v4662 = vpop.f32.mrb[0].mxu0
        %v4663 = vpop.f32.mrb[0].mxu0
        %v4664 = vpop.f32.mrb[0].mxu0
        %4665 = vdwg.mxu0
        %4666 = vmatprep.subr.bf16.mxu0 0
        %4667 = vmatpush1.bf16.msra.mxu0 %v4242
        %4668 = vmatprep.subr.bf16.mxu0 0
        %4669 = vmatpush1.bf16.msra.mxu0 %v4243
        %4670 = vmatprep.subr.bf16.mxu0 0
        %4671 = vmatpush1.bf16.msra.mxu0 %v4244
        %4672 = vmatprep.subr.bf16.mxu0 0
        %4673 = vmatpush1.bf16.msra.mxu0 %v4245
        %4674 = vmatprep.subr.bf16.mxu0 0
        %4675 = vmatpush1.bf16.msra.mxu0 %v4246
        %4676 = vmatprep.subr.bf16.mxu0 0
        %4677 = vmatpush1.bf16.msra.mxu0 %v4247
        %4678 = vmatprep.subr.bf16.mxu0 0
        %4679 = vmatpush1.bf16.msra.mxu0 %v4248
        %4680 = vmatprep.subr.bf16.mxu0 0
        %4681 = vmatpush1.bf16.msra.mxu0 %v4249
        %4682 = vmatprep.subr.bf16.mxu0 0
        %4683 = vmatpush1.bf16.msra.mxu0 %v4250
        %4684 = vmatprep.subr.bf16.mxu0 0
        %4685 = vmatpush1.bf16.msra.mxu0 %v4251
        %4686 = vmatprep.subr.bf16.mxu0 0
        %4687 = vmatpush1.bf16.msra.mxu0 %v4252
        %4688 = vmatprep.subr.bf16.mxu0 0
        %4689 = vmatpush1.bf16.msra.mxu0 %v4253
        %4690 = vmatprep.subr.bf16.mxu0 0
        %4691 = vmatpush1.bf16.msra.mxu0 %v4254
        %4692 = vmatprep.subr.bf16.mxu0 0
        %4693 = vmatpush1.bf16.msra.mxu0 %v4255
        %4694 = vmatprep.subr.bf16.mxu0 0
        %4695 = vmatpush1.bf16.msra.mxu0 %v4256
        %4696 = vmatprep.subr.bf16.mxu0 0
        %4697 = vmatpush1.bf16.msra.mxu0 %v4257
        %4698 = vmatprep.mubr.bf16.mxu0 %v3354
        %4699 = vmatmul.mubr.bf16.gmra.mrb[0].mxu0 %v3353
        %v4700 = vpop.f32.mrb[0].mxu0
        %v4701 = vadd.f32 %v4661, %v4700
        %v4702 = vpop.f32.mrb[0].mxu0
        %v4703 = vpop.f32.mrb[0].mxu0
        %v4704 = vpop.f32.mrb[0].mxu0
        %4705 = vdwg.mxu0
        %v4706 = vadd.f32 %v2141, %v4701
        %v4707 = vld [vmem:[#allocation20] sm:$0x1]
        %v4708 = vld [vmem:[#allocation22] sm:$0x1]
        %4709 = vadd.xlane.f32.xlu0 %v4706
        %v4710 = vpop.xlane.xlu0 %4709
        %v4711 = vmul.f32 %v4710, %v2118
        %v4712 = vsub.f32 %v4706, %v4711
        %v4713 = vmul.f32 %v4712, %v4712
        %4714 = vadd.xlane.f32.xlu0 %v4713
        %v4715 = vpop.xlane.xlu0 %4714
        %v4716 = vmul.f32 %v4715, %v2118
        %v4717 = vadd.f32 %v4716, 1e-05
        %v4718 = vrsqrt.pop %v4717
        %v4719 = vmul.f32 %v4712, %v4718
        %v4721 = vlaneseq
        %v4722 = vshrl.u32 %v4721, 7
        %v4723 = vsub.s32 0, %v4722
        %v4724 = vrot.slane %v4707, %v4723
        %v4726 = vmul.f32 %v4719, %v4724
        %v4728 = vlaneseq
        %v4729 = vshrl.u32 %v4728, 7
        %v4730 = vsub.s32 0, %v4729
        %v4731 = vrot.slane %v4708, %v4730
        %v4733 = vadd.f32 %v4726, %v4731
        %v4734 = vpack.c.bf16 %v4733, %v4733
        %v4735 = vld [vmem:[#allocation23] sm:$0xff]
        %v4736 = vld [vmem:[#allocation23 + $0x8] sm:$0xf]
        %v4737 = vld [vmem:[#allocation23 + $0xc] sm:$0xff]
        %v4738 = vld [vmem:[#allocation23 + $0x14] sm:$0xf]
        %v4739 = vld [vmem:[#allocation23 + $0x18] sm:$0xff]
        %v4740 = vld [vmem:[#allocation23 + $0x20] sm:$0xf]
        %v4741 = vld [vmem:[#allocation23 + $0x24] sm:$0xff]
        %v4742 = vld [vmem:[#allocation23 + $0x2c] sm:$0xf]
        %v4743 = vld [vmem:[#allocation23 + $0x30] sm:$0xff]
        %v4744 = vld [vmem:[#allocation23 + $0x38] sm:$0xf]
        %v4745 = vld [vmem:[#allocation23 + $0x3c] sm:$0xff]
        %v4746 = vld [vmem:[#allocation23 + $0x44] sm:$0xf]
        %v4747 = vld [vmem:[#allocation23 + $0x48] sm:$0xff]
        %v4748 = vld [vmem:[#allocation23 + $0x50] sm:$0xf]
        %v4749 = vld [vmem:[#allocation23 + $0x54] sm:$0xff]
        %v4750 = vld [vmem:[#allocation23 + $0x5c] sm:$0xf]
        %v4751 = vld [vmem:[#allocation23 + $0x60] sm:$0xff]
        %v4752 = vld [vmem:[#allocation23 + $0x68] sm:$0xf]
        %v4753 = vld [vmem:[#allocation23 + $0x6c] sm:$0xff]
        %v4754 = vld [vmem:[#allocation23 + $0x74] sm:$0xf]
        %v4755 = vld [vmem:[#allocation23 + $0x78] sm:$0xff]
        %v4756 = vld [vmem:[#allocation23 + $0x80] sm:$0xf]
        %v4757 = vld [vmem:[#allocation23 + $0x84] sm:$0xff]
        %v4758 = vld [vmem:[#allocation23 + $0x8c] sm:$0xf]
        %v4759 = vld [vmem:[#allocation23 + $0x90] sm:$0xff]
        %v4760 = vld [vmem:[#allocation23 + $0x98] sm:$0xf]
        %v4761 = vld [vmem:[#allocation23 + $0x9c] sm:$0xff]
        %v4762 = vld [vmem:[#allocation23 + $0xa4] sm:$0xf]
        %v4763 = vld [vmem:[#allocation23 + $0xa8] sm:$0xff]
        %v4764 = vld [vmem:[#allocation23 + $0xb0] sm:$0xf]
        %v4765 = vld [vmem:[#allocation23 + $0xb4] sm:$0xff]
        %v4766 = vld [vmem:[#allocation23 + $0xbc] sm:$0xf]
        %v4767 = vld [vmem:[%s35] sm:$0x7]
        %v4769 = vlaneseq
        %v4770 = vshrl.u32 %v4769, 7
        %v4771 = vsub.s32 0, %v4770
        %v4772 = vrot.slane %v4767, %v4771
        %v4773 = vlaneseq
        %v4774 = vshrl.u32 %v4773, 7
        %v4775 = vsub.s32 1, %v4774
        %v4776 = vrot.slane %v4767, %v4775
        %v4777 = vlaneseq
        %v4778 = vshrl.u32 %v4777, 7
        %v4779 = vsub.s32 2, %v4778
        %v4780 = vrot.slane %v4767, %v4779
        %v4816 = vunpack.c.l.b16 %v4735
        %v4817 = vunpack.c.h.b16 %v4735
        %v4818 = vunpack.c.l.b16 %v4736
        %v4819 = vunpack.c.l.b16 %v4737
        %v4820 = vunpack.c.h.b16 %v4737
        %v4821 = vunpack.c.l.b16 %v4738
        %v4822 = vunpack.c.l.b16 %v4739
        %v4823 = vunpack.c.h.b16 %v4739
        %v4824 = vunpack.c.l.b16 %v4740
        %v4825 = vunpack.c.l.b16 %v4741
        %v4826 = vunpack.c.h.b16 %v4741
        %v4827 = vunpack.c.l.b16 %v4742
        %v4828 = vunpack.c.l.b16 %v4743
        %v4829 = vunpack.c.h.b16 %v4743
        %v4830 = vunpack.c.l.b16 %v4744
        %v4831 = vunpack.c.l.b16 %v4745
        %v4832 = vunpack.c.h.b16 %v4745
        %v4833 = vunpack.c.l.b16 %v4746
        %v4834 = vunpack.c.l.b16 %v4747
        %v4835 = vunpack.c.h.b16 %v4747
        %v4836 = vunpack.c.l.b16 %v4748
        %v4837 = vunpack.c.l.b16 %v4749
        %v4838 = vunpack.c.h.b16 %v4749
        %v4839 = vunpack.c.l.b16 %v4750
        %v4840 = vunpack.c.l.b16 %v4751
        %v4841 = vunpack.c.h.b16 %v4751
        %v4842 = vunpack.c.l.b16 %v4752
        %v4843 = vunpack.c.l.b16 %v4753
        %v4844 = vunpack.c.h.b16 %v4753
        %v4845 = vunpack.c.l.b16 %v4754
        %v4846 = vunpack.c.l.b16 %v4755
        %v4847 = vunpack.c.h.b16 %v4755
        %v4848 = vunpack.c.l.b16 %v4756
        %v4849 = vunpack.c.l.b16 %v4757
        %v4850 = vunpack.c.h.b16 %v4757
        %v4851 = vunpack.c.l.b16 %v4758
        %v4852 = vunpack.c.l.b16 %v4759
        %v4853 = vunpack.c.h.b16 %v4759
        %v4854 = vunpack.c.l.b16 %v4760
        %v4855 = vunpack.c.l.b16 %v4761
        %v4856 = vunpack.c.h.b16 %v4761
        %v4857 = vunpack.c.l.b16 %v4762
        %v4858 = vunpack.c.l.b16 %v4763
        %v4859 = vunpack.c.h.b16 %v4763
        %v4860 = vunpack.c.l.b16 %v4764
        %v4861 = vunpack.c.l.b16 %v4765
        %v4862 = vunpack.c.h.b16 %v4765
        %v4863 = vunpack.c.l.b16 %v4766
        %v4864 = vpack.c.b16 %v4819, %v4816
        %v4865 = vpack.c.b16 %v4820, %v4817
        %v4866 = vpack.c.b16 %v4821, %v4818
        %v4867 = vpack.c.b16 %v4825, %v4822
        %v4868 = vpack.c.b16 %v4826, %v4823
        %v4869 = vpack.c.b16 %v4827, %v4824
        %v4870 = vpack.c.b16 %v4831, %v4828
        %v4871 = vpack.c.b16 %v4832, %v4829
        %v4872 = vpack.c.b16 %v4833, %v4830
        %v4873 = vpack.c.b16 %v4837, %v4834
        %v4874 = vpack.c.b16 %v4838, %v4835
        %v4875 = vpack.c.b16 %v4839, %v4836
        %v4876 = vpack.c.b16 %v4843, %v4840
        %v4877 = vpack.c.b16 %v4844, %v4841
        %v4878 = vpack.c.b16 %v4845, %v4842
        %v4879 = vpack.c.b16 %v4849, %v4846
        %v4880 = vpack.c.b16 %v4850, %v4847
        %v4881 = vpack.c.b16 %v4851, %v4848
        %v4882 = vpack.c.b16 %v4855, %v4852
        %v4883 = vpack.c.b16 %v4856, %v4853
        %v4884 = vpack.c.b16 %v4857, %v4854
        %v4885 = vpack.c.b16 %v4861, %v4858
        %v4886 = vpack.c.b16 %v4862, %v4859
        %v4887 = vpack.c.b16 %v4863, %v4860
        %4912 = vmatprep.subr.bf16.mxu0 %v4865
        %4913 = vmatpush1.bf16.msra.mxu0 %v4864
        %4914 = vmatprep.subr.bf16.mxu0 %v4868
        %4915 = vmatpush1.bf16.msra.mxu0 %v4867
        %4916 = vmatprep.subr.bf16.mxu0 %v4871
        %4917 = vmatpush1.bf16.msra.mxu0 %v4870
        %4918 = vmatprep.subr.bf16.mxu0 %v4874
        %4919 = vmatpush1.bf16.msra.mxu0 %v4873
        %4920 = vmatprep.subr.bf16.mxu0 %v4877
        %4921 = vmatpush1.bf16.msra.mxu0 %v4876
        %4922 = vmatprep.subr.bf16.mxu0 %v4880
        %4923 = vmatpush1.bf16.msra.mxu0 %v4879
        %4924 = vmatprep.subr.bf16.mxu0 %v4883
        %4925 = vmatpush1.bf16.msra.mxu0 %v4882
        %4926 = vmatprep.subr.bf16.mxu0 %v4886
        %4927 = vmatpush1.bf16.msra.mxu0 %v4885
        %4928 = vmatprep.subr.bf16.mxu0 0
        %4929 = vmatpush1.bf16.msra.mxu0 0
        %4930 = vmatprep.subr.bf16.mxu0 0
        %4931 = vmatpush1.bf16.msra.mxu0 0
        %4932 = vmatprep.subr.bf16.mxu0 0
        %4933 = vmatpush1.bf16.msra.mxu0 0
        %4934 = vmatprep.subr.bf16.mxu0 0
        %4935 = vmatpush1.bf16.msra.mxu0 0
        %4936 = vmatprep.subr.bf16.mxu0 0
        %4937 = vmatpush1.bf16.msra.mxu0 0
        %4938 = vmatprep.subr.bf16.mxu0 0
        %4939 = vmatpush1.bf16.msra.mxu0 0
        %4940 = vmatprep.subr.bf16.mxu0 0
        %4941 = vmatpush1.bf16.msra.mxu0 0
        %4942 = vmatprep.subr.bf16.mxu0 0
        %4943 = vmatpush1.bf16.msra.mxu0 0
        %4944 = vmatprep.mubr.bf16.mxu0 0
        %4945 = vmatmul.mubr.bf16.gmra.mrb[0].mxu0 %v4734
        %v4946 = vpop.f32.mrb[0].mxu0
        %v4947 = vadd.f32 %v4772, %v4946
        %v4948 = vpop.f32.mrb[0].mxu0
        %v4949 = vadd.f32 %v4776, %v4948
        %v4950 = vpop.f32.mrb[0].mxu0
        %v4951 = vpop.f32.mrb[0].mxu0
        %4952 = vdwg.mxu0
        %4953 = vmatprep.subr.bf16.mxu0 0
        %4954 = vmatpush1.bf16.msra.mxu0 %v4866
        %4955 = vmatprep.subr.bf16.mxu0 0
        %4956 = vmatpush1.bf16.msra.mxu0 %v4869
        %4957 = vmatprep.subr.bf16.mxu0 0
        %4958 = vmatpush1.bf16.msra.mxu0 %v4872
        %4959 = vmatprep.subr.bf16.mxu0 0
        %4960 = vmatpush1.bf16.msra.mxu0 %v4875
        %4961 = vmatprep.subr.bf16.mxu0 0
        %4962 = vmatpush1.bf16.msra.mxu0 %v4878
        %4963 = vmatprep.subr.bf16.mxu0 0
        %4964 = vmatpush1.bf16.msra.mxu0 %v4881
        %4965 = vmatprep.subr.bf16.mxu0 0
        %4966 = vmatpush1.bf16.msra.mxu0 %v4884
        %4967 = vmatprep.subr.bf16.mxu0 0
        %4968 = vmatpush1.bf16.msra.mxu0 %v4887
        %4969 = vmatprep.subr.bf16.mxu0 0
        %4970 = vmatpush1.bf16.msra.mxu0 0
        %4971 = vmatprep.subr.bf16.mxu0 0
        %4972 = vmatpush1.bf16.msra.mxu0 0
        %4973 = vmatprep.subr.bf16.mxu0 0
        %4974 = vmatpush1.bf16.msra.mxu0 0
        %4975 = vmatprep.subr.bf16.mxu0 0
        %4976 = vmatpush1.bf16.msra.mxu0 0
        %4977 = vmatprep.subr.bf16.mxu0 0
        %4978 = vmatpush1.bf16.msra.mxu0 0
        %4979 = vmatprep.subr.bf16.mxu0 0
        %4980 = vmatpush1.bf16.msra.mxu0 0
        %4981 = vmatprep.subr.bf16.mxu0 0
        %4982 = vmatpush1.bf16.msra.mxu0 0
        %4983 = vmatprep.subr.bf16.mxu0 0
        %4984 = vmatpush1.bf16.msra.mxu0 0
        %4985 = vmatprep.mubr.bf16.mxu0 0
        %4986 = vmatmul.mubr.bf16.gmra.mrb[0].mxu0 %v4734
        %v4987 = vpop.f32.mrb[0].mxu0
        %v4988 = vadd.f32 %v4780, %v4987
        %v4989 = vpop.f32.mrb[0].mxu0
        %v4990 = vpop.f32.mrb[0].mxu0
        %v4991 = vpop.f32.mrb[0].mxu0
        %4992 = vdwg.mxu0
        %4994 = vrot.lane.b32.xlu0 %v4947, 96
        %v4995 = vpop.permute.xlu0 %4994
        %4997 = vrot.lane.b32.xlu0 %v4947, 64
        %v4998 = vpop.permute.xlu0 %4997
        %5000 = vrot.lane.b32.xlu0 %v4947, 32
        %v5001 = vpop.permute.xlu0 %5000
        %v5003 = vpack.c.bf16 %v4947, %v4947
        %v5004 = vpack.c.bf16 %v4995, %v4995
        %v5005 = vpack.c.bf16 %v4998, %v4998
        %v5006 = vpack.c.bf16 %v5001, %v5001
        %5008 = vrot.lane.b32.xlu0 %v4949, 96
        %v5009 = vpop.permute.xlu0 %5008
        %5011 = vrot.lane.b32.xlu0 %v4949, 64
        %v5012 = vpop.permute.xlu0 %5011
        %5014 = vrot.lane.b32.xlu0 %v4949, 32
        %v5015 = vpop.permute.xlu0 %5014
        %v5017 = vpack.c.bf16 %v4949, %v4949
        %v5018 = vpack.c.bf16 %v5009, %v5009
        %v5019 = vpack.c.bf16 %v5012, %v5012
        %v5020 = vpack.c.bf16 %v5015, %v5015
        %5022 = vrot.lane.b32.xlu0 %v4988, 96
        %v5023 = vpop.permute.xlu0 %5022
        %5025 = vrot.lane.b32.xlu0 %v4988, 64
        %v5026 = vpop.permute.xlu0 %5025
        %5028 = vrot.lane.b32.xlu0 %v4988, 32
        %v5029 = vpop.permute.xlu0 %5028
        %v5031 = vpack.c.bf16 %v4988, %v4988
        %v5032 = vpack.c.bf16 %v5023, %v5023
        %v5033 = vpack.c.bf16 %v5026, %v5026
        %v5034 = vpack.c.bf16 %v5029, %v5029
        %v5036 = vsel %vm1565, %v5003, 0
        %v5039 = vsel %vm1565, %v5017, 0
        %5041 = vmatprep.subr.bf16.mxu0 0
        %5042 = vmatpush1.bf16.xpose.msra.mxu0 %v5039
        %5043 = vmatprep.subr.bf16.mxu0 0
        %5044 = vmatpush1.bf16.xpose.msra.mxu0 0
        %5045 = vmatprep.subr.bf16.mxu0 0
        %5046 = vmatpush1.bf16.xpose.msra.mxu0 0
        %5047 = vmatprep.subr.bf16.mxu0 0
        %5048 = vmatpush1.bf16.xpose.msra.mxu0 0
        %5049 = vmatprep.subr.bf16.mxu0 0
        %5050 = vmatpush1.bf16.xpose.msra.mxu0 0
        %5051 = vmatprep.subr.bf16.mxu0 0
        %5052 = vmatpush1.bf16.xpose.msra.mxu0 0
        %5053 = vmatprep.subr.bf16.mxu0 0
        %5054 = vmatpush1.bf16.xpose.msra.mxu0 0
        %5055 = vmatprep.subr.bf16.mxu0 0
        %5056 = vmatpush1.bf16.xpose.msra.mxu0 0
        %5057 = vmatprep.subr.bf16.mxu0 0
        %5058 = vmatpush1.bf16.xpose.msra.mxu0 0
        %5059 = vmatprep.subr.bf16.mxu0 0
        %5060 = vmatpush1.bf16.xpose.msra.mxu0 0
        %5061 = vmatprep.subr.bf16.mxu0 0
        %5062 = vmatpush1.bf16.xpose.msra.mxu0 0
        %5063 = vmatprep.subr.bf16.mxu0 0
        %5064 = vmatpush1.bf16.xpose.msra.mxu0 0
        %5065 = vmatprep.subr.bf16.mxu0 0
        %5066 = vmatpush1.bf16.xpose.msra.mxu0 0
        %5067 = vmatprep.subr.bf16.mxu0 0
        %5068 = vmatpush1.bf16.xpose.msra.mxu0 0
        %5069 = vmatprep.subr.bf16.mxu0 0
        %5070 = vmatpush1.bf16.xpose.msra.mxu0 0
        %5071 = vmatprep.subr.bf16.mxu0 0
        %5072 = vmatpush1.bf16.xpose.msra.mxu0 0
        %5073 = vmatprep.mubr.bf16.mxu0 0
        %5074 = vmatmul.mubr.bf16.gmra.mrb[0].mxu0 %v5036
        %v5075 = vpop.f32.mrb[0].mxu0
        %v5076 = vadd.f32 0.0, %v5075
        %v5077 = vpop.f32.mrb[0].mxu0
        %v5078 = vpop.f32.mrb[0].mxu0
        %v5079 = vpop.f32.mrb[0].mxu0
        %5080 = vdwg.mxu0
        %v5082 = vsel %vm1565, %v5004, 0
        %v5085 = vsel %vm1565, %v5018, 0
        %5087 = vmatprep.subr.bf16.mxu0 0
        %5088 = vmatpush1.bf16.xpose.msra.mxu0 %v5085
        %5089 = vmatprep.subr.bf16.mxu0 0
        %5090 = vmatpush1.bf16.xpose.msra.mxu0 0
        %5091 = vmatprep.subr.bf16.mxu0 0
        %5092 = vmatpush1.bf16.xpose.msra.mxu0 0
        %5093 = vmatprep.subr.bf16.mxu0 0
        %5094 = vmatpush1.bf16.xpose.msra.mxu0 0
        %5095 = vmatprep.subr.bf16.mxu0 0
        %5096 = vmatpush1.bf16.xpose.msra.mxu0 0
        %5097 = vmatprep.subr.bf16.mxu0 0
        %5098 = vmatpush1.bf16.xpose.msra.mxu0 0
        %5099 = vmatprep.subr.bf16.mxu0 0
        %5100 = vmatpush1.bf16.xpose.msra.mxu0 0
        %5101 = vmatprep.subr.bf16.mxu0 0
        %5102 = vmatpush1.bf16.xpose.msra.mxu0 0
        %5103 = vmatprep.subr.bf16.mxu0 0
        %5104 = vmatpush1.bf16.xpose.msra.mxu0 0
        %5105 = vmatprep.subr.bf16.mxu0 0
        %5106 = vmatpush1.bf16.xpose.msra.mxu0 0
        %5107 = vmatprep.subr.bf16.mxu0 0
        %5108 = vmatpush1.bf16.xpose.msra.mxu0 0
        %5109 = vmatprep.subr.bf16.mxu0 0
        %5110 = vmatpush1.bf16.xpose.msra.mxu0 0
        %5111 = vmatprep.subr.bf16.mxu0 0
        %5112 = vmatpush1.bf16.xpose.msra.mxu0 0
        %5113 = vmatprep.subr.bf16.mxu0 0
        %5114 = vmatpush1.bf16.xpose.msra.mxu0 0
        %5115 = vmatprep.subr.bf16.mxu0 0
        %5116 = vmatpush1.bf16.xpose.msra.mxu0 0
        %5117 = vmatprep.subr.bf16.mxu0 0
        %5118 = vmatpush1.bf16.xpose.msra.mxu0 0
        %5119 = vmatprep.mubr.bf16.mxu0 0
        %5120 = vmatmul.mubr.bf16.gmra.mrb[0].mxu0 %v5082
        %v5121 = vpop.f32.mrb[0].mxu0
        %v5122 = vadd.f32 0.0, %v5121
        %v5123 = vpop.f32.mrb[0].mxu0
        %v5124 = vpop.f32.mrb[0].mxu0
        %v5125 = vpop.f32.mrb[0].mxu0
        %5126 = vdwg.mxu0
        %v5128 = vsel %vm1565, %v5005, 0
        %v5131 = vsel %vm1565, %v5019, 0
        %5133 = vmatprep.subr.bf16.mxu0 0
        %5134 = vmatpush1.bf16.xpose.msra.mxu0 %v5131
        %5135 = vmatprep.subr.bf16.mxu0 0
        %5136 = vmatpush1.bf16.xpose.msra.mxu0 0
        %5137 = vmatprep.subr.bf16.mxu0 0
        %5138 = vmatpush1.bf16.xpose.msra.mxu0 0
        %5139 = vmatprep.subr.bf16.mxu0 0
        %5140 = vmatpush1.bf16.xpose.msra.mxu0 0
        %5141 = vmatprep.subr.bf16.mxu0 0
        %5142 = vmatpush1.bf16.xpose.msra.mxu0 0
        %5143 = vmatprep.subr.bf16.mxu0 0
        %5144 = vmatpush1.bf16.xpose.msra.mxu0 0
        %5145 = vmatprep.subr.bf16.mxu0 0
        %5146 = vmatpush1.bf16.xpose.msra.mxu0 0
        %5147 = vmatprep.subr.bf16.mxu0 0
        %5148 = vmatpush1.bf16.xpose.msra.mxu0 0
        %5149 = vmatprep.subr.bf16.mxu0 0
        %5150 = vmatpush1.bf16.xpose.msra.mxu0 0
        %5151 = vmatprep.subr.bf16.mxu0 0
        %5152 = vmatpush1.bf16.xpose.msra.mxu0 0
        %5153 = vmatprep.subr.bf16.mxu0 0
        %5154 = vmatpush1.bf16.xpose.msra.mxu0 0
        %5155 = vmatprep.subr.bf16.mxu0 0
        %5156 = vmatpush1.bf16.xpose.msra.mxu0 0
        %5157 = vmatprep.subr.bf16.mxu0 0
        %5158 = vmatpush1.bf16.xpose.msra.mxu0 0
        %5159 = vmatprep.subr.bf16.mxu0 0
        %5160 = vmatpush1.bf16.xpose.msra.mxu0 0
        %5161 = vmatprep.subr.bf16.mxu0 0
        %5162 = vmatpush1.bf16.xpose.msra.mxu0 0
        %5163 = vmatprep.subr.bf16.mxu0 0
        %5164 = vmatpush1.bf16.xpose.msra.mxu0 0
        %5165 = vmatprep.mubr.bf16.mxu0 0
        %5166 = vmatmul.mubr.bf16.gmra.mrb[0].mxu0 %v5128
        %v5167 = vpop.f32.mrb[0].mxu0
        %v5168 = vadd.f32 0.0, %v5167
        %v5169 = vpop.f32.mrb[0].mxu0
        %v5170 = vpop.f32.mrb[0].mxu0
        %v5171 = vpop.f32.mrb[0].mxu0
        %5172 = vdwg.mxu0
        %v5174 = vsel %vm1565, %v5006, 0
        %v5177 = vsel %vm1565, %v5020, 0
        %5179 = vmatprep.subr.bf16.mxu0 0
        %5180 = vmatpush1.bf16.xpose.msra.mxu0 %v5177
        %5181 = vmatprep.subr.bf16.mxu0 0
        %5182 = vmatpush1.bf16.xpose.msra.mxu0 0
        %5183 = vmatprep.subr.bf16.mxu0 0
        %5184 = vmatpush1.bf16.xpose.msra.mxu0 0
        %5185 = vmatprep.subr.bf16.mxu0 0
        %5186 = vmatpush1.bf16.xpose.msra.mxu0 0
        %5187 = vmatprep.subr.bf16.mxu0 0
        %5188 = vmatpush1.bf16.xpose.msra.mxu0 0
        %5189 = vmatprep.subr.bf16.mxu0 0
        %5190 = vmatpush1.bf16.xpose.msra.mxu0 0
        %5191 = vmatprep.subr.bf16.mxu0 0
        %5192 = vmatpush1.bf16.xpose.msra.mxu0 0
        %5193 = vmatprep.subr.bf16.mxu0 0
        %5194 = vmatpush1.bf16.xpose.msra.mxu0 0
        %5195 = vmatprep.subr.bf16.mxu0 0
        %5196 = vmatpush1.bf16.xpose.msra.mxu0 0
        %5197 = vmatprep.subr.bf16.mxu0 0
        %5198 = vmatpush1.bf16.xpose.msra.mxu0 0
        %5199 = vmatprep.subr.bf16.mxu0 0
        %5200 = vmatpush1.bf16.xpose.msra.mxu0 0
        %5201 = vmatprep.subr.bf16.mxu0 0
        %5202 = vmatpush1.bf16.xpose.msra.mxu0 0
        %5203 = vmatprep.subr.bf16.mxu0 0
        %5204 = vmatpush1.bf16.xpose.msra.mxu0 0
        %5205 = vmatprep.subr.bf16.mxu0 0
        %5206 = vmatpush1.bf16.xpose.msra.mxu0 0
        %5207 = vmatprep.subr.bf16.mxu0 0
        %5208 = vmatpush1.bf16.xpose.msra.mxu0 0
        %5209 = vmatprep.subr.bf16.mxu0 0
        %5210 = vmatpush1.bf16.xpose.msra.mxu0 0
        %5211 = vmatprep.mubr.bf16.mxu0 0
        %5212 = vmatmul.mubr.bf16.gmra.mrb[0].mxu0 %v5174
        %v5213 = vpop.f32.mrb[0].mxu0
        %v5214 = vadd.f32 0.0, %v5213
        %v5215 = vpop.f32.mrb[0].mxu0
        %v5216 = vpop.f32.mrb[0].mxu0
        %v5217 = vpop.f32.mrb[0].mxu0
        %5218 = vdwg.mxu0
        %v5219 = vsel %vm1750, %v5076, -inf
        %5220 = vmax.xlane.f32.xlu0 %v5219
        %v5221 = vpop.xlane.xlu0 %5220
        %v5222 = vsel %vm1750, %v5122, -inf
        %5223 = vmax.xlane.f32.xlu0 %v5222
        %v5224 = vpop.xlane.xlu0 %5223
        %v5225 = vsel %vm1750, %v5168, -inf
        %5226 = vmax.xlane.f32.xlu0 %v5225
        %v5227 = vpop.xlane.xlu0 %5226
        %v5228 = vsel %vm1750, %v5214, -inf
        %5229 = vmax.xlane.f32.xlu0 %v5228
        %v5230 = vpop.xlane.xlu0 %5229
        %v5231 = vsub.f32 %v5076, %v5221
        %v5232 = vsub.f32 %v5122, %v5224
        %v5233 = vsub.f32 %v5168, %v5227
        %v5234 = vsub.f32 %v5214, %v5230
        %v5235 = vmul.f32 %v5231, 1.442695
        %v5236 = vpow.pop %v5235
        %v5237 = vmul.f32 %v5232, 1.442695
        %v5238 = vpow.pop %v5237
        %v5239 = vmul.f32 %v5233, 1.442695
        %v5240 = vpow.pop %v5239
        %v5241 = vmul.f32 %v5234, 1.442695
        %v5242 = vpow.pop %v5241
        %v5243 = vsel %vm1750, %v5236, 0.0
        %5244 = vadd.xlane.f32.xlu0 %v5243
        %v5245 = vpop.xlane.xlu0 %5244
        %v5246 = vsel %vm1750, %v5238, 0.0
        %5247 = vadd.xlane.f32.xlu0 %v5246
        %v5248 = vpop.xlane.xlu0 %5247
        %v5249 = vsel %vm1750, %v5240, 0.0
        %5250 = vadd.xlane.f32.xlu0 %v5249
        %v5251 = vpop.xlane.xlu0 %5250
        %v5252 = vsel %vm1750, %v5242, 0.0
        %5253 = vadd.xlane.f32.xlu0 %v5252
        %v5254 = vpop.xlane.xlu0 %5253
        %v5255 = vrcp.pop %v5245
        %v5256 = vrcp.pop %v5248
        %v5257 = vrcp.pop %v5251
        %v5258 = vrcp.pop %v5254
        %v5259 = vmul.f32 %v5236, %v5255
        %v5260 = vmul.f32 %v5238, %v5256
        %v5261 = vmul.f32 %v5240, %v5257
        %v5262 = vmul.f32 %v5242, %v5258
        %v5263 = vpack.c.bf16 %v5259, %v5259
        %v5264 = vpack.c.bf16 %v5260, %v5260
        %v5265 = vpack.c.bf16 %v5261, %v5261
        %v5266 = vpack.c.bf16 %v5262, %v5262
        %v5268 = vsel %vm1750, %v5263, 0
        %v5271 = vsel %vm1802, %v5031, 0
        %5273 = vmatprep.subr.bf16.mxu0 0
        %5274 = vmatpush1.bf16.msra.mxu0 %v5271
        %5275 = vmatprep.subr.bf16.mxu0 0
        %5276 = vmatpush1.bf16.msra.mxu0 0
        %5277 = vmatprep.subr.bf16.mxu0 0
        %5278 = vmatpush1.bf16.msra.mxu0 0
        %5279 = vmatprep.subr.bf16.mxu0 0
        %5280 = vmatpush1.bf16.msra.mxu0 0
        %5281 = vmatprep.subr.bf16.mxu0 0
        %5282 = vmatpush1.bf16.msra.mxu0 0
        %5283 = vmatprep.subr.bf16.mxu0 0
        %5284 = vmatpush1.bf16.msra.mxu0 0
        %5285 = vmatprep.subr.bf16.mxu0 0
        %5286 = vmatpush1.bf16.msra.mxu0 0
        %5287 = vmatprep.subr.bf16.mxu0 0
        %5288 = vmatpush1.bf16.msra.mxu0 0
        %5289 = vmatprep.subr.bf16.mxu0 0
        %5290 = vmatpush1.bf16.msra.mxu0 0
        %5291 = vmatprep.subr.bf16.mxu0 0
        %5292 = vmatpush1.bf16.msra.mxu0 0
        %5293 = vmatprep.subr.bf16.mxu0 0
        %5294 = vmatpush1.bf16.msra.mxu0 0
        %5295 = vmatprep.subr.bf16.mxu0 0
        %5296 = vmatpush1.bf16.msra.mxu0 0
        %5297 = vmatprep.subr.bf16.mxu0 0
        %5298 = vmatpush1.bf16.msra.mxu0 0
        %5299 = vmatprep.subr.bf16.mxu0 0
        %5300 = vmatpush1.bf16.msra.mxu0 0
        %5301 = vmatprep.subr.bf16.mxu0 0
        %5302 = vmatpush1.bf16.msra.mxu0 0
        %5303 = vmatprep.subr.bf16.mxu0 0
        %5304 = vmatpush1.bf16.msra.mxu0 0
        %5305 = vmatprep.mubr.bf16.mxu0 0
        %5306 = vmatmul.mubr.bf16.gmra.mrb[0].mxu0 %v5268
        %v5307 = vpop.f32.mrb[0].mxu0
        %v5308 = vadd.f32 0.0, %v5307
        %v5309 = vpop.f32.mrb[0].mxu0
        %v5310 = vpop.f32.mrb[0].mxu0
        %v5311 = vpop.f32.mrb[0].mxu0
        %5312 = vdwg.mxu0
        %v5314 = vsel %vm1750, %v5264, 0
        %v5317 = vsel %vm1802, %v5032, 0
        %5319 = vmatprep.subr.bf16.mxu0 0
        %5320 = vmatpush1.bf16.msra.mxu0 %v5317
        %5321 = vmatprep.subr.bf16.mxu0 0
        %5322 = vmatpush1.bf16.msra.mxu0 0
        %5323 = vmatprep.subr.bf16.mxu0 0
        %5324 = vmatpush1.bf16.msra.mxu0 0
        %5325 = vmatprep.subr.bf16.mxu0 0
        %5326 = vmatpush1.bf16.msra.mxu0 0
        %5327 = vmatprep.subr.bf16.mxu0 0
        %5328 = vmatpush1.bf16.msra.mxu0 0
        %5329 = vmatprep.subr.bf16.mxu0 0
        %5330 = vmatpush1.bf16.msra.mxu0 0
        %5331 = vmatprep.subr.bf16.mxu0 0
        %5332 = vmatpush1.bf16.msra.mxu0 0
        %5333 = vmatprep.subr.bf16.mxu0 0
        %5334 = vmatpush1.bf16.msra.mxu0 0
        %5335 = vmatprep.subr.bf16.mxu0 0
        %5336 = vmatpush1.bf16.msra.mxu0 0
        %5337 = vmatprep.subr.bf16.mxu0 0
        %5338 = vmatpush1.bf16.msra.mxu0 0
        %5339 = vmatprep.subr.bf16.mxu0 0
        %5340 = vmatpush1.bf16.msra.mxu0 0
        %5341 = vmatprep.subr.bf16.mxu0 0
        %5342 = vmatpush1.bf16.msra.mxu0 0
        %5343 = vmatprep.subr.bf16.mxu0 0
        %5344 = vmatpush1.bf16.msra.mxu0 0
        %5345 = vmatprep.subr.bf16.mxu0 0
        %5346 = vmatpush1.bf16.msra.mxu0 0
        %5347 = vmatprep.subr.bf16.mxu0 0
        %5348 = vmatpush1.bf16.msra.mxu0 0
        %5349 = vmatprep.subr.bf16.mxu0 0
        %5350 = vmatpush1.bf16.msra.mxu0 0
        %5351 = vmatprep.mubr.bf16.mxu0 0
        %5352 = vmatmul.mubr.bf16.gmra.mrb[0].mxu0 %v5314
        %v5353 = vpop.f32.mrb[0].mxu0
        %v5354 = vadd.f32 0.0, %v5353
        %v5355 = vpop.f32.mrb[0].mxu0
        %v5356 = vpop.f32.mrb[0].mxu0
        %v5357 = vpop.f32.mrb[0].mxu0
        %5358 = vdwg.mxu0
        %v5360 = vsel %vm1750, %v5265, 0
        %v5363 = vsel %vm1802, %v5033, 0
        %5365 = vmatprep.subr.bf16.mxu0 0
        %5366 = vmatpush1.bf16.msra.mxu0 %v5363
        %5367 = vmatprep.subr.bf16.mxu0 0
        %5368 = vmatpush1.bf16.msra.mxu0 0
        %5369 = vmatprep.subr.bf16.mxu0 0
        %5370 = vmatpush1.bf16.msra.mxu0 0
        %5371 = vmatprep.subr.bf16.mxu0 0
        %5372 = vmatpush1.bf16.msra.mxu0 0
        %5373 = vmatprep.subr.bf16.mxu0 0
        %5374 = vmatpush1.bf16.msra.mxu0 0
        %5375 = vmatprep.subr.bf16.mxu0 0
        %5376 = vmatpush1.bf16.msra.mxu0 0
        %5377 = vmatprep.subr.bf16.mxu0 0
        %5378 = vmatpush1.bf16.msra.mxu0 0
        %5379 = vmatprep.subr.bf16.mxu0 0
        %5380 = vmatpush1.bf16.msra.mxu0 0
        %5381 = vmatprep.subr.bf16.mxu0 0
        %5382 = vmatpush1.bf16.msra.mxu0 0
        %5383 = vmatprep.subr.bf16.mxu0 0
        %5384 = vmatpush1.bf16.msra.mxu0 0
        %5385 = vmatprep.subr.bf16.mxu0 0
        %5386 = vmatpush1.bf16.msra.mxu0 0
        %5387 = vmatprep.subr.bf16.mxu0 0
        %5388 = vmatpush1.bf16.msra.mxu0 0
        %5389 = vmatprep.subr.bf16.mxu0 0
        %5390 = vmatpush1.bf16.msra.mxu0 0
        %5391 = vmatprep.subr.bf16.mxu0 0
        %5392 = vmatpush1.bf16.msra.mxu0 0
        %5393 = vmatprep.subr.bf16.mxu0 0
        %5394 = vmatpush1.bf16.msra.mxu0 0
        %5395 = vmatprep.subr.bf16.mxu0 0
        %5396 = vmatpush1.bf16.msra.mxu0 0
        %5397 = vmatprep.mubr.bf16.mxu0 0
        %5398 = vmatmul.mubr.bf16.gmra.mrb[0].mxu0 %v5360
        %v5399 = vpop.f32.mrb[0].mxu0
        %v5400 = vadd.f32 0.0, %v5399
        %v5401 = vpop.f32.mrb[0].mxu0
        %v5402 = vpop.f32.mrb[0].mxu0
        %v5403 = vpop.f32.mrb[0].mxu0
        %5404 = vdwg.mxu0
        %v5406 = vsel %vm1750, %v5266, 0
        %v5409 = vsel %vm1802, %v5034, 0
        %5411 = vmatprep.subr.bf16.mxu0 0
        %5412 = vmatpush1.bf16.msra.mxu0 %v5409
        %5413 = vmatprep.subr.bf16.mxu0 0
        %5414 = vmatpush1.bf16.msra.mxu0 0
        %5415 = vmatprep.subr.bf16.mxu0 0
        %5416 = vmatpush1.bf16.msra.mxu0 0
        %5417 = vmatprep.subr.bf16.mxu0 0
        %5418 = vmatpush1.bf16.msra.mxu0 0
        %5419 = vmatprep.subr.bf16.mxu0 0
        %5420 = vmatpush1.bf16.msra.mxu0 0
        %5421 = vmatprep.subr.bf16.mxu0 0
        %5422 = vmatpush1.bf16.msra.mxu0 0
        %5423 = vmatprep.subr.bf16.mxu0 0
        %5424 = vmatpush1.bf16.msra.mxu0 0
        %5425 = vmatprep.subr.bf16.mxu0 0
        %5426 = vmatpush1.bf16.msra.mxu0 0
        %5427 = vmatprep.subr.bf16.mxu0 0
        %5428 = vmatpush1.bf16.msra.mxu0 0
        %5429 = vmatprep.subr.bf16.mxu0 0
        %5430 = vmatpush1.bf16.msra.mxu0 0
        %5431 = vmatprep.subr.bf16.mxu0 0
        %5432 = vmatpush1.bf16.msra.mxu0 0
        %5433 = vmatprep.subr.bf16.mxu0 0
        %5434 = vmatpush1.bf16.msra.mxu0 0
        %5435 = vmatprep.subr.bf16.mxu0 0
        %5436 = vmatpush1.bf16.msra.mxu0 0
        %5437 = vmatprep.subr.bf16.mxu0 0
        %5438 = vmatpush1.bf16.msra.mxu0 0
        %5439 = vmatprep.subr.bf16.mxu0 0
        %5440 = vmatpush1.bf16.msra.mxu0 0
        %5441 = vmatprep.subr.bf16.mxu0 0
        %5442 = vmatpush1.bf16.msra.mxu0 0
        %5443 = vmatprep.mubr.bf16.mxu0 0
        %5444 = vmatmul.mubr.bf16.gmra.mrb[0].mxu0 %v5406
        %v5445 = vpop.f32.mrb[0].mxu0
        %v5446 = vadd.f32 0.0, %v5445
        %v5447 = vpop.f32.mrb[0].mxu0
        %v5448 = vpop.f32.mrb[0].mxu0
        %v5449 = vpop.f32.mrb[0].mxu0
        %5450 = vdwg.mxu0
        %5452 = vrot.lane.b32.xlu0 %v5354, 32
        %v5453 = vpop.permute.xlu0 %5452
        %5456 = vrot.lane.b32.xlu0 %v5400, 64
        %v5457 = vpop.permute.xlu0 %5456
        %5460 = vrot.lane.b32.xlu0 %v5446, 96
        %v5461 = vpop.permute.xlu0 %5460
        %v5463 = vsel %vm1565, %v5308, %v5453
        %v5464 = vsel %vm1997, %v5463, %v5457
        %v5465 = vsel %vm1999, %v5464, %v5461
        %v5466 = vpack.c.bf16 %v5465, %v5465
        %v5467 = vld [vmem:[#allocation25] sm:$0xf]
        %v5468 = vld [vmem:[#allocation25 + $0x4] sm:$0xf]
        %v5469 = vld [vmem:[#allocation25 + $0x8] sm:$0xf]
        %v5470 = vld [vmem:[#allocation25 + $0xc] sm:$0xf]
        %v5471 = vld [vmem:[#allocation25 + $0x10] sm:$0xf]
        %v5472 = vld [vmem:[#allocation25 + $0x14] sm:$0xf]
        %v5473 = vld [vmem:[#allocation25 + $0x18] sm:$0xf]
        %v5474 = vld [vmem:[#allocation25 + $0x1c] sm:$0xf]
        %v5475 = vld [vmem:[#allocation25 + $0x20] sm:$0xf]
        %v5476 = vld [vmem:[#allocation25 + $0x24] sm:$0xf]
        %v5477 = vld [vmem:[#allocation25 + $0x28] sm:$0xf]
        %v5478 = vld [vmem:[#allocation25 + $0x2c] sm:$0xf]
        %v5479 = vld [vmem:[#allocation25 + $0x30] sm:$0xf]
        %v5480 = vld [vmem:[#allocation25 + $0x34] sm:$0xf]
        %v5481 = vld [vmem:[#allocation25 + $0x38] sm:$0xf]
        %v5482 = vld [vmem:[#allocation25 + $0x3c] sm:$0xf]
        %v5483 = vld [vmem:[%s39] sm:$0x1]
        %v5485 = vlaneseq
        %v5486 = vshrl.u32 %v5485, 7
        %v5487 = vsub.s32 0, %v5486
        %v5488 = vrot.slane %v5483, %v5487
        %v5506 = vunpack.c.l.b16 %v5467
        %v5507 = vunpack.c.l.b16 %v5468
        %v5508 = vunpack.c.l.b16 %v5469
        %v5509 = vunpack.c.l.b16 %v5470
        %v5510 = vunpack.c.l.b16 %v5471
        %v5511 = vunpack.c.l.b16 %v5472
        %v5512 = vunpack.c.l.b16 %v5473
        %v5513 = vunpack.c.l.b16 %v5474
        %v5514 = vunpack.c.l.b16 %v5475
        %v5515 = vunpack.c.l.b16 %v5476
        %v5516 = vunpack.c.l.b16 %v5477
        %v5517 = vunpack.c.l.b16 %v5478
        %v5518 = vunpack.c.l.b16 %v5479
        %v5519 = vunpack.c.l.b16 %v5480
        %v5520 = vunpack.c.l.b16 %v5481
        %v5521 = vunpack.c.l.b16 %v5482
        %v5522 = vpack.c.b16 %v5507, %v5506
        %v5523 = vpack.c.b16 %v5509, %v5508
        %v5524 = vpack.c.b16 %v5511, %v5510
        %v5525 = vpack.c.b16 %v5513, %v5512
        %v5526 = vpack.c.b16 %v5515, %v5514
        %v5527 = vpack.c.b16 %v5517, %v5516
        %v5528 = vpack.c.b16 %v5519, %v5518
        %v5529 = vpack.c.b16 %v5521, %v5520
        %5538 = vmatprep.subr.bf16.mxu0 0
        %5539 = vmatpush1.bf16.msra.mxu0 %v5522
        %5540 = vmatprep.subr.bf16.mxu0 0
        %5541 = vmatpush1.bf16.msra.mxu0 %v5523
        %5542 = vmatprep.subr.bf16.mxu0 0
        %5543 = vmatpush1.bf16.msra.mxu0 %v5524
        %5544 = vmatprep.subr.bf16.mxu0 0
        %5545 = vmatpush1.bf16.msra.mxu0 %v5525
        %5546 = vmatprep.subr.bf16.mxu0 0
        %5547 = vmatpush1.bf16.msra.mxu0 %v5526
        %5548 = vmatprep.subr.bf16.mxu0 0
        %5549 = vmatpush1.bf16.msra.mxu0 %v5527
        %5550 = vmatprep.subr.bf16.mxu0 0
        %5551 = vmatpush1.bf16.msra.mxu0 %v5528
        %5552 = vmatprep.subr.bf16.mxu0 0
        %5553 = vmatpush1.bf16.msra.mxu0 %v5529
        %5554 = vmatprep.subr.bf16.mxu0 0
        %5555 = vmatpush1.bf16.msra.mxu0 0
        %5556 = vmatprep.subr.bf16.mxu0 0
        %5557 = vmatpush1.bf16.msra.mxu0 0
        %5558 = vmatprep.subr.bf16.mxu0 0
        %5559 = vmatpush1.bf16.msra.mxu0 0
        %5560 = vmatprep.subr.bf16.mxu0 0
        %5561 = vmatpush1.bf16.msra.mxu0 0
        %5562 = vmatprep.subr.bf16.mxu0 0
        %5563 = vmatpush1.bf16.msra.mxu0 0
        %5564 = vmatprep.subr.bf16.mxu0 0
        %5565 = vmatpush1.bf16.msra.mxu0 0
        %5566 = vmatprep.subr.bf16.mxu0 0
        %5567 = vmatpush1.bf16.msra.mxu0 0
        %5568 = vmatprep.subr.bf16.mxu0 0
        %5569 = vmatpush1.bf16.msra.mxu0 0
        %5570 = vmatprep.mubr.bf16.mxu0 0
        %5571 = vmatmul.mubr.bf16.gmra.mrb[0].mxu0 %v5466
        %v5572 = vpop.f32.mrb[0].mxu0
        %v5573 = vadd.f32 %v5488, %v5572
        %v5574 = vpop.f32.mrb[0].mxu0
        %v5575 = vpop.f32.mrb[0].mxu0
        %v5576 = vpop.f32.mrb[0].mxu0
        %5577 = vdwg.mxu0
        %v5578 = vadd.f32 %v4733, %v5573
        %v5579 = vld [vmem:[%s41] sm:$0x1]
        %v5580 = vld [vmem:[%s43] sm:$0x1]
        %5581 = vadd.xlane.f32.xlu0 %v5578
        %v5582 = vpop.xlane.xlu0 %5581
        %v5583 = vmul.f32 %v5582, %v2118
        %v5584 = vsub.f32 %v5578, %v5583
        %v5585 = vmul.f32 %v5584, %v5584
        %5586 = vadd.xlane.f32.xlu0 %v5585
        %v5587 = vpop.xlane.xlu0 %5586
        %v5588 = vmul.f32 %v5587, %v2118
        %v5589 = vadd.f32 %v5588, 1e-05
        %v5590 = vrsqrt.pop %v5589
        %v5591 = vmul.f32 %v5584, %v5590
        %v5593 = vlaneseq
        %v5594 = vshrl.u32 %v5593, 7
        %v5595 = vsub.s32 0, %v5594
        %v5596 = vrot.slane %v5579, %v5595
        %v5598 = vmul.f32 %v5591, %v5596
        %v5600 = vlaneseq
        %v5601 = vshrl.u32 %v5600, 7
        %v5602 = vsub.s32 0, %v5601
        %v5603 = vrot.slane %v5580, %v5602
        %v5605 = vadd.f32 %v5598, %v5603
        %v5606 = vpack.c.bf16 %v5605, %v5605
        %v5607 = vld [vmem:[#allocation26] sm:$0xff]
        %v5608 = vld [vmem:[#allocation26 + $0x8] sm:$0xff]
        %v5609 = vld [vmem:[#allocation26 + $0x10] sm:$0xff]
        %v5610 = vld [vmem:[#allocation26 + $0x18] sm:$0xff]
        %v5611 = vld [vmem:[#allocation26 + $0x20] sm:$0xff]
        %v5612 = vld [vmem:[#allocation26 + $0x28] sm:$0xff]
        %v5613 = vld [vmem:[#allocation26 + $0x30] sm:$0xff]
        %v5614 = vld [vmem:[#allocation26 + $0x38] sm:$0xff]
        %v5615 = vld [vmem:[#allocation26 + $0x40] sm:$0xff]
        %v5616 = vld [vmem:[#allocation26 + $0x48] sm:$0xff]
        %v5617 = vld [vmem:[#allocation26 + $0x50] sm:$0xff]
        %v5618 = vld [vmem:[#allocation26 + $0x58] sm:$0xff]
        %v5619 = vld [vmem:[#allocation26 + $0x60] sm:$0xff]
        %v5620 = vld [vmem:[#allocation26 + $0x68] sm:$0xff]
        %v5621 = vld [vmem:[#allocation26 + $0x70] sm:$0xff]
        %v5622 = vld [vmem:[#allocation26 + $0x78] sm:$0xff]
        %v5623 = vld [vmem:[#allocation26 + $0x80] sm:$0xff]
        %v5624 = vld [vmem:[#allocation26 + $0x88] sm:$0xff]
        %v5625 = vld [vmem:[#allocation26 + $0x90] sm:$0xff]
        %v5626 = vld [vmem:[#allocation26 + $0x98] sm:$0xff]
        %v5627 = vld [vmem:[#allocation26 + $0xa0] sm:$0xff]
        %v5628 = vld [vmem:[#allocation26 + $0xa8] sm:$0xff]
        %v5629 = vld [vmem:[#allocation26 + $0xb0] sm:$0xff]
        %v5630 = vld [vmem:[#allocation26 + $0xb8] sm:$0xff]
        %v5631 = vld [vmem:[#allocation26 + $0xc0] sm:$0xff]
        %v5632 = vld [vmem:[#allocation26 + $0xc8] sm:$0xff]
        %v5633 = vld [vmem:[#allocation26 + $0xd0] sm:$0xff]
        %v5634 = vld [vmem:[#allocation26 + $0xd8] sm:$0xff]
        %v5635 = vld [vmem:[#allocation26 + $0xe0] sm:$0xff]
        %v5636 = vld [vmem:[#allocation26 + $0xe8] sm:$0xff]
        %v5637 = vld [vmem:[#allocation26 + $0xf0] sm:$0xff]
        %v5638 = vld [vmem:[#allocation26 + $0xf8] sm:$0xff]
        %v5639 = vld [vmem:[#allocation26 + $0x100] sm:$0xff]
        %v5640 = vld [vmem:[#allocation26 + $0x108] sm:$0xff]
        %v5641 = vld [vmem:[#allocation26 + $0x110] sm:$0xff]
        %v5642 = vld [vmem:[#allocation26 + $0x118] sm:$0xff]
        %v5643 = vld [vmem:[#allocation26 + $0x120] sm:$0xff]
        %v5644 = vld [vmem:[#allocation26 + $0x128] sm:$0xff]
        %v5645 = vld [vmem:[#allocation26 + $0x130] sm:$0xff]
        %v5646 = vld [vmem:[#allocation26 + $0x138] sm:$0xff]
        %v5647 = vld [vmem:[#allocation26 + $0x140] sm:$0xff]
        %v5648 = vld [vmem:[#allocation26 + $0x148] sm:$0xff]
        %v5649 = vld [vmem:[#allocation26 + $0x150] sm:$0xff]
        %v5650 = vld [vmem:[#allocation26 + $0x158] sm:$0xff]
        %v5651 = vld [vmem:[#allocation26 + $0x160] sm:$0xff]
        %v5652 = vld [vmem:[#allocation26 + $0x168] sm:$0xff]
        %v5653 = vld [vmem:[#allocation26 + $0x170] sm:$0xff]
        %v5654 = vld [vmem:[#allocation26 + $0x178] sm:$0xff]
        %v5655 = vld [vmem:[#allocation26 + $0x180] sm:$0xff]
        %v5656 = vld [vmem:[#allocation26 + $0x188] sm:$0xff]
        %v5657 = vld [vmem:[#allocation26 + $0x190] sm:$0xff]
        %v5658 = vld [vmem:[#allocation26 + $0x198] sm:$0xff]
        %v5659 = vld [vmem:[#allocation26 + $0x1a0] sm:$0xff]
        %v5660 = vld [vmem:[#allocation26 + $0x1a8] sm:$0xff]
        %v5661 = vld [vmem:[#allocation26 + $0x1b0] sm:$0xff]
        %v5662 = vld [vmem:[#allocation26 + $0x1b8] sm:$0xff]
        %v5663 = vld [vmem:[#allocation26 + $0x1c0] sm:$0xff]
        %v5664 = vld [vmem:[#allocation26 + $0x1c8] sm:$0xff]
        %v5665 = vld [vmem:[#allocation26 + $0x1d0] sm:$0xff]
        %v5666 = vld [vmem:[#allocation26 + $0x1d8] sm:$0xff]
        %v5667 = vld [vmem:[#allocation26 + $0x1e0] sm:$0xff]
        %v5668 = vld [vmem:[#allocation26 + $0x1e8] sm:$0xff]
        %v5669 = vld [vmem:[#allocation26 + $0x1f0] sm:$0xff]
        %v5670 = vld [vmem:[#allocation26 + $0x1f8] sm:$0xff]
        %v5671 = vld [vmem:[#allocation26 + $0x200] sm:$0xff]
        %v5672 = vld [vmem:[#allocation26 + $0x208] sm:$0xff]
        %v5673 = vld [vmem:[#allocation26 + $0x210] sm:$0xff]
        %v5674 = vld [vmem:[#allocation26 + $0x218] sm:$0xff]
        %v5675 = vld [vmem:[#allocation26 + $0x220] sm:$0xff]
        %v5676 = vld [vmem:[#allocation26 + $0x228] sm:$0xff]
        %v5677 = vld [vmem:[#allocation26 + $0x230] sm:$0xff]
        %v5678 = vld [vmem:[#allocation26 + $0x238] sm:$0xff]
        %v5679 = vld [vmem:[#allocation26 + $0x240] sm:$0xff]
        %v5680 = vld [vmem:[#allocation26 + $0x248] sm:$0xff]
        %v5681 = vld [vmem:[#allocation26 + $0x250] sm:$0xff]
        %v5682 = vld [vmem:[#allocation26 + $0x258] sm:$0xff]
        %v5683 = vld [vmem:[#allocation26 + $0x260] sm:$0xff]
        %v5684 = vld [vmem:[#allocation26 + $0x268] sm:$0xff]
        %v5685 = vld [vmem:[#allocation26 + $0x270] sm:$0xff]
        %v5686 = vld [vmem:[#allocation26 + $0x278] sm:$0xff]
        %v5687 = vld [vmem:[#allocation26 + $0x280] sm:$0xff]
        %v5688 = vld [vmem:[#allocation26 + $0x288] sm:$0xff]
        %v5689 = vld [vmem:[#allocation26 + $0x290] sm:$0xff]
        %v5690 = vld [vmem:[#allocation26 + $0x298] sm:$0xff]
        %v5691 = vld [vmem:[#allocation26 + $0x2a0] sm:$0xff]
        %v5692 = vld [vmem:[#allocation26 + $0x2a8] sm:$0xff]
        %v5693 = vld [vmem:[#allocation26 + $0x2b0] sm:$0xff]
        %v5694 = vld [vmem:[#allocation26 + $0x2b8] sm:$0xff]
        %v5695 = vld [vmem:[#allocation26 + $0x2c0] sm:$0xff]
        %v5696 = vld [vmem:[#allocation26 + $0x2c8] sm:$0xff]
        %v5697 = vld [vmem:[#allocation26 + $0x2d0] sm:$0xff]
        %v5698 = vld [vmem:[#allocation26 + $0x2d8] sm:$0xff]
        %v5699 = vld [vmem:[#allocation26 + $0x2e0] sm:$0xff]
        %v5700 = vld [vmem:[#allocation26 + $0x2e8] sm:$0xff]
        %v5701 = vld [vmem:[#allocation26 + $0x2f0] sm:$0xff]
        %v5702 = vld [vmem:[#allocation26 + $0x2f8] sm:$0xff]
        %v5703 = vld [vmem:[#allocation26 + $0x300] sm:$0xff]
        %v5704 = vld [vmem:[#allocation26 + $0x308] sm:$0xff]
        %v5705 = vld [vmem:[#allocation26 + $0x310] sm:$0xff]
        %v5706 = vld [vmem:[#allocation26 + $0x318] sm:$0xff]
        %v5707 = vld [vmem:[#allocation26 + $0x320] sm:$0xff]
        %v5708 = vld [vmem:[#allocation26 + $0x328] sm:$0xff]
        %v5709 = vld [vmem:[#allocation26 + $0x330] sm:$0xff]
        %v5710 = vld [vmem:[#allocation26 + $0x338] sm:$0xff]
        %v5711 = vld [vmem:[#allocation26 + $0x340] sm:$0xff]
        %v5712 = vld [vmem:[#allocation26 + $0x348] sm:$0xff]
        %v5713 = vld [vmem:[#allocation26 + $0x350] sm:$0xff]
        %v5714 = vld [vmem:[#allocation26 + $0x358] sm:$0xff]
        %v5715 = vld [vmem:[#allocation26 + $0x360] sm:$0xff]
        %v5716 = vld [vmem:[#allocation26 + $0x368] sm:$0xff]
        %v5717 = vld [vmem:[#allocation26 + $0x370] sm:$0xff]
        %v5718 = vld [vmem:[#allocation26 + $0x378] sm:$0xff]
        %v5719 = vld [vmem:[#allocation26 + $0x380] sm:$0xff]
        %v5720 = vld [vmem:[#allocation26 + $0x388] sm:$0xff]
        %v5721 = vld [vmem:[#allocation26 + $0x390] sm:$0xff]
        %v5722 = vld [vmem:[#allocation26 + $0x398] sm:$0xff]
        %v5723 = vld [vmem:[#allocation26 + $0x3a0] sm:$0xff]
        %v5724 = vld [vmem:[#allocation26 + $0x3a8] sm:$0xff]
        %v5725 = vld [vmem:[#allocation26 + $0x3b0] sm:$0xff]
        %v5726 = vld [vmem:[#allocation26 + $0x3b8] sm:$0xff]
        %v5727 = vld [vmem:[#allocation26 + $0x3c0] sm:$0xff]
        %v5728 = vld [vmem:[#allocation26 + $0x3c8] sm:$0xff]
        %v5729 = vld [vmem:[#allocation26 + $0x3d0] sm:$0xff]
        %v5730 = vld [vmem:[#allocation26 + $0x3d8] sm:$0xff]
        %v5731 = vld [vmem:[#allocation26 + $0x3e0] sm:$0xff]
        %v5732 = vld [vmem:[#allocation26 + $0x3e8] sm:$0xff]
        %v5733 = vld [vmem:[#allocation26 + $0x3f0] sm:$0xff]
        %v5734 = vld [vmem:[#allocation26 + $0x3f8] sm:$0xff]
        %v5735 = vld [vmem:[#allocation28] sm:$0xff]
        %v5736 = vld [vmem:[#allocation28 + $0x8] sm:$0xff]
        %v5739 = vlaneseq
        %v5740 = vshrl.u32 %v5739, 7
        %v5741 = vsub.s32 0, %v5740
        %v5742 = vrot.slane %v5735, %v5741
        %v5743 = vlaneseq
        %v5744 = vshrl.u32 %v5743, 7
        %v5745 = vsub.s32 1, %v5744
        %v5746 = vrot.slane %v5735, %v5745
        %v5747 = vlaneseq
        %v5748 = vshrl.u32 %v5747, 7
        %v5749 = vsub.s32 2, %v5748
        %v5750 = vrot.slane %v5735, %v5749
        %v5751 = vlaneseq
        %v5752 = vshrl.u32 %v5751, 7
        %v5753 = vsub.s32 3, %v5752
        %v5754 = vrot.slane %v5735, %v5753
        %v5755 = vlaneseq
        %v5756 = vshrl.u32 %v5755, 7
        %v5757 = vsub.s32 4, %v5756
        %v5758 = vrot.slane %v5735, %v5757
        %v5759 = vlaneseq
        %v5760 = vshrl.u32 %v5759, 7
        %v5761 = vsub.s32 5, %v5760
        %v5762 = vrot.slane %v5735, %v5761
        %v5763 = vlaneseq
        %v5764 = vshrl.u32 %v5763, 7
        %v5765 = vsub.s32 6, %v5764
        %v5766 = vrot.slane %v5735, %v5765
        %v5767 = vlaneseq
        %v5768 = vshrl.u32 %v5767, 7
        %v5769 = vsub.s32 7, %v5768
        %v5770 = vrot.slane %v5735, %v5769
        %v5771 = vlaneseq
        %v5772 = vshrl.u32 %v5771, 7
        %v5773 = vsub.s32 0, %v5772
        %v5774 = vrot.slane %v5736, %v5773
        %v5775 = vlaneseq
        %v5776 = vshrl.u32 %v5775, 7
        %v5777 = vsub.s32 1, %v5776
        %v5778 = vrot.slane %v5736, %v5777
        %v5779 = vlaneseq
        %v5780 = vshrl.u32 %v5779, 7
        %v5781 = vsub.s32 2, %v5780
        %v5782 = vrot.slane %v5736, %v5781
        %v5783 = vlaneseq
        %v5784 = vshrl.u32 %v5783, 7
        %v5785 = vsub.s32 3, %v5784
        %v5786 = vrot.slane %v5736, %v5785
        %v5787 = vlaneseq
        %v5788 = vshrl.u32 %v5787, 7
        %v5789 = vsub.s32 4, %v5788
        %v5790 = vrot.slane %v5736, %v5789
        %v5791 = vlaneseq
        %v5792 = vshrl.u32 %v5791, 7
        %v5793 = vsub.s32 5, %v5792
        %v5794 = vrot.slane %v5736, %v5793
        %v5795 = vlaneseq
        %v5796 = vshrl.u32 %v5795, 7
        %v5797 = vsub.s32 6, %v5796
        %v5798 = vrot.slane %v5736, %v5797
        %v5799 = vlaneseq
        %v5800 = vshrl.u32 %v5799, 7
        %v5801 = vsub.s32 7, %v5800
        %v5802 = vrot.slane %v5736, %v5801
        %v5947 = vunpack.c.l.b16 %v5607
        %v5948 = vunpack.c.h.b16 %v5607
        %v5949 = vunpack.c.l.b16 %v5608
        %v5950 = vunpack.c.h.b16 %v5608
        %v5951 = vunpack.c.l.b16 %v5609
        %v5952 = vunpack.c.h.b16 %v5609
        %v5953 = vunpack.c.l.b16 %v5610
        %v5954 = vunpack.c.h.b16 %v5610
        %v5955 = vunpack.c.l.b16 %v5611
        %v5956 = vunpack.c.h.b16 %v5611
        %v5957 = vunpack.c.l.b16 %v5612
        %v5958 = vunpack.c.h.b16 %v5612
        %v5959 = vunpack.c.l.b16 %v5613
        %v5960 = vunpack.c.h.b16 %v5613
        %v5961 = vunpack.c.l.b16 %v5614
        %v5962 = vunpack.c.h.b16 %v5614
        %v5963 = vunpack.c.l.b16 %v5615
        %v5964 = vunpack.c.h.b16 %v5615
        %v5965 = vunpack.c.l.b16 %v5616
        %v5966 = vunpack.c.h.b16 %v5616
        %v5967 = vunpack.c.l.b16 %v5617
        %v5968 = vunpack.c.h.b16 %v5617
        %v5969 = vunpack.c.l.b16 %v5618
        %v5970 = vunpack.c.h.b16 %v5618
        %v5971 = vunpack.c.l.b16 %v5619
        %v5972 = vunpack.c.h.b16 %v5619
        %v5973 = vunpack.c.l.b16 %v5620
        %v5974 = vunpack.c.h.b16 %v5620
        %v5975 = vunpack.c.l.b16 %v5621
        %v5976 = vunpack.c.h.b16 %v5621
        %v5977 = vunpack.c.l.b16 %v5622
        %v5978 = vunpack.c.h.b16 %v5622
        %v5979 = vunpack.c.l.b16 %v5623
        %v5980 = vunpack.c.h.b16 %v5623
        %v5981 = vunpack.c.l.b16 %v5624
        %v5982 = vunpack.c.h.b16 %v5624
        %v5983 = vunpack.c.l.b16 %v5625
        %v5984 = vunpack.c.h.b16 %v5625
        %v5985 = vunpack.c.l.b16 %v5626
        %v5986 = vunpack.c.h.b16 %v5626
        %v5987 = vunpack.c.l.b16 %v5627
        %v5988 = vunpack.c.h.b16 %v5627
        %v5989 = vunpack.c.l.b16 %v5628
        %v5990 = vunpack.c.h.b16 %v5628
        %v5991 = vunpack.c.l.b16 %v5629
        %v5992 = vunpack.c.h.b16 %v5629
        %v5993 = vunpack.c.l.b16 %v5630
        %v5994 = vunpack.c.h.b16 %v5630
        %v5995 = vunpack.c.l.b16 %v5631
        %v5996 = vunpack.c.h.b16 %v5631
        %v5997 = vunpack.c.l.b16 %v5632
        %v5998 = vunpack.c.h.b16 %v5632
        %v5999 = vunpack.c.l.b16 %v5633
        %v6000 = vunpack.c.h.b16 %v5633
        %v6001 = vunpack.c.l.b16 %v5634
        %v6002 = vunpack.c.h.b16 %v5634
        %v6003 = vunpack.c.l.b16 %v5635
        %v6004 = vunpack.c.h.b16 %v5635
        %v6005 = vunpack.c.l.b16 %v5636
        %v6006 = vunpack.c.h.b16 %v5636
        %v6007 = vunpack.c.l.b16 %v5637
        %v6008 = vunpack.c.h.b16 %v5637
        %v6009 = vunpack.c.l.b16 %v5638
        %v6010 = vunpack.c.h.b16 %v5638
        %v6011 = vunpack.c.l.b16 %v5639
        %v6012 = vunpack.c.h.b16 %v5639
        %v6013 = vunpack.c.l.b16 %v5640
        %v6014 = vunpack.c.h.b16 %v5640
        %v6015 = vunpack.c.l.b16 %v5641
        %v6016 = vunpack.c.h.b16 %v5641
        %v6017 = vunpack.c.l.b16 %v5642
        %v6018 = vunpack.c.h.b16 %v5642
        %v6019 = vunpack.c.l.b16 %v5643
        %v6020 = vunpack.c.h.b16 %v5643
        %v6021 = vunpack.c.l.b16 %v5644
        %v6022 = vunpack.c.h.b16 %v5644
        %v6023 = vunpack.c.l.b16 %v5645
        %v6024 = vunpack.c.h.b16 %v5645
        %v6025 = vunpack.c.l.b16 %v5646
        %v6026 = vunpack.c.h.b16 %v5646
        %v6027 = vunpack.c.l.b16 %v5647
        %v6028 = vunpack.c.h.b16 %v5647
        %v6029 = vunpack.c.l.b16 %v5648
        %v6030 = vunpack.c.h.b16 %v5648
        %v6031 = vunpack.c.l.b16 %v5649
        %v6032 = vunpack.c.h.b16 %v5649
        %v6033 = vunpack.c.l.b16 %v5650
        %v6034 = vunpack.c.h.b16 %v5650
        %v6035 = vunpack.c.l.b16 %v5651
        %v6036 = vunpack.c.h.b16 %v5651
        %v6037 = vunpack.c.l.b16 %v5652
        %v6038 = vunpack.c.h.b16 %v5652
        %v6039 = vunpack.c.l.b16 %v5653
        %v6040 = vunpack.c.h.b16 %v5653
        %v6041 = vunpack.c.l.b16 %v5654
        %v6042 = vunpack.c.h.b16 %v5654
        %v6043 = vunpack.c.l.b16 %v5655
        %v6044 = vunpack.c.h.b16 %v5655
        %v6045 = vunpack.c.l.b16 %v5656
        %v6046 = vunpack.c.h.b16 %v5656
        %v6047 = vunpack.c.l.b16 %v5657
        %v6048 = vunpack.c.h.b16 %v5657
        %v6049 = vunpack.c.l.b16 %v5658
        %v6050 = vunpack.c.h.b16 %v5658
        %v6051 = vunpack.c.l.b16 %v5659
        %v6052 = vunpack.c.h.b16 %v5659
        %v6053 = vunpack.c.l.b16 %v5660
        %v6054 = vunpack.c.h.b16 %v5660
        %v6055 = vunpack.c.l.b16 %v5661
        %v6056 = vunpack.c.h.b16 %v5661
        %v6057 = vunpack.c.l.b16 %v5662
        %v6058 = vunpack.c.h.b16 %v5662
        %v6059 = vunpack.c.l.b16 %v5663
        %v6060 = vunpack.c.h.b16 %v5663
        %v6061 = vunpack.c.l.b16 %v5664
        %v6062 = vunpack.c.h.b16 %v5664
        %v6063 = vunpack.c.l.b16 %v5665
        %v6064 = vunpack.c.h.b16 %v5665
        %v6065 = vunpack.c.l.b16 %v5666
        %v6066 = vunpack.c.h.b16 %v5666
        %v6067 = vunpack.c.l.b16 %v5667
        %v6068 = vunpack.c.h.b16 %v5667
        %v6069 = vunpack.c.l.b16 %v5668
        %v6070 = vunpack.c.h.b16 %v5668
        %v6071 = vunpack.c.l.b16 %v5669
        %v6072 = vunpack.c.h.b16 %v5669
        %v6073 = vunpack.c.l.b16 %v5670
        %v6074 = vunpack.c.h.b16 %v5670
        %v6075 = vunpack.c.l.b16 %v5671
        %v6076 = vunpack.c.h.b16 %v5671
        %v6077 = vunpack.c.l.b16 %v5672
        %v6078 = vunpack.c.h.b16 %v5672
        %v6079 = vunpack.c.l.b16 %v5673
        %v6080 = vunpack.c.h.b16 %v5673
        %v6081 = vunpack.c.l.b16 %v5674
        %v6082 = vunpack.c.h.b16 %v5674
        %v6083 = vunpack.c.l.b16 %v5675
        %v6084 = vunpack.c.h.b16 %v5675
        %v6085 = vunpack.c.l.b16 %v5676
        %v6086 = vunpack.c.h.b16 %v5676
        %v6087 = vunpack.c.l.b16 %v5677
        %v6088 = vunpack.c.h.b16 %v5677
        %v6089 = vunpack.c.l.b16 %v5678
        %v6090 = vunpack.c.h.b16 %v5678
        %v6091 = vunpack.c.l.b16 %v5679
        %v6092 = vunpack.c.h.b16 %v5679
        %v6093 = vunpack.c.l.b16 %v5680
        %v6094 = vunpack.c.h.b16 %v5680
        %v6095 = vunpack.c.l.b16 %v5681
        %v6096 = vunpack.c.h.b16 %v5681
        %v6097 = vunpack.c.l.b16 %v5682
        %v6098 = vunpack.c.h.b16 %v5682
        %v6099 = vunpack.c.l.b16 %v5683
        %v6100 = vunpack.c.h.b16 %v5683
        %v6101 = vunpack.c.l.b16 %v5684
        %v6102 = vunpack.c.h.b16 %v5684
        %v6103 = vunpack.c.l.b16 %v5685
        %v6104 = vunpack.c.h.b16 %v5685
        %v6105 = vunpack.c.l.b16 %v5686
        %v6106 = vunpack.c.h.b16 %v5686
        %v6107 = vunpack.c.l.b16 %v5687
        %v6108 = vunpack.c.h.b16 %v5687
        %v6109 = vunpack.c.l.b16 %v5688
        %v6110 = vunpack.c.h.b16 %v5688
        %v6111 = vunpack.c.l.b16 %v5689
        %v6112 = vunpack.c.h.b16 %v5689
        %v6113 = vunpack.c.l.b16 %v5690
        %v6114 = vunpack.c.h.b16 %v5690
        %v6115 = vunpack.c.l.b16 %v5691
        %v6116 = vunpack.c.h.b16 %v5691
        %v6117 = vunpack.c.l.b16 %v5692
        %v6118 = vunpack.c.h.b16 %v5692
        %v6119 = vunpack.c.l.b16 %v5693
        %v6120 = vunpack.c.h.b16 %v5693
        %v6121 = vunpack.c.l.b16 %v5694
        %v6122 = vunpack.c.h.b16 %v5694
        %v6123 = vunpack.c.l.b16 %v5695
        %v6124 = vunpack.c.h.b16 %v5695
        %v6125 = vunpack.c.l.b16 %v5696
        %v6126 = vunpack.c.h.b16 %v5696
        %v6127 = vunpack.c.l.b16 %v5697
        %v6128 = vunpack.c.h.b16 %v5697
        %v6129 = vunpack.c.l.b16 %v5698
        %v6130 = vunpack.c.h.b16 %v5698
        %v6131 = vunpack.c.l.b16 %v5699
        %v6132 = vunpack.c.h.b16 %v5699
        %v6133 = vunpack.c.l.b16 %v5700
        %v6134 = vunpack.c.h.b16 %v5700
        %v6135 = vunpack.c.l.b16 %v5701
        %v6136 = vunpack.c.h.b16 %v5701
        %v6137 = vunpack.c.l.b16 %v5702
        %v6138 = vunpack.c.h.b16 %v5702
        %v6139 = vunpack.c.l.b16 %v5703
        %v6140 = vunpack.c.h.b16 %v5703
        %v6141 = vunpack.c.l.b16 %v5704
        %v6142 = vunpack.c.h.b16 %v5704
        %v6143 = vunpack.c.l.b16 %v5705
        %v6144 = vunpack.c.h.b16 %v5705
        %v6145 = vunpack.c.l.b16 %v5706
        %v6146 = vunpack.c.h.b16 %v5706
        %v6147 = vunpack.c.l.b16 %v5707
        %v6148 = vunpack.c.h.b16 %v5707
        %v6149 = vunpack.c.l.b16 %v5708
        %v6150 = vunpack.c.h.b16 %v5708
        %v6151 = vunpack.c.l.b16 %v5709
        %v6152 = vunpack.c.h.b16 %v5709
        %v6153 = vunpack.c.l.b16 %v5710
        %v6154 = vunpack.c.h.b16 %v5710
        %v6155 = vunpack.c.l.b16 %v5711
        %v6156 = vunpack.c.h.b16 %v5711
        %v6157 = vunpack.c.l.b16 %v5712
        %v6158 = vunpack.c.h.b16 %v5712
        %v6159 = vunpack.c.l.b16 %v5713
        %v6160 = vunpack.c.h.b16 %v5713
        %v6161 = vunpack.c.l.b16 %v5714
        %v6162 = vunpack.c.h.b16 %v5714
        %v6163 = vunpack.c.l.b16 %v5715
        %v6164 = vunpack.c.h.b16 %v5715
        %v6165 = vunpack.c.l.b16 %v5716
        %v6166 = vunpack.c.h.b16 %v5716
        %v6167 = vunpack.c.l.b16 %v5717
        %v6168 = vunpack.c.h.b16 %v5717
        %v6169 = vunpack.c.l.b16 %v5718
        %v6170 = vunpack.c.h.b16 %v5718
        %v6171 = vunpack.c.l.b16 %v5719
        %v6172 = vunpack.c.h.b16 %v5719
        %v6173 = vunpack.c.l.b16 %v5720
        %v6174 = vunpack.c.h.b16 %v5720
        %v6175 = vunpack.c.l.b16 %v5721
        %v6176 = vunpack.c.h.b16 %v5721
        %v6177 = vunpack.c.l.b16 %v5722
        %v6178 = vunpack.c.h.b16 %v5722
        %v6179 = vunpack.c.l.b16 %v5723
        %v6180 = vunpack.c.h.b16 %v5723
        %v6181 = vunpack.c.l.b16 %v5724
        %v6182 = vunpack.c.h.b16 %v5724
        %v6183 = vunpack.c.l.b16 %v5725
        %v6184 = vunpack.c.h.b16 %v5725
        %v6185 = vunpack.c.l.b16 %v5726
        %v6186 = vunpack.c.h.b16 %v5726
        %v6187 = vunpack.c.l.b16 %v5727
        %v6188 = vunpack.c.h.b16 %v5727
        %v6189 = vunpack.c.l.b16 %v5728
        %v6190 = vunpack.c.h.b16 %v5728
        %v6191 = vunpack.c.l.b16 %v5729
        %v6192 = vunpack.c.h.b16 %v5729
        %v6193 = vunpack.c.l.b16 %v5730
        %v6194 = vunpack.c.h.b16 %v5730
        %v6195 = vunpack.c.l.b16 %v5731
        %v6196 = vunpack.c.h.b16 %v5731
        %v6197 = vunpack.c.l.b16 %v5732
        %v6198 = vunpack.c.h.b16 %v5732
        %v6199 = vunpack.c.l.b16 %v5733
        %v6200 = vunpack.c.h.b16 %v5733
        %v6201 = vunpack.c.l.b16 %v5734
        %v6202 = vunpack.c.h.b16 %v5734
        %v6203 = vpack.c.b16 %v5963, %v5947
        %v6204 = vpack.c.b16 %v5964, %v5948
        %v6205 = vpack.c.b16 %v5965, %v5949
        %v6206 = vpack.c.b16 %v5966, %v5950
        %v6207 = vpack.c.b16 %v5967, %v5951
        %v6208 = vpack.c.b16 %v5968, %v5952
        %v6209 = vpack.c.b16 %v5969, %v5953
        %v6210 = vpack.c.b16 %v5970, %v5954
        %v6211 = vpack.c.b16 %v5971, %v5955
        %v6212 = vpack.c.b16 %v5972, %v5956
        %v6213 = vpack.c.b16 %v5973, %v5957
        %v6214 = vpack.c.b16 %v5974, %v5958
        %v6215 = vpack.c.b16 %v5975, %v5959
        %v6216 = vpack.c.b16 %v5976, %v5960
        %v6217 = vpack.c.b16 %v5977, %v5961
        %v6218 = vpack.c.b16 %v5978, %v5962
        %v6219 = vpack.c.b16 %v5995, %v5979
        %v6220 = vpack.c.b16 %v5996, %v5980
        %v6221 = vpack.c.b16 %v5997, %v5981
        %v6222 = vpack.c.b16 %v5998, %v5982
        %v6223 = vpack.c.b16 %v5999, %v5983
        %v6224 = vpack.c.b16 %v6000, %v5984
        %v6225 = vpack.c.b16 %v6001, %v5985
        %v6226 = vpack.c.b16 %v6002, %v5986
        %v6227 = vpack.c.b16 %v6003, %v5987
        %v6228 = vpack.c.b16 %v6004, %v5988
        %v6229 = vpack.c.b16 %v6005, %v5989
        %v6230 = vpack.c.b16 %v6006, %v5990
        %v6231 = vpack.c.b16 %v6007, %v5991
        %v6232 = vpack.c.b16 %v6008, %v5992
        %v6233 = vpack.c.b16 %v6009, %v5993
        %v6234 = vpack.c.b16 %v6010, %v5994
        %v6235 = vpack.c.b16 %v6027, %v6011
        %v6236 = vpack.c.b16 %v6028, %v6012
        %v6237 = vpack.c.b16 %v6029, %v6013
        %v6238 = vpack.c.b16 %v6030, %v6014
        %v6239 = vpack.c.b16 %v6031, %v6015
        %v6240 = vpack.c.b16 %v6032, %v6016
        %v6241 = vpack.c.b16 %v6033, %v6017
        %v6242 = vpack.c.b16 %v6034, %v6018
        %v6243 = vpack.c.b16 %v6035, %v6019
        %v6244 = vpack.c.b16 %v6036, %v6020
        %v6245 = vpack.c.b16 %v6037, %v6021
        %v6246 = vpack.c.b16 %v6038, %v6022
        %v6247 = vpack.c.b16 %v6039, %v6023
        %v6248 = vpack.c.b16 %v6040, %v6024
        %v6249 = vpack.c.b16 %v6041, %v6025
        %v6250 = vpack.c.b16 %v6042, %v6026
        %v6251 = vpack.c.b16 %v6059, %v6043
        %v6252 = vpack.c.b16 %v6060, %v6044
        %v6253 = vpack.c.b16 %v6061, %v6045
        %v6254 = vpack.c.b16 %v6062, %v6046
        %v6255 = vpack.c.b16 %v6063, %v6047
        %v6256 = vpack.c.b16 %v6064, %v6048
        %v6257 = vpack.c.b16 %v6065, %v6049
        %v6258 = vpack.c.b16 %v6066, %v6050
        %v6259 = vpack.c.b16 %v6067, %v6051
        %v6260 = vpack.c.b16 %v6068, %v6052
        %v6261 = vpack.c.b16 %v6069, %v6053
        %v6262 = vpack.c.b16 %v6070, %v6054
        %v6263 = vpack.c.b16 %v6071, %v6055
        %v6264 = vpack.c.b16 %v6072, %v6056
        %v6265 = vpack.c.b16 %v6073, %v6057
        %v6266 = vpack.c.b16 %v6074, %v6058
        %v6267 = vpack.c.b16 %v6091, %v6075
        %v6268 = vpack.c.b16 %v6092, %v6076
        %v6269 = vpack.c.b16 %v6093, %v6077
        %v6270 = vpack.c.b16 %v6094, %v6078
        %v6271 = vpack.c.b16 %v6095, %v6079
        %v6272 = vpack.c.b16 %v6096, %v6080
        %v6273 = vpack.c.b16 %v6097, %v6081
        %v6274 = vpack.c.b16 %v6098, %v6082
        %v6275 = vpack.c.b16 %v6099, %v6083
        %v6276 = vpack.c.b16 %v6100, %v6084
        %v6277 = vpack.c.b16 %v6101, %v6085
        %v6278 = vpack.c.b16 %v6102, %v6086
        %v6279 = vpack.c.b16 %v6103, %v6087
        %v6280 = vpack.c.b16 %v6104, %v6088
        %v6281 = vpack.c.b16 %v6105, %v6089
        %v6282 = vpack.c.b16 %v6106, %v6090
        %v6283 = vpack.c.b16 %v6123, %v6107
        %v6284 = vpack.c.b16 %v6124, %v6108
        %v6285 = vpack.c.b16 %v6125, %v6109
        %v6286 = vpack.c.b16 %v6126, %v6110
        %v6287 = vpack.c.b16 %v6127, %v6111
        %v6288 = vpack.c.b16 %v6128, %v6112
        %v6289 = vpack.c.b16 %v6129, %v6113
        %v6290 = vpack.c.b16 %v6130, %v6114
        %v6291 = vpack.c.b16 %v6131, %v6115
        %v6292 = vpack.c.b16 %v6132, %v6116
        %v6293 = vpack.c.b16 %v6133, %v6117
        %v6294 = vpack.c.b16 %v6134, %v6118
        %v6295 = vpack.c.b16 %v6135, %v6119
        %v6296 = vpack.c.b16 %v6136, %v6120
        %v6297 = vpack.c.b16 %v6137, %v6121
        %v6298 = vpack.c.b16 %v6138, %v6122
        %v6299 = vpack.c.b16 %v6155, %v6139
        %v6300 = vpack.c.b16 %v6156, %v6140
        %v6301 = vpack.c.b16 %v6157, %v6141
        %v6302 = vpack.c.b16 %v6158, %v6142
        %v6303 = vpack.c.b16 %v6159, %v6143
        %v6304 = vpack.c.b16 %v6160, %v6144
        %v6305 = vpack.c.b16 %v6161, %v6145
        %v6306 = vpack.c.b16 %v6162, %v6146
        %v6307 = vpack.c.b16 %v6163, %v6147
        %v6308 = vpack.c.b16 %v6164, %v6148
        %v6309 = vpack.c.b16 %v6165, %v6149
        %v6310 = vpack.c.b16 %v6166, %v6150
        %v6311 = vpack.c.b16 %v6167, %v6151
        %v6312 = vpack.c.b16 %v6168, %v6152
        %v6313 = vpack.c.b16 %v6169, %v6153
        %v6314 = vpack.c.b16 %v6170, %v6154
        %v6315 = vpack.c.b16 %v6187, %v6171
        %v6316 = vpack.c.b16 %v6188, %v6172
        %v6317 = vpack.c.b16 %v6189, %v6173
        %v6318 = vpack.c.b16 %v6190, %v6174
        %v6319 = vpack.c.b16 %v6191, %v6175
        %v6320 = vpack.c.b16 %v6192, %v6176
        %v6321 = vpack.c.b16 %v6193, %v6177
        %v6322 = vpack.c.b16 %v6194, %v6178
        %v6323 = vpack.c.b16 %v6195, %v6179
        %v6324 = vpack.c.b16 %v6196, %v6180
        %v6325 = vpack.c.b16 %v6197, %v6181
        %v6326 = vpack.c.b16 %v6198, %v6182
        %v6327 = vpack.c.b16 %v6199, %v6183
        %v6328 = vpack.c.b16 %v6200, %v6184
        %v6329 = vpack.c.b16 %v6201, %v6185
        %v6330 = vpack.c.b16 %v6202, %v6186
        %6459 = vmatprep.subr.bf16.mxu0 %v6204
        %6460 = vmatpush1.bf16.msra.mxu0 %v6203
        %6461 = vmatprep.subr.bf16.mxu0 %v6220
        %6462 = vmatpush1.bf16.msra.mxu0 %v6219
        %6463 = vmatprep.subr.bf16.mxu0 %v6236
        %6464 = vmatpush1.bf16.msra.mxu0 %v6235
        %6465 = vmatprep.subr.bf16.mxu0 %v6252
        %6466 = vmatpush1.bf16.msra.mxu0 %v6251
        %6467 = vmatprep.subr.bf16.mxu0 %v6268
        %6468 = vmatpush1.bf16.msra.mxu0 %v6267
        %6469 = vmatprep.subr.bf16.mxu0 %v6284
        %6470 = vmatpush1.bf16.msra.mxu0 %v6283
        %6471 = vmatprep.subr.bf16.mxu0 %v6300
        %6472 = vmatpush1.bf16.msra.mxu0 %v6299
        %6473 = vmatprep.subr.bf16.mxu0 %v6316
        %6474 = vmatpush1.bf16.msra.mxu0 %v6315
        %6475 = vmatprep.subr.bf16.mxu0 0
        %6476 = vmatpush1.bf16.msra.mxu0 0
        %6477 = vmatprep.subr.bf16.mxu0 0
        %6478 = vmatpush1.bf16.msra.mxu0 0
        %6479 = vmatprep.subr.bf16.mxu0 0
        %6480 = vmatpush1.bf16.msra.mxu0 0
        %6481 = vmatprep.subr.bf16.mxu0 0
        %6482 = vmatpush1.bf16.msra.mxu0 0
        %6483 = vmatprep.subr.bf16.mxu0 0
        %6484 = vmatpush1.bf16.msra.mxu0 0
        %6485 = vmatprep.subr.bf16.mxu0 0
        %6486 = vmatpush1.bf16.msra.mxu0 0
        %6487 = vmatprep.subr.bf16.mxu0 0
        %6488 = vmatpush1.bf16.msra.mxu0 0
        %6489 = vmatprep.subr.bf16.mxu0 0
        %6490 = vmatpush1.bf16.msra.mxu0 0
        %6491 = vmatprep.mubr.bf16.mxu0 0
        %6492 = vmatmul.mubr.bf16.gmra.mrb[0].mxu0 %v5606
        %v6493 = vpop.f32.mrb[0].mxu0
        %v6494 = vadd.f32 %v5742, %v6493
        %v6495 = vpop.f32.mrb[0].mxu0
        %v6496 = vadd.f32 %v5746, %v6495
        %v6497 = vpop.f32.mrb[0].mxu0
        %v6498 = vpop.f32.mrb[0].mxu0
        %6499 = vdwg.mxu0
        %6500 = vmatprep.subr.bf16.mxu0 %v6206
        %6501 = vmatpush1.bf16.msra.mxu0 %v6205
        %6502 = vmatprep.subr.bf16.mxu0 %v6222
        %6503 = vmatpush1.bf16.msra.mxu0 %v6221
        %6504 = vmatprep.subr.bf16.mxu0 %v6238
        %6505 = vmatpush1.bf16.msra.mxu0 %v6237
        %6506 = vmatprep.subr.bf16.mxu0 %v6254
        %6507 = vmatpush1.bf16.msra.mxu0 %v6253
        %6508 = vmatprep.subr.bf16.mxu0 %v6270
        %6509 = vmatpush1.bf16.msra.mxu0 %v6269
        %6510 = vmatprep.subr.bf16.mxu0 %v6286
        %6511 = vmatpush1.bf16.msra.mxu0 %v6285
        %6512 = vmatprep.subr.bf16.mxu0 %v6302
        %6513 = vmatpush1.bf16.msra.mxu0 %v6301
        %6514 = vmatprep.subr.bf16.mxu0 %v6318
        %6515 = vmatpush1.bf16.msra.mxu0 %v6317
        %6516 = vmatprep.subr.bf16.mxu0 0
        %6517 = vmatpush1.bf16.msra.mxu0 0
        %6518 = vmatprep.subr.bf16.mxu0 0
        %6519 = vmatpush1.bf16.msra.mxu0 0
        %6520 = vmatprep.subr.bf16.mxu0 0
        %6521 = vmatpush1.bf16.msra.mxu0 0
        %6522 = vmatprep.subr.bf16.mxu0 0
        %6523 = vmatpush1.bf16.msra.mxu0 0
        %6524 = vmatprep.subr.bf16.mxu0 0
        %6525 = vmatpush1.bf16.msra.mxu0 0
        %6526 = vmatprep.subr.bf16.mxu0 0
        %6527 = vmatpush1.bf16.msra.mxu0 0
        %6528 = vmatprep.subr.bf16.mxu0 0
        %6529 = vmatpush1.bf16.msra.mxu0 0
        %6530 = vmatprep.subr.bf16.mxu0 0
        %6531 = vmatpush1.bf16.msra.mxu0 0
        %6532 = vmatprep.mubr.bf16.mxu0 0
        %6533 = vmatmul.mubr.bf16.gmra.mrb[0].mxu0 %v5606
        %v6534 = vpop.f32.mrb[0].mxu0
        %v6535 = vadd.f32 %v5750, %v6534
        %v6536 = vpop.f32.mrb[0].mxu0
        %v6537 = vadd.f32 %v5754, %v6536
        %v6538 = vpop.f32.mrb[0].mxu0
        %v6539 = vpop.f32.mrb[0].mxu0
        %6540 = vdwg.mxu0
        %6541 = vmatprep.subr.bf16.mxu0 %v6208
        %6542 = vmatpush1.bf16.msra.mxu0 %v6207
        %6543 = vmatprep.subr.bf16.mxu0 %v6224
        %6544 = vmatpush1.bf16.msra.mxu0 %v6223
        %6545 = vmatprep.subr.bf16.mxu0 %v6240
        %6546 = vmatpush1.bf16.msra.mxu0 %v6239
        %6547 = vmatprep.subr.bf16.mxu0 %v6256
        %6548 = vmatpush1.bf16.msra.mxu0 %v6255
        %6549 = vmatprep.subr.bf16.mxu0 %v6272
        %6550 = vmatpush1.bf16.msra.mxu0 %v6271
        %6551 = vmatprep.subr.bf16.mxu0 %v6288
        %6552 = vmatpush1.bf16.msra.mxu0 %v6287
        %6553 = vmatprep.subr.bf16.mxu0 %v6304
        %6554 = vmatpush1.bf16.msra.mxu0 %v6303
        %6555 = vmatprep.subr.bf16.mxu0 %v6320
        %6556 = vmatpush1.bf16.msra.mxu0 %v6319
        %6557 = vmatprep.subr.bf16.mxu0 0
        %6558 = vmatpush1.bf16.msra.mxu0 0
        %6559 = vmatprep.subr.bf16.mxu0 0
        %6560 = vmatpush1.bf16.msra.mxu0 0
        %6561 = vmatprep.subr.bf16.mxu0 0
        %6562 = vmatpush1.bf16.msra.mxu0 0
        %6563 = vmatprep.subr.bf16.mxu0 0
        %6564 = vmatpush1.bf16.msra.mxu0 0
        %6565 = vmatprep.subr.bf16.mxu0 0
        %6566 = vmatpush1.bf16.msra.mxu0 0
        %6567 = vmatprep.subr.bf16.mxu0 0
        %6568 = vmatpush1.bf16.msra.mxu0 0
        %6569 = vmatprep.subr.bf16.mxu0 0
        %6570 = vmatpush1.bf16.msra.mxu0 0
        %6571 = vmatprep.subr.bf16.mxu0 0
        %6572 = vmatpush1.bf16.msra.mxu0 0
        %6573 = vmatprep.mubr.bf16.mxu0 0
        %6574 = vmatmul.mubr.bf16.gmra.mrb[0].mxu0 %v5606
        %v6575 = vpop.f32.mrb[0].mxu0
        %v6576 = vadd.f32 %v5758, %v6575
        %v6577 = vpop.f32.mrb[0].mxu0
        %v6578 = vadd.f32 %v5762, %v6577
        %v6579 = vpop.f32.mrb[0].mxu0
        %v6580 = vpop.f32.mrb[0].mxu0
        %6581 = vdwg.mxu0
        %6582 = vmatprep.subr.bf16.mxu0 %v6210
        %6583 = vmatpush1.bf16.msra.mxu0 %v6209
        %6584 = vmatprep.subr.bf16.mxu0 %v6226
        %6585 = vmatpush1.bf16.msra.mxu0 %v6225
        %6586 = vmatprep.subr.bf16.mxu0 %v6242
        %6587 = vmatpush1.bf16.msra.mxu0 %v6241
        %6588 = vmatprep.subr.bf16.mxu0 %v6258
        %6589 = vmatpush1.bf16.msra.mxu0 %v6257
        %6590 = vmatprep.subr.bf16.mxu0 %v6274
        %6591 = vmatpush1.bf16.msra.mxu0 %v6273
        %6592 = vmatprep.subr.bf16.mxu0 %v6290
        %6593 = vmatpush1.bf16.msra.mxu0 %v6289
        %6594 = vmatprep.subr.bf16.mxu0 %v6306
        %6595 = vmatpush1.bf16.msra.mxu0 %v6305
        %6596 = vmatprep.subr.bf16.mxu0 %v6322
        %6597 = vmatpush1.bf16.msra.mxu0 %v6321
        %6598 = vmatprep.subr.bf16.mxu0 0
        %6599 = vmatpush1.bf16.msra.mxu0 0
        %6600 = vmatprep.subr.bf16.mxu0 0
        %6601 = vmatpush1.bf16.msra.mxu0 0
        %6602 = vmatprep.subr.bf16.mxu0 0
        %6603 = vmatpush1.bf16.msra.mxu0 0
        %6604 = vmatprep.subr.bf16.mxu0 0
        %6605 = vmatpush1.bf16.msra.mxu0 0
        %6606 = vmatprep.subr.bf16.mxu0 0
        %6607 = vmatpush1.bf16.msra.mxu0 0
        %6608 = vmatprep.subr.bf16.mxu0 0
        %6609 = vmatpush1.bf16.msra.mxu0 0
        %6610 = vmatprep.subr.bf16.mxu0 0
        %6611 = vmatpush1.bf16.msra.mxu0 0
        %6612 = vmatprep.subr.bf16.mxu0 0
        %6613 = vmatpush1.bf16.msra.mxu0 0
        %6614 = vmatprep.mubr.bf16.mxu0 0
        %6615 = vmatmul.mubr.bf16.gmra.mrb[0].mxu0 %v5606
        %v6616 = vpop.f32.mrb[0].mxu0
        %v6617 = vadd.f32 %v5766, %v6616
        %v6618 = vpop.f32.mrb[0].mxu0
        %v6619 = vadd.f32 %v5770, %v6618
        %v6620 = vpop.f32.mrb[0].mxu0
        %v6621 = vpop.f32.mrb[0].mxu0
        %6622 = vdwg.mxu0
        %6623 = vmatprep.subr.bf16.mxu0 %v6212
        %6624 = vmatpush1.bf16.msra.mxu0 %v6211
        %6625 = vmatprep.subr.bf16.mxu0 %v6228
        %6626 = vmatpush1.bf16.msra.mxu0 %v6227
        %6627 = vmatprep.subr.bf16.mxu0 %v6244
        %6628 = vmatpush1.bf16.msra.mxu0 %v6243
        %6629 = vmatprep.subr.bf16.mxu0 %v6260
        %6630 = vmatpush1.bf16.msra.mxu0 %v6259
        %6631 = vmatprep.subr.bf16.mxu0 %v6276
        %6632 = vmatpush1.bf16.msra.mxu0 %v6275
        %6633 = vmatprep.subr.bf16.mxu0 %v6292
        %6634 = vmatpush1.bf16.msra.mxu0 %v6291
        %6635 = vmatprep.subr.bf16.mxu0 %v6308
        %6636 = vmatpush1.bf16.msra.mxu0 %v6307
        %6637 = vmatprep.subr.bf16.mxu0 %v6324
        %6638 = vmatpush1.bf16.msra.mxu0 %v6323
        %6639 = vmatprep.subr.bf16.mxu0 0
        %6640 = vmatpush1.bf16.msra.mxu0 0
        %6641 = vmatprep.subr.bf16.mxu0 0
        %6642 = vmatpush1.bf16.msra.mxu0 0
        %6643 = vmatprep.subr.bf16.mxu0 0
        %6644 = vmatpush1.bf16.msra.mxu0 0
        %6645 = vmatprep.subr.bf16.mxu0 0
        %6646 = vmatpush1.bf16.msra.mxu0 0
        %6647 = vmatprep.subr.bf16.mxu0 0
        %6648 = vmatpush1.bf16.msra.mxu0 0
        %6649 = vmatprep.subr.bf16.mxu0 0
        %6650 = vmatpush1.bf16.msra.mxu0 0
        %6651 = vmatprep.subr.bf16.mxu0 0
        %6652 = vmatpush1.bf16.msra.mxu0 0
        %6653 = vmatprep.subr.bf16.mxu0 0
        %6654 = vmatpush1.bf16.msra.mxu0 0
        %6655 = vmatprep.mubr.bf16.mxu0 0
        %6656 = vmatmul.mubr.bf16.gmra.mrb[0].mxu0 %v5606
        %v6657 = vpop.f32.mrb[0].mxu0
        %v6658 = vadd.f32 %v5774, %v6657
        %v6659 = vpop.f32.mrb[0].mxu0
        %v6660 = vadd.f32 %v5778, %v6659
        %v6661 = vpop.f32.mrb[0].mxu0
        %v6662 = vpop.f32.mrb[0].mxu0
        %6663 = vdwg.mxu0
        %6664 = vmatprep.subr.bf16.mxu0 %v6214
        %6665 = vmatpush1.bf16.msra.mxu0 %v6213
        %6666 = vmatprep.subr.bf16.mxu0 %v6230
        %6667 = vmatpush1.bf16.msra.mxu0 %v6229
        %6668 = vmatprep.subr.bf16.mxu0 %v6246
        %6669 = vmatpush1.bf16.msra.mxu0 %v6245
        %6670 = vmatprep.subr.bf16.mxu0 %v6262
        %6671 = vmatpush1.bf16.msra.mxu0 %v6261
        %6672 = vmatprep.subr.bf16.mxu0 %v6278
        %6673 = vmatpush1.bf16.msra.mxu0 %v6277
        %6674 = vmatprep.subr.bf16.mxu0 %v6294
        %6675 = vmatpush1.bf16.msra.mxu0 %v6293
        %6676 = vmatprep.subr.bf16.mxu0 %v6310
        %6677 = vmatpush1.bf16.msra.mxu0 %v6309
        %6678 = vmatprep.subr.bf16.mxu0 %v6326
        %6679 = vmatpush1.bf16.msra.mxu0 %v6325
        %6680 = vmatprep.subr.bf16.mxu0 0
        %6681 = vmatpush1.bf16.msra.mxu0 0
        %6682 = vmatprep.subr.bf16.mxu0 0
        %6683 = vmatpush1.bf16.msra.mxu0 0
        %6684 = vmatprep.subr.bf16.mxu0 0
        %6685 = vmatpush1.bf16.msra.mxu0 0
        %6686 = vmatprep.subr.bf16.mxu0 0
        %6687 = vmatpush1.bf16.msra.mxu0 0
        %6688 = vmatprep.subr.bf16.mxu0 0
        %6689 = vmatpush1.bf16.msra.mxu0 0
        %6690 = vmatprep.subr.bf16.mxu0 0
        %6691 = vmatpush1.bf16.msra.mxu0 0
        %6692 = vmatprep.subr.bf16.mxu0 0
        %6693 = vmatpush1.bf16.msra.mxu0 0
        %6694 = vmatprep.subr.bf16.mxu0 0
        %6695 = vmatpush1.bf16.msra.mxu0 0
        %6696 = vmatprep.mubr.bf16.mxu0 0
        %6697 = vmatmul.mubr.bf16.gmra.mrb[0].mxu0 %v5606
        %v6698 = vpop.f32.mrb[0].mxu0
        %v6699 = vadd.f32 %v5782, %v6698
        %v6700 = vpop.f32.mrb[0].mxu0
        %v6701 = vadd.f32 %v5786, %v6700
        %v6702 = vpop.f32.mrb[0].mxu0
        %v6703 = vpop.f32.mrb[0].mxu0
        %6704 = vdwg.mxu0
        %6705 = vmatprep.subr.bf16.mxu0 %v6216
        %6706 = vmatpush1.bf16.msra.mxu0 %v6215
        %6707 = vmatprep.subr.bf16.mxu0 %v6232
        %6708 = vmatpush1.bf16.msra.mxu0 %v6231
        %6709 = vmatprep.subr.bf16.mxu0 %v6248
        %6710 = vmatpush1.bf16.msra.mxu0 %v6247
        %6711 = vmatprep.subr.bf16.mxu0 %v6264
        %6712 = vmatpush1.bf16.msra.mxu0 %v6263
        %6713 = vmatprep.subr.bf16.mxu0 %v6280
        %6714 = vmatpush1.bf16.msra.mxu0 %v6279
        %6715 = vmatprep.subr.bf16.mxu0 %v6296
        %6716 = vmatpush1.bf16.msra.mxu0 %v6295
        %6717 = vmatprep.subr.bf16.mxu0 %v6312
        %6718 = vmatpush1.bf16.msra.mxu0 %v6311
        %6719 = vmatprep.subr.bf16.mxu0 %v6328
        %6720 = vmatpush1.bf16.msra.mxu0 %v6327
        %6721 = vmatprep.subr.bf16.mxu0 0
        %6722 = vmatpush1.bf16.msra.mxu0 0
        %6723 = vmatprep.subr.bf16.mxu0 0
        %6724 = vmatpush1.bf16.msra.mxu0 0
        %6725 = vmatprep.subr.bf16.mxu0 0
        %6726 = vmatpush1.bf16.msra.mxu0 0
        %6727 = vmatprep.subr.bf16.mxu0 0
        %6728 = vmatpush1.bf16.msra.mxu0 0
        %6729 = vmatprep.subr.bf16.mxu0 0
        %6730 = vmatpush1.bf16.msra.mxu0 0
        %6731 = vmatprep.subr.bf16.mxu0 0
        %6732 = vmatpush1.bf16.msra.mxu0 0
        %6733 = vmatprep.subr.bf16.mxu0 0
        %6734 = vmatpush1.bf16.msra.mxu0 0
        %6735 = vmatprep.subr.bf16.mxu0 0
        %6736 = vmatpush1.bf16.msra.mxu0 0
        %6737 = vmatprep.mubr.bf16.mxu0 0
        %6738 = vmatmul.mubr.bf16.gmra.mrb[0].mxu0 %v5606
        %v6739 = vpop.f32.mrb[0].mxu0
        %v6740 = vadd.f32 %v5790, %v6739
        %v6741 = vpop.f32.mrb[0].mxu0
        %v6742 = vadd.f32 %v5794, %v6741
        %v6743 = vpop.f32.mrb[0].mxu0
        %v6744 = vpop.f32.mrb[0].mxu0
        %6745 = vdwg.mxu0
        %6746 = vmatprep.subr.bf16.mxu0 %v6218
        %6747 = vmatpush1.bf16.msra.mxu0 %v6217
        %6748 = vmatprep.subr.bf16.mxu0 %v6234
        %6749 = vmatpush1.bf16.msra.mxu0 %v6233
        %6750 = vmatprep.subr.bf16.mxu0 %v6250
        %6751 = vmatpush1.bf16.msra.mxu0 %v6249
        %6752 = vmatprep.subr.bf16.mxu0 %v6266
        %6753 = vmatpush1.bf16.msra.mxu0 %v6265
        %6754 = vmatprep.subr.bf16.mxu0 %v6282
        %6755 = vmatpush1.bf16.msra.mxu0 %v6281
        %6756 = vmatprep.subr.bf16.mxu0 %v6298
        %6757 = vmatpush1.bf16.msra.mxu0 %v6297
        %6758 = vmatprep.subr.bf16.mxu0 %v6314
        %6759 = vmatpush1.bf16.msra.mxu0 %v6313
        %6760 = vmatprep.subr.bf16.mxu0 %v6330
        %6761 = vmatpush1.bf16.msra.mxu0 %v6329
        %6762 = vmatprep.subr.bf16.mxu0 0
        %6763 = vmatpush1.bf16.msra.mxu0 0
        %6764 = vmatprep.subr.bf16.mxu0 0
        %6765 = vmatpush1.bf16.msra.mxu0 0
        %6766 = vmatprep.subr.bf16.mxu0 0
        %6767 = vmatpush1.bf16.msra.mxu0 0
        %6768 = vmatprep.subr.bf16.mxu0 0
        %6769 = vmatpush1.bf16.msra.mxu0 0
        %6770 = vmatprep.subr.bf16.mxu0 0
        %6771 = vmatpush1.bf16.msra.mxu0 0
        %6772 = vmatprep.subr.bf16.mxu0 0
        %6773 = vmatpush1.bf16.msra.mxu0 0
        %6774 = vmatprep.subr.bf16.mxu0 0
        %6775 = vmatpush1.bf16.msra.mxu0 0
        %6776 = vmatprep.subr.bf16.mxu0 0
        %6777 = vmatpush1.bf16.msra.mxu0 0
        %6778 = vmatprep.mubr.bf16.mxu0 0
        %6779 = vmatmul.mubr.bf16.gmra.mrb[0].mxu0 %v5606
        %v6780 = vpop.f32.mrb[0].mxu0
        %v6781 = vadd.f32 %v5798, %v6780
        %v6782 = vpop.f32.mrb[0].mxu0
        %v6783 = vadd.f32 %v5802, %v6782
        %v6784 = vpop.f32.mrb[0].mxu0
        %v6785 = vpop.f32.mrb[0].mxu0
        %6786 = vdwg.mxu0
        %v6787 = vmax.f32 %v6494, 0.0
        %v6788 = vmax.f32 %v6496, 0.0
        %v6789 = vmax.f32 %v6535, 0.0
        %v6790 = vmax.f32 %v6537, 0.0
        %v6791 = vmax.f32 %v6576, 0.0
        %v6792 = vmax.f32 %v6578, 0.0
        %v6793 = vmax.f32 %v6617, 0.0
        %v6794 = vmax.f32 %v6619, 0.0
        %v6795 = vmax.f32 %v6658, 0.0
        %v6796 = vmax.f32 %v6660, 0.0
        %v6797 = vmax.f32 %v6699, 0.0
        %v6798 = vmax.f32 %v6701, 0.0
        %v6799 = vmax.f32 %v6740, 0.0
        %v6800 = vmax.f32 %v6742, 0.0
        %v6801 = vmax.f32 %v6781, 0.0
        %v6802 = vmax.f32 %v6783, 0.0
        %v6803 = vpack.c.bf16 %v6787, %v6787
        %v6804 = vpack.c.bf16 %v6788, %v6788
        %v6805 = vpack.c.bf16 %v6789, %v6789
        %v6806 = vpack.c.bf16 %v6790, %v6790
        %v6807 = vpack.c.bf16 %v6791, %v6791
        %v6808 = vpack.c.bf16 %v6792, %v6792
        %v6809 = vpack.c.bf16 %v6793, %v6793
        %v6810 = vpack.c.bf16 %v6794, %v6794
        %v6811 = vpack.c.bf16 %v6795, %v6795
        %v6812 = vpack.c.bf16 %v6796, %v6796
        %v6813 = vpack.c.bf16 %v6797, %v6797
        %v6814 = vpack.c.bf16 %v6798, %v6798
        %v6815 = vpack.c.bf16 %v6799, %v6799
        %v6816 = vpack.c.bf16 %v6800, %v6800
        %v6817 = vpack.c.bf16 %v6801, %v6801
        %v6818 = vpack.c.bf16 %v6802, %v6802
        %v6819 = vld [vmem:[#allocation29] sm:$0xf]
        %v6820 = vld [vmem:[#allocation29 + $0x4] sm:$0xf]
        %v6821 = vld [vmem:[#allocation29 + $0x8] sm:$0xf]
        %v6822 = vld [vmem:[#allocation29 + $0xc] sm:$0xf]
        %v6823 = vld [vmem:[#allocation29 + $0x10] sm:$0xf]
        %v6824 = vld [vmem:[#allocation29 + $0x14] sm:$0xf]
        %v6825 = vld [vmem:[#allocation29 + $0x18] sm:$0xf]
        %v6826 = vld [vmem:[#allocation29 + $0x1c] sm:$0xf]
        %v6827 = vld [vmem:[#allocation29 + $0x20] sm:$0xf]
        %v6828 = vld [vmem:[#allocation29 + $0x24] sm:$0xf]
        %v6829 = vld [vmem:[#allocation29 + $0x28] sm:$0xf]
        %v6830 = vld [vmem:[#allocation29 + $0x2c] sm:$0xf]
        %v6831 = vld [vmem:[#allocation29 + $0x30] sm:$0xf]
        %v6832 = vld [vmem:[#allocation29 + $0x34] sm:$0xf]
        %v6833 = vld [vmem:[#allocation29 + $0x38] sm:$0xf]
        %v6834 = vld [vmem:[#allocation29 + $0x3c] sm:$0xf]
        %v6835 = vld [vmem:[#allocation29 + $0x40] sm:$0xf]
        %v6836 = vld [vmem:[#allocation29 + $0x44] sm:$0xf]
        %v6837 = vld [vmem:[#allocation29 + $0x48] sm:$0xf]
        %v6838 = vld [vmem:[#allocation29 + $0x4c] sm:$0xf]
        %v6839 = vld [vmem:[#allocation29 + $0x50] sm:$0xf]
        %v6840 = vld [vmem:[#allocation29 + $0x54] sm:$0xf]
        %v6841 = vld [vmem:[#allocation29 + $0x58] sm:$0xf]
        %v6842 = vld [vmem:[#allocation29 + $0x5c] sm:$0xf]
        %v6843 = vld [vmem:[#allocation29 + $0x60] sm:$0xf]
        %v6844 = vld [vmem:[#allocation29 + $0x64] sm:$0xf]
        %v6845 = vld [vmem:[#allocation29 + $0x68] sm:$0xf]
        %v6846 = vld [vmem:[#allocation29 + $0x6c] sm:$0xf]
        %v6847 = vld [vmem:[#allocation29 + $0x70] sm:$0xf]
        %v6848 = vld [vmem:[#allocation29 + $0x74] sm:$0xf]
        %v6849 = vld [vmem:[#allocation29 + $0x78] sm:$0xf]
        %v6850 = vld [vmem:[#allocation29 + $0x7c] sm:$0xf]
        %v6851 = vld [vmem:[#allocation29 + $0x80] sm:$0xf]
        %v6852 = vld [vmem:[#allocation29 + $0x84] sm:$0xf]
        %v6853 = vld [vmem:[#allocation29 + $0x88] sm:$0xf]
        %v6854 = vld [vmem:[#allocation29 + $0x8c] sm:$0xf]
        %v6855 = vld [vmem:[#allocation29 + $0x90] sm:$0xf]
        %v6856 = vld [vmem:[#allocation29 + $0x94] sm:$0xf]
        %v6857 = vld [vmem:[#allocation29 + $0x98] sm:$0xf]
        %v6858 = vld [vmem:[#allocation29 + $0x9c] sm:$0xf]
        %v6859 = vld [vmem:[#allocation29 + $0xa0] sm:$0xf]
        %v6860 = vld [vmem:[#allocation29 + $0xa4] sm:$0xf]
        %v6861 = vld [vmem:[#allocation29 + $0xa8] sm:$0xf]
        %v6862 = vld [vmem:[#allocation29 + $0xac] sm:$0xf]
        %v6863 = vld [vmem:[#allocation29 + $0xb0] sm:$0xf]
        %v6864 = vld [vmem:[#allocation29 + $0xb4] sm:$0xf]
        %v6865 = vld [vmem:[#allocation29 + $0xb8] sm:$0xf]
        %v6866 = vld [vmem:[#allocation29 + $0xbc] sm:$0xf]
        %v6867 = vld [vmem:[#allocation29 + $0xc0] sm:$0xf]
        %v6868 = vld [vmem:[#allocation29 + $0xc4] sm:$0xf]
        %v6869 = vld [vmem:[#allocation29 + $0xc8] sm:$0xf]
        %v6870 = vld [vmem:[#allocation29 + $0xcc] sm:$0xf]
        %v6871 = vld [vmem:[#allocation29 + $0xd0] sm:$0xf]
        %v6872 = vld [vmem:[#allocation29 + $0xd4] sm:$0xf]
        %v6873 = vld [vmem:[#allocation29 + $0xd8] sm:$0xf]
        %v6874 = vld [vmem:[#allocation29 + $0xdc] sm:$0xf]
        %v6875 = vld [vmem:[#allocation29 + $0xe0] sm:$0xf]
        %v6876 = vld [vmem:[#allocation29 + $0xe4] sm:$0xf]
        %v6877 = vld [vmem:[#allocation29 + $0xe8] sm:$0xf]
        %v6878 = vld [vmem:[#allocation29 + $0xec] sm:$0xf]
        %v6879 = vld [vmem:[#allocation29 + $0xf0] sm:$0xf]
        %v6880 = vld [vmem:[#allocation29 + $0xf4] sm:$0xf]
        %v6881 = vld [vmem:[#allocation29 + $0xf8] sm:$0xf]
        %v6882 = vld [vmem:[#allocation29 + $0xfc] sm:$0xf]
        %v6883 = vld [vmem:[#allocation29 + $0x100] sm:$0xf]
        %v6884 = vld [vmem:[#allocation29 + $0x104] sm:$0xf]
        %v6885 = vld [vmem:[#allocation29 + $0x108] sm:$0xf]
        %v6886 = vld [vmem:[#allocation29 + $0x10c] sm:$0xf]
        %v6887 = vld [vmem:[#allocation29 + $0x110] sm:$0xf]
        %v6888 = vld [vmem:[#allocation29 + $0x114] sm:$0xf]
        %v6889 = vld [vmem:[#allocation29 + $0x118] sm:$0xf]
        %v6890 = vld [vmem:[#allocation29 + $0x11c] sm:$0xf]
        %v6891 = vld [vmem:[#allocation29 + $0x120] sm:$0xf]
        %v6892 = vld [vmem:[#allocation29 + $0x124] sm:$0xf]
        %v6893 = vld [vmem:[#allocation29 + $0x128] sm:$0xf]
        %v6894 = vld [vmem:[#allocation29 + $0x12c] sm:$0xf]
        %v6895 = vld [vmem:[#allocation29 + $0x130] sm:$0xf]
        %v6896 = vld [vmem:[#allocation29 + $0x134] sm:$0xf]
        %v6897 = vld [vmem:[#allocation29 + $0x138] sm:$0xf]
        %v6898 = vld [vmem:[#allocation29 + $0x13c] sm:$0xf]
        %v6899 = vld [vmem:[#allocation29 + $0x140] sm:$0xf]
        %v6900 = vld [vmem:[#allocation29 + $0x144] sm:$0xf]
        %v6901 = vld [vmem:[#allocation29 + $0x148] sm:$0xf]
        %v6902 = vld [vmem:[#allocation29 + $0x14c] sm:$0xf]
        %v6903 = vld [vmem:[#allocation29 + $0x150] sm:$0xf]
        %v6904 = vld [vmem:[#allocation29 + $0x154] sm:$0xf]
        %v6905 = vld [vmem:[#allocation29 + $0x158] sm:$0xf]
        %v6906 = vld [vmem:[#allocation29 + $0x15c] sm:$0xf]
        %v6907 = vld [vmem:[#allocation29 + $0x160] sm:$0xf]
        %v6908 = vld [vmem:[#allocation29 + $0x164] sm:$0xf]
        %v6909 = vld [vmem:[#allocation29 + $0x168] sm:$0xf]
        %v6910 = vld [vmem:[#allocation29 + $0x16c] sm:$0xf]
        %v6911 = vld [vmem:[#allocation29 + $0x170] sm:$0xf]
        %v6912 = vld [vmem:[#allocation29 + $0x174] sm:$0xf]
        %v6913 = vld [vmem:[#allocation29 + $0x178] sm:$0xf]
        %v6914 = vld [vmem:[#allocation29 + $0x17c] sm:$0xf]
        %v6915 = vld [vmem:[#allocation29 + $0x180] sm:$0xf]
        %v6916 = vld [vmem:[#allocation29 + $0x184] sm:$0xf]
        %v6917 = vld [vmem:[#allocation29 + $0x188] sm:$0xf]
        %v6918 = vld [vmem:[#allocation29 + $0x18c] sm:$0xf]
        %v6919 = vld [vmem:[#allocation29 + $0x190] sm:$0xf]
        %v6920 = vld [vmem:[#allocation29 + $0x194] sm:$0xf]
        %v6921 = vld [vmem:[#allocation29 + $0x198] sm:$0xf]
        %v6922 = vld [vmem:[#allocation29 + $0x19c] sm:$0xf]
        %v6923 = vld [vmem:[#allocation29 + $0x1a0] sm:$0xf]
        %v6924 = vld [vmem:[#allocation29 + $0x1a4] sm:$0xf]
        %v6925 = vld [vmem:[#allocation29 + $0x1a8] sm:$0xf]
        %v6926 = vld [vmem:[#allocation29 + $0x1ac] sm:$0xf]
        %v6927 = vld [vmem:[#allocation29 + $0x1b0] sm:$0xf]
        %v6928 = vld [vmem:[#allocation29 + $0x1b4] sm:$0xf]
        %v6929 = vld [vmem:[#allocation29 + $0x1b8] sm:$0xf]
        %v6930 = vld [vmem:[#allocation29 + $0x1bc] sm:$0xf]
        %v6931 = vld [vmem:[#allocation29 + $0x1c0] sm:$0xf]
        %v6932 = vld [vmem:[#allocation29 + $0x1c4] sm:$0xf]
        %v6933 = vld [vmem:[#allocation29 + $0x1c8] sm:$0xf]
        %v6934 = vld [vmem:[#allocation29 + $0x1cc] sm:$0xf]
        %v6935 = vld [vmem:[#allocation29 + $0x1d0] sm:$0xf]
        %v6936 = vld [vmem:[#allocation29 + $0x1d4] sm:$0xf]
        %v6937 = vld [vmem:[#allocation29 + $0x1d8] sm:$0xf]
        %v6938 = vld [vmem:[#allocation29 + $0x1dc] sm:$0xf]
        %v6939 = vld [vmem:[#allocation29 + $0x1e0] sm:$0xf]
        %v6940 = vld [vmem:[#allocation29 + $0x1e4] sm:$0xf]
        %v6941 = vld [vmem:[#allocation29 + $0x1e8] sm:$0xf]
        %v6942 = vld [vmem:[#allocation29 + $0x1ec] sm:$0xf]
        %v6943 = vld [vmem:[#allocation29 + $0x1f0] sm:$0xf]
        %v6944 = vld [vmem:[#allocation29 + $0x1f4] sm:$0xf]
        %v6945 = vld [vmem:[#allocation29 + $0x1f8] sm:$0xf]
        %v6946 = vld [vmem:[#allocation29 + $0x1fc] sm:$0xf]
        %v6947 = vld [vmem:[#allocation29 + $0x200] sm:$0xf]
        %v6948 = vld [vmem:[#allocation29 + $0x204] sm:$0xf]
        %v6949 = vld [vmem:[#allocation29 + $0x208] sm:$0xf]
        %v6950 = vld [vmem:[#allocation29 + $0x20c] sm:$0xf]
        %v6951 = vld [vmem:[#allocation29 + $0x210] sm:$0xf]
        %v6952 = vld [vmem:[#allocation29 + $0x214] sm:$0xf]
        %v6953 = vld [vmem:[#allocation29 + $0x218] sm:$0xf]
        %v6954 = vld [vmem:[#allocation29 + $0x21c] sm:$0xf]
        %v6955 = vld [vmem:[#allocation29 + $0x220] sm:$0xf]
        %v6956 = vld [vmem:[#allocation29 + $0x224] sm:$0xf]
        %v6957 = vld [vmem:[#allocation29 + $0x228] sm:$0xf]
        %v6958 = vld [vmem:[#allocation29 + $0x22c] sm:$0xf]
        %v6959 = vld [vmem:[#allocation29 + $0x230] sm:$0xf]
        %v6960 = vld [vmem:[#allocation29 + $0x234] sm:$0xf]
        %v6961 = vld [vmem:[#allocation29 + $0x238] sm:$0xf]
        %v6962 = vld [vmem:[#allocation29 + $0x23c] sm:$0xf]
        %v6963 = vld [vmem:[#allocation29 + $0x240] sm:$0xf]
        %v6964 = vld [vmem:[#allocation29 + $0x244] sm:$0xf]
        %v6965 = vld [vmem:[#allocation29 + $0x248] sm:$0xf]
        %v6966 = vld [vmem:[#allocation29 + $0x24c] sm:$0xf]
        %v6967 = vld [vmem:[#allocation29 + $0x250] sm:$0xf]
        %v6968 = vld [vmem:[#allocation29 + $0x254] sm:$0xf]
        %v6969 = vld [vmem:[#allocation29 + $0x258] sm:$0xf]
        %v6970 = vld [vmem:[#allocation29 + $0x25c] sm:$0xf]
        %v6971 = vld [vmem:[#allocation29 + $0x260] sm:$0xf]
        %v6972 = vld [vmem:[#allocation29 + $0x264] sm:$0xf]
        %v6973 = vld [vmem:[#allocation29 + $0x268] sm:$0xf]
        %v6974 = vld [vmem:[#allocation29 + $0x26c] sm:$0xf]
        %v6975 = vld [vmem:[#allocation29 + $0x270] sm:$0xf]
        %v6976 = vld [vmem:[#allocation29 + $0x274] sm:$0xf]
        %v6977 = vld [vmem:[#allocation29 + $0x278] sm:$0xf]
        %v6978 = vld [vmem:[#allocation29 + $0x27c] sm:$0xf]
        %v6979 = vld [vmem:[#allocation29 + $0x280] sm:$0xf]
        %v6980 = vld [vmem:[#allocation29 + $0x284] sm:$0xf]
        %v6981 = vld [vmem:[#allocation29 + $0x288] sm:$0xf]
        %v6982 = vld [vmem:[#allocation29 + $0x28c] sm:$0xf]
        %v6983 = vld [vmem:[#allocation29 + $0x290] sm:$0xf]
        %v6984 = vld [vmem:[#allocation29 + $0x294] sm:$0xf]
        %v6985 = vld [vmem:[#allocation29 + $0x298] sm:$0xf]
        %v6986 = vld [vmem:[#allocation29 + $0x29c] sm:$0xf]
        %v6987 = vld [vmem:[#allocation29 + $0x2a0] sm:$0xf]
        %v6988 = vld [vmem:[#allocation29 + $0x2a4] sm:$0xf]
        %v6989 = vld [vmem:[#allocation29 + $0x2a8] sm:$0xf]
        %v6990 = vld [vmem:[#allocation29 + $0x2ac] sm:$0xf]
        %v6991 = vld [vmem:[#allocation29 + $0x2b0] sm:$0xf]
        %v6992 = vld [vmem:[#allocation29 + $0x2b4] sm:$0xf]
        %v6993 = vld [vmem:[#allocation29 + $0x2b8] sm:$0xf]
        %v6994 = vld [vmem:[#allocation29 + $0x2bc] sm:$0xf]
        %v6995 = vld [vmem:[#allocation29 + $0x2c0] sm:$0xf]
        %v6996 = vld [vmem:[#allocation29 + $0x2c4] sm:$0xf]
        %v6997 = vld [vmem:[#allocation29 + $0x2c8] sm:$0xf]
        %v6998 = vld [vmem:[#allocation29 + $0x2cc] sm:$0xf]
        %v6999 = vld [vmem:[#allocation29 + $0x2d0] sm:$0xf]
        %v7000 = vld [vmem:[#allocation29 + $0x2d4] sm:$0xf]
        %v7001 = vld [vmem:[#allocation29 + $0x2d8] sm:$0xf]
        %v7002 = vld [vmem:[#allocation29 + $0x2dc] sm:$0xf]
        %v7003 = vld [vmem:[#allocation29 + $0x2e0] sm:$0xf]
        %v7004 = vld [vmem:[#allocation29 + $0x2e4] sm:$0xf]
        %v7005 = vld [vmem:[#allocation29 + $0x2e8] sm:$0xf]
        %v7006 = vld [vmem:[#allocation29 + $0x2ec] sm:$0xf]
        %v7007 = vld [vmem:[#allocation29 + $0x2f0] sm:$0xf]
        %v7008 = vld [vmem:[#allocation29 + $0x2f4] sm:$0xf]
        %v7009 = vld [vmem:[#allocation29 + $0x2f8] sm:$0xf]
        %v7010 = vld [vmem:[#allocation29 + $0x2fc] sm:$0xf]
        %v7011 = vld [vmem:[#allocation29 + $0x300] sm:$0xf]
        %v7012 = vld [vmem:[#allocation29 + $0x304] sm:$0xf]
        %v7013 = vld [vmem:[#allocation29 + $0x308] sm:$0xf]
        %v7014 = vld [vmem:[#allocation29 + $0x30c] sm:$0xf]
        %v7015 = vld [vmem:[#allocation29 + $0x310] sm:$0xf]
        %v7016 = vld [vmem:[#allocation29 + $0x314] sm:$0xf]
        %v7017 = vld [vmem:[#allocation29 + $0x318] sm:$0xf]
        %v7018 = vld [vmem:[#allocation29 + $0x31c] sm:$0xf]
        %v7019 = vld [vmem:[#allocation29 + $0x320] sm:$0xf]
        %v7020 = vld [vmem:[#allocation29 + $0x324] sm:$0xf]
        %v7021 = vld [vmem:[#allocation29 + $0x328] sm:$0xf]
        %v7022 = vld [vmem:[#allocation29 + $0x32c] sm:$0xf]
        %v7023 = vld [vmem:[#allocation29 + $0x330] sm:$0xf]
        %v7024 = vld [vmem:[#allocation29 + $0x334] sm:$0xf]
        %v7025 = vld [vmem:[#allocation29 + $0x338] sm:$0xf]
        %v7026 = vld [vmem:[#allocation29 + $0x33c] sm:$0xf]
        %v7027 = vld [vmem:[#allocation29 + $0x340] sm:$0xf]
        %v7028 = vld [vmem:[#allocation29 + $0x344] sm:$0xf]
        %v7029 = vld [vmem:[#allocation29 + $0x348] sm:$0xf]
        %v7030 = vld [vmem:[#allocation29 + $0x34c] sm:$0xf]
        %v7031 = vld [vmem:[#allocation29 + $0x350] sm:$0xf]
        %v7032 = vld [vmem:[#allocation29 + $0x354] sm:$0xf]
        %v7033 = vld [vmem:[#allocation29 + $0x358] sm:$0xf]
        %v7034 = vld [vmem:[#allocation29 + $0x35c] sm:$0xf]
        %v7035 = vld [vmem:[#allocation29 + $0x360] sm:$0xf]
        %v7036 = vld [vmem:[#allocation29 + $0x364] sm:$0xf]
        %v7037 = vld [vmem:[#allocation29 + $0x368] sm:$0xf]
        %v7038 = vld [vmem:[#allocation29 + $0x36c] sm:$0xf]
        %v7039 = vld [vmem:[#allocation29 + $0x370] sm:$0xf]
        %v7040 = vld [vmem:[#allocation29 + $0x374] sm:$0xf]
        %v7041 = vld [vmem:[#allocation29 + $0x378] sm:$0xf]
        %v7042 = vld [vmem:[#allocation29 + $0x37c] sm:$0xf]
        %v7043 = vld [vmem:[#allocation29 + $0x380] sm:$0xf]
        %v7044 = vld [vmem:[#allocation29 + $0x384] sm:$0xf]
        %v7045 = vld [vmem:[#allocation29 + $0x388] sm:$0xf]
        %v7046 = vld [vmem:[#allocation29 + $0x38c] sm:$0xf]
        %v7047 = vld [vmem:[#allocation29 + $0x390] sm:$0xf]
        %v7048 = vld [vmem:[#allocation29 + $0x394] sm:$0xf]
        %v7049 = vld [vmem:[#allocation29 + $0x398] sm:$0xf]
        %v7050 = vld [vmem:[#allocation29 + $0x39c] sm:$0xf]
        %v7051 = vld [vmem:[#allocation29 + $0x3a0] sm:$0xf]
        %v7052 = vld [vmem:[#allocation29 + $0x3a4] sm:$0xf]
        %v7053 = vld [vmem:[#allocation29 + $0x3a8] sm:$0xf]
        %v7054 = vld [vmem:[#allocation29 + $0x3ac] sm:$0xf]
        %v7055 = vld [vmem:[#allocation29 + $0x3b0] sm:$0xf]
        %v7056 = vld [vmem:[#allocation29 + $0x3b4] sm:$0xf]
        %v7057 = vld [vmem:[#allocation29 + $0x3b8] sm:$0xf]
        %v7058 = vld [vmem:[#allocation29 + $0x3bc] sm:$0xf]
        %v7059 = vld [vmem:[#allocation29 + $0x3c0] sm:$0xf]
        %v7060 = vld [vmem:[#allocation29 + $0x3c4] sm:$0xf]
        %v7061 = vld [vmem:[#allocation29 + $0x3c8] sm:$0xf]
        %v7062 = vld [vmem:[#allocation29 + $0x3cc] sm:$0xf]
        %v7063 = vld [vmem:[#allocation29 + $0x3d0] sm:$0xf]
        %v7064 = vld [vmem:[#allocation29 + $0x3d4] sm:$0xf]
        %v7065 = vld [vmem:[#allocation29 + $0x3d8] sm:$0xf]
        %v7066 = vld [vmem:[#allocation29 + $0x3dc] sm:$0xf]
        %v7067 = vld [vmem:[#allocation29 + $0x3e0] sm:$0xf]
        %v7068 = vld [vmem:[#allocation29 + $0x3e4] sm:$0xf]
        %v7069 = vld [vmem:[#allocation29 + $0x3e8] sm:$0xf]
        %v7070 = vld [vmem:[#allocation29 + $0x3ec] sm:$0xf]
        %v7071 = vld [vmem:[#allocation29 + $0x3f0] sm:$0xf]
        %v7072 = vld [vmem:[#allocation29 + $0x3f4] sm:$0xf]
        %v7073 = vld [vmem:[#allocation29 + $0x3f8] sm:$0xf]
        %v7074 = vld [vmem:[#allocation29 + $0x3fc] sm:$0xf]
        %v7075 = vld [vmem:[%s51] sm:$0x1]
        %v7077 = vlaneseq
        %v7078 = vshrl.u32 %v7077, 7
        %v7079 = vsub.s32 0, %v7078
        %v7080 = vrot.slane %v7075, %v7079
        %v7338 = vunpack.c.l.b16 %v6819
        %v7339 = vunpack.c.l.b16 %v6820
        %v7340 = vunpack.c.l.b16 %v6821
        %v7341 = vunpack.c.l.b16 %v6822
        %v7342 = vunpack.c.l.b16 %v6823
        %v7343 = vunpack.c.l.b16 %v6824
        %v7344 = vunpack.c.l.b16 %v6825
        %v7345 = vunpack.c.l.b16 %v6826
        %v7346 = vunpack.c.l.b16 %v6827
        %v7347 = vunpack.c.l.b16 %v6828
        %v7348 = vunpack.c.l.b16 %v6829
        %v7349 = vunpack.c.l.b16 %v6830
        %v7350 = vunpack.c.l.b16 %v6831
        %v7351 = vunpack.c.l.b16 %v6832
        %v7352 = vunpack.c.l.b16 %v6833
        %v7353 = vunpack.c.l.b16 %v6834
        %v7354 = vunpack.c.l.b16 %v6835
        %v7355 = vunpack.c.l.b16 %v6836
        %v7356 = vunpack.c.l.b16 %v6837
        %v7357 = vunpack.c.l.b16 %v6838
        %v7358 = vunpack.c.l.b16 %v6839
        %v7359 = vunpack.c.l.b16 %v6840
        %v7360 = vunpack.c.l.b16 %v6841
        %v7361 = vunpack.c.l.b16 %v6842
        %v7362 = vunpack.c.l.b16 %v6843
        %v7363 = vunpack.c.l.b16 %v6844
        %v7364 = vunpack.c.l.b16 %v6845
        %v7365 = vunpack.c.l.b16 %v6846
        %v7366 = vunpack.c.l.b16 %v6847
        %v7367 = vunpack.c.l.b16 %v6848
        %v7368 = vunpack.c.l.b16 %v6849
        %v7369 = vunpack.c.l.b16 %v6850
        %v7370 = vunpack.c.l.b16 %v6851
        %v7371 = vunpack.c.l.b16 %v6852
        %v7372 = vunpack.c.l.b16 %v6853
        %v7373 = vunpack.c.l.b16 %v6854
        %v7374 = vunpack.c.l.b16 %v6855
        %v7375 = vunpack.c.l.b16 %v6856
        %v7376 = vunpack.c.l.b16 %v6857
        %v7377 = vunpack.c.l.b16 %v6858
        %v7378 = vunpack.c.l.b16 %v6859
        %v7379 = vunpack.c.l.b16 %v6860
        %v7380 = vunpack.c.l.b16 %v6861
        %v7381 = vunpack.c.l.b16 %v6862
        %v7382 = vunpack.c.l.b16 %v6863
        %v7383 = vunpack.c.l.b16 %v6864
        %v7384 = vunpack.c.l.b16 %v6865
        %v7385 = vunpack.c.l.b16 %v6866
        %v7386 = vunpack.c.l.b16 %v6867
        %v7387 = vunpack.c.l.b16 %v6868
        %v7388 = vunpack.c.l.b16 %v6869
        %v7389 = vunpack.c.l.b16 %v6870
        %v7390 = vunpack.c.l.b16 %v6871
        %v7391 = vunpack.c.l.b16 %v6872
        %v7392 = vunpack.c.l.b16 %v6873
        %v7393 = vunpack.c.l.b16 %v6874
        %v7394 = vunpack.c.l.b16 %v6875
        %v7395 = vunpack.c.l.b16 %v6876
        %v7396 = vunpack.c.l.b16 %v6877
        %v7397 = vunpack.c.l.b16 %v6878
        %v7398 = vunpack.c.l.b16 %v6879
        %v7399 = vunpack.c.l.b16 %v6880
        %v7400 = vunpack.c.l.b16 %v6881
        %v7401 = vunpack.c.l.b16 %v6882
        %v7402 = vunpack.c.l.b16 %v6883
        %v7403 = vunpack.c.l.b16 %v6884
        %v7404 = vunpack.c.l.b16 %v6885
        %v7405 = vunpack.c.l.b16 %v6886
        %v7406 = vunpack.c.l.b16 %v6887
        %v7407 = vunpack.c.l.b16 %v6888
        %v7408 = vunpack.c.l.b16 %v6889
        %v7409 = vunpack.c.l.b16 %v6890
        %v7410 = vunpack.c.l.b16 %v6891
        %v7411 = vunpack.c.l.b16 %v6892
        %v7412 = vunpack.c.l.b16 %v6893
        %v7413 = vunpack.c.l.b16 %v6894
        %v7414 = vunpack.c.l.b16 %v6895
        %v7415 = vunpack.c.l.b16 %v6896
        %v7416 = vunpack.c.l.b16 %v6897
        %v7417 = vunpack.c.l.b16 %v6898
        %v7418 = vunpack.c.l.b16 %v6899
        %v7419 = vunpack.c.l.b16 %v6900
        %v7420 = vunpack.c.l.b16 %v6901
        %v7421 = vunpack.c.l.b16 %v6902
        %v7422 = vunpack.c.l.b16 %v6903
        %v7423 = vunpack.c.l.b16 %v6904
        %v7424 = vunpack.c.l.b16 %v6905
        %v7425 = vunpack.c.l.b16 %v6906
        %v7426 = vunpack.c.l.b16 %v6907
        %v7427 = vunpack.c.l.b16 %v6908
        %v7428 = vunpack.c.l.b16 %v6909
        %v7429 = vunpack.c.l.b16 %v6910
        %v7430 = vunpack.c.l.b16 %v6911
        %v7431 = vunpack.c.l.b16 %v6912
        %v7432 = vunpack.c.l.b16 %v6913
        %v7433 = vunpack.c.l.b16 %v6914
        %v7434 = vunpack.c.l.b16 %v6915
        %v7435 = vunpack.c.l.b16 %v6916
        %v7436 = vunpack.c.l.b16 %v6917
        %v7437 = vunpack.c.l.b16 %v6918
        %v7438 = vunpack.c.l.b16 %v6919
        %v7439 = vunpack.c.l.b16 %v6920
        %v7440 = vunpack.c.l.b16 %v6921
        %v7441 = vunpack.c.l.b16 %v6922
        %v7442 = vunpack.c.l.b16 %v6923
        %v7443 = vunpack.c.l.b16 %v6924
        %v7444 = vunpack.c.l.b16 %v6925
        %v7445 = vunpack.c.l.b16 %v6926
        %v7446 = vunpack.c.l.b16 %v6927
        %v7447 = vunpack.c.l.b16 %v6928
        %v7448 = vunpack.c.l.b16 %v6929
        %v7449 = vunpack.c.l.b16 %v6930
        %v7450 = vunpack.c.l.b16 %v6931
        %v7451 = vunpack.c.l.b16 %v6932
        %v7452 = vunpack.c.l.b16 %v6933
        %v7453 = vunpack.c.l.b16 %v6934
        %v7454 = vunpack.c.l.b16 %v6935
        %v7455 = vunpack.c.l.b16 %v6936
        %v7456 = vunpack.c.l.b16 %v6937
        %v7457 = vunpack.c.l.b16 %v6938
        %v7458 = vunpack.c.l.b16 %v6939
        %v7459 = vunpack.c.l.b16 %v6940
        %v7460 = vunpack.c.l.b16 %v6941
        %v7461 = vunpack.c.l.b16 %v6942
        %v7462 = vunpack.c.l.b16 %v6943
        %v7463 = vunpack.c.l.b16 %v6944
        %v7464 = vunpack.c.l.b16 %v6945
        %v7465 = vunpack.c.l.b16 %v6946
        %v7466 = vunpack.c.l.b16 %v6947
        %v7467 = vunpack.c.l.b16 %v6948
        %v7468 = vunpack.c.l.b16 %v6949
        %v7469 = vunpack.c.l.b16 %v6950
        %v7470 = vunpack.c.l.b16 %v6951
        %v7471 = vunpack.c.l.b16 %v6952
        %v7472 = vunpack.c.l.b16 %v6953
        %v7473 = vunpack.c.l.b16 %v6954
        %v7474 = vunpack.c.l.b16 %v6955
        %v7475 = vunpack.c.l.b16 %v6956
        %v7476 = vunpack.c.l.b16 %v6957
        %v7477 = vunpack.c.l.b16 %v6958
        %v7478 = vunpack.c.l.b16 %v6959
        %v7479 = vunpack.c.l.b16 %v6960
        %v7480 = vunpack.c.l.b16 %v6961
        %v7481 = vunpack.c.l.b16 %v6962
        %v7482 = vunpack.c.l.b16 %v6963
        %v7483 = vunpack.c.l.b16 %v6964
        %v7484 = vunpack.c.l.b16 %v6965
        %v7485 = vunpack.c.l.b16 %v6966
        %v7486 = vunpack.c.l.b16 %v6967
        %v7487 = vunpack.c.l.b16 %v6968
        %v7488 = vunpack.c.l.b16 %v6969
        %v7489 = vunpack.c.l.b16 %v6970
        %v7490 = vunpack.c.l.b16 %v6971
        %v7491 = vunpack.c.l.b16 %v6972
        %v7492 = vunpack.c.l.b16 %v6973
        %v7493 = vunpack.c.l.b16 %v6974
        %v7494 = vunpack.c.l.b16 %v6975
        %v7495 = vunpack.c.l.b16 %v6976
        %v7496 = vunpack.c.l.b16 %v6977
        %v7497 = vunpack.c.l.b16 %v6978
        %v7498 = vunpack.c.l.b16 %v6979
        %v7499 = vunpack.c.l.b16 %v6980
        %v7500 = vunpack.c.l.b16 %v6981
        %v7501 = vunpack.c.l.b16 %v6982
        %v7502 = vunpack.c.l.b16 %v6983
        %v7503 = vunpack.c.l.b16 %v6984
        %v7504 = vunpack.c.l.b16 %v6985
        %v7505 = vunpack.c.l.b16 %v6986
        %v7506 = vunpack.c.l.b16 %v6987
        %v7507 = vunpack.c.l.b16 %v6988
        %v7508 = vunpack.c.l.b16 %v6989
        %v7509 = vunpack.c.l.b16 %v6990
        %v7510 = vunpack.c.l.b16 %v6991
        %v7511 = vunpack.c.l.b16 %v6992
        %v7512 = vunpack.c.l.b16 %v6993
        %v7513 = vunpack.c.l.b16 %v6994
        %v7514 = vunpack.c.l.b16 %v6995
        %v7515 = vunpack.c.l.b16 %v6996
        %v7516 = vunpack.c.l.b16 %v6997
        %v7517 = vunpack.c.l.b16 %v6998
        %v7518 = vunpack.c.l.b16 %v6999
        %v7519 = vunpack.c.l.b16 %v7000
        %v7520 = vunpack.c.l.b16 %v7001
        %v7521 = vunpack.c.l.b16 %v7002
        %v7522 = vunpack.c.l.b16 %v7003
        %v7523 = vunpack.c.l.b16 %v7004
        %v7524 = vunpack.c.l.b16 %v7005
        %v7525 = vunpack.c.l.b16 %v7006
        %v7526 = vunpack.c.l.b16 %v7007
        %v7527 = vunpack.c.l.b16 %v7008
        %v7528 = vunpack.c.l.b16 %v7009
        %v7529 = vunpack.c.l.b16 %v7010
        %v7530 = vunpack.c.l.b16 %v7011
        %v7531 = vunpack.c.l.b16 %v7012
        %v7532 = vunpack.c.l.b16 %v7013
        %v7533 = vunpack.c.l.b16 %v7014
        %v7534 = vunpack.c.l.b16 %v7015
        %v7535 = vunpack.c.l.b16 %v7016
        %v7536 = vunpack.c.l.b16 %v7017
        %v7537 = vunpack.c.l.b16 %v7018
        %v7538 = vunpack.c.l.b16 %v7019
        %v7539 = vunpack.c.l.b16 %v7020
        %v7540 = vunpack.c.l.b16 %v7021
        %v7541 = vunpack.c.l.b16 %v7022
        %v7542 = vunpack.c.l.b16 %v7023
        %v7543 = vunpack.c.l.b16 %v7024
        %v7544 = vunpack.c.l.b16 %v7025
        %v7545 = vunpack.c.l.b16 %v7026
        %v7546 = vunpack.c.l.b16 %v7027
        %v7547 = vunpack.c.l.b16 %v7028
        %v7548 = vunpack.c.l.b16 %v7029
        %v7549 = vunpack.c.l.b16 %v7030
        %v7550 = vunpack.c.l.b16 %v7031
        %v7551 = vunpack.c.l.b16 %v7032
        %v7552 = vunpack.c.l.b16 %v7033
        %v7553 = vunpack.c.l.b16 %v7034
        %v7554 = vunpack.c.l.b16 %v7035
        %v7555 = vunpack.c.l.b16 %v7036
        %v7556 = vunpack.c.l.b16 %v7037
        %v7557 = vunpack.c.l.b16 %v7038
        %v7558 = vunpack.c.l.b16 %v7039
        %v7559 = vunpack.c.l.b16 %v7040
        %v7560 = vunpack.c.l.b16 %v7041
        %v7561 = vunpack.c.l.b16 %v7042
        %v7562 = vunpack.c.l.b16 %v7043
        %v7563 = vunpack.c.l.b16 %v7044
        %v7564 = vunpack.c.l.b16 %v7045
        %v7565 = vunpack.c.l.b16 %v7046
        %v7566 = vunpack.c.l.b16 %v7047
        %v7567 = vunpack.c.l.b16 %v7048
        %v7568 = vunpack.c.l.b16 %v7049
        %v7569 = vunpack.c.l.b16 %v7050
        %v7570 = vunpack.c.l.b16 %v7051
        %v7571 = vunpack.c.l.b16 %v7052
        %v7572 = vunpack.c.l.b16 %v7053
        %v7573 = vunpack.c.l.b16 %v7054
        %v7574 = vunpack.c.l.b16 %v7055
        %v7575 = vunpack.c.l.b16 %v7056
        %v7576 = vunpack.c.l.b16 %v7057
        %v7577 = vunpack.c.l.b16 %v7058
        %v7578 = vunpack.c.l.b16 %v7059
        %v7579 = vunpack.c.l.b16 %v7060
        %v7580 = vunpack.c.l.b16 %v7061
        %v7581 = vunpack.c.l.b16 %v7062
        %v7582 = vunpack.c.l.b16 %v7063
        %v7583 = vunpack.c.l.b16 %v7064
        %v7584 = vunpack.c.l.b16 %v7065
        %v7585 = vunpack.c.l.b16 %v7066
        %v7586 = vunpack.c.l.b16 %v7067
        %v7587 = vunpack.c.l.b16 %v7068
        %v7588 = vunpack.c.l.b16 %v7069
        %v7589 = vunpack.c.l.b16 %v7070
        %v7590 = vunpack.c.l.b16 %v7071
        %v7591 = vunpack.c.l.b16 %v7072
        %v7592 = vunpack.c.l.b16 %v7073
        %v7593 = vunpack.c.l.b16 %v7074
        %v7594 = vpack.c.b16 %v7339, %v7338
        %v7595 = vpack.c.b16 %v7341, %v7340
        %v7596 = vpack.c.b16 %v7343, %v7342
        %v7597 = vpack.c.b16 %v7345, %v7344
        %v7598 = vpack.c.b16 %v7347, %v7346
        %v7599 = vpack.c.b16 %v7349, %v7348
        %v7600 = vpack.c.b16 %v7351, %v7350
        %v7601 = vpack.c.b16 %v7353, %v7352
        %v7602 = vpack.c.b16 %v7355, %v7354
        %v7603 = vpack.c.b16 %v7357, %v7356
        %v7604 = vpack.c.b16 %v7359, %v7358
        %v7605 = vpack.c.b16 %v7361, %v7360
        %v7606 = vpack.c.b16 %v7363, %v7362
        %v7607 = vpack.c.b16 %v7365, %v7364
        %v7608 = vpack.c.b16 %v7367, %v7366
        %v7609 = vpack.c.b16 %v7369, %v7368
        %v7610 = vpack.c.b16 %v7371, %v7370
        %v7611 = vpack.c.b16 %v7373, %v7372
        %v7612 = vpack.c.b16 %v7375, %v7374
        %v7613 = vpack.c.b16 %v7377, %v7376
        %v7614 = vpack.c.b16 %v7379, %v7378
        %v7615 = vpack.c.b16 %v7381, %v7380
        %v7616 = vpack.c.b16 %v7383, %v7382
        %v7617 = vpack.c.b16 %v7385, %v7384
        %v7618 = vpack.c.b16 %v7387, %v7386
        %v7619 = vpack.c.b16 %v7389, %v7388
        %v7620 = vpack.c.b16 %v7391, %v7390
        %v7621 = vpack.c.b16 %v7393, %v7392
        %v7622 = vpack.c.b16 %v7395, %v7394
        %v7623 = vpack.c.b16 %v7397, %v7396
        %v7624 = vpack.c.b16 %v7399, %v7398
        %v7625 = vpack.c.b16 %v7401, %v7400
        %v7626 = vpack.c.b16 %v7403, %v7402
        %v7627 = vpack.c.b16 %v7405, %v7404
        %v7628 = vpack.c.b16 %v7407, %v7406
        %v7629 = vpack.c.b16 %v7409, %v7408
        %v7630 = vpack.c.b16 %v7411, %v7410
        %v7631 = vpack.c.b16 %v7413, %v7412
        %v7632 = vpack.c.b16 %v7415, %v7414
        %v7633 = vpack.c.b16 %v7417, %v7416
        %v7634 = vpack.c.b16 %v7419, %v7418
        %v7635 = vpack.c.b16 %v7421, %v7420
        %v7636 = vpack.c.b16 %v7423, %v7422
        %v7637 = vpack.c.b16 %v7425, %v7424
        %v7638 = vpack.c.b16 %v7427, %v7426
        %v7639 = vpack.c.b16 %v7429, %v7428
        %v7640 = vpack.c.b16 %v7431, %v7430
        %v7641 = vpack.c.b16 %v7433, %v7432
        %v7642 = vpack.c.b16 %v7435, %v7434
        %v7643 = vpack.c.b16 %v7437, %v7436
        %v7644 = vpack.c.b16 %v7439, %v7438
        %v7645 = vpack.c.b16 %v7441, %v7440
        %v7646 = vpack.c.b16 %v7443, %v7442
        %v7647 = vpack.c.b16 %v7445, %v7444
        %v7648 = vpack.c.b16 %v7447, %v7446
        %v7649 = vpack.c.b16 %v7449, %v7448
        %v7650 = vpack.c.b16 %v7451, %v7450
        %v7651 = vpack.c.b16 %v7453, %v7452
        %v7652 = vpack.c.b16 %v7455, %v7454
        %v7653 = vpack.c.b16 %v7457, %v7456
        %v7654 = vpack.c.b16 %v7459, %v7458
        %v7655 = vpack.c.b16 %v7461, %v7460
        %v7656 = vpack.c.b16 %v7463, %v7462
        %v7657 = vpack.c.b16 %v7465, %v7464
        %v7658 = vpack.c.b16 %v7467, %v7466
        %v7659 = vpack.c.b16 %v7469, %v7468
        %v7660 = vpack.c.b16 %v7471, %v7470
        %v7661 = vpack.c.b16 %v7473, %v7472
        %v7662 = vpack.c.b16 %v7475, %v7474
        %v7663 = vpack.c.b16 %v7477, %v7476
        %v7664 = vpack.c.b16 %v7479, %v7478
        %v7665 = vpack.c.b16 %v7481, %v7480
        %v7666 = vpack.c.b16 %v7483, %v7482
        %v7667 = vpack.c.b16 %v7485, %v7484
        %v7668 = vpack.c.b16 %v7487, %v7486
        %v7669 = vpack.c.b16 %v7489, %v7488
        %v7670 = vpack.c.b16 %v7491, %v7490
        %v7671 = vpack.c.b16 %v7493, %v7492
        %v7672 = vpack.c.b16 %v7495, %v7494
        %v7673 = vpack.c.b16 %v7497, %v7496
        %v7674 = vpack.c.b16 %v7499, %v7498
        %v7675 = vpack.c.b16 %v7501, %v7500
        %v7676 = vpack.c.b16 %v7503, %v7502
        %v7677 = vpack.c.b16 %v7505, %v7504
        %v7678 = vpack.c.b16 %v7507, %v7506
        %v7679 = vpack.c.b16 %v7509, %v7508
        %v7680 = vpack.c.b16 %v7511, %v7510
        %v7681 = vpack.c.b16 %v7513, %v7512
        %v7682 = vpack.c.b16 %v7515, %v7514
        %v7683 = vpack.c.b16 %v7517, %v7516
        %v7684 = vpack.c.b16 %v7519, %v7518
        %v7685 = vpack.c.b16 %v7521, %v7520
        %v7686 = vpack.c.b16 %v7523, %v7522
        %v7687 = vpack.c.b16 %v7525, %v7524
        %v7688 = vpack.c.b16 %v7527, %v7526
        %v7689 = vpack.c.b16 %v7529, %v7528
        %v7690 = vpack.c.b16 %v7531, %v7530
        %v7691 = vpack.c.b16 %v7533, %v7532
        %v7692 = vpack.c.b16 %v7535, %v7534
        %v7693 = vpack.c.b16 %v7537, %v7536
        %v7694 = vpack.c.b16 %v7539, %v7538
        %v7695 = vpack.c.b16 %v7541, %v7540
        %v7696 = vpack.c.b16 %v7543, %v7542
        %v7697 = vpack.c.b16 %v7545, %v7544
        %v7698 = vpack.c.b16 %v7547, %v7546
        %v7699 = vpack.c.b16 %v7549, %v7548
        %v7700 = vpack.c.b16 %v7551, %v7550
        %v7701 = vpack.c.b16 %v7553, %v7552
        %v7702 = vpack.c.b16 %v7555, %v7554
        %v7703 = vpack.c.b16 %v7557, %v7556
        %v7704 = vpack.c.b16 %v7559, %v7558
        %v7705 = vpack.c.b16 %v7561, %v7560
        %v7706 = vpack.c.b16 %v7563, %v7562
        %v7707 = vpack.c.b16 %v7565, %v7564
        %v7708 = vpack.c.b16 %v7567, %v7566
        %v7709 = vpack.c.b16 %v7569, %v7568
        %v7710 = vpack.c.b16 %v7571, %v7570
        %v7711 = vpack.c.b16 %v7573, %v7572
        %v7712 = vpack.c.b16 %v7575, %v7574
        %v7713 = vpack.c.b16 %v7577, %v7576
        %v7714 = vpack.c.b16 %v7579, %v7578
        %v7715 = vpack.c.b16 %v7581, %v7580
        %v7716 = vpack.c.b16 %v7583, %v7582
        %v7717 = vpack.c.b16 %v7585, %v7584
        %v7718 = vpack.c.b16 %v7587, %v7586
        %v7719 = vpack.c.b16 %v7589, %v7588
        %v7720 = vpack.c.b16 %v7591, %v7590
        %v7721 = vpack.c.b16 %v7593, %v7592
        %7850 = vmatprep.subr.bf16.mxu0 0
        %7851 = vmatpush1.bf16.msra.mxu0 %v7594
        %7852 = vmatprep.subr.bf16.mxu0 0
        %7853 = vmatpush1.bf16.msra.mxu0 %v7595
        %7854 = vmatprep.subr.bf16.mxu0 0
        %7855 = vmatpush1.bf16.msra.mxu0 %v7596
        %7856 = vmatprep.subr.bf16.mxu0 0
        %7857 = vmatpush1.bf16.msra.mxu0 %v7597
        %7858 = vmatprep.subr.bf16.mxu0 0
        %7859 = vmatpush1.bf16.msra.mxu0 %v7598
        %7860 = vmatprep.subr.bf16.mxu0 0
        %7861 = vmatpush1.bf16.msra.mxu0 %v7599
        %7862 = vmatprep.subr.bf16.mxu0 0
        %7863 = vmatpush1.bf16.msra.mxu0 %v7600
        %7864 = vmatprep.subr.bf16.mxu0 0
        %7865 = vmatpush1.bf16.msra.mxu0 %v7601
        %7866 = vmatprep.subr.bf16.mxu0 0
        %7867 = vmatpush1.bf16.msra.mxu0 %v7602
        %7868 = vmatprep.subr.bf16.mxu0 0
        %7869 = vmatpush1.bf16.msra.mxu0 %v7603
        %7870 = vmatprep.subr.bf16.mxu0 0
        %7871 = vmatpush1.bf16.msra.mxu0 %v7604
        %7872 = vmatprep.subr.bf16.mxu0 0
        %7873 = vmatpush1.bf16.msra.mxu0 %v7605
        %7874 = vmatprep.subr.bf16.mxu0 0
        %7875 = vmatpush1.bf16.msra.mxu0 %v7606
        %7876 = vmatprep.subr.bf16.mxu0 0
        %7877 = vmatpush1.bf16.msra.mxu0 %v7607
        %7878 = vmatprep.subr.bf16.mxu0 0
        %7879 = vmatpush1.bf16.msra.mxu0 %v7608
        %7880 = vmatprep.subr.bf16.mxu0 0
        %7881 = vmatpush1.bf16.msra.mxu0 %v7609
        %7882 = vmatprep.mubr.bf16.mxu0 %v6804
        %7883 = vmatmul.mubr.bf16.gmra.mrb[0].mxu0 %v6803
        %v7884 = vpop.f32.mrb[0].mxu0
        %v7885 = vadd.f32 %v7080, %v7884
        %v7886 = vpop.f32.mrb[0].mxu0
        %v7887 = vpop.f32.mrb[0].mxu0
        %v7888 = vpop.f32.mrb[0].mxu0
        %7889 = vdwg.mxu0
        %7890 = vmatprep.subr.bf16.mxu0 0
        %7891 = vmatpush1.bf16.msra.mxu0 %v7610
        %7892 = vmatprep.subr.bf16.mxu0 0
        %7893 = vmatpush1.bf16.msra.mxu0 %v7611
        %7894 = vmatprep.subr.bf16.mxu0 0
        %7895 = vmatpush1.bf16.msra.mxu0 %v7612
        %7896 = vmatprep.subr.bf16.mxu0 0
        %7897 = vmatpush1.bf16.msra.mxu0 %v7613
        %7898 = vmatprep.subr.bf16.mxu0 0
        %7899 = vmatpush1.bf16.msra.mxu0 %v7614
        %7900 = vmatprep.subr.bf16.mxu0 0
        %7901 = vmatpush1.bf16.msra.mxu0 %v7615
        %7902 = vmatprep.subr.bf16.mxu0 0
        %7903 = vmatpush1.bf16.msra.mxu0 %v7616
        %7904 = vmatprep.subr.bf16.mxu0 0
        %7905 = vmatpush1.bf16.msra.mxu0 %v7617
        %7906 = vmatprep.subr.bf16.mxu0 0
        %7907 = vmatpush1.bf16.msra.mxu0 %v7618
        %7908 = vmatprep.subr.bf16.mxu0 0
        %7909 = vmatpush1.bf16.msra.mxu0 %v7619
        %7910 = vmatprep.subr.bf16.mxu0 0
        %7911 = vmatpush1.bf16.msra.mxu0 %v7620
        %7912 = vmatprep.subr.bf16.mxu0 0
        %7913 = vmatpush1.bf16.msra.mxu0 %v7621
        %7914 = vmatprep.subr.bf16.mxu0 0
        %7915 = vmatpush1.bf16.msra.mxu0 %v7622
        %7916 = vmatprep.subr.bf16.mxu0 0
        %7917 = vmatpush1.bf16.msra.mxu0 %v7623
        %7918 = vmatprep.subr.bf16.mxu0 0
        %7919 = vmatpush1.bf16.msra.mxu0 %v7624
        %7920 = vmatprep.subr.bf16.mxu0 0
        %7921 = vmatpush1.bf16.msra.mxu0 %v7625
        %7922 = vmatprep.mubr.bf16.mxu0 %v6806
        %7923 = vmatmul.mubr.bf16.gmra.mrb[0].mxu0 %v6805
        %v7924 = vpop.f32.mrb[0].mxu0
        %v7925 = vadd.f32 %v7885, %v7924
        %v7926 = vpop.f32.mrb[0].mxu0
        %v7927 = vpop.f32.mrb[0].mxu0
        %v7928 = vpop.f32.mrb[0].mxu0
        %7929 = vdwg.mxu0
        %7930 = vmatprep.subr.bf16.mxu0 0
        %7931 = vmatpush1.bf16.msra.mxu0 %v7626
        %7932 = vmatprep.subr.bf16.mxu0 0
        %7933 = vmatpush1.bf16.msra.mxu0 %v7627
        %7934 = vmatprep.subr.bf16.mxu0 0
        %7935 = vmatpush1.bf16.msra.mxu0 %v7628
        %7936 = vmatprep.subr.bf16.mxu0 0
        %7937 = vmatpush1.bf16.msra.mxu0 %v7629
        %7938 = vmatprep.subr.bf16.mxu0 0
        %7939 = vmatpush1.bf16.msra.mxu0 %v7630
        %7940 = vmatprep.subr.bf16.mxu0 0
        %7941 = vmatpush1.bf16.msra.mxu0 %v7631
        %7942 = vmatprep.subr.bf16.mxu0 0
        %7943 = vmatpush1.bf16.msra.mxu0 %v7632
        %7944 = vmatprep.subr.bf16.mxu0 0
        %7945 = vmatpush1.bf16.msra.mxu0 %v7633
        %7946 = vmatprep.subr.bf16.mxu0 0
        %7947 = vmatpush1.bf16.msra.mxu0 %v7634
        %7948 = vmatprep.subr.bf16.mxu0 0
        %7949 = vmatpush1.bf16.msra.mxu0 %v7635
        %7950 = vmatprep.subr.bf16.mxu0 0
        %7951 = vmatpush1.bf16.msra.mxu0 %v7636
        %7952 = vmatprep.subr.bf16.mxu0 0
        %7953 = vmatpush1.bf16.msra.mxu0 %v7637
        %7954 = vmatprep.subr.bf16.mxu0 0
        %7955 = vmatpush1.bf16.msra.mxu0 %v7638
        %7956 = vmatprep.subr.bf16.mxu0 0
        %7957 = vmatpush1.bf16.msra.mxu0 %v7639
        %7958 = vmatprep.subr.bf16.mxu0 0
        %7959 = vmatpush1.bf16.msra.mxu0 %v7640
        %7960 = vmatprep.subr.bf16.mxu0 0
        %7961 = vmatpush1.bf16.msra.mxu0 %v7641
        %7962 = vmatprep.mubr.bf16.mxu0 %v6808
        %7963 = vmatmul.mubr.bf16.gmra.mrb[0].mxu0 %v6807
        %v7964 = vpop.f32.mrb[0].mxu0
        %v7965 = vadd.f32 %v7925, %v7964
        %v7966 = vpop.f32.mrb[0].mxu0
        %v7967 = vpop.f32.mrb[0].mxu0
        %v7968 = vpop.f32.mrb[0].mxu0
        %7969 = vdwg.mxu0
        %7970 = vmatprep.subr.bf16.mxu0 0
        %7971 = vmatpush1.bf16.msra.mxu0 %v7642
        %7972 = vmatprep.subr.bf16.mxu0 0
        %7973 = vmatpush1.bf16.msra.mxu0 %v7643
        %7974 = vmatprep.subr.bf16.mxu0 0
        %7975 = vmatpush1.bf16.msra.mxu0 %v7644
        %7976 = vmatprep.subr.bf16.mxu0 0
        %7977 = vmatpush1.bf16.msra.mxu0 %v7645
        %7978 = vmatprep.subr.bf16.mxu0 0
        %7979 = vmatpush1.bf16.msra.mxu0 %v7646
        %7980 = vmatprep.subr.bf16.mxu0 0
        %7981 = vmatpush1.bf16.msra.mxu0 %v7647
        %7982 = vmatprep.subr.bf16.mxu0 0
        %7983 = vmatpush1.bf16.msra.mxu0 %v7648
        %7984 = vmatprep.subr.bf16.mxu0 0
        %7985 = vmatpush1.bf16.msra.mxu0 %v7649
        %7986 = vmatprep.subr.bf16.mxu0 0
        %7987 = vmatpush1.bf16.msra.mxu0 %v7650
        %7988 = vmatprep.subr.bf16.mxu0 0
        %7989 = vmatpush1.bf16.msra.mxu0 %v7651
        %7990 = vmatprep.subr.bf16.mxu0 0
        %7991 = vmatpush1.bf16.msra.mxu0 %v7652
        %7992 = vmatprep.subr.bf16.mxu0 0
        %7993 = vmatpush1.bf16.msra.mxu0 %v7653
        %7994 = vmatprep.subr.bf16.mxu0 0
        %7995 = vmatpush1.bf16.msra.mxu0 %v7654
        %7996 = vmatprep.subr.bf16.mxu0 0
        %7997 = vmatpush1.bf16.msra.mxu0 %v7655
        %7998 = vmatprep.subr.bf16.mxu0 0
        %7999 = vmatpush1.bf16.msra.mxu0 %v7656
        %8000 = vmatprep.subr.bf16.mxu0 0
        %8001 = vmatpush1.bf16.msra.mxu0 %v7657
        %8002 = vmatprep.mubr.bf16.mxu0 %v6810
        %8003 = vmatmul.mubr.bf16.gmra.mrb[0].mxu0 %v6809
        %v8004 = vpop.f32.mrb[0].mxu0
        %v8005 = vadd.f32 %v7965, %v8004
        %v8006 = vpop.f32.mrb[0].mxu0
        %v8007 = vpop.f32.mrb[0].mxu0
        %v8008 = vpop.f32.mrb[0].mxu0
        %8009 = vdwg.mxu0
        %8010 = vmatprep.subr.bf16.mxu0 0
        %8011 = vmatpush1.bf16.msra.mxu0 %v7658
        %8012 = vmatprep.subr.bf16.mxu0 0
        %8013 = vmatpush1.bf16.msra.mxu0 %v7659
        %8014 = vmatprep.subr.bf16.mxu0 0
        %8015 = vmatpush1.bf16.msra.mxu0 %v7660
        %8016 = vmatprep.subr.bf16.mxu0 0
        %8017 = vmatpush1.bf16.msra.mxu0 %v7661
        %8018 = vmatprep.subr.bf16.mxu0 0
        %8019 = vmatpush1.bf16.msra.mxu0 %v7662
        %8020 = vmatprep.subr.bf16.mxu0 0
        %8021 = vmatpush1.bf16.msra.mxu0 %v7663
        %8022 = vmatprep.subr.bf16.mxu0 0
        %8023 = vmatpush1.bf16.msra.mxu0 %v7664
        %8024 = vmatprep.subr.bf16.mxu0 0
        %8025 = vmatpush1.bf16.msra.mxu0 %v7665
        %8026 = vmatprep.subr.bf16.mxu0 0
        %8027 = vmatpush1.bf16.msra.mxu0 %v7666
        %8028 = vmatprep.subr.bf16.mxu0 0
        %8029 = vmatpush1.bf16.msra.mxu0 %v7667
        %8030 = vmatprep.subr.bf16.mxu0 0
        %8031 = vmatpush1.bf16.msra.mxu0 %v7668
        %8032 = vmatprep.subr.bf16.mxu0 0
        %8033 = vmatpush1.bf16.msra.mxu0 %v7669
        %8034 = vmatprep.subr.bf16.mxu0 0
        %8035 = vmatpush1.bf16.msra.mxu0 %v7670
        %8036 = vmatprep.subr.bf16.mxu0 0
        %8037 = vmatpush1.bf16.msra.mxu0 %v7671
        %8038 = vmatprep.subr.bf16.mxu0 0
        %8039 = vmatpush1.bf16.msra.mxu0 %v7672
        %8040 = vmatprep.subr.bf16.mxu0 0
        %8041 = vmatpush1.bf16.msra.mxu0 %v7673
        %8042 = vmatprep.mubr.bf16.mxu0 %v6812
        %8043 = vmatmul.mubr.bf16.gmra.mrb[0].mxu0 %v6811
        %v8044 = vpop.f32.mrb[0].mxu0
        %v8045 = vadd.f32 %v8005, %v8044
        %v8046 = vpop.f32.mrb[0].mxu0
        %v8047 = vpop.f32.mrb[0].mxu0
        %v8048 = vpop.f32.mrb[0].mxu0
        %8049 = vdwg.mxu0
        %8050 = vmatprep.subr.bf16.mxu0 0
        %8051 = vmatpush1.bf16.msra.mxu0 %v7674
        %8052 = vmatprep.subr.bf16.mxu0 0
        %8053 = vmatpush1.bf16.msra.mxu0 %v7675
        %8054 = vmatprep.subr.bf16.mxu0 0
        %8055 = vmatpush1.bf16.msra.mxu0 %v7676
        %8056 = vmatprep.subr.bf16.mxu0 0
        %8057 = vmatpush1.bf16.msra.mxu0 %v7677
        %8058 = vmatprep.subr.bf16.mxu0 0
        %8059 = vmatpush1.bf16.msra.mxu0 %v7678
        %8060 = vmatprep.subr.bf16.mxu0 0
        %8061 = vmatpush1.bf16.msra.mxu0 %v7679
        %8062 = vmatprep.subr.bf16.mxu0 0
        %8063 = vmatpush1.bf16.msra.mxu0 %v7680
        %8064 = vmatprep.subr.bf16.mxu0 0
        %8065 = vmatpush1.bf16.msra.mxu0 %v7681
        %8066 = vmatprep.subr.bf16.mxu0 0
        %8067 = vmatpush1.bf16.msra.mxu0 %v7682
        %8068 = vmatprep.subr.bf16.mxu0 0
        %8069 = vmatpush1.bf16.msra.mxu0 %v7683
        %8070 = vmatprep.subr.bf16.mxu0 0
        %8071 = vmatpush1.bf16.msra.mxu0 %v7684
        %8072 = vmatprep.subr.bf16.mxu0 0
        %8073 = vmatpush1.bf16.msra.mxu0 %v7685
        %8074 = vmatprep.subr.bf16.mxu0 0
        %8075 = vmatpush1.bf16.msra.mxu0 %v7686
        %8076 = vmatprep.subr.bf16.mxu0 0
        %8077 = vmatpush1.bf16.msra.mxu0 %v7687
        %8078 = vmatprep.subr.bf16.mxu0 0
        %8079 = vmatpush1.bf16.msra.mxu0 %v7688
        %8080 = vmatprep.subr.bf16.mxu0 0
        %8081 = vmatpush1.bf16.msra.mxu0 %v7689
        %8082 = vmatprep.mubr.bf16.mxu0 %v6814
        %8083 = vmatmul.mubr.bf16.gmra.mrb[0].mxu0 %v6813
        %v8084 = vpop.f32.mrb[0].mxu0
        %v8085 = vadd.f32 %v8045, %v8084
        %v8086 = vpop.f32.mrb[0].mxu0
        %v8087 = vpop.f32.mrb[0].mxu0
        %v8088 = vpop.f32.mrb[0].mxu0
        %8089 = vdwg.mxu0
        %8090 = vmatprep.subr.bf16.mxu0 0
        %8091 = vmatpush1.bf16.msra.mxu0 %v7690
        %8092 = vmatprep.subr.bf16.mxu0 0
        %8093 = vmatpush1.bf16.msra.mxu0 %v7691
        %8094 = vmatprep.subr.bf16.mxu0 0
        %8095 = vmatpush1.bf16.msra.mxu0 %v7692
        %8096 = vmatprep.subr.bf16.mxu0 0
        %8097 = vmatpush1.bf16.msra.mxu0 %v7693
        %8098 = vmatprep.subr.bf16.mxu0 0
        %8099 = vmatpush1.bf16.msra.mxu0 %v7694
        %8100 = vmatprep.subr.bf16.mxu0 0
        %8101 = vmatpush1.bf16.msra.mxu0 %v7695
        %8102 = vmatprep.subr.bf16.mxu0 0
        %8103 = vmatpush1.bf16.msra.mxu0 %v7696
        %8104 = vmatprep.subr.bf16.mxu0 0
        %8105 = vmatpush1.bf16.msra.mxu0 %v7697
        %8106 = vmatprep.subr.bf16.mxu0 0
        %8107 = vmatpush1.bf16.msra.mxu0 %v7698
        %8108 = vmatprep.subr.bf16.mxu0 0
        %8109 = vmatpush1.bf16.msra.mxu0 %v7699
        %8110 = vmatprep.subr.bf16.mxu0 0
        %8111 = vmatpush1.bf16.msra.mxu0 %v7700
        %8112 = vmatprep.subr.bf16.mxu0 0
        %8113 = vmatpush1.bf16.msra.mxu0 %v7701
        %8114 = vmatprep.subr.bf16.mxu0 0
        %8115 = vmatpush1.bf16.msra.mxu0 %v7702
        %8116 = vmatprep.subr.bf16.mxu0 0
        %8117 = vmatpush1.bf16.msra.mxu0 %v7703
        %8118 = vmatprep.subr.bf16.mxu0 0
        %8119 = vmatpush1.bf16.msra.mxu0 %v7704
        %8120 = vmatprep.subr.bf16.mxu0 0
        %8121 = vmatpush1.bf16.msra.mxu0 %v7705
        %8122 = vmatprep.mubr.bf16.mxu0 %v6816
        %8123 = vmatmul.mubr.bf16.gmra.mrb[0].mxu0 %v6815
        %v8124 = vpop.f32.mrb[0].mxu0
        %v8125 = vadd.f32 %v8085, %v8124
        %v8126 = vpop.f32.mrb[0].mxu0
        %v8127 = vpop.f32.mrb[0].mxu0
        %v8128 = vpop.f32.mrb[0].mxu0
        %8129 = vdwg.mxu0
        %8130 = vmatprep.subr.bf16.mxu0 0
        %8131 = vmatpush1.bf16.msra.mxu0 %v7706
        %8132 = vmatprep.subr.bf16.mxu0 0
        %8133 = vmatpush1.bf16.msra.mxu0 %v7707
        %8134 = vmatprep.subr.bf16.mxu0 0
        %8135 = vmatpush1.bf16.msra.mxu0 %v7708
        %8136 = vmatprep.subr.bf16.mxu0 0
        %8137 = vmatpush1.bf16.msra.mxu0 %v7709
        %8138 = vmatprep.subr.bf16.mxu0 0
        %8139 = vmatpush1.bf16.msra.mxu0 %v7710
        %8140 = vmatprep.subr.bf16.mxu0 0
        %8141 = vmatpush1.bf16.msra.mxu0 %v7711
        %8142 = vmatprep.subr.bf16.mxu0 0
        %8143 = vmatpush1.bf16.msra.mxu0 %v7712
        %8144 = vmatprep.subr.bf16.mxu0 0
        %8145 = vmatpush1.bf16.msra.mxu0 %v7713
        %8146 = vmatprep.subr.bf16.mxu0 0
        %8147 = vmatpush1.bf16.msra.mxu0 %v7714
        %8148 = vmatprep.subr.bf16.mxu0 0
        %8149 = vmatpush1.bf16.msra.mxu0 %v7715
        %8150 = vmatprep.subr.bf16.mxu0 0
        %8151 = vmatpush1.bf16.msra.mxu0 %v7716
        %8152 = vmatprep.subr.bf16.mxu0 0
        %8153 = vmatpush1.bf16.msra.mxu0 %v7717
        %8154 = vmatprep.subr.bf16.mxu0 0
        %8155 = vmatpush1.bf16.msra.mxu0 %v7718
        %8156 = vmatprep.subr.bf16.mxu0 0
        %8157 = vmatpush1.bf16.msra.mxu0 %v7719
        %8158 = vmatprep.subr.bf16.mxu0 0
        %8159 = vmatpush1.bf16.msra.mxu0 %v7720
        %8160 = vmatprep.subr.bf16.mxu0 0
        %8161 = vmatpush1.bf16.msra.mxu0 %v7721
        %8162 = vmatprep.mubr.bf16.mxu0 %v6818
        %8163 = vmatmul.mubr.bf16.gmra.mrb[0].mxu0 %v6817
        %v8164 = vpop.f32.mrb[0].mxu0
        %v8165 = vadd.f32 %v8125, %v8164
        %v8166 = vpop.f32.mrb[0].mxu0
        %v8167 = vpop.f32.mrb[0].mxu0
        %v8168 = vpop.f32.mrb[0].mxu0
        %8169 = vdwg.mxu0
        %v8170 = vadd.f32 %v5605, %v8165
        %v8171 = vld [vmem:[%s53] sm:$0x1]
        %v8172 = vld [vmem:[%s55] sm:$0x1]
        %8173 = vadd.xlane.f32.xlu0 %v8170
        %v8174 = vpop.xlane.xlu0 %8173
        %v8175 = vmul.f32 %v8174, %v2118
        %v8176 = vsub.f32 %v8170, %v8175
        %v8177 = vmul.f32 %v8176, %v8176
        %8178 = vadd.xlane.f32.xlu0 %v8177
        %v8179 = vpop.xlane.xlu0 %8178
        %v8180 = vmul.f32 %v8179, %v2118
        %v8181 = vadd.f32 %v8180, 1e-05
        %v8182 = vrsqrt.pop %v8181
        %v8183 = vmul.f32 %v8176, %v8182
        %v8185 = vlaneseq
        %v8186 = vshrl.u32 %v8185, 7
        %v8187 = vsub.s32 0, %v8186
        %v8188 = vrot.slane %v8171, %v8187
        %v8190 = vmul.f32 %v8183, %v8188
        %v8192 = vlaneseq
        %v8193 = vshrl.u32 %v8192, 7
        %v8194 = vsub.s32 0, %v8193
        %v8195 = vrot.slane %v8172, %v8194
        %v8197 = vadd.f32 %v8190, %v8195
        %v8198 = vpack.c.bf16 %v8197, %v8197
        %v8199 = vld [vmem:[#allocation31] sm:$0xf]
        %v8200 = vld [vmem:[#allocation31 + $0x4] sm:$0xf]
        %v8201 = vld [vmem:[#allocation31 + $0x8] sm:$0xf]
        %v8202 = vld [vmem:[#allocation31 + $0xc] sm:$0xf]
        %v8203 = vld [vmem:[#allocation31 + $0x10] sm:$0xf]
        %v8204 = vld [vmem:[#allocation31 + $0x14] sm:$0xf]
        %v8205 = vld [vmem:[#allocation31 + $0x18] sm:$0xf]
        %v8206 = vld [vmem:[#allocation31 + $0x1c] sm:$0xf]
        %v8207 = vld [vmem:[#allocation31 + $0x20] sm:$0xf]
        %v8208 = vld [vmem:[#allocation31 + $0x24] sm:$0xf]
        %v8209 = vld [vmem:[#allocation31 + $0x28] sm:$0xf]
        %v8210 = vld [vmem:[#allocation31 + $0x2c] sm:$0xf]
        %v8211 = vld [vmem:[#allocation31 + $0x30] sm:$0xf]
        %v8212 = vld [vmem:[#allocation31 + $0x34] sm:$0xf]
        %v8213 = vld [vmem:[#allocation31 + $0x38] sm:$0xf]
        %v8214 = vld [vmem:[#allocation31 + $0x3c] sm:$0xf]
        %v8215 = vld [vmem:[#allocation32] sm:$0x1]
        %v8217 = vlaneseq
        %v8218 = vshrl.u32 %v8217, 7
        %v8219 = vsub.s32 0, %v8218
        %v8220 = vrot.slane %v8215, %v8219
        %v8238 = vunpack.c.l.b16 %v8199
        %v8239 = vunpack.c.l.b16 %v8200
        %v8240 = vunpack.c.l.b16 %v8201
        %v8241 = vunpack.c.l.b16 %v8202
        %v8242 = vunpack.c.l.b16 %v8203
        %v8243 = vunpack.c.l.b16 %v8204
        %v8244 = vunpack.c.l.b16 %v8205
        %v8245 = vunpack.c.l.b16 %v8206
        %v8246 = vunpack.c.l.b16 %v8207
        %v8247 = vunpack.c.l.b16 %v8208
        %v8248 = vunpack.c.l.b16 %v8209
        %v8249 = vunpack.c.l.b16 %v8210
        %v8250 = vunpack.c.l.b16 %v8211
        %v8251 = vunpack.c.l.b16 %v8212
        %v8252 = vunpack.c.l.b16 %v8213
        %v8253 = vunpack.c.l.b16 %v8214
        %v8254 = vpack.c.b16 %v8239, %v8238
        %v8255 = vpack.c.b16 %v8241, %v8240
        %v8256 = vpack.c.b16 %v8243, %v8242
        %v8257 = vpack.c.b16 %v8245, %v8244
        %v8258 = vpack.c.b16 %v8247, %v8246
        %v8259 = vpack.c.b16 %v8249, %v8248
        %v8260 = vpack.c.b16 %v8251, %v8250
        %v8261 = vpack.c.b16 %v8253, %v8252
        %8270 = vmatprep.subr.bf16.mxu0 0
        %8271 = vmatpush1.bf16.msra.mxu0 %v8254
        %8272 = vmatprep.subr.bf16.mxu0 0
        %8273 = vmatpush1.bf16.msra.mxu0 %v8255
        %8274 = vmatprep.subr.bf16.mxu0 0
        %8275 = vmatpush1.bf16.msra.mxu0 %v8256
        %8276 = vmatprep.subr.bf16.mxu0 0
        %8277 = vmatpush1.bf16.msra.mxu0 %v8257
        %8278 = vmatprep.subr.bf16.mxu0 0
        %8279 = vmatpush1.bf16.msra.mxu0 %v8258
        %8280 = vmatprep.subr.bf16.mxu0 0
        %8281 = vmatpush1.bf16.msra.mxu0 %v8259
        %8282 = vmatprep.subr.bf16.mxu0 0
        %8283 = vmatpush1.bf16.msra.mxu0 %v8260
        %8284 = vmatprep.subr.bf16.mxu0 0
        %8285 = vmatpush1.bf16.msra.mxu0 %v8261
        %8286 = vmatprep.subr.bf16.mxu0 0
        %8287 = vmatpush1.bf16.msra.mxu0 0
        %8288 = vmatprep.subr.bf16.mxu0 0
        %8289 = vmatpush1.bf16.msra.mxu0 0
        %8290 = vmatprep.subr.bf16.mxu0 0
        %8291 = vmatpush1.bf16.msra.mxu0 0
        %8292 = vmatprep.subr.bf16.mxu0 0
        %8293 = vmatpush1.bf16.msra.mxu0 0
        %8294 = vmatprep.subr.bf16.mxu0 0
        %8295 = vmatpush1.bf16.msra.mxu0 0
        %8296 = vmatprep.subr.bf16.mxu0 0
        %8297 = vmatpush1.bf16.msra.mxu0 0
        %8298 = vmatprep.subr.bf16.mxu0 0
        %8299 = vmatpush1.bf16.msra.mxu0 0
        %8300 = vmatprep.subr.bf16.mxu0 0
        %8301 = vmatpush1.bf16.msra.mxu0 0
        %8302 = vmatprep.mubr.bf16.mxu0 0
        %8303 = vmatmul.mubr.bf16.gmra.mrb[0].mxu0 %v8198
        %v8304 = vpop.f32.mrb[0].mxu0
        %v8305 = vadd.f32 %v8220, %v8304
        %v8306 = vpop.f32.mrb[0].mxu0
        %v8307 = vpop.f32.mrb[0].mxu0
        %v8308 = vpop.f32.mrb[0].mxu0
        %8309 = vdwg.mxu0
        %8310 = vst [vmem:[%s1199] sm:$0xff] %v8305
        %s8311 = sand.u32 %s731, 1
        %s8312 = scalar_lea.sflag [#allocation4], %s8311
        %s8313 = sand.u32 %s731, 1
        %s8314 = smul.addr %s8313, 8
        %s8315 = scalar_lea.vmem [#allocation34], %s8314
        // Predicated region
        $region221: #{base_t1_forward.1} parent=139 // pred_check
          %p8316 = pneg %p741
        $region222: #{base_t1_forward.1} parent=139 // pred_check_branch
          %8318 = sbr.rel (%p8316) target = $region224
        $region223: #{base_t1_forward.1} parent=139 // pred_region
          %s8320 = ssub.s32 128, 128
          %8321 = vsyncadd %s8312, %s8320
          %s8322 = smul.addr %s88, 128
          %s8323 = scalar_lea.hbm %s61, %s8322
          %s8325 = sshll.u32 %s8315, 4
          %s8326 = int_to_ptr.vmem [resolvable:$true] %s8325
          %8328 = dma.vmem_to_hbm [thread:$0]  %s8326, 128, %s8323, %s8312
        $region224: #{base_t1_forward.1} parent=139 // pred_fallthru
          _
      $region140: #{base_t1_forward.1} parent=5 // pred_fallthru
        _
      %p8329 = scmp.le.s32.totalorder 2, %s83
      // Predicated region
      $region225: #{base_t1_forward.1} parent=5 // pred_check
        %p8330 = pneg %p8329
      $region226: #{base_t1_forward.1} parent=5 // pred_check_branch
        %8332 = sbr.rel (%p8330) target = $region228
      $region227: #{base_t1_forward.1} parent=5 // pred_region
        %s8333 = ssub.s32 %s83, 2
        // Predicated region
        $region229: #{base_t1_forward.1} parent=227 // pred_check
          %p8334 = pneg %p747
        $region230: #{base_t1_forward.1} parent=227 // pred_check_branch
          %8336 = sbr.rel (%p8334) target = $region232
        $region231: #{base_t1_forward.1} parent=227 // pred_region
          %s8337 = sand.u32 %s732, 1
          %s8338 = scalar_lea.sflag [#allocation4], %s8337
          %s8339 = sand.u32 %s732, 1
          %s8340 = smul.addr %s8339, 8
          %s8341 = scalar_lea.vmem [#allocation34], %s8340
          %8342 = dma.done %s8338, 128
        $region232: #{base_t1_forward.1} parent=227 // pred_fallthru
          _
      $region228: #{base_t1_forward.1} parent=5 // pred_fallthru
        _
    $region6: #{base_t1_forward.1} parent=1 // loop_footer
      %s87 = sadd.s32 1, %s83
    $region7: #{base_t1_forward.1} parent=1 // loop_footer_branch
      %82 = sbr.rel target = $region3
    $region8: #{base_t1_forward.1} parent=1 // loop_exit
      _
    %8343 = vsyncpa [#allocation3], 1
    %s8344 = scalar_lea.sflag [#allocation3], 1
    %8345 = vsyncpa %s8344, 1
    %8346 = vsyncpa [#allocation6], 1
    %8347 = vsyncpa [#allocation9], 1
    %8348 = vsyncpa [#allocation12], 1
    %8349 = vsyncpa [#allocation15], 1
    %8350 = vsyncpa [#allocation18], 1
    %8351 = vsyncpa [#allocation21], 1
    %8352 = vsyncpa [#allocation24], 1
    %8353 = vsyncpa [#allocation27], 1
    %8354 = vsyncpa [#allocation30], 1
    %8355 = vsyncpa [#allocation33], 1
    %8356 = vsyncpa [#allocation4], 1
    %s8357 = scalar_lea.sflag [#allocation4], 1
    %8358 = vsyncpa %s8357, 1

</llo_original>
